<compile_context>
chip_gen: v7x
topology: tpu7x:2x2x1
jax: 0.10.0
libtpu: 0.0.40
codegen_flags: <defaults>
</compile_context>

<pallas_src>
import functools

import jax
import jax.numpy as jnp
from jax.experimental import pallas as pl
from jax.experimental.pallas import tpu as pltpu


_BN_EPS = 1e-5
_VMEM_LIMIT = 48 * 1024 * 1024    # scoped-VMEM cap (fits v7x's 64 MiB physical)
_TILE_BUDGET = 24 * 1024 * 1024   # bytes for double-buffered activation tiles
_MAX_TM = 2048                    # max row tile (review: sweep 512..2048)


# ----------------------------------------------------------------------------
# small helpers
# ----------------------------------------------------------------------------
def _round_up(x, m):
    return (x + m - 1) // m * m


def _choose_tm(M, row_bytes):
    """Large row tile (pipeline efficiency), multiple of 16, double-buffered
    activation tiles kept within the VMEM budget."""
    tm = _MAX_TM
    while tm > 16 and 2 * tm * row_bytes > _TILE_BUDGET:   # x2: double buffering
        tm //= 2
    return min(tm, _round_up(M, 16))


def _pad_rows(a, rows):
    if a.shape[0] == rows:
        return a
    return jnp.pad(a, ((0, rows - a.shape[0]), (0, 0)))


# ----------------------------------------------------------------------------
# Pallas kernels
# ----------------------------------------------------------------------------
def _dual_mm_bias_silu_kernel(x_ref, w1_ref, b1_ref, w2_ref, b2_ref,
                              o1_ref, o2_ref):
    """Fused cv1+cv2: read x tile once, two matmul+bias+SiLU outputs."""
    x = x_ref[...]
    a1 = jnp.dot(x, w1_ref[...], preferred_element_type=jnp.float32) + b1_ref[...]
    o1_ref[...] = (a1 * jax.nn.sigmoid(a1)).astype(o1_ref.dtype)
    a2 = jnp.dot(x, w2_ref[...], preferred_element_type=jnp.float32) + b2_ref[...]
    o2_ref[...] = (a2 * jax.nn.sigmoid(a2)).astype(o2_ref.dtype)


def _concat_mm_bias_silu_kernel(a_ref, b_ref, wa_ref, wb_ref, bias_ref, o_ref):
    """cv3 with the channel concat fused: acc = a@wa + b@wb + bias; SiLU."""
    acc = jnp.dot(a_ref[...], wa_ref[...], preferred_element_type=jnp.float32)
    acc = acc + jnp.dot(b_ref[...], wb_ref[...], preferred_element_type=jnp.float32)
    acc = acc + bias_ref[...]
    o_ref[...] = (acc * jax.nn.sigmoid(acc)).astype(o_ref.dtype)


def _res_unit_kernel(y_ref, mask_ref, w1_ref, b1_ref, w2_ref, b2_ref,
                     o_ref, tbuf_ref, *, H, W, shortcut):
    """Fully fused bottleneck unit on the flat spatially-padded layout.

    One image per grid step.  P = (H+2)*(W+2) rows.  The 3x3 conv is done as
    9 shifted contiguous (P, C) x (C, C) matmuls over a zero-margined VMEM
    staging buffer (no im2col tensor, no HBM round-trip of `t`).
    """
    Wp = W + 2
    P = (H + 2) * Wp
    C = y_ref.shape[-1]
    Cout = o_ref.shape[-1]

    y = y_ref[0]                                                # (P, C)

    # --- 1x1 conv + folded BN + SiLU (f32 epilogue) --------------------------
    t = jnp.dot(y, w1_ref[...], preferred_element_type=jnp.float32)
    t = t + b1_ref[...]
    t = t * jax.nn.sigmoid(t)
    t = t * mask_ref[...]           # force exact zeros on the spatial pad rows

    # --- stage t with a zero halo of (W+3) rows on each side -----------------
    tbuf_ref[...] = jnp.zeros_like(tbuf_ref)
    tbuf_ref[W + 3:W + 3 + P, :] = t

    # --- 3x3 conv: 9 shifted contiguous matmuls, f32 accumulation ------------
    acc = jnp.zeros((P, Cout), jnp.float32)
    for kh in range(3):
        for kw in range(3):
            start = kh * Wp + kw
            lhs = tbuf_ref[start:start + P, :]
            rhs = w2_ref[(kh * 3 + kw) * C:(kh * 3 + kw + 1) * C, :]
            acc = acc + jnp.dot(lhs.astype(rhs.dtype), rhs,
                                preferred_element_type=jnp.float32)
    acc = acc + b2_ref[...]
    z = acc * jax.nn.sigmoid(acc)
    if shortcut:
        z = z + y.astype(jnp.float32)                           # residual (post-act)
    o_ref[0] = z.astype(o_ref.dtype)


# ----------------------------------------------------------------------------
# pallas_call wrappers
# ----------------------------------------------------------------------------
def fused_cv1_cv2(x, w1, b1, w2, b2):
    """y1 = SiLU(x@w1+b1), y2 = SiLU(x@w2+b2) in one call (x read once)."""
    M, K = x.shape
    c_ = w1.shape[1]
    itemsize = jnp.dtype(x.dtype).itemsize
    tm = _choose_tm(M, (K + 2 * c_) * itemsize)
    Mp = _round_up(M, tm)
    xp = _pad_rows(x, Mp)

    y1, y2 = pl.pallas_call(
        _dual_mm_bias_silu_kernel,
        out_shape=(jax.ShapeDtypeStruct((Mp, c_), x.dtype),
                   jax.ShapeDtypeStruct((Mp, c_), x.dtype)),
        grid=(Mp // tm,),
        in_specs=[pl.BlockSpec((tm, K), lambda i: (i, 0)),
                  pl.BlockSpec((K, c_), lambda i: (0, 0)),
                  pl.BlockSpec((1, c_), lambda i: (0, 0)),
                  pl.BlockSpec((K, c_), lambda i: (0, 0)),
                  pl.BlockSpec((1, c_), lambda i: (0, 0))],
        out_specs=(pl.BlockSpec((tm, c_), lambda i: (i, 0)),
                   pl.BlockSpec((tm, c_), lambda i: (i, 0))),
        compiler_params=pltpu.CompilerParams(
            dimension_semantics=("parallel",),
            vmem_limit_bytes=_VMEM_LIMIT),
    )(xp, w1, b1, w2, b2)
    return y1[:M], y2[:M]


def fused_concat_cv3(a, b, wa, wb, bias):
    """out = SiLU(concat(a,b) @ [wa;wb] + bias), concat fused into the kernel."""
    M, ca = a.shape
    c2 = wa.shape[1]
    itemsize = jnp.dtype(a.dtype).itemsize
    tm = _choose_tm(M, (2 * ca + c2) * itemsize)
    Mp = _round_up(M, tm)
    ap, bp = _pad_rows(a, Mp), _pad_rows(b, Mp)

    out = pl.pallas_call(
        _concat_mm_bias_silu_kernel,
        out_shape=jax.ShapeDtypeStruct((Mp, c2), a.dtype),
        grid=(Mp // tm,),
        in_specs=[pl.BlockSpec((tm, ca), lambda i: (i, 0)),
                  pl.BlockSpec((tm, ca), lambda i: (i, 0)),
                  pl.BlockSpec((ca, c2), lambda i: (0, 0)),
                  pl.BlockSpec((ca, c2), lambda i: (0, 0)),
                  pl.BlockSpec((1, c2), lambda i: (0, 0))],
        out_specs=pl.BlockSpec((tm, c2), lambda i: (i, 0)),
        compiler_params=pltpu.CompilerParams(
            dimension_semantics=("parallel",),
            vmem_limit_bytes=_VMEM_LIMIT),
    )(ap, bp, wa, wb, bias)
    return out[:M]


def res_unit(y_pad, mask, w1, b1, w2, b2, *, H, W, shortcut):
    """One fused bottleneck unit on the flat padded layout (N, P, C)."""
    N, P, C = y_pad.shape
    tbuf_len = P + 2 * W + 6                      # P + 2*(W+3) zero halo rows
    kernel = functools.partial(_res_unit_kernel, H=H, W=W, shortcut=shortcut)
    return pl.pallas_call(
        kernel,
        out_shape=jax.ShapeDtypeStruct((N, P, C), y_pad.dtype),
        grid=(N,),
        in_specs=[
            pl.BlockSpec((1, P, C), lambda n: (n, 0, 0)),   # y (one image)
            pl.BlockSpec((P, 1), lambda n: (0, 0)),         # interior mask
            pl.BlockSpec((C, C), lambda n: (0, 0)),         # 1x1 weight
            pl.BlockSpec((1, C), lambda n: (0, 0)),         # 1x1 bias
            pl.BlockSpec((9 * C, C), lambda n: (0, 0)),     # 3x3 weight
            pl.BlockSpec((1, C), lambda n: (0, 0)),         # 3x3 bias
        ],
        out_specs=pl.BlockSpec((1, P, C), lambda n: (n, 0, 0)),
        scratch_shapes=[pltpu.VMEM((tbuf_len, C), jnp.float32)],
        compiler_params=pltpu.CompilerParams(
            dimension_semantics=("parallel",),
            vmem_limit_bytes=_VMEM_LIMIT),
    )(y_pad, mask, w1, b1, w2, b2)


# ----------------------------------------------------------------------------
# parameters (deterministic), BN folding
# ----------------------------------------------------------------------------
def _make_cbf_params(key, c_out, c_in, k, dtype):
    """Conv(k,k,bias=False)+BN folded into (w_mat, bias) for a matmul kernel.

    Layout: 1x1 -> (c_in, c_out); 3x3 -> (kh,kw,c_in,c_out) reshaped to
    (9*c_in, c_out) with row index kh*3*c_in + kw*c_in + ci.
    """
    k1, k2, k3, k4, k5 = jax.random.split(key, 5)
    w = 0.1 * jax.random.normal(k1, (c_out, c_in, k, k), dtype=jnp.float32)
    gamma = 1.0 + 0.1 * jax.random.normal(k2, (c_out,), dtype=jnp.float32)
    beta = 0.1 * jax.random.normal(k3, (c_out,), dtype=jnp.float32)
    mean = 0.05 * jax.random.normal(k4, (c_out,), dtype=jnp.float32)
    var = 0.5 + jax.random.uniform(k5, (c_out,), dtype=jnp.float32)

    scale = gamma / jnp.sqrt(var + _BN_EPS)
    w_f = w * scale[:, None, None, None]
    b_f = beta - mean * scale

    if k == 1:
        w_mat = w_f.reshape(c_out, c_in).T
    else:
        w_mat = jnp.transpose(w_f, (2, 3, 1, 0)).reshape(k * k * c_in, c_out)
    return w_mat.astype(dtype), b_f.reshape(1, c_out).astype(jnp.float32)


def make_c3_params(key, c1, c2, n=1, e=0.5, dtype=jnp.float32):
    c_ = int(c2 * e)
    keys = jax.random.split(key, 3 + 2 * n)
    return {
        "cv1": _make_cbf_params(keys[0], c_, c1, 1, dtype),
        "cv2": _make_cbf_params(keys[1], c_, c1, 1, dtype),
        "cv3": _make_cbf_params(keys[2], c2, 2 * c_, 1, dtype),
        "m": [(_make_cbf_params(keys[3 + 2 * i], c_, c_, 1, dtype),
               _make_cbf_params(keys[4 + 2 * i], c_, c_, 3, dtype))
              for i in range(n)],
    }


def cast_c3_params(params, dtype):
    """Cast stored weights (not biases) to `dtype` (e.g. bf16 on v6e/v7x)."""
    cast = lambda p: (p[0].astype(dtype), p[1])
    return {"cv1": cast(params["cv1"]), "cv2": cast(params["cv2"]),
            "cv3": cast(params["cv3"]),
            "m": [(cast(a), cast(b)) for a, b in params["m"]]}


# ----------------------------------------------------------------------------
# C3 forward
# ----------------------------------------------------------------------------
def c3_forward(x_nchw, params, shortcut=True):
    N, C1, H, W = x_nchw.shape
    M = N * H * W
    dtype = params["cv1"][0].dtype        # storage/compute dtype (f32 or bf16)

    # NCHW -> flattened NHWC once at the module boundary.
    # TODO(synk): in a full network keep NHWC end-to-end and drop these transposes.
    x = jnp.transpose(x_nchw, (0, 2, 3, 1)).reshape(M, C1).astype(dtype)

    (w1, b1), (w2, b2) = params["cv1"], params["cv2"]
    y1, y2 = fused_cv1_cv2(x, w1, b1, w2, b2)
    c_ = y1.shape[-1]

    if params["m"]:
        Hp, Wp = H + 2, W + 2
        P = Hp * Wp
        # one spatial zero-pad before the chain; every res_unit then runs fully
        # fused on the flat padded layout (pad rows are re-masked in-kernel).
        y_pad = jnp.pad(y1.reshape(N, H, W, c_),
                        ((0, 0), (1, 1), (1, 1), (0, 0))).reshape(N, P, c_)
        mask = jnp.pad(jnp.ones((H, W, 1), jnp.float32),
                       ((1, 1), (1, 1), (0, 0))).reshape(P, 1)
        for (mw1, mb1), (mw2, mb2) in params["m"]:
            y_pad = res_unit(y_pad, mask, mw1, mb1, mw2, mb2,
                             H=H, W=W, shortcut=shortcut)
        y1 = y_pad.reshape(N, Hp, Wp, c_)[:, 1:H + 1, 1:W + 1, :].reshape(M, c_)

    w3, b3 = params["cv3"]
    out = fused_concat_cv3(y1, y2, w3[:c_], w3[c_:], b3)   # concat fused in-kernel
    return jnp.transpose(out.reshape(N, H, W, -1),
                         (0, 3, 1, 2)).astype(jnp.float32)


# ----------------------------------------------------------------------------
# pure-JAX reference (same folded params / same math)
# ----------------------------------------------------------------------------
def _im2col_3x3(x_nhwc):
    N, H, W, C = x_nhwc.shape
    xp = jnp.pad(x_nhwc, ((0, 0), (1, 1), (1, 1), (0, 0)))
    patches = [xp[:, kh:kh + H, kw:kw + W, :]
               for kh in range(3) for kw in range(3)]
    return jnp.concatenate(patches, axis=-1)


def _ref_mm(x, w, b, residual=None):
    acc = x @ w.astype(jnp.float32) + b
    y = acc * jax.nn.sigmoid(acc)
    if residual is not None:
        y = y + residual
    return y


def c3_reference(x_nchw, params, shortcut=True):
    N, C1, H, W = x_nchw.shape
    M = N * H * W
    x = jnp.transpose(x_nchw, (0, 2, 3, 1)).reshape(M, C1).astype(jnp.float32)
    w, b = params["cv1"]
    y = _ref_mm(x, w, b)
    c_ = y.shape[-1]
    for (m_cv1, m_cv2) in params["m"]:
        w1, b1 = m_cv1
        t = _ref_mm(y, w1, b1)
        patches = _im2col_3x3(t.reshape(N, H, W, c_)).reshape(M, 9 * c_)
        w2, b2 = m_cv2
        y = _ref_mm(patches, w2, b2, residual=y if shortcut else None)
    w, b = params["cv2"]
    y2 = _ref_mm(x, w, b)
    cat = jnp.concatenate([y, y2], axis=-1)
    w, b = params["cv3"]
    out = _ref_mm(cat, w, b)
    return jnp.transpose(out.reshape(N, H, W, -1), (0, 3, 1, 2))


# ----------------------------------------------------------------------------
if __name__ == "__main__":
    key = jax.random.PRNGKey(0)
    k_x, k_p = jax.random.split(key)

    # Small shapes consistent with the module: c1=4, c2=8, e=0.5 -> c_=4, n=1.
    batch, c1, c2, H, W = 2, 4, 8, 16, 16
    x = jax.random.normal(k_x, (batch, c1, H, W), dtype=jnp.float32)
    params = make_c3_params(k_p, c1, c2, n=1, e=0.5, dtype=jnp.float32)

    ref = c3_reference(x, params, shortcut=True)
    fwd = jax.jit(functools.partial(c3_forward, shortcut=True))

    # f32 path: strict numerical check against the pure-JAX reference.
    out_f32 = fwd(x, params)
    jax.block_until_ready(out_f32)
    assert out_f32.shape == (batch, c2, H, W), out_f32.shape
    assert jnp.allclose(out_f32, ref, atol=5e-4, rtol=5e-4), "f32 mismatch vs reference"

    # bf16 storage path (recommended on v6e/v7x: halves HBM traffic, f32 accum).
    out_bf16 = fwd(x, cast_c3_params(params, jnp.bfloat16))
    jax.block_until_ready(out_bf16)
    assert jnp.allclose(out_bf16, ref, atol=5e-2, rtol=5e-2), "bf16 mismatch vs reference"

    print("KERNEL_OK")
</pallas_src>

<mosaic_0001>
module attributes {stable_mosaic.version = 11 : i64} {
  func.func @_dual_mm_bias_silu_kernel(%arg0: i32, %arg1: memref<512x4xf32, #tpu.memory_space<vmem>>, %arg2: memref<4x4xf32, #tpu.memory_space<vmem>>, %arg3: memref<1x4xf32, #tpu.memory_space<vmem>>, %arg4: memref<4x4xf32, #tpu.memory_space<vmem>>, %arg5: memref<1x4xf32, #tpu.memory_space<vmem>>, %arg6: memref<512x4xf32, #tpu.memory_space<vmem>>, %arg7: memref<512x4xf32, #tpu.memory_space<vmem>>) attributes {dimension_semantics = [#tpu.dimension_semantics<parallel>], iteration_bounds = array<i64: 1>, scalar_prefetch = 0 : i64, scratch_operands = 0 : i64, tpu.core_type = #tpu.core_type<tc>, window_params = [{transform_indices = @transform_0, window_bounds = array<i64: 512, 4>}, {pipeline_mode = #tpu.pipeline_mode<synchronous>, transform_indices = @transform_1, window_bounds = array<i64: 4, 4>}, {pipeline_mode = #tpu.pipeline_mode<synchronous>, transform_indices = @transform_2, window_bounds = array<i64: 1, 4>}, {pipeline_mode = #tpu.pipeline_mode<synchronous>, transform_indices = @transform_3, window_bounds = array<i64: 4, 4>}, {pipeline_mode = #tpu.pipeline_mode<synchronous>, transform_indices = @transform_4, window_bounds = array<i64: 1, 4>}, {transform_indices = @transform_5, window_bounds = array<i64: 512, 4>}, {transform_indices = @transform_6, window_bounds = array<i64: 512, 4>}]} {
    %c0 = arith.constant 0 : index
    %c0_0 = arith.constant 0 : index
    %0 = vector.load %arg1[%c0, %c0_0] : memref<512x4xf32, #tpu.memory_space<vmem>>, vector<512x4xf32>
    %c0_1 = arith.constant 0 : index
    %c0_2 = arith.constant 0 : index
    %1 = vector.load %arg2[%c0_1, %c0_2] : memref<4x4xf32, #tpu.memory_space<vmem>>, vector<4x4xf32>
    %cst = arith.constant dense<0.000000e+00> : vector<512x4xf32>
    %2 = tpu.matmul %0, %1, %cst {dimension_numbers = #tpu.dot_dimension_numbers<[1], [0], [0], [1], [0, 0, 1, 1], [], []>} : vector<512x4xf32>, vector<4x4xf32>, vector<512x4xf32> -> vector<512x4xf32>
    %c0_3 = arith.constant 0 : index
    %c0_4 = arith.constant 0 : index
    %3 = vector.load %arg3[%c0_3, %c0_4] : memref<1x4xf32, #tpu.memory_space<vmem>>, vector<1x4xf32>
    %4 = vector.broadcast %3 : vector<1x4xf32> to vector<512x4xf32>
    %5 = arith.addf %2, %4 : vector<512x4xf32>
    %6 = arith.negf %5 : vector<512x4xf32>
    %7 = math.exp %6 : vector<512x4xf32>
    %cst_5 = arith.constant 1.000000e+00 : f32
    %8 = vector.broadcast %cst_5 : f32 to vector<512x4xf32>
    %9 = arith.addf %8, %7 : vector<512x4xf32>
    %10 = arith.divf %8, %9 : vector<512x4xf32>
    %11 = arith.mulf %5, %10 : vector<512x4xf32>
    %c0_6 = arith.constant 0 : index
    %c0_7 = arith.constant 0 : index
    %12 = vector.load %arg6[%c0_6, %c0_7] : memref<512x4xf32, #tpu.memory_space<vmem>>, vector<512x4xf32>
    tpu.vector_store %arg6[%c0_6, %c0_7], %11 {strides = array<i32>} : memref<512x4xf32, #tpu.memory_space<vmem>>, vector<512x4xf32>,
    %c0_8 = arith.constant 0 : index
    %c0_9 = arith.constant 0 : index
    %13 = vector.load %arg4[%c0_8, %c0_9] : memref<4x4xf32, #tpu.memory_space<vmem>>, vector<4x4xf32>
    %cst_10 = arith.constant dense<0.000000e+00> : vector<512x4xf32>
    %14 = tpu.matmul %0, %13, %cst_10 {dimension_numbers = #tpu.dot_dimension_numbers<[1], [0], [0], [1], [0, 0, 1, 1], [], []>} : vector<512x4xf32>, vector<4x4xf32>, vector<512x4xf32> -> vector<512x4xf32>
    %c0_11 = arith.constant 0 : index
    %c0_12 = arith.constant 0 : index
    %15 = vector.load %arg5[%c0_11, %c0_12] : memref<1x4xf32, #tpu.memory_space<vmem>>, vector<1x4xf32>
    %16 = vector.broadcast %15 : vector<1x4xf32> to vector<512x4xf32>
    %17 = arith.addf %14, %16 : vector<512x4xf32>
    %18 = arith.negf %17 : vector<512x4xf32>
    %19 = math.exp %18 : vector<512x4xf32>
    %cst_13 = arith.constant 1.000000e+00 : f32
    %20 = vector.broadcast %cst_13 : f32 to vector<512x4xf32>
    %21 = arith.addf %20, %19 : vector<512x4xf32>
    %22 = arith.divf %20, %21 : vector<512x4xf32>
    %23 = arith.mulf %17, %22 : vector<512x4xf32>
    %c0_14 = arith.constant 0 : index
    %c0_15 = arith.constant 0 : index
    %24 = vector.load %arg7[%c0_14, %c0_15] : memref<512x4xf32, #tpu.memory_space<vmem>>, vector<512x4xf32>
    tpu.vector_store %arg7[%c0_14, %c0_15], %23 {strides = array<i32>} : memref<512x4xf32, #tpu.memory_space<vmem>>, vector<512x4xf32>,
    return
  }
  func.func @transform_0(%arg0: i32) -> (i32, i32) {
    %c0_i32 = arith.constant 0 : i32
    %c0_i32_0 = arith.constant 0 : i32
    return %arg0, %c0_i32 : i32, i32
  }
  func.func @transform_1(%arg0: i32) -> (i32, i32) {
    %c0_i32 = arith.constant 0 : i32
    %c0_i32_0 = arith.constant 0 : i32
    %c0_i32_1 = arith.constant 0 : i32
    return %c0_i32, %c0_i32_0 : i32, i32
  }
  func.func @transform_2(%arg0: i32) -> (i32, i32) {
    %c0_i32 = arith.constant 0 : i32
    %c0_i32_0 = arith.constant 0 : i32
    %c0_i32_1 = arith.constant 0 : i32
    return %c0_i32, %c0_i32_0 : i32, i32
  }
  func.func @transform_3(%arg0: i32) -> (i32, i32) {
    %c0_i32 = arith.constant 0 : i32
    %c0_i32_0 = arith.constant 0 : i32
    %c0_i32_1 = arith.constant 0 : i32
    return %c0_i32, %c0_i32_0 : i32, i32
  }
  func.func @transform_4(%arg0: i32) -> (i32, i32) {
    %c0_i32 = arith.constant 0 : i32
    %c0_i32_0 = arith.constant 0 : i32
    %c0_i32_1 = arith.constant 0 : i32
    return %c0_i32, %c0_i32_0 : i32, i32
  }
  func.func @transform_5(%arg0: i32) -> (i32, i32) {
    %c0_i32 = arith.constant 0 : i32
    %c0_i32_0 = arith.constant 0 : i32
    return %arg0, %c0_i32 : i32, i32
  }
  func.func @transform_6(%arg0: i32) -> (i32, i32) {
    %c0_i32 = arith.constant 0 : i32
    %c0_i32_0 = arith.constant 0 : i32
    return %arg0, %c0_i32 : i32, i32
  }
}

module attributes {stable_mosaic.version = 11 : i64} {
  func.func @_res_unit_kernel(%arg0: i32, %arg1: memref<1x324x4xf32, #tpu.memory_space<vmem>>, %arg2: memref<324x1xf32, #tpu.memory_space<vmem>>, %arg3: memref<4x4xf32, #tpu.memory_space<vmem>>, %arg4: memref<1x4xf32, #tpu.memory_space<vmem>>, %arg5: memref<36x4xf32, #tpu.memory_space<vmem>>, %arg6: memref<1x4xf32, #tpu.memory_space<vmem>>, %arg7: memref<1x324x4xf32, #tpu.memory_space<vmem>>, %arg8: memref<362x4xf32, #tpu.memory_space<vmem>>) attributes {dimension_semantics = [#tpu.dimension_semantics<parallel>], iteration_bounds = array<i64: 2>, scalar_prefetch = 0 : i64, scratch_operands = 1 : i64, tpu.core_type = #tpu.core_type<tc>, window_params = [{transform_indices = @transform_0, window_bounds = array<i64: 1, 324, 4>}, {pipeline_mode = #tpu.pipeline_mode<synchronous>, transform_indices = @transform_1, window_bounds = array<i64: 324, 1>}, {pipeline_mode = #tpu.pipeline_mode<synchronous>, transform_indices = @transform_2, window_bounds = array<i64: 4, 4>}, {pipeline_mode = #tpu.pipeline_mode<synchronous>, transform_indices = @transform_3, window_bounds = array<i64: 1, 4>}, {pipeline_mode = #tpu.pipeline_mode<synchronous>, transform_indices = @transform_4, window_bounds = array<i64: 36, 4>}, {pipeline_mode = #tpu.pipeline_mode<synchronous>, transform_indices = @transform_5, window_bounds = array<i64: 1, 4>}, {transform_indices = @transform_6, window_bounds = array<i64: 1, 324, 4>}]} {
    %c0 = arith.constant 0 : index
    %c0_0 = arith.constant 0 : index
    %c0_1 = arith.constant 0 : index
    %0 = vector.load %arg1[%c0, %c0_0, %c0_1] : memref<1x324x4xf32, #tpu.memory_space<vmem>>, vector<1x324x4xf32>
    %1 = vector.shape_cast %0 : vector<1x324x4xf32> to vector<324x4xf32>
    %c0_2 = arith.constant 0 : index
    %c0_3 = arith.constant 0 : index
    %2 = vector.load %arg3[%c0_2, %c0_3] : memref<4x4xf32, #tpu.memory_space<vmem>>, vector<4x4xf32>
    %cst = arith.constant dense<0.000000e+00> : vector<324x4xf32>
    %3 = tpu.matmul %1, %2, %cst {dimension_numbers = #tpu.dot_dimension_numbers<[1], [0], [0], [1], [0, 0, 1, 1], [], []>} : vector<324x4xf32>, vector<4x4xf32>, vector<324x4xf32> -> vector<324x4xf32>
    %c0_4 = arith.constant 0 : index
    %c0_5 = arith.constant 0 : index
    %4 = vector.load %arg4[%c0_4, %c0_5] : memref<1x4xf32, #tpu.memory_space<vmem>>, vector<1x4xf32>
    %5 = vector.broadcast %4 : vector<1x4xf32> to vector<324x4xf32>
    %6 = arith.addf %3, %5 : vector<324x4xf32>
    %7 = arith.negf %6 : vector<324x4xf32>
    %8 = math.exp %7 : vector<324x4xf32>
    %cst_6 = arith.constant 1.000000e+00 : f32
    %9 = vector.broadcast %cst_6 : f32 to vector<324x4xf32>
    %10 = arith.addf %9, %8 : vector<324x4xf32>
    %11 = arith.divf %9, %10 : vector<324x4xf32>
    %12 = arith.mulf %6, %11 : vector<324x4xf32>
    %c0_7 = arith.constant 0 : index
    %c0_8 = arith.constant 0 : index
    %13 = vector.load %arg2[%c0_7, %c0_8] : memref<324x1xf32, #tpu.memory_space<vmem>>, vector<324x1xf32>
    %14 = vector.broadcast %13 : vector<324x1xf32> to vector<324x4xf32>
    %15 = arith.mulf %12, %14 : vector<324x4xf32>
    %cst_9 = arith.constant 0.000000e+00 : f32
    %16 = vector.broadcast %cst_9 : f32 to vector<362x4xf32>
    %c0_10 = arith.constant 0 : index
    %c0_11 = arith.constant 0 : index
    %17 = vector.load %arg8[%c0_10, %c0_11] : memref<362x4xf32, #tpu.memory_space<vmem>>, vector<362x4xf32>
    tpu.vector_store %arg8[%c0_10, %c0_11], %16 {strides = array<i32>} : memref<362x4xf32, #tpu.memory_space<vmem>>, vector<362x4xf32>,
    %c19 = arith.constant 19 : index
    %c0_12 = arith.constant 0 : index
    %18 = vector.load %arg8[%c19, %c0_12] : memref<362x4xf32, #tpu.memory_space<vmem>>, vector<324x4xf32>
    tpu.vector_store %arg8[%c19, %c0_12], %15 {strides = array<i32>} : memref<362x4xf32, #tpu.memory_space<vmem>>, vector<324x4xf32>,
    %cst_13 = arith.constant 0.000000e+00 : f32
    %19 = vector.broadcast %cst_13 : f32 to vector<324x4xf32>
    %c0_14 = arith.constant 0 : index
    %c0_15 = arith.constant 0 : index
    %20 = vector.load %arg8[%c0_14, %c0_15] : memref<362x4xf32, #tpu.memory_space<vmem>>, vector<324x4xf32>
    %c0_16 = arith.constant 0 : index
    %c0_17 = arith.constant 0 : index
    %21 = vector.load %arg5[%c0_16, %c0_17] : memref<36x4xf32, #tpu.memory_space<vmem>>, vector<4x4xf32>
    %cst_18 = arith.constant dense<0.000000e+00> : vector<324x4xf32>
    %22 = tpu.matmul %20, %21, %cst_18 {dimension_numbers = #tpu.dot_dimension_numbers<[1], [0], [0], [1], [0, 0, 1, 1], [], []>} : vector<324x4xf32>, vector<4x4xf32>, vector<324x4xf32> -> vector<324x4xf32>
    %23 = arith.addf %19, %22 : vector<324x4xf32>
    %c1 = arith.constant 1 : index
    %c0_19 = arith.constant 0 : index
    %24 = vector.load %arg8[%c1, %c0_19] : memref<362x4xf32, #tpu.memory_space<vmem>>, vector<324x4xf32>
    %c4 = arith.constant 4 : index
    %c0_20 = arith.constant 0 : index
    %25 = vector.load %arg5[%c4, %c0_20] : memref<36x4xf32, #tpu.memory_space<vmem>>, vector<4x4xf32>
    %cst_21 = arith.constant dense<0.000000e+00> : vector<324x4xf32>
    %26 = tpu.matmul %24, %25, %cst_21 {dimension_numbers = #tpu.dot_dimension_numbers<[1], [0], [0], [1], [0, 0, 1, 1], [], []>} : vector<324x4xf32>, vector<4x4xf32>, vector<324x4xf32> -> vector<324x4xf32>
    %27 = arith.addf %23, %26 : vector<324x4xf32>
    %c2 = arith.constant 2 : index
    %c0_22 = arith.constant 0 : index
    %28 = vector.load %arg8[%c2, %c0_22] : memref<362x4xf32, #tpu.memory_space<vmem>>, vector<324x4xf32>
    %c8 = arith.constant 8 : index
    %c0_23 = arith.constant 0 : index
    %29 = vector.load %arg5[%c8, %c0_23] : memref<36x4xf32, #tpu.memory_space<vmem>>, vector<4x4xf32>
    %cst_24 = arith.constant dense<0.000000e+00> : vector<324x4xf32>
    %30 = tpu.matmul %28, %29, %cst_24 {dimension_numbers = #tpu.dot_dimension_numbers<[1], [0], [0], [1], [0, 0, 1, 1], [], []>} : vector<324x4xf32>, vector<4x4xf32>, vector<324x4xf32> -> vector<324x4xf32>
    %31 = arith.addf %27, %30 : vector<324x4xf32>
    %c18 = arith.constant 18 : index
    %c0_25 = arith.constant 0 : index
    %32 = vector.load %arg8[%c18, %c0_25] : memref<362x4xf32, #tpu.memory_space<vmem>>, vector<324x4xf32>
    %c12 = arith.constant 12 : index
    %c0_26 = arith.constant 0 : index
    %33 = vector.load %arg5[%c12, %c0_26] : memref<36x4xf32, #tpu.memory_space<vmem>>, vector<4x4xf32>
    %cst_27 = arith.constant dense<0.000000e+00> : vector<324x4xf32>
    %34 = tpu.matmul %32, %33, %cst_27 {dimension_numbers = #tpu.dot_dimension_numbers<[1], [0], [0], [1], [0, 0, 1, 1], [], []>} : vector<324x4xf32>, vector<4x4xf32>, vector<324x4xf32> -> vector<324x4xf32>
    %35 = arith.addf %31, %34 : vector<324x4xf32>
    %c19_28 = arith.constant 19 : index
    %c0_29 = arith.constant 0 : index
    %36 = vector.load %arg8[%c19_28, %c0_29] : memref<362x4xf32, #tpu.memory_space<vmem>>, vector<324x4xf32>
    %c16 = arith.constant 16 : index
    %c0_30 = arith.constant 0 : index
    %37 = vector.load %arg5[%c16, %c0_30] : memref<36x4xf32, #tpu.memory_space<vmem>>, vector<4x4xf32>
    %cst_31 = arith.constant dense<0.000000e+00> : vector<324x4xf32>
    %38 = tpu.matmul %36, %37, %cst_31 {dimension_numbers = #tpu.dot_dimension_numbers<[1], [0], [0], [1], [0, 0, 1, 1], [], []>} : vector<324x4xf32>, vector<4x4xf32>, vector<324x4xf32> -> vector<324x4xf32>
    %39 = arith.addf %35, %38 : vector<324x4xf32>
    %c20 = arith.constant 20 : index
    %c0_32 = arith.constant 0 : index
    %40 = vector.load %arg8[%c20, %c0_32] : memref<362x4xf32, #tpu.memory_space<vmem>>, vector<324x4xf32>
    %c20_33 = arith.constant 20 : index
    %c0_34 = arith.constant 0 : index
    %41 = vector.load %arg5[%c20_33, %c0_34] : memref<36x4xf32, #tpu.memory_space<vmem>>, vector<4x4xf32>
    %cst_35 = arith.constant dense<0.000000e+00> : vector<324x4xf32>
    %42 = tpu.matmul %40, %41, %cst_35 {dimension_numbers = #tpu.dot_dimension_numbers<[1], [0], [0], [1], [0, 0, 1, 1], [], []>} : vector<324x4xf32>, vector<4x4xf32>, vector<324x4xf32> -> vector<324x4xf32>
    %43 = arith.addf %39, %42 : vector<324x4xf32>
    %c36 = arith.constant 36 : index
    %c0_36 = arith.constant 0 : index
    %44 = vector.load %arg8[%c36, %c0_36] : memref<362x4xf32, #tpu.memory_space<vmem>>, vector<324x4xf32>
    %c24 = arith.constant 24 : index
    %c0_37 = arith.constant 0 : index
    %45 = vector.load %arg5[%c24, %c0_37] : memref<36x4xf32, #tpu.memory_space<vmem>>, vector<4x4xf32>
    %cst_38 = arith.constant dense<0.000000e+00> : vector<324x4xf32>
    %46 = tpu.matmul %44, %45, %cst_38 {dimension_numbers = #tpu.dot_dimension_numbers<[1], [0], [0], [1], [0, 0, 1, 1], [], []>} : vector<324x4xf32>, vector<4x4xf32>, vector<324x4xf32> -> vector<324x4xf32>
    %47 = arith.addf %43, %46 : vector<324x4xf32>
    %c37 = arith.constant 37 : index
    %c0_39 = arith.constant 0 : index
    %48 = vector.load %arg8[%c37, %c0_39] : memref<362x4xf32, #tpu.memory_space<vmem>>, vector<324x4xf32>
    %c28 = arith.constant 28 : index
    %c0_40 = arith.constant 0 : index
    %49 = vector.load %arg5[%c28, %c0_40] : memref<36x4xf32, #tpu.memory_space<vmem>>, vector<4x4xf32>
    %cst_41 = arith.constant dense<0.000000e+00> : vector<324x4xf32>
    %50 = tpu.matmul %48, %49, %cst_41 {dimension_numbers = #tpu.dot_dimension_numbers<[1], [0], [0], [1], [0, 0, 1, 1], [], []>} : vector<324x4xf32>, vector<4x4xf32>, vector<324x4xf32> -> vector<324x4xf32>
    %51 = arith.addf %47, %50 : vector<324x4xf32>
    %c38 = arith.constant 38 : index
    %c0_42 = arith.constant 0 : index
    %52 = vector.load %arg8[%c38, %c0_42] : memref<362x4xf32, #tpu.memory_space<vmem>>, vector<324x4xf32>
    %c32 = arith.constant 32 : index
    %c0_43 = arith.constant 0 : index
    %53 = vector.load %arg5[%c32, %c0_43] : memref<36x4xf32, #tpu.memory_space<vmem>>, vector<4x4xf32>
    %cst_44 = arith.constant dense<0.000000e+00> : vector<324x4xf32>
    %54 = tpu.matmul %52, %53, %cst_44 {dimension_numbers = #tpu.dot_dimension_numbers<[1], [0], [0], [1], [0, 0, 1, 1], [], []>} : vector<324x4xf32>, vector<4x4xf32>, vector<324x4xf32> -> vector<324x4xf32>
    %55 = arith.addf %51, %54 : vector<324x4xf32>
    %c0_45 = arith.constant 0 : index
    %c0_46 = arith.constant 0 : index
    %56 = vector.load %arg6[%c0_45, %c0_46] : memref<1x4xf32, #tpu.memory_space<vmem>>, vector<1x4xf32>
    %57 = vector.broadcast %56 : vector<1x4xf32> to vector<324x4xf32>
    %58 = arith.addf %55, %57 : vector<324x4xf32>
    %59 = arith.negf %58 : vector<324x4xf32>
    %60 = math.exp %59 : vector<324x4xf32>
    %cst_47 = arith.constant 1.000000e+00 : f32
    %61 = vector.broadcast %cst_47 : f32 to vector<324x4xf32>
    %62 = arith.addf %61, %60 : vector<324x4xf32>
    %63 = arith.divf %61, %62 : vector<324x4xf32>
    %64 = arith.mulf %58, %63 : vector<324x4xf32>
    %65 = arith.addf %64, %1 : vector<324x4xf32>
    %c0_48 = arith.constant 0 : index
    %c0_49 = arith.constant 0 : index
    %c0_50 = arith.constant 0 : index
    %66 = vector.load %arg7[%c0_48, %c0_49, %c0_50] : memref<1x324x4xf32, #tpu.memory_space<vmem>>, vector<1x324x4xf32>
    %67 = vector.shape_cast %66 : vector<1x324x4xf32> to vector<324x4xf32>
    %68 = vector.shape_cast %65 : vector<324x4xf32> to vector<1x324x4xf32>
    tpu.vector_store %arg7[%c0_48, %c0_49, %c0_50], %68 {strides = array<i32>} : memref<1x324x4xf32, #tpu.memory_space<vmem>>, vector<1x324x4xf32>,
    return
  }
  func.func @transform_0(%arg0: i32) -> (i32, i32, i32) {
    %c0_i32 = arith.constant 0 : i32
    %c0_i32_0 = arith.constant 0 : i32
    %c0_i32_1 = arith.constant 0 : i32
    return %arg0, %c0_i32, %c0_i32_0 : i32, i32, i32
  }
  func.func @transform_1(%arg0: i32) -> (i32, i32) {
    %c0_i32 = arith.constant 0 : i32
    %c0_i32_0 = arith.constant 0 : i32
    %c0_i32_1 = arith.constant 0 : i32
    return %c0_i32, %c0_i32_0 : i32, i32
  }
  func.func @transform_2(%arg0: i32) -> (i32, i32) {
    %c0_i32 = arith.constant 0 : i32
    %c0_i32_0 = arith.constant 0 : i32
    %c0_i32_1 = arith.constant 0 : i32
    return %c0_i32, %c0_i32_0 : i32, i32
  }
  func.func @transform_3(%arg0: i32) -> (i32, i32) {
    %c0_i32 = arith.constant 0 : i32
    %c0_i32_0 = arith.constant 0 : i32
    %c0_i32_1 = arith.constant 0 : i32
    return %c0_i32, %c0_i32_0 : i32, i32
  }
  func.func @transform_4(%arg0: i32) -> (i32, i32) {
    %c0_i32 = arith.constant 0 : i32
    %c0_i32_0 = arith.constant 0 : i32
    %c0_i32_1 = arith.constant 0 : i32
    return %c0_i32, %c0_i32_0 : i32, i32
  }
  func.func @transform_5(%arg0: i32) -> (i32, i32) {
    %c0_i32 = arith.constant 0 : i32
    %c0_i32_0 = arith.constant 0 : i32
    %c0_i32_1 = arith.constant 0 : i32
    return %c0_i32, %c0_i32_0 : i32, i32
  }
  func.func @transform_6(%arg0: i32) -> (i32, i32, i32) {
    %c0_i32 = arith.constant 0 : i32
    %c0_i32_0 = arith.constant 0 : i32
    %c0_i32_1 = arith.constant 0 : i32
    return %arg0, %c0_i32, %c0_i32_0 : i32, i32, i32
  }
}

module attributes {stable_mosaic.version = 11 : i64} {
  func.func @_concat_mm_bias_silu_kernel(%arg0: i32, %arg1: memref<512x4xf32, #tpu.memory_space<vmem>>, %arg2: memref<512x4xf32, #tpu.memory_space<vmem>>, %arg3: memref<4x8xf32, #tpu.memory_space<vmem>>, %arg4: memref<4x8xf32, #tpu.memory_space<vmem>>, %arg5: memref<1x8xf32, #tpu.memory_space<vmem>>, %arg6: memref<512x8xf32, #tpu.memory_space<vmem>>) attributes {dimension_semantics = [#tpu.dimension_semantics<parallel>], iteration_bounds = array<i64: 1>, scalar_prefetch = 0 : i64, scratch_operands = 0 : i64, tpu.core_type = #tpu.core_type<tc>, window_params = [{transform_indices = @transform_0, window_bounds = array<i64: 512, 4>}, {transform_indices = @transform_1, window_bounds = array<i64: 512, 4>}, {pipeline_mode = #tpu.pipeline_mode<synchronous>, transform_indices = @transform_2, window_bounds = array<i64: 4, 8>}, {pipeline_mode = #tpu.pipeline_mode<synchronous>, transform_indices = @transform_3, window_bounds = array<i64: 4, 8>}, {pipeline_mode = #tpu.pipeline_mode<synchronous>, transform_indices = @transform_4, window_bounds = array<i64: 1, 8>}, {transform_indices = @transform_5, window_bounds = array<i64: 512, 8>}]} {
    %c0 = arith.constant 0 : index
    %c0_0 = arith.constant 0 : index
    %0 = vector.load %arg1[%c0, %c0_0] : memref<512x4xf32, #tpu.memory_space<vmem>>, vector<512x4xf32>
    %c0_1 = arith.constant 0 : index
    %c0_2 = arith.constant 0 : index
    %1 = vector.load %arg3[%c0_1, %c0_2] : memref<4x8xf32, #tpu.memory_space<vmem>>, vector<4x8xf32>
    %cst = arith.constant dense<0.000000e+00> : vector<512x8xf32>
    %2 = tpu.matmul %0, %1, %cst {dimension_numbers = #tpu.dot_dimension_numbers<[1], [0], [0], [1], [0, 0, 1, 1], [], []>} : vector<512x4xf32>, vector<4x8xf32>, vector<512x8xf32> -> vector<512x8xf32>
    %c0_3 = arith.constant 0 : index
    %c0_4 = arith.constant 0 : index
    %3 = vector.load %arg2[%c0_3, %c0_4] : memref<512x4xf32, #tpu.memory_space<vmem>>, vector<512x4xf32>
    %c0_5 = arith.constant 0 : index
    %c0_6 = arith.constant 0 : index
    %4 = vector.load %arg4[%c0_5, %c0_6] : memref<4x8xf32, #tpu.memory_space<vmem>>, vector<4x8xf32>
    %cst_7 = arith.constant dense<0.000000e+00> : vector<512x8xf32>
    %5 = tpu.matmul %3, %4, %cst_7 {dimension_numbers = #tpu.dot_dimension_numbers<[1], [0], [0], [1], [0, 0, 1, 1], [], []>} : vector<512x4xf32>, vector<4x8xf32>, vector<512x8xf32> -> vector<512x8xf32>
    %6 = arith.addf %2, %5 : vector<512x8xf32>
    %c0_8 = arith.constant 0 : index
    %c0_9 = arith.constant 0 : index
    %7 = vector.load %arg5[%c0_8, %c0_9] : memref<1x8xf32, #tpu.memory_space<vmem>>, vector<1x8xf32>
    %8 = vector.broadcast %7 : vector<1x8xf32> to vector<512x8xf32>
    %9 = arith.addf %6, %8 : vector<512x8xf32>
    %10 = arith.negf %9 : vector<512x8xf32>
    %11 = math.exp %10 : vector<512x8xf32>
    %cst_10 = arith.constant 1.000000e+00 : f32
    %12 = vector.broadcast %cst_10 : f32 to vector<512x8xf32>
    %13 = arith.addf %12, %11 : vector<512x8xf32>
    %14 = arith.divf %12, %13 : vector<512x8xf32>
    %15 = arith.mulf %9, %14 : vector<512x8xf32>
    %c0_11 = arith.constant 0 : index
    %c0_12 = arith.constant 0 : index
    %16 = vector.load %arg6[%c0_11, %c0_12] : memref<512x8xf32, #tpu.memory_space<vmem>>, vector<512x8xf32>
    tpu.vector_store %arg6[%c0_11, %c0_12], %15 {strides = array<i32>} : memref<512x8xf32, #tpu.memory_space<vmem>>, vector<512x8xf32>,
    return
  }
  func.func @transform_0(%arg0: i32) -> (i32, i32) {
    %c0_i32 = arith.constant 0 : i32
    %c0_i32_0 = arith.constant 0 : i32
    return %arg0, %c0_i32 : i32, i32
  }
  func.func @transform_1(%arg0: i32) -> (i32, i32) {
    %c0_i32 = arith.constant 0 : i32
    %c0_i32_0 = arith.constant 0 : i32
    return %arg0, %c0_i32 : i32, i32
  }
  func.func @transform_2(%arg0: i32) -> (i32, i32) {
    %c0_i32 = arith.constant 0 : i32
    %c0_i32_0 = arith.constant 0 : i32
    %c0_i32_1 = arith.constant 0 : i32
    return %c0_i32, %c0_i32_0 : i32, i32
  }
  func.func @transform_3(%arg0: i32) -> (i32, i32) {
    %c0_i32 = arith.constant 0 : i32
    %c0_i32_0 = arith.constant 0 : i32
    %c0_i32_1 = arith.constant 0 : i32
    return %c0_i32, %c0_i32_0 : i32, i32
  }
  func.func @transform_4(%arg0: i32) -> (i32, i32) {
    %c0_i32 = arith.constant 0 : i32
    %c0_i32_0 = arith.constant 0 : i32
    %c0_i32_1 = arith.constant 0 : i32
    return %c0_i32, %c0_i32_0 : i32, i32
  }
  func.func @transform_5(%arg0: i32) -> (i32, i32) {
    %c0_i32 = arith.constant 0 : i32
    %c0_i32_0 = arith.constant 0 : i32
    return %arg0, %c0_i32 : i32, i32
  }
}

</mosaic_0001>

<llo_original>
// kernel: c3_forward.3
$region0: #{c3_forward.3}
  #allocation0 [shape = 'u32[]', space=smem, size = 0x4, offset = 0x4, fixed_abs, tag = 'smem constant byte address 0x4 - core index']
  #allocation1 [shape = 'u32[144,128]{1,0:T(1,128)}', space=vmem, size = 0x12000, scoped, tag = 'internal scratch']
  %s0 = inlined_call_operand.vmem [shape: f32[512,4], index: 0, kind: input, shape index: {}]
  %s1 = inlined_call_operand.vmem [shape: f32[4,4], index: 1, kind: input, shape index: {}]
  %s2 = inlined_call_operand.vmem [shape: f32[1,4], index: 2, kind: input, shape index: {}]
  %s3 = inlined_call_operand.vmem [shape: f32[4,4], index: 3, kind: input, shape index: {}]
  %s4 = inlined_call_operand.vmem [shape: f32[1,4], index: 4, kind: input, shape index: {}]
  %s5 = inlined_call_operand.vmem [shape: f32[512,4], index: 5, kind: output, shape index: {0}]
  %s6 = inlined_call_operand.vmem [shape: f32[512,4], index: 6, kind: output, shape index: {1}]
  %7 = xla_tuple %s5, %s6
  %s8 = sld [smem:[#allocation0]]
  $region38: #{c3_forward.3} parent=0
    _
  %s10 = ssub.s32 1, %s8
  %s11 = scalar_select 0, %s10, %s8
  // Predicated region
  $region2: #{c3_forward.3} parent=0 // pred_check
    _
  $region3: #{c3_forward.3} parent=0 // pred_check_branch
    %13 = sbr.rel (0) target = $region5
  $region4: #{c3_forward.3} parent=0 // pred_region
    _
  $region5: #{c3_forward.3} parent=0 // pred_fallthru
    _
  // Predicated region
  $region6: #{c3_forward.3} parent=0 // pred_check
    _
  $region7: #{c3_forward.3} parent=0 // pred_check_branch
    %15 = sbr.rel (0) target = $region9
  $region8: #{c3_forward.3} parent=0 // pred_region
    _
  $region9: #{c3_forward.3} parent=0 // pred_fallthru
    _
  // Predicated region
  $region10: #{c3_forward.3} parent=0 // pred_check
    _
  $region11: #{c3_forward.3} parent=0 // pred_check_branch
    %17 = sbr.rel (0) target = $region13
  $region12: #{c3_forward.3} parent=0 // pred_region
    _
  $region13: #{c3_forward.3} parent=0 // pred_fallthru
    _
  // Predicated region
  $region14: #{c3_forward.3} parent=0 // pred_check
    _
  $region15: #{c3_forward.3} parent=0 // pred_check_branch
    %19 = sbr.rel (0) target = $region17
  $region16: #{c3_forward.3} parent=0 // pred_region
    _
  $region17: #{c3_forward.3} parent=0 // pred_fallthru
    _
  // Predicated region
  $region18: #{c3_forward.3} parent=0 // pred_check
    _
  $region19: #{c3_forward.3} parent=0 // pred_check_branch
    %21 = sbr.rel (0) target = $region21
  $region20: #{c3_forward.3} parent=0 // pred_region
    _
  $region21: #{c3_forward.3} parent=0 // pred_fallthru
    _
  %v22 = vld [vmem:[%s0] sm:$0xff]
  %v23 = vld [vmem:[%s0 + $0x8] sm:$0xff]
  %v24 = vld [vmem:[%s0 + $0x10] sm:$0xff]
  %v25 = vld [vmem:[%s0 + $0x18] sm:$0xff]
  %v26 = vld [vmem:[%s0 + $0x20] sm:$0xff]
  %v27 = vld [vmem:[%s0 + $0x28] sm:$0xff]
  %v28 = vld [vmem:[%s0 + $0x30] sm:$0xff]
  %v29 = vld [vmem:[%s0 + $0x38] sm:$0xff]
  %v30 = vld [vmem:[%s0 + $0x40] sm:$0xff]
  %v31 = vld [vmem:[%s0 + $0x48] sm:$0xff]
  %v32 = vld [vmem:[%s0 + $0x50] sm:$0xff]
  %v33 = vld [vmem:[%s0 + $0x58] sm:$0xff]
  %v34 = vld [vmem:[%s0 + $0x60] sm:$0xff]
  %v35 = vld [vmem:[%s0 + $0x68] sm:$0xff]
  %v36 = vld [vmem:[%s0 + $0x70] sm:$0xff]
  %v37 = vld [vmem:[%s0 + $0x78] sm:$0xff]
  %v38 = vld [vmem:[%s0 + $0x80] sm:$0xff]
  %v39 = vld [vmem:[%s0 + $0x88] sm:$0xff]
  %v40 = vld [vmem:[%s0 + $0x90] sm:$0xff]
  %v41 = vld [vmem:[%s0 + $0x98] sm:$0xff]
  %v42 = vld [vmem:[%s0 + $0xa0] sm:$0xff]
  %v43 = vld [vmem:[%s0 + $0xa8] sm:$0xff]
  %v44 = vld [vmem:[%s0 + $0xb0] sm:$0xff]
  %v45 = vld [vmem:[%s0 + $0xb8] sm:$0xff]
  %v46 = vld [vmem:[%s0 + $0xc0] sm:$0xff]
  %v47 = vld [vmem:[%s0 + $0xc8] sm:$0xff]
  %v48 = vld [vmem:[%s0 + $0xd0] sm:$0xff]
  %v49 = vld [vmem:[%s0 + $0xd8] sm:$0xff]
  %v50 = vld [vmem:[%s0 + $0xe0] sm:$0xff]
  %v51 = vld [vmem:[%s0 + $0xe8] sm:$0xff]
  %v52 = vld [vmem:[%s0 + $0xf0] sm:$0xff]
  %v53 = vld [vmem:[%s0 + $0xf8] sm:$0xff]
  %v54 = vld [vmem:[%s0 + $0x100] sm:$0xff]
  %v55 = vld [vmem:[%s0 + $0x108] sm:$0xff]
  %v56 = vld [vmem:[%s0 + $0x110] sm:$0xff]
  %v57 = vld [vmem:[%s0 + $0x118] sm:$0xff]
  %v58 = vld [vmem:[%s0 + $0x120] sm:$0xff]
  %v59 = vld [vmem:[%s0 + $0x128] sm:$0xff]
  %v60 = vld [vmem:[%s0 + $0x130] sm:$0xff]
  %v61 = vld [vmem:[%s0 + $0x138] sm:$0xff]
  %v62 = vld [vmem:[%s0 + $0x140] sm:$0xff]
  %v63 = vld [vmem:[%s0 + $0x148] sm:$0xff]
  %v64 = vld [vmem:[%s0 + $0x150] sm:$0xff]
  %v65 = vld [vmem:[%s0 + $0x158] sm:$0xff]
  %v66 = vld [vmem:[%s0 + $0x160] sm:$0xff]
  %v67 = vld [vmem:[%s0 + $0x168] sm:$0xff]
  %v68 = vld [vmem:[%s0 + $0x170] sm:$0xff]
  %v69 = vld [vmem:[%s0 + $0x178] sm:$0xff]
  %v70 = vld [vmem:[%s0 + $0x180] sm:$0xff]
  %v71 = vld [vmem:[%s0 + $0x188] sm:$0xff]
  %v72 = vld [vmem:[%s0 + $0x190] sm:$0xff]
  %v73 = vld [vmem:[%s0 + $0x198] sm:$0xff]
  %v74 = vld [vmem:[%s0 + $0x1a0] sm:$0xff]
  %v75 = vld [vmem:[%s0 + $0x1a8] sm:$0xff]
  %v76 = vld [vmem:[%s0 + $0x1b0] sm:$0xff]
  %v77 = vld [vmem:[%s0 + $0x1b8] sm:$0xff]
  %v78 = vld [vmem:[%s0 + $0x1c0] sm:$0xff]
  %v79 = vld [vmem:[%s0 + $0x1c8] sm:$0xff]
  %v80 = vld [vmem:[%s0 + $0x1d0] sm:$0xff]
  %v81 = vld [vmem:[%s0 + $0x1d8] sm:$0xff]
  %v82 = vld [vmem:[%s0 + $0x1e0] sm:$0xff]
  %v83 = vld [vmem:[%s0 + $0x1e8] sm:$0xff]
  %v84 = vld [vmem:[%s0 + $0x1f0] sm:$0xff]
  %v85 = vld [vmem:[%s0 + $0x1f8] sm:$0xff]
  %v86 = vld [vmem:[%s1] sm:$0xf]
  %v87 = vld [vmem:[%s2] sm:$0x1]
  %v89 = vlaneseq
  %v90 = vshrl.u32 %v89, 7
  %v91 = vsub.s32 0, %v90
  %v92 = vrot.slane %v87, %v91
  %vm94 = vcmask 31744
  %v96 = vsel %vm94, %v22, 0
  %v99 = vsel %vm94, %v23, 0
  %v102 = vsel %vm94, %v24, 0
  %v105 = vsel %vm94, %v25, 0
  %v108 = vsel %vm94, %v26, 0
  %v111 = vsel %vm94, %v27, 0
  %v114 = vsel %vm94, %v28, 0
  %v117 = vsel %vm94, %v29, 0
  %v120 = vsel %vm94, %v30, 0
  %v123 = vsel %vm94, %v31, 0
  %v126 = vsel %vm94, %v32, 0
  %v129 = vsel %vm94, %v33, 0
  %v132 = vsel %vm94, %v34, 0
  %v135 = vsel %vm94, %v35, 0
  %v138 = vsel %vm94, %v36, 0
  %v141 = vsel %vm94, %v37, 0
  %v144 = vsel %vm94, %v38, 0
  %v147 = vsel %vm94, %v39, 0
  %v150 = vsel %vm94, %v40, 0
  %v153 = vsel %vm94, %v41, 0
  %v156 = vsel %vm94, %v42, 0
  %v159 = vsel %vm94, %v43, 0
  %v162 = vsel %vm94, %v44, 0
  %v165 = vsel %vm94, %v45, 0
  %v168 = vsel %vm94, %v46, 0
  %v171 = vsel %vm94, %v47, 0
  %v174 = vsel %vm94, %v48, 0
  %v177 = vsel %vm94, %v49, 0
  %v180 = vsel %vm94, %v50, 0
  %v183 = vsel %vm94, %v51, 0
  %v186 = vsel %vm94, %v52, 0
  %v189 = vsel %vm94, %v53, 0
  %v192 = vsel %vm94, %v54, 0
  %v195 = vsel %vm94, %v55, 0
  %v198 = vsel %vm94, %v56, 0
  %v201 = vsel %vm94, %v57, 0
  %v204 = vsel %vm94, %v58, 0
  %v207 = vsel %vm94, %v59, 0
  %v210 = vsel %vm94, %v60, 0
  %v213 = vsel %vm94, %v61, 0
  %v216 = vsel %vm94, %v62, 0
  %v219 = vsel %vm94, %v63, 0
  %v222 = vsel %vm94, %v64, 0
  %v225 = vsel %vm94, %v65, 0
  %v228 = vsel %vm94, %v66, 0
  %v231 = vsel %vm94, %v67, 0
  %v234 = vsel %vm94, %v68, 0
  %v237 = vsel %vm94, %v69, 0
  %v240 = vsel %vm94, %v70, 0
  %v243 = vsel %vm94, %v71, 0
  %v246 = vsel %vm94, %v72, 0
  %v249 = vsel %vm94, %v73, 0
  %v252 = vsel %vm94, %v74, 0
  %v255 = vsel %vm94, %v75, 0
  %v258 = vsel %vm94, %v76, 0
  %v261 = vsel %vm94, %v77, 0
  %v264 = vsel %vm94, %v78, 0
  %v267 = vsel %vm94, %v79, 0
  %v270 = vsel %vm94, %v80, 0
  %v273 = vsel %vm94, %v81, 0
  %v276 = vsel %vm94, %v82, 0
  %v279 = vsel %vm94, %v83, 0
  %v282 = vsel %vm94, %v84, 0
  %v285 = vsel %vm94, %v85, 0
  %vm287 = vcmask 1043456
  %v289 = vsel %vm287, %v86, 0
  %291 = vmatprep.subr.mxu0 0.0
  %292 = vmatpush1.msra.mxu0 %v289
  %293 = vmatprep.subr.mxu0 0.0
  %294 = vmatpush1.msra.mxu0 0.0
  %295 = vmatprep.subr.mxu0 0.0
  %296 = vmatpush1.msra.mxu0 0.0
  %297 = vmatprep.subr.mxu0 0.0
  %298 = vmatpush1.msra.mxu0 0.0
  %299 = vmatprep.subr.mxu0 0.0
  %300 = vmatpush1.msra.mxu0 0.0
  %301 = vmatprep.subr.mxu0 0.0
  %302 = vmatpush1.msra.mxu0 0.0
  %303 = vmatprep.subr.mxu0 0.0
  %304 = vmatpush1.msra.mxu0 0.0
  %305 = vmatprep.subr.mxu0 0.0
  %306 = vmatpush1.msra.mxu0 0.0
  %307 = vmatprep.subr.mxu0 0.0
  %308 = vmatpush1.msra.mxu0 0.0
  %309 = vmatprep.subr.mxu0 0.0
  %310 = vmatpush1.msra.mxu0 0.0
  %311 = vmatprep.subr.mxu0 0.0
  %312 = vmatpush1.msra.mxu0 0.0
  %313 = vmatprep.subr.mxu0 0.0
  %314 = vmatpush1.msra.mxu0 0.0
  %315 = vmatprep.subr.mxu0 0.0
  %316 = vmatpush1.msra.mxu0 0.0
  %317 = vmatprep.subr.mxu0 0.0
  %318 = vmatpush1.msra.mxu0 0.0
  %319 = vmatprep.subr.mxu0 0.0
  %320 = vmatpush1.msra.mxu0 0.0
  %321 = vmatprep.subr.mxu0 0.0
  %322 = vmatpush1.msra.mxu0 0.0
  %323 = vmatprep.subr.mxu0 0.0
  %324 = vmatpush1.msra.mxu0 0.0
  %325 = vmatprep.subr.mxu0 0.0
  %326 = vmatpush1.msra.mxu0 0.0
  %327 = vmatprep.subr.mxu0 0.0
  %328 = vmatpush1.msra.mxu0 0.0
  %329 = vmatprep.subr.mxu0 0.0
  %330 = vmatpush1.msra.mxu0 0.0
  %331 = vmatprep.subr.mxu0 0.0
  %332 = vmatpush1.msra.mxu0 0.0
  %333 = vmatprep.subr.mxu0 0.0
  %334 = vmatpush1.msra.mxu0 0.0
  %335 = vmatprep.subr.mxu0 0.0
  %336 = vmatpush1.msra.mxu0 0.0
  %337 = vmatprep.subr.mxu0 0.0
  %338 = vmatpush1.msra.mxu0 0.0
  %339 = vmatprep.subr.mxu0 0.0
  %340 = vmatpush1.msra.mxu0 0.0
  %341 = vmatprep.subr.mxu0 0.0
  %342 = vmatpush1.msra.mxu0 0.0
  %343 = vmatprep.subr.mxu0 0.0
  %344 = vmatpush1.msra.mxu0 0.0
  %345 = vmatprep.subr.mxu0 0.0
  %346 = vmatpush1.msra.mxu0 0.0
  %347 = vmatprep.subr.mxu0 0.0
  %348 = vmatpush1.msra.mxu0 0.0
  %349 = vmatprep.subr.mxu0 0.0
  %350 = vmatpush1.msra.mxu0 0.0
  %351 = vmatprep.subr.mxu0 0.0
  %352 = vmatpush1.msra.mxu0 0.0
  %353 = vmatprep.subr.mxu0 0.0
  %354 = vmatpush1.msra.mxu0 0.0
  %355 = vmatprep.mubr.f32.mxu0 0.0
  %356 = vmatmul.mubr.f32.gmra.mrb[0].mxu0 %v96
  %v357 = vpop.f32.mrb[0].mxu0
  %v358 = vadd.f32 %v92, %v357
  %v359 = vpop.f32.mrb[0].mxu0
  %360 = vmatprep.mubr.f32.mxu0 0.0
  %361 = vmatmul.mubr.f32.gmra.mrb[0].mxu0 %v99
  %v362 = vpop.f32.mrb[0].mxu0
  %v363 = vadd.f32 %v92, %v362
  %v364 = vpop.f32.mrb[0].mxu0
  %365 = vmatprep.mubr.f32.mxu0 0.0
  %366 = vmatmul.mubr.f32.gmra.mrb[0].mxu0 %v102
  %v367 = vpop.f32.mrb[0].mxu0
  %v368 = vadd.f32 %v92, %v367
  %v369 = vpop.f32.mrb[0].mxu0
  %370 = vmatprep.mubr.f32.mxu0 0.0
  %371 = vmatmul.mubr.f32.gmra.mrb[0].mxu0 %v105
  %v372 = vpop.f32.mrb[0].mxu0
  %v373 = vadd.f32 %v92, %v372
  %v374 = vpop.f32.mrb[0].mxu0
  %375 = vmatprep.mubr.f32.mxu0 0.0
  %376 = vmatmul.mubr.f32.gmra.mrb[0].mxu0 %v108
  %v377 = vpop.f32.mrb[0].mxu0
  %v378 = vadd.f32 %v92, %v377
  %v379 = vpop.f32.mrb[0].mxu0
  %380 = vmatprep.mubr.f32.mxu0 0.0
  %381 = vmatmul.mubr.f32.gmra.mrb[0].mxu0 %v111
  %v382 = vpop.f32.mrb[0].mxu0
  %v383 = vadd.f32 %v92, %v382
  %v384 = vpop.f32.mrb[0].mxu0
  %385 = vmatprep.mubr.f32.mxu0 0.0
  %386 = vmatmul.mubr.f32.gmra.mrb[0].mxu0 %v114
  %v387 = vpop.f32.mrb[0].mxu0
  %v388 = vadd.f32 %v92, %v387
  %v389 = vpop.f32.mrb[0].mxu0
  %390 = vmatprep.mubr.f32.mxu0 0.0
  %391 = vmatmul.mubr.f32.gmra.mrb[0].mxu0 %v117
  %v392 = vpop.f32.mrb[0].mxu0
  %v393 = vadd.f32 %v92, %v392
  %v394 = vpop.f32.mrb[0].mxu0
  %395 = vmatprep.mubr.f32.mxu0 0.0
  %396 = vmatmul.mubr.f32.gmra.mrb[0].mxu0 %v120
  %v397 = vpop.f32.mrb[0].mxu0
  %v398 = vadd.f32 %v92, %v397
  %v399 = vpop.f32.mrb[0].mxu0
  %400 = vmatprep.mubr.f32.mxu0 0.0
  %401 = vmatmul.mubr.f32.gmra.mrb[0].mxu0 %v123
  %v402 = vpop.f32.mrb[0].mxu0
  %v403 = vadd.f32 %v92, %v402
  %v404 = vpop.f32.mrb[0].mxu0
  %405 = vmatprep.mubr.f32.mxu0 0.0
  %406 = vmatmul.mubr.f32.gmra.mrb[0].mxu0 %v126
  %v407 = vpop.f32.mrb[0].mxu0
  %v408 = vadd.f32 %v92, %v407
  %v409 = vpop.f32.mrb[0].mxu0
  %410 = vmatprep.mubr.f32.mxu0 0.0
  %411 = vmatmul.mubr.f32.gmra.mrb[0].mxu0 %v129
  %v412 = vpop.f32.mrb[0].mxu0
  %v413 = vadd.f32 %v92, %v412
  %v414 = vpop.f32.mrb[0].mxu0
  %415 = vmatprep.mubr.f32.mxu0 0.0
  %416 = vmatmul.mubr.f32.gmra.mrb[0].mxu0 %v132
  %v417 = vpop.f32.mrb[0].mxu0
  %v418 = vadd.f32 %v92, %v417
  %v419 = vpop.f32.mrb[0].mxu0
  %420 = vmatprep.mubr.f32.mxu0 0.0
  %421 = vmatmul.mubr.f32.gmra.mrb[0].mxu0 %v135
  %v422 = vpop.f32.mrb[0].mxu0
  %v423 = vadd.f32 %v92, %v422
  %v424 = vpop.f32.mrb[0].mxu0
  %425 = vmatprep.mubr.f32.mxu0 0.0
  %426 = vmatmul.mubr.f32.gmra.mrb[0].mxu0 %v138
  %v427 = vpop.f32.mrb[0].mxu0
  %v428 = vadd.f32 %v92, %v427
  %v429 = vpop.f32.mrb[0].mxu0
  %430 = vmatprep.mubr.f32.mxu0 0.0
  %431 = vmatmul.mubr.f32.gmra.mrb[0].mxu0 %v141
  %v432 = vpop.f32.mrb[0].mxu0
  %v433 = vadd.f32 %v92, %v432
  %v434 = vpop.f32.mrb[0].mxu0
  %435 = vmatprep.mubr.f32.mxu0 0.0
  %436 = vmatmul.mubr.f32.gmra.mrb[0].mxu0 %v144
  %v437 = vpop.f32.mrb[0].mxu0
  %v438 = vadd.f32 %v92, %v437
  %v439 = vpop.f32.mrb[0].mxu0
  %440 = vmatprep.mubr.f32.mxu0 0.0
  %441 = vmatmul.mubr.f32.gmra.mrb[0].mxu0 %v147
  %v442 = vpop.f32.mrb[0].mxu0
  %v443 = vadd.f32 %v92, %v442
  %v444 = vpop.f32.mrb[0].mxu0
  %445 = vmatprep.mubr.f32.mxu0 0.0
  %446 = vmatmul.mubr.f32.gmra.mrb[0].mxu0 %v150
  %v447 = vpop.f32.mrb[0].mxu0
  %v448 = vadd.f32 %v92, %v447
  %v449 = vpop.f32.mrb[0].mxu0
  %450 = vmatprep.mubr.f32.mxu0 0.0
  %451 = vmatmul.mubr.f32.gmra.mrb[0].mxu0 %v153
  %v452 = vpop.f32.mrb[0].mxu0
  %v453 = vadd.f32 %v92, %v452
  %v454 = vpop.f32.mrb[0].mxu0
  %455 = vmatprep.mubr.f32.mxu0 0.0
  %456 = vmatmul.mubr.f32.gmra.mrb[0].mxu0 %v156
  %v457 = vpop.f32.mrb[0].mxu0
  %v458 = vadd.f32 %v92, %v457
  %v459 = vpop.f32.mrb[0].mxu0
  %460 = vmatprep.mubr.f32.mxu0 0.0
  %461 = vmatmul.mubr.f32.gmra.mrb[0].mxu0 %v159
  %v462 = vpop.f32.mrb[0].mxu0
  %v463 = vadd.f32 %v92, %v462
  %v464 = vpop.f32.mrb[0].mxu0
  %465 = vmatprep.mubr.f32.mxu0 0.0
  %466 = vmatmul.mubr.f32.gmra.mrb[0].mxu0 %v162
  %v467 = vpop.f32.mrb[0].mxu0
  %v468 = vadd.f32 %v92, %v467
  %v469 = vpop.f32.mrb[0].mxu0
  %470 = vmatprep.mubr.f32.mxu0 0.0
  %471 = vmatmul.mubr.f32.gmra.mrb[0].mxu0 %v165
  %v472 = vpop.f32.mrb[0].mxu0
  %v473 = vadd.f32 %v92, %v472
  %v474 = vpop.f32.mrb[0].mxu0
  %475 = vmatprep.mubr.f32.mxu0 0.0
  %476 = vmatmul.mubr.f32.gmra.mrb[0].mxu0 %v168
  %v477 = vpop.f32.mrb[0].mxu0
  %v478 = vadd.f32 %v92, %v477
  %v479 = vpop.f32.mrb[0].mxu0
  %480 = vmatprep.mubr.f32.mxu0 0.0
  %481 = vmatmul.mubr.f32.gmra.mrb[0].mxu0 %v171
  %v482 = vpop.f32.mrb[0].mxu0
  %v483 = vadd.f32 %v92, %v482
  %v484 = vpop.f32.mrb[0].mxu0
  %485 = vmatprep.mubr.f32.mxu0 0.0
  %486 = vmatmul.mubr.f32.gmra.mrb[0].mxu0 %v174
  %v487 = vpop.f32.mrb[0].mxu0
  %v488 = vadd.f32 %v92, %v487
  %v489 = vpop.f32.mrb[0].mxu0
  %490 = vmatprep.mubr.f32.mxu0 0.0
  %491 = vmatmul.mubr.f32.gmra.mrb[0].mxu0 %v177
  %v492 = vpop.f32.mrb[0].mxu0
  %v493 = vadd.f32 %v92, %v492
  %v494 = vpop.f32.mrb[0].mxu0
  %495 = vmatprep.mubr.f32.mxu0 0.0
  %496 = vmatmul.mubr.f32.gmra.mrb[0].mxu0 %v180
  %v497 = vpop.f32.mrb[0].mxu0
  %v498 = vadd.f32 %v92, %v497
  %v499 = vpop.f32.mrb[0].mxu0
  %500 = vmatprep.mubr.f32.mxu0 0.0
  %501 = vmatmul.mubr.f32.gmra.mrb[0].mxu0 %v183
  %v502 = vpop.f32.mrb[0].mxu0
  %v503 = vadd.f32 %v92, %v502
  %v504 = vpop.f32.mrb[0].mxu0
  %505 = vmatprep.mubr.f32.mxu0 0.0
  %506 = vmatmul.mubr.f32.gmra.mrb[0].mxu0 %v186
  %v507 = vpop.f32.mrb[0].mxu0
  %v508 = vadd.f32 %v92, %v507
  %v509 = vpop.f32.mrb[0].mxu0
  %510 = vmatprep.mubr.f32.mxu0 0.0
  %511 = vmatmul.mubr.f32.gmra.mrb[0].mxu0 %v189
  %v512 = vpop.f32.mrb[0].mxu0
  %v513 = vadd.f32 %v92, %v512
  %v514 = vpop.f32.mrb[0].mxu0
  %515 = vmatprep.mubr.f32.mxu0 0.0
  %516 = vmatmul.mubr.f32.gmra.mrb[0].mxu0 %v192
  %v517 = vpop.f32.mrb[0].mxu0
  %v518 = vadd.f32 %v92, %v517
  %v519 = vpop.f32.mrb[0].mxu0
  %520 = vmatprep.mubr.f32.mxu0 0.0
  %521 = vmatmul.mubr.f32.gmra.mrb[0].mxu0 %v195
  %v522 = vpop.f32.mrb[0].mxu0
  %v523 = vadd.f32 %v92, %v522
  %v524 = vpop.f32.mrb[0].mxu0
  %525 = vmatprep.mubr.f32.mxu0 0.0
  %526 = vmatmul.mubr.f32.gmra.mrb[0].mxu0 %v198
  %v527 = vpop.f32.mrb[0].mxu0
  %v528 = vadd.f32 %v92, %v527
  %v529 = vpop.f32.mrb[0].mxu0
  %530 = vmatprep.mubr.f32.mxu0 0.0
  %531 = vmatmul.mubr.f32.gmra.mrb[0].mxu0 %v201
  %v532 = vpop.f32.mrb[0].mxu0
  %v533 = vadd.f32 %v92, %v532
  %v534 = vpop.f32.mrb[0].mxu0
  %535 = vmatprep.mubr.f32.mxu0 0.0
  %536 = vmatmul.mubr.f32.gmra.mrb[0].mxu0 %v204
  %v537 = vpop.f32.mrb[0].mxu0
  %v538 = vadd.f32 %v92, %v537
  %v539 = vpop.f32.mrb[0].mxu0
  %540 = vmatprep.mubr.f32.mxu0 0.0
  %541 = vmatmul.mubr.f32.gmra.mrb[0].mxu0 %v207
  %v542 = vpop.f32.mrb[0].mxu0
  %v543 = vadd.f32 %v92, %v542
  %v544 = vpop.f32.mrb[0].mxu0
  %545 = vmatprep.mubr.f32.mxu0 0.0
  %546 = vmatmul.mubr.f32.gmra.mrb[0].mxu0 %v210
  %v547 = vpop.f32.mrb[0].mxu0
  %v548 = vadd.f32 %v92, %v547
  %v549 = vpop.f32.mrb[0].mxu0
  %550 = vmatprep.mubr.f32.mxu0 0.0
  %551 = vmatmul.mubr.f32.gmra.mrb[0].mxu0 %v213
  %v552 = vpop.f32.mrb[0].mxu0
  %v553 = vadd.f32 %v92, %v552
  %v554 = vpop.f32.mrb[0].mxu0
  %555 = vmatprep.mubr.f32.mxu0 0.0
  %556 = vmatmul.mubr.f32.gmra.mrb[0].mxu0 %v216
  %v557 = vpop.f32.mrb[0].mxu0
  %v558 = vadd.f32 %v92, %v557
  %v559 = vpop.f32.mrb[0].mxu0
  %560 = vmatprep.mubr.f32.mxu0 0.0
  %561 = vmatmul.mubr.f32.gmra.mrb[0].mxu0 %v219
  %v562 = vpop.f32.mrb[0].mxu0
  %v563 = vadd.f32 %v92, %v562
  %v564 = vpop.f32.mrb[0].mxu0
  %565 = vmatprep.mubr.f32.mxu0 0.0
  %566 = vmatmul.mubr.f32.gmra.mrb[0].mxu0 %v222
  %v567 = vpop.f32.mrb[0].mxu0
  %v568 = vadd.f32 %v92, %v567
  %v569 = vpop.f32.mrb[0].mxu0
  %570 = vmatprep.mubr.f32.mxu0 0.0
  %571 = vmatmul.mubr.f32.gmra.mrb[0].mxu0 %v225
  %v572 = vpop.f32.mrb[0].mxu0
  %v573 = vadd.f32 %v92, %v572
  %v574 = vpop.f32.mrb[0].mxu0
  %575 = vmatprep.mubr.f32.mxu0 0.0
  %576 = vmatmul.mubr.f32.gmra.mrb[0].mxu0 %v228
  %v577 = vpop.f32.mrb[0].mxu0
  %v578 = vadd.f32 %v92, %v577
  %v579 = vpop.f32.mrb[0].mxu0
  %580 = vmatprep.mubr.f32.mxu0 0.0
  %581 = vmatmul.mubr.f32.gmra.mrb[0].mxu0 %v231
  %v582 = vpop.f32.mrb[0].mxu0
  %v583 = vadd.f32 %v92, %v582
  %v584 = vpop.f32.mrb[0].mxu0
  %585 = vmatprep.mubr.f32.mxu0 0.0
  %586 = vmatmul.mubr.f32.gmra.mrb[0].mxu0 %v234
  %v587 = vpop.f32.mrb[0].mxu0
  %v588 = vadd.f32 %v92, %v587
  %v589 = vpop.f32.mrb[0].mxu0
  %590 = vmatprep.mubr.f32.mxu0 0.0
  %591 = vmatmul.mubr.f32.gmra.mrb[0].mxu0 %v237
  %v592 = vpop.f32.mrb[0].mxu0
  %v593 = vadd.f32 %v92, %v592
  %v594 = vpop.f32.mrb[0].mxu0
  %595 = vmatprep.mubr.f32.mxu0 0.0
  %596 = vmatmul.mubr.f32.gmra.mrb[0].mxu0 %v240
  %v597 = vpop.f32.mrb[0].mxu0
  %v598 = vadd.f32 %v92, %v597
  %v599 = vpop.f32.mrb[0].mxu0
  %600 = vmatprep.mubr.f32.mxu0 0.0
  %601 = vmatmul.mubr.f32.gmra.mrb[0].mxu0 %v243
  %v602 = vpop.f32.mrb[0].mxu0
  %v603 = vadd.f32 %v92, %v602
  %v604 = vpop.f32.mrb[0].mxu0
  %605 = vmatprep.mubr.f32.mxu0 0.0
  %606 = vmatmul.mubr.f32.gmra.mrb[0].mxu0 %v246
  %v607 = vpop.f32.mrb[0].mxu0
  %v608 = vadd.f32 %v92, %v607
  %v609 = vpop.f32.mrb[0].mxu0
  %610 = vmatprep.mubr.f32.mxu0 0.0
  %611 = vmatmul.mubr.f32.gmra.mrb[0].mxu0 %v249
  %v612 = vpop.f32.mrb[0].mxu0
  %v613 = vadd.f32 %v92, %v612
  %v614 = vpop.f32.mrb[0].mxu0
  %615 = vmatprep.mubr.f32.mxu0 0.0
  %616 = vmatmul.mubr.f32.gmra.mrb[0].mxu0 %v252
  %v617 = vpop.f32.mrb[0].mxu0
  %v618 = vadd.f32 %v92, %v617
  %v619 = vpop.f32.mrb[0].mxu0
  %620 = vmatprep.mubr.f32.mxu0 0.0
  %621 = vmatmul.mubr.f32.gmra.mrb[0].mxu0 %v255
  %v622 = vpop.f32.mrb[0].mxu0
  %v623 = vadd.f32 %v92, %v622
  %v624 = vpop.f32.mrb[0].mxu0
  %625 = vmatprep.mubr.f32.mxu0 0.0
  %626 = vmatmul.mubr.f32.gmra.mrb[0].mxu0 %v258
  %v627 = vpop.f32.mrb[0].mxu0
  %v628 = vadd.f32 %v92, %v627
  %v629 = vpop.f32.mrb[0].mxu0
  %630 = vmatprep.mubr.f32.mxu0 0.0
  %631 = vmatmul.mubr.f32.gmra.mrb[0].mxu0 %v261
  %v632 = vpop.f32.mrb[0].mxu0
  %v633 = vadd.f32 %v92, %v632
  %v634 = vpop.f32.mrb[0].mxu0
  %635 = vmatprep.mubr.f32.mxu0 0.0
  %636 = vmatmul.mubr.f32.gmra.mrb[0].mxu0 %v264
  %v637 = vpop.f32.mrb[0].mxu0
  %v638 = vadd.f32 %v92, %v637
  %v639 = vpop.f32.mrb[0].mxu0
  %640 = vmatprep.mubr.f32.mxu0 0.0
  %641 = vmatmul.mubr.f32.gmra.mrb[0].mxu0 %v267
  %v642 = vpop.f32.mrb[0].mxu0
  %v643 = vadd.f32 %v92, %v642
  %v644 = vpop.f32.mrb[0].mxu0
  %645 = vmatprep.mubr.f32.mxu0 0.0
  %646 = vmatmul.mubr.f32.gmra.mrb[0].mxu0 %v270
  %v647 = vpop.f32.mrb[0].mxu0
  %v648 = vadd.f32 %v92, %v647
  %v649 = vpop.f32.mrb[0].mxu0
  %650 = vmatprep.mubr.f32.mxu0 0.0
  %651 = vmatmul.mubr.f32.gmra.mrb[0].mxu0 %v273
  %v652 = vpop.f32.mrb[0].mxu0
  %v653 = vadd.f32 %v92, %v652
  %v654 = vpop.f32.mrb[0].mxu0
  %655 = vmatprep.mubr.f32.mxu0 0.0
  %656 = vmatmul.mubr.f32.gmra.mrb[0].mxu0 %v276
  %v657 = vpop.f32.mrb[0].mxu0
  %v658 = vadd.f32 %v92, %v657
  %v659 = vpop.f32.mrb[0].mxu0
  %660 = vmatprep.mubr.f32.mxu0 0.0
  %661 = vmatmul.mubr.f32.gmra.mrb[0].mxu0 %v279
  %v662 = vpop.f32.mrb[0].mxu0
  %v663 = vadd.f32 %v92, %v662
  %v664 = vpop.f32.mrb[0].mxu0
  %665 = vmatprep.mubr.f32.mxu0 0.0
  %666 = vmatmul.mubr.f32.gmra.mrb[0].mxu0 %v282
  %v667 = vpop.f32.mrb[0].mxu0
  %v668 = vadd.f32 %v92, %v667
  %v669 = vpop.f32.mrb[0].mxu0
  %670 = vmatprep.mubr.f32.mxu0 0.0
  %671 = vmatmul.mubr.f32.gmra.mrb[0].mxu0 %v285
  %v672 = vpop.f32.mrb[0].mxu0
  %v673 = vadd.f32 %v92, %v672
  %v674 = vpop.f32.mrb[0].mxu0
  %675 = vdwg.mxu0
  %v676 = vxor.u32 %v358, 2147483648
  %v677 = vxor.u32 %v363, 2147483648
  %v678 = vxor.u32 %v368, 2147483648
  %v679 = vxor.u32 %v373, 2147483648
  %v680 = vxor.u32 %v378, 2147483648
  %v681 = vxor.u32 %v383, 2147483648
  %v682 = vxor.u32 %v388, 2147483648
  %v683 = vxor.u32 %v393, 2147483648
  %v684 = vxor.u32 %v398, 2147483648
  %v685 = vxor.u32 %v403, 2147483648
  %v686 = vxor.u32 %v408, 2147483648
  %v687 = vxor.u32 %v413, 2147483648
  %v688 = vxor.u32 %v418, 2147483648
  %v689 = vxor.u32 %v423, 2147483648
  %v690 = vxor.u32 %v428, 2147483648
  %v691 = vxor.u32 %v433, 2147483648
  %v692 = vxor.u32 %v438, 2147483648
  %v693 = vxor.u32 %v443, 2147483648
  %v694 = vxor.u32 %v448, 2147483648
  %v695 = vxor.u32 %v453, 2147483648
  %v696 = vxor.u32 %v458, 2147483648
  %v697 = vxor.u32 %v463, 2147483648
  %v698 = vxor.u32 %v468, 2147483648
  %v699 = vxor.u32 %v473, 2147483648
  %v700 = vxor.u32 %v478, 2147483648
  %v701 = vxor.u32 %v483, 2147483648
  %v702 = vxor.u32 %v488, 2147483648
  %v703 = vxor.u32 %v493, 2147483648
  %v704 = vxor.u32 %v498, 2147483648
  %v705 = vxor.u32 %v503, 2147483648
  %v706 = vxor.u32 %v508, 2147483648
  %v707 = vxor.u32 %v513, 2147483648
  %v708 = vxor.u32 %v518, 2147483648
  %v709 = vxor.u32 %v523, 2147483648
  %v710 = vxor.u32 %v528, 2147483648
  %v711 = vxor.u32 %v533, 2147483648
  %v712 = vxor.u32 %v538, 2147483648
  %v713 = vxor.u32 %v543, 2147483648
  %v714 = vxor.u32 %v548, 2147483648
  %v715 = vxor.u32 %v553, 2147483648
  %v716 = vxor.u32 %v558, 2147483648
  %v717 = vxor.u32 %v563, 2147483648
  %v718 = vxor.u32 %v568, 2147483648
  %v719 = vxor.u32 %v573, 2147483648
  %v720 = vxor.u32 %v578, 2147483648
  %v721 = vxor.u32 %v583, 2147483648
  %v722 = vxor.u32 %v588, 2147483648
  %v723 = vxor.u32 %v593, 2147483648
  %v724 = vxor.u32 %v598, 2147483648
  %v725 = vxor.u32 %v603, 2147483648
  %v726 = vxor.u32 %v608, 2147483648
  %v727 = vxor.u32 %v613, 2147483648
  %v728 = vxor.u32 %v618, 2147483648
  %v729 = vxor.u32 %v623, 2147483648
  %v730 = vxor.u32 %v628, 2147483648
  %v731 = vxor.u32 %v633, 2147483648
  %v732 = vxor.u32 %v638, 2147483648
  %v733 = vxor.u32 %v643, 2147483648
  %v734 = vxor.u32 %v648, 2147483648
  %v735 = vxor.u32 %v653, 2147483648
  %v736 = vxor.u32 %v658, 2147483648
  %v737 = vxor.u32 %v663, 2147483648
  %v738 = vxor.u32 %v668, 2147483648
  %v739 = vxor.u32 %v673, 2147483648
  %v740 = vmul.f32 %v676, 1.442695
  %v741 = vpow.pop %v740
  %v742 = vmul.f32 %v677, 1.442695
  %v743 = vpow.pop %v742
  %v744 = vmul.f32 %v678, 1.442695
  %v745 = vpow.pop %v744
  %v746 = vmul.f32 %v679, 1.442695
  %v747 = vpow.pop %v746
  %v748 = vmul.f32 %v680, 1.442695
  %v749 = vpow.pop %v748
  %v750 = vmul.f32 %v681, 1.442695
  %v751 = vpow.pop %v750
  %v752 = vmul.f32 %v682, 1.442695
  %v753 = vpow.pop %v752
  %v754 = vmul.f32 %v683, 1.442695
  %v755 = vpow.pop %v754
  %v756 = vmul.f32 %v684, 1.442695
  %v757 = vpow.pop %v756
  %v758 = vmul.f32 %v685, 1.442695
  %v759 = vpow.pop %v758
  %v760 = vmul.f32 %v686, 1.442695
  %v761 = vpow.pop %v760
  %v762 = vmul.f32 %v687, 1.442695
  %v763 = vpow.pop %v762
  %v764 = vmul.f32 %v688, 1.442695
  %v765 = vpow.pop %v764
  %v766 = vmul.f32 %v689, 1.442695
  %v767 = vpow.pop %v766
  %v768 = vmul.f32 %v690, 1.442695
  %v769 = vpow.pop %v768
  %v770 = vmul.f32 %v691, 1.442695
  %v771 = vpow.pop %v770
  %v772 = vmul.f32 %v692, 1.442695
  %v773 = vpow.pop %v772
  %v774 = vmul.f32 %v693, 1.442695
  %v775 = vpow.pop %v774
  %v776 = vmul.f32 %v694, 1.442695
  %v777 = vpow.pop %v776
  %v778 = vmul.f32 %v695, 1.442695
  %v779 = vpow.pop %v778
  %v780 = vmul.f32 %v696, 1.442695
  %v781 = vpow.pop %v780
  %v782 = vmul.f32 %v697, 1.442695
  %v783 = vpow.pop %v782
  %v784 = vmul.f32 %v698, 1.442695
  %v785 = vpow.pop %v784
  %v786 = vmul.f32 %v699, 1.442695
  %v787 = vpow.pop %v786
  %v788 = vmul.f32 %v700, 1.442695
  %v789 = vpow.pop %v788
  %v790 = vmul.f32 %v701, 1.442695
  %v791 = vpow.pop %v790
  %v792 = vmul.f32 %v702, 1.442695
  %v793 = vpow.pop %v792
  %v794 = vmul.f32 %v703, 1.442695
  %v795 = vpow.pop %v794
  %v796 = vmul.f32 %v704, 1.442695
  %v797 = vpow.pop %v796
  %v798 = vmul.f32 %v705, 1.442695
  %v799 = vpow.pop %v798
  %v800 = vmul.f32 %v706, 1.442695
  %v801 = vpow.pop %v800
  %v802 = vmul.f32 %v707, 1.442695
  %v803 = vpow.pop %v802
  %v804 = vmul.f32 %v708, 1.442695
  %v805 = vpow.pop %v804
  %v806 = vmul.f32 %v709, 1.442695
  %v807 = vpow.pop %v806
  %v808 = vmul.f32 %v710, 1.442695
  %v809 = vpow.pop %v808
  %v810 = vmul.f32 %v711, 1.442695
  %v811 = vpow.pop %v810
  %v812 = vmul.f32 %v712, 1.442695
  %v813 = vpow.pop %v812
  %v814 = vmul.f32 %v713, 1.442695
  %v815 = vpow.pop %v814
  %v816 = vmul.f32 %v714, 1.442695
  %v817 = vpow.pop %v816
  %v818 = vmul.f32 %v715, 1.442695
  %v819 = vpow.pop %v818
  %v820 = vmul.f32 %v716, 1.442695
  %v821 = vpow.pop %v820
  %v822 = vmul.f32 %v717, 1.442695
  %v823 = vpow.pop %v822
  %v824 = vmul.f32 %v718, 1.442695
  %v825 = vpow.pop %v824
  %v826 = vmul.f32 %v719, 1.442695
  %v827 = vpow.pop %v826
  %v828 = vmul.f32 %v720, 1.442695
  %v829 = vpow.pop %v828
  %v830 = vmul.f32 %v721, 1.442695
  %v831 = vpow.pop %v830
  %v832 = vmul.f32 %v722, 1.442695
  %v833 = vpow.pop %v832
  %v834 = vmul.f32 %v723, 1.442695
  %v835 = vpow.pop %v834
  %v836 = vmul.f32 %v724, 1.442695
  %v837 = vpow.pop %v836
  %v838 = vmul.f32 %v725, 1.442695
  %v839 = vpow.pop %v838
  %v840 = vmul.f32 %v726, 1.442695
  %v841 = vpow.pop %v840
  %v842 = vmul.f32 %v727, 1.442695
  %v843 = vpow.pop %v842
  %v844 = vmul.f32 %v728, 1.442695
  %v845 = vpow.pop %v844
  %v846 = vmul.f32 %v729, 1.442695
  %v847 = vpow.pop %v846
  %v848 = vmul.f32 %v730, 1.442695
  %v849 = vpow.pop %v848
  %v850 = vmul.f32 %v731, 1.442695
  %v851 = vpow.pop %v850
  %v852 = vmul.f32 %v732, 1.442695
  %v853 = vpow.pop %v852
  %v854 = vmul.f32 %v733, 1.442695
  %v855 = vpow.pop %v854
  %v856 = vmul.f32 %v734, 1.442695
  %v857 = vpow.pop %v856
  %v858 = vmul.f32 %v735, 1.442695
  %v859 = vpow.pop %v858
  %v860 = vmul.f32 %v736, 1.442695
  %v861 = vpow.pop %v860
  %v862 = vmul.f32 %v737, 1.442695
  %v863 = vpow.pop %v862
  %v864 = vmul.f32 %v738, 1.442695
  %v865 = vpow.pop %v864
  %v866 = vmul.f32 %v739, 1.442695
  %v867 = vpow.pop %v866
  %v868 = vadd.f32 %v741, 1.0
  %v869 = vadd.f32 %v743, 1.0
  %v870 = vadd.f32 %v745, 1.0
  %v871 = vadd.f32 %v747, 1.0
  %v872 = vadd.f32 %v749, 1.0
  %v873 = vadd.f32 %v751, 1.0
  %v874 = vadd.f32 %v753, 1.0
  %v875 = vadd.f32 %v755, 1.0
  %v876 = vadd.f32 %v757, 1.0
  %v877 = vadd.f32 %v759, 1.0
  %v878 = vadd.f32 %v761, 1.0
  %v879 = vadd.f32 %v763, 1.0
  %v880 = vadd.f32 %v765, 1.0
  %v881 = vadd.f32 %v767, 1.0
  %v882 = vadd.f32 %v769, 1.0
  %v883 = vadd.f32 %v771, 1.0
  %v884 = vadd.f32 %v773, 1.0
  %v885 = vadd.f32 %v775, 1.0
  %v886 = vadd.f32 %v777, 1.0
  %v887 = vadd.f32 %v779, 1.0
  %v888 = vadd.f32 %v781, 1.0
  %v889 = vadd.f32 %v783, 1.0
  %v890 = vadd.f32 %v785, 1.0
  %v891 = vadd.f32 %v787, 1.0
  %v892 = vadd.f32 %v789, 1.0
  %v893 = vadd.f32 %v791, 1.0
  %v894 = vadd.f32 %v793, 1.0
  %v895 = vadd.f32 %v795, 1.0
  %v896 = vadd.f32 %v797, 1.0
  %v897 = vadd.f32 %v799, 1.0
  %v898 = vadd.f32 %v801, 1.0
  %v899 = vadd.f32 %v803, 1.0
  %v900 = vadd.f32 %v805, 1.0
  %v901 = vadd.f32 %v807, 1.0
  %v902 = vadd.f32 %v809, 1.0
  %v903 = vadd.f32 %v811, 1.0
  %v904 = vadd.f32 %v813, 1.0
  %v905 = vadd.f32 %v815, 1.0
  %v906 = vadd.f32 %v817, 1.0
  %v907 = vadd.f32 %v819, 1.0
  %v908 = vadd.f32 %v821, 1.0
  %v909 = vadd.f32 %v823, 1.0
  %v910 = vadd.f32 %v825, 1.0
  %v911 = vadd.f32 %v827, 1.0
  %v912 = vadd.f32 %v829, 1.0
  %v913 = vadd.f32 %v831, 1.0
  %v914 = vadd.f32 %v833, 1.0
  %v915 = vadd.f32 %v835, 1.0
  %v916 = vadd.f32 %v837, 1.0
  %v917 = vadd.f32 %v839, 1.0
  %v918 = vadd.f32 %v841, 1.0
  %v919 = vadd.f32 %v843, 1.0
  %v920 = vadd.f32 %v845, 1.0
  %v921 = vadd.f32 %v847, 1.0
  %v922 = vadd.f32 %v849, 1.0
  %v923 = vadd.f32 %v851, 1.0
  %v924 = vadd.f32 %v853, 1.0
  %v925 = vadd.f32 %v855, 1.0
  %v926 = vadd.f32 %v857, 1.0
  %v927 = vadd.f32 %v859, 1.0
  %v928 = vadd.f32 %v861, 1.0
  %v929 = vadd.f32 %v863, 1.0
  %v930 = vadd.f32 %v865, 1.0
  %v931 = vadd.f32 %v867, 1.0
  %v932 = vrcp.pop %v868
  %v933 = vmul.f32 1.0, %v932
  %v934 = vrcp.pop %v869
  %v935 = vmul.f32 1.0, %v934
  %v936 = vrcp.pop %v870
  %v937 = vmul.f32 1.0, %v936
  %v938 = vrcp.pop %v871
  %v939 = vmul.f32 1.0, %v938
  %v940 = vrcp.pop %v872
  %v941 = vmul.f32 1.0, %v940
  %v942 = vrcp.pop %v873
  %v943 = vmul.f32 1.0, %v942
  %v944 = vrcp.pop %v874
  %v945 = vmul.f32 1.0, %v944
  %v946 = vrcp.pop %v875
  %v947 = vmul.f32 1.0, %v946
  %v948 = vrcp.pop %v876
  %v949 = vmul.f32 1.0, %v948
  %v950 = vrcp.pop %v877
  %v951 = vmul.f32 1.0, %v950
  %v952 = vrcp.pop %v878
  %v953 = vmul.f32 1.0, %v952
  %v954 = vrcp.pop %v879
  %v955 = vmul.f32 1.0, %v954
  %v956 = vrcp.pop %v880
  %v957 = vmul.f32 1.0, %v956
  %v958 = vrcp.pop %v881
  %v959 = vmul.f32 1.0, %v958
  %v960 = vrcp.pop %v882
  %v961 = vmul.f32 1.0, %v960
  %v962 = vrcp.pop %v883
  %v963 = vmul.f32 1.0, %v962
  %v964 = vrcp.pop %v884
  %v965 = vmul.f32 1.0, %v964
  %v966 = vrcp.pop %v885
  %v967 = vmul.f32 1.0, %v966
  %v968 = vrcp.pop %v886
  %v969 = vmul.f32 1.0, %v968
  %v970 = vrcp.pop %v887
  %v971 = vmul.f32 1.0, %v970
  %v972 = vrcp.pop %v888
  %v973 = vmul.f32 1.0, %v972
  %v974 = vrcp.pop %v889
  %v975 = vmul.f32 1.0, %v974
  %v976 = vrcp.pop %v890
  %v977 = vmul.f32 1.0, %v976
  %v978 = vrcp.pop %v891
  %v979 = vmul.f32 1.0, %v978
  %v980 = vrcp.pop %v892
  %v981 = vmul.f32 1.0, %v980
  %v982 = vrcp.pop %v893
  %v983 = vmul.f32 1.0, %v982
  %v984 = vrcp.pop %v894
  %v985 = vmul.f32 1.0, %v984
  %v986 = vrcp.pop %v895
  %v987 = vmul.f32 1.0, %v986
  %v988 = vrcp.pop %v896
  %v989 = vmul.f32 1.0, %v988
  %v990 = vrcp.pop %v897
  %v991 = vmul.f32 1.0, %v990
  %v992 = vrcp.pop %v898
  %v993 = vmul.f32 1.0, %v992
  %v994 = vrcp.pop %v899
  %v995 = vmul.f32 1.0, %v994
  %v996 = vrcp.pop %v900
  %v997 = vmul.f32 1.0, %v996
  %v998 = vrcp.pop %v901
  %v999 = vmul.f32 1.0, %v998
  %v1000 = vrcp.pop %v902
  %v1001 = vmul.f32 1.0, %v1000
  %v1002 = vrcp.pop %v903
  %v1003 = vmul.f32 1.0, %v1002
  %v1004 = vrcp.pop %v904
  %v1005 = vmul.f32 1.0, %v1004
  %v1006 = vrcp.pop %v905
  %v1007 = vmul.f32 1.0, %v1006
  %v1008 = vrcp.pop %v906
  %v1009 = vmul.f32 1.0, %v1008
  %v1010 = vrcp.pop %v907
  %v1011 = vmul.f32 1.0, %v1010
  %v1012 = vrcp.pop %v908
  %v1013 = vmul.f32 1.0, %v1012
  %v1014 = vrcp.pop %v909
  %v1015 = vmul.f32 1.0, %v1014
  %v1016 = vrcp.pop %v910
  %v1017 = vmul.f32 1.0, %v1016
  %v1018 = vrcp.pop %v911
  %v1019 = vmul.f32 1.0, %v1018
  %v1020 = vrcp.pop %v912
  %v1021 = vmul.f32 1.0, %v1020
  %v1022 = vrcp.pop %v913
  %v1023 = vmul.f32 1.0, %v1022
  %v1024 = vrcp.pop %v914
  %v1025 = vmul.f32 1.0, %v1024
  %v1026 = vrcp.pop %v915
  %v1027 = vmul.f32 1.0, %v1026
  %v1028 = vrcp.pop %v916
  %v1029 = vmul.f32 1.0, %v1028
  %v1030 = vrcp.pop %v917
  %v1031 = vmul.f32 1.0, %v1030
  %v1032 = vrcp.pop %v918
  %v1033 = vmul.f32 1.0, %v1032
  %v1034 = vrcp.pop %v919
  %v1035 = vmul.f32 1.0, %v1034
  %v1036 = vrcp.pop %v920
  %v1037 = vmul.f32 1.0, %v1036
  %v1038 = vrcp.pop %v921
  %v1039 = vmul.f32 1.0, %v1038
  %v1040 = vrcp.pop %v922
  %v1041 = vmul.f32 1.0, %v1040
  %v1042 = vrcp.pop %v923
  %v1043 = vmul.f32 1.0, %v1042
  %v1044 = vrcp.pop %v924
  %v1045 = vmul.f32 1.0, %v1044
  %v1046 = vrcp.pop %v925
  %v1047 = vmul.f32 1.0, %v1046
  %v1048 = vrcp.pop %v926
  %v1049 = vmul.f32 1.0, %v1048
  %v1050 = vrcp.pop %v927
  %v1051 = vmul.f32 1.0, %v1050
  %v1052 = vrcp.pop %v928
  %v1053 = vmul.f32 1.0, %v1052
  %v1054 = vrcp.pop %v929
  %v1055 = vmul.f32 1.0, %v1054
  %v1056 = vrcp.pop %v930
  %v1057 = vmul.f32 1.0, %v1056
  %v1058 = vrcp.pop %v931
  %v1059 = vmul.f32 1.0, %v1058
  %v1060 = vmul.f32 %v358, %v933
  %v1061 = vmul.f32 %v363, %v935
  %v1062 = vmul.f32 %v368, %v937
  %v1063 = vmul.f32 %v373, %v939
  %v1064 = vmul.f32 %v378, %v941
  %v1065 = vmul.f32 %v383, %v943
  %v1066 = vmul.f32 %v388, %v945
  %v1067 = vmul.f32 %v393, %v947
  %v1068 = vmul.f32 %v398, %v949
  %v1069 = vmul.f32 %v403, %v951
  %v1070 = vmul.f32 %v408, %v953
  %v1071 = vmul.f32 %v413, %v955
  %v1072 = vmul.f32 %v418, %v957
  %v1073 = vmul.f32 %v423, %v959
  %v1074 = vmul.f32 %v428, %v961
  %v1075 = vmul.f32 %v433, %v963
  %v1076 = vmul.f32 %v438, %v965
  %v1077 = vmul.f32 %v443, %v967
  %v1078 = vmul.f32 %v448, %v969
  %v1079 = vmul.f32 %v453, %v971
  %v1080 = vmul.f32 %v458, %v973
  %v1081 = vmul.f32 %v463, %v975
  %v1082 = vmul.f32 %v468, %v977
  %v1083 = vmul.f32 %v473, %v979
  %v1084 = vmul.f32 %v478, %v981
  %v1085 = vmul.f32 %v483, %v983
  %v1086 = vmul.f32 %v488, %v985
  %v1087 = vmul.f32 %v493, %v987
  %v1088 = vmul.f32 %v498, %v989
  %v1089 = vmul.f32 %v503, %v991
  %v1090 = vmul.f32 %v508, %v993
  %v1091 = vmul.f32 %v513, %v995
  %v1092 = vmul.f32 %v518, %v997
  %v1093 = vmul.f32 %v523, %v999
  %v1094 = vmul.f32 %v528, %v1001
  %v1095 = vmul.f32 %v533, %v1003
  %v1096 = vmul.f32 %v538, %v1005
  %v1097 = vmul.f32 %v543, %v1007
  %v1098 = vmul.f32 %v548, %v1009
  %v1099 = vmul.f32 %v553, %v1011
  %v1100 = vmul.f32 %v558, %v1013
  %v1101 = vmul.f32 %v563, %v1015
  %v1102 = vmul.f32 %v568, %v1017
  %v1103 = vmul.f32 %v573, %v1019
  %v1104 = vmul.f32 %v578, %v1021
  %v1105 = vmul.f32 %v583, %v1023
  %v1106 = vmul.f32 %v588, %v1025
  %v1107 = vmul.f32 %v593, %v1027
  %v1108 = vmul.f32 %v598, %v1029
  %v1109 = vmul.f32 %v603, %v1031
  %v1110 = vmul.f32 %v608, %v1033
  %v1111 = vmul.f32 %v613, %v1035
  %v1112 = vmul.f32 %v618, %v1037
  %v1113 = vmul.f32 %v623, %v1039
  %v1114 = vmul.f32 %v628, %v1041
  %v1115 = vmul.f32 %v633, %v1043
  %v1116 = vmul.f32 %v638, %v1045
  %v1117 = vmul.f32 %v643, %v1047
  %v1118 = vmul.f32 %v648, %v1049
  %v1119 = vmul.f32 %v653, %v1051
  %v1120 = vmul.f32 %v658, %v1053
  %v1121 = vmul.f32 %v663, %v1055
  %v1122 = vmul.f32 %v668, %v1057
  %v1123 = vmul.f32 %v673, %v1059
  %1124 = vst.msk [vmem:[%s5] sm:$0xff] %vm94, %v1060
  %1125 = vst.msk [vmem:[%s5 + $0x8] sm:$0xff] %vm94, %v1061
  %1126 = vst.msk [vmem:[%s5 + $0x10] sm:$0xff] %vm94, %v1062
  %1127 = vst.msk [vmem:[%s5 + $0x18] sm:$0xff] %vm94, %v1063
  %1128 = vst.msk [vmem:[%s5 + $0x20] sm:$0xff] %vm94, %v1064
  %1129 = vst.msk [vmem:[%s5 + $0x28] sm:$0xff] %vm94, %v1065
  %1130 = vst.msk [vmem:[%s5 + $0x30] sm:$0xff] %vm94, %v1066
  %1131 = vst.msk [vmem:[%s5 + $0x38] sm:$0xff] %vm94, %v1067
  %1132 = vst.msk [vmem:[%s5 + $0x40] sm:$0xff] %vm94, %v1068
  %1133 = vst.msk [vmem:[%s5 + $0x48] sm:$0xff] %vm94, %v1069
  %1134 = vst.msk [vmem:[%s5 + $0x50] sm:$0xff] %vm94, %v1070
  %1135 = vst.msk [vmem:[%s5 + $0x58] sm:$0xff] %vm94, %v1071
  %1136 = vst.msk [vmem:[%s5 + $0x60] sm:$0xff] %vm94, %v1072
  %1137 = vst.msk [vmem:[%s5 + $0x68] sm:$0xff] %vm94, %v1073
  %1138 = vst.msk [vmem:[%s5 + $0x70] sm:$0xff] %vm94, %v1074
  %1139 = vst.msk [vmem:[%s5 + $0x78] sm:$0xff] %vm94, %v1075
  %1140 = vst.msk [vmem:[%s5 + $0x80] sm:$0xff] %vm94, %v1076
  %1141 = vst.msk [vmem:[%s5 + $0x88] sm:$0xff] %vm94, %v1077
  %1142 = vst.msk [vmem:[%s5 + $0x90] sm:$0xff] %vm94, %v1078
  %1143 = vst.msk [vmem:[%s5 + $0x98] sm:$0xff] %vm94, %v1079
  %1144 = vst.msk [vmem:[%s5 + $0xa0] sm:$0xff] %vm94, %v1080
  %1145 = vst.msk [vmem:[%s5 + $0xa8] sm:$0xff] %vm94, %v1081
  %1146 = vst.msk [vmem:[%s5 + $0xb0] sm:$0xff] %vm94, %v1082
  %1147 = vst.msk [vmem:[%s5 + $0xb8] sm:$0xff] %vm94, %v1083
  %1148 = vst.msk [vmem:[%s5 + $0xc0] sm:$0xff] %vm94, %v1084
  %1149 = vst.msk [vmem:[%s5 + $0xc8] sm:$0xff] %vm94, %v1085
  %1150 = vst.msk [vmem:[%s5 + $0xd0] sm:$0xff] %vm94, %v1086
  %1151 = vst.msk [vmem:[%s5 + $0xd8] sm:$0xff] %vm94, %v1087
  %1152 = vst.msk [vmem:[%s5 + $0xe0] sm:$0xff] %vm94, %v1088
  %1153 = vst.msk [vmem:[%s5 + $0xe8] sm:$0xff] %vm94, %v1089
  %1154 = vst.msk [vmem:[%s5 + $0xf0] sm:$0xff] %vm94, %v1090
  %1155 = vst.msk [vmem:[%s5 + $0xf8] sm:$0xff] %vm94, %v1091
  %1156 = vst.msk [vmem:[%s5 + $0x100] sm:$0xff] %vm94, %v1092
  %1157 = vst.msk [vmem:[%s5 + $0x108] sm:$0xff] %vm94, %v1093
  %1158 = vst.msk [vmem:[%s5 + $0x110] sm:$0xff] %vm94, %v1094
  %1159 = vst.msk [vmem:[%s5 + $0x118] sm:$0xff] %vm94, %v1095
  %1160 = vst.msk [vmem:[%s5 + $0x120] sm:$0xff] %vm94, %v1096
  %1161 = vst.msk [vmem:[%s5 + $0x128] sm:$0xff] %vm94, %v1097
  %1162 = vst.msk [vmem:[%s5 + $0x130] sm:$0xff] %vm94, %v1098
  %1163 = vst.msk [vmem:[%s5 + $0x138] sm:$0xff] %vm94, %v1099
  %1164 = vst.msk [vmem:[%s5 + $0x140] sm:$0xff] %vm94, %v1100
  %1165 = vst.msk [vmem:[%s5 + $0x148] sm:$0xff] %vm94, %v1101
  %1166 = vst.msk [vmem:[%s5 + $0x150] sm:$0xff] %vm94, %v1102
  %1167 = vst.msk [vmem:[%s5 + $0x158] sm:$0xff] %vm94, %v1103
  %1168 = vst.msk [vmem:[%s5 + $0x160] sm:$0xff] %vm94, %v1104
  %1169 = vst.msk [vmem:[%s5 + $0x168] sm:$0xff] %vm94, %v1105
  %1170 = vst.msk [vmem:[%s5 + $0x170] sm:$0xff] %vm94, %v1106
  %1171 = vst.msk [vmem:[%s5 + $0x178] sm:$0xff] %vm94, %v1107
  %1172 = vst.msk [vmem:[%s5 + $0x180] sm:$0xff] %vm94, %v1108
  %1173 = vst.msk [vmem:[%s5 + $0x188] sm:$0xff] %vm94, %v1109
  %1174 = vst.msk [vmem:[%s5 + $0x190] sm:$0xff] %vm94, %v1110
  %1175 = vst.msk [vmem:[%s5 + $0x198] sm:$0xff] %vm94, %v1111
  %1176 = vst.msk [vmem:[%s5 + $0x1a0] sm:$0xff] %vm94, %v1112
  %1177 = vst.msk [vmem:[%s5 + $0x1a8] sm:$0xff] %vm94, %v1113
  %1178 = vst.msk [vmem:[%s5 + $0x1b0] sm:$0xff] %vm94, %v1114
  %1179 = vst.msk [vmem:[%s5 + $0x1b8] sm:$0xff] %vm94, %v1115
  %1180 = vst.msk [vmem:[%s5 + $0x1c0] sm:$0xff] %vm94, %v1116
  %1181 = vst.msk [vmem:[%s5 + $0x1c8] sm:$0xff] %vm94, %v1117
  %1182 = vst.msk [vmem:[%s5 + $0x1d0] sm:$0xff] %vm94, %v1118
  %1183 = vst.msk [vmem:[%s5 + $0x1d8] sm:$0xff] %vm94, %v1119
  %1184 = vst.msk [vmem:[%s5 + $0x1e0] sm:$0xff] %vm94, %v1120
  %1185 = vst.msk [vmem:[%s5 + $0x1e8] sm:$0xff] %vm94, %v1121
  %1186 = vst.msk [vmem:[%s5 + $0x1f0] sm:$0xff] %vm94, %v1122
  %1187 = vst.msk [vmem:[%s5 + $0x1f8] sm:$0xff] %vm94, %v1123
  %v1188 = vld [vmem:[%s3] sm:$0xf]
  %v1189 = vld [vmem:[%s4] sm:$0x1]
  %v1191 = vlaneseq
  %v1192 = vshrl.u32 %v1191, 7
  %v1193 = vsub.s32 0, %v1192
  %v1194 = vrot.slane %v1189, %v1193
  %v1197 = vsel %vm287, %v1188, 0
  %1199 = vmatprep.subr.mxu0 0.0
  %1200 = vmatpush1.msra.mxu0 %v1197
  %1201 = vmatprep.subr.mxu0 0.0
  %1202 = vmatpush1.msra.mxu0 0.0
  %1203 = vmatprep.subr.mxu0 0.0
  %1204 = vmatpush1.msra.mxu0 0.0
  %1205 = vmatprep.subr.mxu0 0.0
  %1206 = vmatpush1.msra.mxu0 0.0
  %1207 = vmatprep.subr.mxu0 0.0
  %1208 = vmatpush1.msra.mxu0 0.0
  %1209 = vmatprep.subr.mxu0 0.0
  %1210 = vmatpush1.msra.mxu0 0.0
  %1211 = vmatprep.subr.mxu0 0.0
  %1212 = vmatpush1.msra.mxu0 0.0
  %1213 = vmatprep.subr.mxu0 0.0
  %1214 = vmatpush1.msra.mxu0 0.0
  %1215 = vmatprep.subr.mxu0 0.0
  %1216 = vmatpush1.msra.mxu0 0.0
  %1217 = vmatprep.subr.mxu0 0.0
  %1218 = vmatpush1.msra.mxu0 0.0
  %1219 = vmatprep.subr.mxu0 0.0
  %1220 = vmatpush1.msra.mxu0 0.0
  %1221 = vmatprep.subr.mxu0 0.0
  %1222 = vmatpush1.msra.mxu0 0.0
  %1223 = vmatprep.subr.mxu0 0.0
  %1224 = vmatpush1.msra.mxu0 0.0
  %1225 = vmatprep.subr.mxu0 0.0
  %1226 = vmatpush1.msra.mxu0 0.0
  %1227 = vmatprep.subr.mxu0 0.0
  %1228 = vmatpush1.msra.mxu0 0.0
  %1229 = vmatprep.subr.mxu0 0.0
  %1230 = vmatpush1.msra.mxu0 0.0
  %1231 = vmatprep.subr.mxu0 0.0
  %1232 = vmatpush1.msra.mxu0 0.0
  %1233 = vmatprep.subr.mxu0 0.0
  %1234 = vmatpush1.msra.mxu0 0.0
  %1235 = vmatprep.subr.mxu0 0.0
  %1236 = vmatpush1.msra.mxu0 0.0
  %1237 = vmatprep.subr.mxu0 0.0
  %1238 = vmatpush1.msra.mxu0 0.0
  %1239 = vmatprep.subr.mxu0 0.0
  %1240 = vmatpush1.msra.mxu0 0.0
  %1241 = vmatprep.subr.mxu0 0.0
  %1242 = vmatpush1.msra.mxu0 0.0
  %1243 = vmatprep.subr.mxu0 0.0
  %1244 = vmatpush1.msra.mxu0 0.0
  %1245 = vmatprep.subr.mxu0 0.0
  %1246 = vmatpush1.msra.mxu0 0.0
  %1247 = vmatprep.subr.mxu0 0.0
  %1248 = vmatpush1.msra.mxu0 0.0
  %1249 = vmatprep.subr.mxu0 0.0
  %1250 = vmatpush1.msra.mxu0 0.0
  %1251 = vmatprep.subr.mxu0 0.0
  %1252 = vmatpush1.msra.mxu0 0.0
  %1253 = vmatprep.subr.mxu0 0.0
  %1254 = vmatpush1.msra.mxu0 0.0
  %1255 = vmatprep.subr.mxu0 0.0
  %1256 = vmatpush1.msra.mxu0 0.0
  %1257 = vmatprep.subr.mxu0 0.0
  %1258 = vmatpush1.msra.mxu0 0.0
  %1259 = vmatprep.subr.mxu0 0.0
  %1260 = vmatpush1.msra.mxu0 0.0
  %1261 = vmatprep.subr.mxu0 0.0
  %1262 = vmatpush1.msra.mxu0 0.0
  %1263 = vmatprep.mubr.f32.mxu0 0.0
  %1264 = vmatmul.mubr.f32.gmra.mrb[0].mxu0 %v96
  %v1265 = vpop.f32.mrb[0].mxu0
  %v1266 = vadd.f32 %v1194, %v1265
  %v1267 = vpop.f32.mrb[0].mxu0
  %1268 = vmatprep.mubr.f32.mxu0 0.0
  %1269 = vmatmul.mubr.f32.gmra.mrb[0].mxu0 %v99
  %v1270 = vpop.f32.mrb[0].mxu0
  %v1271 = vadd.f32 %v1194, %v1270
  %v1272 = vpop.f32.mrb[0].mxu0
  %1273 = vmatprep.mubr.f32.mxu0 0.0
  %1274 = vmatmul.mubr.f32.gmra.mrb[0].mxu0 %v102
  %v1275 = vpop.f32.mrb[0].mxu0
  %v1276 = vadd.f32 %v1194, %v1275
  %v1277 = vpop.f32.mrb[0].mxu0
  %1278 = vmatprep.mubr.f32.mxu0 0.0
  %1279 = vmatmul.mubr.f32.gmra.mrb[0].mxu0 %v105
  %v1280 = vpop.f32.mrb[0].mxu0
  %v1281 = vadd.f32 %v1194, %v1280
  %v1282 = vpop.f32.mrb[0].mxu0
  %1283 = vmatprep.mubr.f32.mxu0 0.0
  %1284 = vmatmul.mubr.f32.gmra.mrb[0].mxu0 %v108
  %v1285 = vpop.f32.mrb[0].mxu0
  %v1286 = vadd.f32 %v1194, %v1285
  %v1287 = vpop.f32.mrb[0].mxu0
  %1288 = vmatprep.mubr.f32.mxu0 0.0
  %1289 = vmatmul.mubr.f32.gmra.mrb[0].mxu0 %v111
  %v1290 = vpop.f32.mrb[0].mxu0
  %v1291 = vadd.f32 %v1194, %v1290
  %v1292 = vpop.f32.mrb[0].mxu0
  %1293 = vmatprep.mubr.f32.mxu0 0.0
  %1294 = vmatmul.mubr.f32.gmra.mrb[0].mxu0 %v114
  %v1295 = vpop.f32.mrb[0].mxu0
  %v1296 = vadd.f32 %v1194, %v1295
  %v1297 = vpop.f32.mrb[0].mxu0
  %1298 = vmatprep.mubr.f32.mxu0 0.0
  %1299 = vmatmul.mubr.f32.gmra.mrb[0].mxu0 %v117
  %v1300 = vpop.f32.mrb[0].mxu0
  %v1301 = vadd.f32 %v1194, %v1300
  %v1302 = vpop.f32.mrb[0].mxu0
  %1303 = vmatprep.mubr.f32.mxu0 0.0
  %1304 = vmatmul.mubr.f32.gmra.mrb[0].mxu0 %v120
  %v1305 = vpop.f32.mrb[0].mxu0
  %v1306 = vadd.f32 %v1194, %v1305
  %v1307 = vpop.f32.mrb[0].mxu0
  %1308 = vmatprep.mubr.f32.mxu0 0.0
  %1309 = vmatmul.mubr.f32.gmra.mrb[0].mxu0 %v123
  %v1310 = vpop.f32.mrb[0].mxu0
  %v1311 = vadd.f32 %v1194, %v1310
  %v1312 = vpop.f32.mrb[0].mxu0
  %1313 = vmatprep.mubr.f32.mxu0 0.0
  %1314 = vmatmul.mubr.f32.gmra.mrb[0].mxu0 %v126
  %v1315 = vpop.f32.mrb[0].mxu0
  %v1316 = vadd.f32 %v1194, %v1315
  %v1317 = vpop.f32.mrb[0].mxu0
  %1318 = vmatprep.mubr.f32.mxu0 0.0
  %1319 = vmatmul.mubr.f32.gmra.mrb[0].mxu0 %v129
  %v1320 = vpop.f32.mrb[0].mxu0
  %v1321 = vadd.f32 %v1194, %v1320
  %v1322 = vpop.f32.mrb[0].mxu0
  %1323 = vmatprep.mubr.f32.mxu0 0.0
  %1324 = vmatmul.mubr.f32.gmra.mrb[0].mxu0 %v132
  %v1325 = vpop.f32.mrb[0].mxu0
  %v1326 = vadd.f32 %v1194, %v1325
  %v1327 = vpop.f32.mrb[0].mxu0
  %1328 = vmatprep.mubr.f32.mxu0 0.0
  %1329 = vmatmul.mubr.f32.gmra.mrb[0].mxu0 %v135
  %v1330 = vpop.f32.mrb[0].mxu0
  %v1331 = vadd.f32 %v1194, %v1330
  %v1332 = vpop.f32.mrb[0].mxu0
  %1333 = vmatprep.mubr.f32.mxu0 0.0
  %1334 = vmatmul.mubr.f32.gmra.mrb[0].mxu0 %v138
  %v1335 = vpop.f32.mrb[0].mxu0
  %v1336 = vadd.f32 %v1194, %v1335
  %v1337 = vpop.f32.mrb[0].mxu0
  %1338 = vmatprep.mubr.f32.mxu0 0.0
  %1339 = vmatmul.mubr.f32.gmra.mrb[0].mxu0 %v141
  %v1340 = vpop.f32.mrb[0].mxu0
  %v1341 = vadd.f32 %v1194, %v1340
  %v1342 = vpop.f32.mrb[0].mxu0
  %1343 = vmatprep.mubr.f32.mxu0 0.0
  %1344 = vmatmul.mubr.f32.gmra.mrb[0].mxu0 %v144
  %v1345 = vpop.f32.mrb[0].mxu0
  %v1346 = vadd.f32 %v1194, %v1345
  %v1347 = vpop.f32.mrb[0].mxu0
  %1348 = vmatprep.mubr.f32.mxu0 0.0
  %1349 = vmatmul.mubr.f32.gmra.mrb[0].mxu0 %v147
  %v1350 = vpop.f32.mrb[0].mxu0
  %v1351 = vadd.f32 %v1194, %v1350
  %v1352 = vpop.f32.mrb[0].mxu0
  %1353 = vmatprep.mubr.f32.mxu0 0.0
  %1354 = vmatmul.mubr.f32.gmra.mrb[0].mxu0 %v150
  %v1355 = vpop.f32.mrb[0].mxu0
  %v1356 = vadd.f32 %v1194, %v1355
  %v1357 = vpop.f32.mrb[0].mxu0
  %1358 = vmatprep.mubr.f32.mxu0 0.0
  %1359 = vmatmul.mubr.f32.gmra.mrb[0].mxu0 %v153
  %v1360 = vpop.f32.mrb[0].mxu0
  %v1361 = vadd.f32 %v1194, %v1360
  %v1362 = vpop.f32.mrb[0].mxu0
  %1363 = vmatprep.mubr.f32.mxu0 0.0
  %1364 = vmatmul.mubr.f32.gmra.mrb[0].mxu0 %v156
  %v1365 = vpop.f32.mrb[0].mxu0
  %v1366 = vadd.f32 %v1194, %v1365
  %v1367 = vpop.f32.mrb[0].mxu0
  %1368 = vmatprep.mubr.f32.mxu0 0.0
  %1369 = vmatmul.mubr.f32.gmra.mrb[0].mxu0 %v159
  %v1370 = vpop.f32.mrb[0].mxu0
  %v1371 = vadd.f32 %v1194, %v1370
  %v1372 = vpop.f32.mrb[0].mxu0
  %1373 = vmatprep.mubr.f32.mxu0 0.0
  %1374 = vmatmul.mubr.f32.gmra.mrb[0].mxu0 %v162
  %v1375 = vpop.f32.mrb[0].mxu0
  %v1376 = vadd.f32 %v1194, %v1375
  %v1377 = vpop.f32.mrb[0].mxu0
  %1378 = vmatprep.mubr.f32.mxu0 0.0
  %1379 = vmatmul.mubr.f32.gmra.mrb[0].mxu0 %v165
  %v1380 = vpop.f32.mrb[0].mxu0
  %v1381 = vadd.f32 %v1194, %v1380
  %v1382 = vpop.f32.mrb[0].mxu0
  %1383 = vmatprep.mubr.f32.mxu0 0.0
  %1384 = vmatmul.mubr.f32.gmra.mrb[0].mxu0 %v168
  %v1385 = vpop.f32.mrb[0].mxu0
  %v1386 = vadd.f32 %v1194, %v1385
  %v1387 = vpop.f32.mrb[0].mxu0
  %1388 = vmatprep.mubr.f32.mxu0 0.0
  %1389 = vmatmul.mubr.f32.gmra.mrb[0].mxu0 %v171
  %v1390 = vpop.f32.mrb[0].mxu0
  %v1391 = vadd.f32 %v1194, %v1390
  %v1392 = vpop.f32.mrb[0].mxu0
  %1393 = vmatprep.mubr.f32.mxu0 0.0
  %1394 = vmatmul.mubr.f32.gmra.mrb[0].mxu0 %v174
  %v1395 = vpop.f32.mrb[0].mxu0
  %v1396 = vadd.f32 %v1194, %v1395
  %v1397 = vpop.f32.mrb[0].mxu0
  %1398 = vmatprep.mubr.f32.mxu0 0.0
  %1399 = vmatmul.mubr.f32.gmra.mrb[0].mxu0 %v177
  %v1400 = vpop.f32.mrb[0].mxu0
  %v1401 = vadd.f32 %v1194, %v1400
  %v1402 = vpop.f32.mrb[0].mxu0
  %1403 = vmatprep.mubr.f32.mxu0 0.0
  %1404 = vmatmul.mubr.f32.gmra.mrb[0].mxu0 %v180
  %v1405 = vpop.f32.mrb[0].mxu0
  %v1406 = vadd.f32 %v1194, %v1405
  %v1407 = vpop.f32.mrb[0].mxu0
  %1408 = vmatprep.mubr.f32.mxu0 0.0
  %1409 = vmatmul.mubr.f32.gmra.mrb[0].mxu0 %v183
  %v1410 = vpop.f32.mrb[0].mxu0
  %v1411 = vadd.f32 %v1194, %v1410
  %v1412 = vpop.f32.mrb[0].mxu0
  %1413 = vmatprep.mubr.f32.mxu0 0.0
  %1414 = vmatmul.mubr.f32.gmra.mrb[0].mxu0 %v186
  %v1415 = vpop.f32.mrb[0].mxu0
  %v1416 = vadd.f32 %v1194, %v1415
  %v1417 = vpop.f32.mrb[0].mxu0
  %1418 = vmatprep.mubr.f32.mxu0 0.0
  %1419 = vmatmul.mubr.f32.gmra.mrb[0].mxu0 %v189
  %v1420 = vpop.f32.mrb[0].mxu0
  %v1421 = vadd.f32 %v1194, %v1420
  %v1422 = vpop.f32.mrb[0].mxu0
  %1423 = vmatprep.mubr.f32.mxu0 0.0
  %1424 = vmatmul.mubr.f32.gmra.mrb[0].mxu0 %v192
  %v1425 = vpop.f32.mrb[0].mxu0
  %v1426 = vadd.f32 %v1194, %v1425
  %v1427 = vpop.f32.mrb[0].mxu0
  %1428 = vmatprep.mubr.f32.mxu0 0.0
  %1429 = vmatmul.mubr.f32.gmra.mrb[0].mxu0 %v195
  %v1430 = vpop.f32.mrb[0].mxu0
  %v1431 = vadd.f32 %v1194, %v1430
  %v1432 = vpop.f32.mrb[0].mxu0
  %1433 = vmatprep.mubr.f32.mxu0 0.0
  %1434 = vmatmul.mubr.f32.gmra.mrb[0].mxu0 %v198
  %v1435 = vpop.f32.mrb[0].mxu0
  %v1436 = vadd.f32 %v1194, %v1435
  %v1437 = vpop.f32.mrb[0].mxu0
  %1438 = vmatprep.mubr.f32.mxu0 0.0
  %1439 = vmatmul.mubr.f32.gmra.mrb[0].mxu0 %v201
  %v1440 = vpop.f32.mrb[0].mxu0
  %v1441 = vadd.f32 %v1194, %v1440
  %v1442 = vpop.f32.mrb[0].mxu0
  %1443 = vmatprep.mubr.f32.mxu0 0.0
  %1444 = vmatmul.mubr.f32.gmra.mrb[0].mxu0 %v204
  %v1445 = vpop.f32.mrb[0].mxu0
  %v1446 = vadd.f32 %v1194, %v1445
  %v1447 = vpop.f32.mrb[0].mxu0
  %1448 = vmatprep.mubr.f32.mxu0 0.0
  %1449 = vmatmul.mubr.f32.gmra.mrb[0].mxu0 %v207
  %v1450 = vpop.f32.mrb[0].mxu0
  %v1451 = vadd.f32 %v1194, %v1450
  %v1452 = vpop.f32.mrb[0].mxu0
  %1453 = vmatprep.mubr.f32.mxu0 0.0
  %1454 = vmatmul.mubr.f32.gmra.mrb[0].mxu0 %v210
  %v1455 = vpop.f32.mrb[0].mxu0
  %v1456 = vadd.f32 %v1194, %v1455
  %v1457 = vpop.f32.mrb[0].mxu0
  %1458 = vmatprep.mubr.f32.mxu0 0.0
  %1459 = vmatmul.mubr.f32.gmra.mrb[0].mxu0 %v213
  %v1460 = vpop.f32.mrb[0].mxu0
  %v1461 = vadd.f32 %v1194, %v1460
  %v1462 = vpop.f32.mrb[0].mxu0
  %1463 = vmatprep.mubr.f32.mxu0 0.0
  %1464 = vmatmul.mubr.f32.gmra.mrb[0].mxu0 %v216
  %v1465 = vpop.f32.mrb[0].mxu0
  %v1466 = vadd.f32 %v1194, %v1465
  %v1467 = vpop.f32.mrb[0].mxu0
  %1468 = vmatprep.mubr.f32.mxu0 0.0
  %1469 = vmatmul.mubr.f32.gmra.mrb[0].mxu0 %v219
  %v1470 = vpop.f32.mrb[0].mxu0
  %v1471 = vadd.f32 %v1194, %v1470
  %v1472 = vpop.f32.mrb[0].mxu0
  %1473 = vmatprep.mubr.f32.mxu0 0.0
  %1474 = vmatmul.mubr.f32.gmra.mrb[0].mxu0 %v222
  %v1475 = vpop.f32.mrb[0].mxu0
  %v1476 = vadd.f32 %v1194, %v1475
  %v1477 = vpop.f32.mrb[0].mxu0
  %1478 = vmatprep.mubr.f32.mxu0 0.0
  %1479 = vmatmul.mubr.f32.gmra.mrb[0].mxu0 %v225
  %v1480 = vpop.f32.mrb[0].mxu0
  %v1481 = vadd.f32 %v1194, %v1480
  %v1482 = vpop.f32.mrb[0].mxu0
  %1483 = vmatprep.mubr.f32.mxu0 0.0
  %1484 = vmatmul.mubr.f32.gmra.mrb[0].mxu0 %v228
  %v1485 = vpop.f32.mrb[0].mxu0
  %v1486 = vadd.f32 %v1194, %v1485
  %v1487 = vpop.f32.mrb[0].mxu0
  %1488 = vmatprep.mubr.f32.mxu0 0.0
  %1489 = vmatmul.mubr.f32.gmra.mrb[0].mxu0 %v231
  %v1490 = vpop.f32.mrb[0].mxu0
  %v1491 = vadd.f32 %v1194, %v1490
  %v1492 = vpop.f32.mrb[0].mxu0
  %1493 = vmatprep.mubr.f32.mxu0 0.0
  %1494 = vmatmul.mubr.f32.gmra.mrb[0].mxu0 %v234
  %v1495 = vpop.f32.mrb[0].mxu0
  %v1496 = vadd.f32 %v1194, %v1495
  %v1497 = vpop.f32.mrb[0].mxu0
  %1498 = vmatprep.mubr.f32.mxu0 0.0
  %1499 = vmatmul.mubr.f32.gmra.mrb[0].mxu0 %v237
  %v1500 = vpop.f32.mrb[0].mxu0
  %v1501 = vadd.f32 %v1194, %v1500
  %v1502 = vpop.f32.mrb[0].mxu0
  %1503 = vmatprep.mubr.f32.mxu0 0.0
  %1504 = vmatmul.mubr.f32.gmra.mrb[0].mxu0 %v240
  %v1505 = vpop.f32.mrb[0].mxu0
  %v1506 = vadd.f32 %v1194, %v1505
  %v1507 = vpop.f32.mrb[0].mxu0
  %1508 = vmatprep.mubr.f32.mxu0 0.0
  %1509 = vmatmul.mubr.f32.gmra.mrb[0].mxu0 %v243
  %v1510 = vpop.f32.mrb[0].mxu0
  %v1511 = vadd.f32 %v1194, %v1510
  %v1512 = vpop.f32.mrb[0].mxu0
  %1513 = vmatprep.mubr.f32.mxu0 0.0
  %1514 = vmatmul.mubr.f32.gmra.mrb[0].mxu0 %v246
  %v1515 = vpop.f32.mrb[0].mxu0
  %v1516 = vadd.f32 %v1194, %v1515
  %v1517 = vpop.f32.mrb[0].mxu0
  %1518 = vmatprep.mubr.f32.mxu0 0.0
  %1519 = vmatmul.mubr.f32.gmra.mrb[0].mxu0 %v249
  %v1520 = vpop.f32.mrb[0].mxu0
  %v1521 = vadd.f32 %v1194, %v1520
  %v1522 = vpop.f32.mrb[0].mxu0
  %1523 = vmatprep.mubr.f32.mxu0 0.0
  %1524 = vmatmul.mubr.f32.gmra.mrb[0].mxu0 %v252
  %v1525 = vpop.f32.mrb[0].mxu0
  %v1526 = vadd.f32 %v1194, %v1525
  %v1527 = vpop.f32.mrb[0].mxu0
  %1528 = vmatprep.mubr.f32.mxu0 0.0
  %1529 = vmatmul.mubr.f32.gmra.mrb[0].mxu0 %v255
  %v1530 = vpop.f32.mrb[0].mxu0
  %v1531 = vadd.f32 %v1194, %v1530
  %v1532 = vpop.f32.mrb[0].mxu0
  %1533 = vmatprep.mubr.f32.mxu0 0.0
  %1534 = vmatmul.mubr.f32.gmra.mrb[0].mxu0 %v258
  %v1535 = vpop.f32.mrb[0].mxu0
  %v1536 = vadd.f32 %v1194, %v1535
  %v1537 = vpop.f32.mrb[0].mxu0
  %1538 = vmatprep.mubr.f32.mxu0 0.0
  %1539 = vmatmul.mubr.f32.gmra.mrb[0].mxu0 %v261
  %v1540 = vpop.f32.mrb[0].mxu0
  %v1541 = vadd.f32 %v1194, %v1540
  %v1542 = vpop.f32.mrb[0].mxu0
  %1543 = vmatprep.mubr.f32.mxu0 0.0
  %1544 = vmatmul.mubr.f32.gmra.mrb[0].mxu0 %v264
  %v1545 = vpop.f32.mrb[0].mxu0
  %v1546 = vadd.f32 %v1194, %v1545
  %v1547 = vpop.f32.mrb[0].mxu0
  %1548 = vmatprep.mubr.f32.mxu0 0.0
  %1549 = vmatmul.mubr.f32.gmra.mrb[0].mxu0 %v267
  %v1550 = vpop.f32.mrb[0].mxu0
  %v1551 = vadd.f32 %v1194, %v1550
  %v1552 = vpop.f32.mrb[0].mxu0
  %1553 = vmatprep.mubr.f32.mxu0 0.0
  %1554 = vmatmul.mubr.f32.gmra.mrb[0].mxu0 %v270
  %v1555 = vpop.f32.mrb[0].mxu0
  %v1556 = vadd.f32 %v1194, %v1555
  %v1557 = vpop.f32.mrb[0].mxu0
  %1558 = vmatprep.mubr.f32.mxu0 0.0
  %1559 = vmatmul.mubr.f32.gmra.mrb[0].mxu0 %v273
  %v1560 = vpop.f32.mrb[0].mxu0
  %v1561 = vadd.f32 %v1194, %v1560
  %v1562 = vpop.f32.mrb[0].mxu0
  %1563 = vmatprep.mubr.f32.mxu0 0.0
  %1564 = vmatmul.mubr.f32.gmra.mrb[0].mxu0 %v276
  %v1565 = vpop.f32.mrb[0].mxu0
  %v1566 = vadd.f32 %v1194, %v1565
  %v1567 = vpop.f32.mrb[0].mxu0
  %1568 = vmatprep.mubr.f32.mxu0 0.0
  %1569 = vmatmul.mubr.f32.gmra.mrb[0].mxu0 %v279
  %v1570 = vpop.f32.mrb[0].mxu0
  %v1571 = vadd.f32 %v1194, %v1570
  %v1572 = vpop.f32.mrb[0].mxu0
  %1573 = vmatprep.mubr.f32.mxu0 0.0
  %1574 = vmatmul.mubr.f32.gmra.mrb[0].mxu0 %v282
  %v1575 = vpop.f32.mrb[0].mxu0
  %v1576 = vadd.f32 %v1194, %v1575
  %v1577 = vpop.f32.mrb[0].mxu0
  %1578 = vmatprep.mubr.f32.mxu0 0.0
  %1579 = vmatmul.mubr.f32.gmra.mrb[0].mxu0 %v285
  %v1580 = vpop.f32.mrb[0].mxu0
  %v1581 = vadd.f32 %v1194, %v1580
  %v1582 = vpop.f32.mrb[0].mxu0
  %1583 = vdwg.mxu0
  %v1584 = vxor.u32 %v1266, 2147483648
  %v1585 = vxor.u32 %v1271, 2147483648
  %v1586 = vxor.u32 %v1276, 2147483648
  %v1587 = vxor.u32 %v1281, 2147483648
  %v1588 = vxor.u32 %v1286, 2147483648
  %v1589 = vxor.u32 %v1291, 2147483648
  %v1590 = vxor.u32 %v1296, 2147483648
  %v1591 = vxor.u32 %v1301, 2147483648
  %v1592 = vxor.u32 %v1306, 2147483648
  %v1593 = vxor.u32 %v1311, 2147483648
  %v1594 = vxor.u32 %v1316, 2147483648
  %v1595 = vxor.u32 %v1321, 2147483648
  %v1596 = vxor.u32 %v1326, 2147483648
  %v1597 = vxor.u32 %v1331, 2147483648
  %v1598 = vxor.u32 %v1336, 2147483648
  %v1599 = vxor.u32 %v1341, 2147483648
  %v1600 = vxor.u32 %v1346, 2147483648
  %v1601 = vxor.u32 %v1351, 2147483648
  %v1602 = vxor.u32 %v1356, 2147483648
  %v1603 = vxor.u32 %v1361, 2147483648
  %v1604 = vxor.u32 %v1366, 2147483648
  %v1605 = vxor.u32 %v1371, 2147483648
  %v1606 = vxor.u32 %v1376, 2147483648
  %v1607 = vxor.u32 %v1381, 2147483648
  %v1608 = vxor.u32 %v1386, 2147483648
  %v1609 = vxor.u32 %v1391, 2147483648
  %v1610 = vxor.u32 %v1396, 2147483648
  %v1611 = vxor.u32 %v1401, 2147483648
  %v1612 = vxor.u32 %v1406, 2147483648
  %v1613 = vxor.u32 %v1411, 2147483648
  %v1614 = vxor.u32 %v1416, 2147483648
  %v1615 = vxor.u32 %v1421, 2147483648
  %v1616 = vxor.u32 %v1426, 2147483648
  %v1617 = vxor.u32 %v1431, 2147483648
  %v1618 = vxor.u32 %v1436, 2147483648
  %v1619 = vxor.u32 %v1441, 2147483648
  %v1620 = vxor.u32 %v1446, 2147483648
  %v1621 = vxor.u32 %v1451, 2147483648
  %v1622 = vxor.u32 %v1456, 2147483648
  %v1623 = vxor.u32 %v1461, 2147483648
  %v1624 = vxor.u32 %v1466, 2147483648
  %v1625 = vxor.u32 %v1471, 2147483648
  %v1626 = vxor.u32 %v1476, 2147483648
  %v1627 = vxor.u32 %v1481, 2147483648
  %v1628 = vxor.u32 %v1486, 2147483648
  %v1629 = vxor.u32 %v1491, 2147483648
  %v1630 = vxor.u32 %v1496, 2147483648
  %v1631 = vxor.u32 %v1501, 2147483648
  %v1632 = vxor.u32 %v1506, 2147483648
  %v1633 = vxor.u32 %v1511, 2147483648
  %v1634 = vxor.u32 %v1516, 2147483648
  %v1635 = vxor.u32 %v1521, 2147483648
  %v1636 = vxor.u32 %v1526, 2147483648
  %v1637 = vxor.u32 %v1531, 2147483648
  %v1638 = vxor.u32 %v1536, 2147483648
  %v1639 = vxor.u32 %v1541, 2147483648
  %v1640 = vxor.u32 %v1546, 2147483648
  %v1641 = vxor.u32 %v1551, 2147483648
  %v1642 = vxor.u32 %v1556, 2147483648
  %v1643 = vxor.u32 %v1561, 2147483648
  %v1644 = vxor.u32 %v1566, 2147483648
  %v1645 = vxor.u32 %v1571, 2147483648
  %v1646 = vxor.u32 %v1576, 2147483648
  %v1647 = vxor.u32 %v1581, 2147483648
  %v1648 = vmul.f32 %v1584, 1.442695
  %v1649 = vpow.pop %v1648
  %v1650 = vmul.f32 %v1585, 1.442695
  %v1651 = vpow.pop %v1650
  %v1652 = vmul.f32 %v1586, 1.442695
  %v1653 = vpow.pop %v1652
  %v1654 = vmul.f32 %v1587, 1.442695
  %v1655 = vpow.pop %v1654
  %v1656 = vmul.f32 %v1588, 1.442695
  %v1657 = vpow.pop %v1656
  %v1658 = vmul.f32 %v1589, 1.442695
  %v1659 = vpow.pop %v1658
  %v1660 = vmul.f32 %v1590, 1.442695
  %v1661 = vpow.pop %v1660
  %v1662 = vmul.f32 %v1591, 1.442695
  %v1663 = vpow.pop %v1662
  %v1664 = vmul.f32 %v1592, 1.442695
  %v1665 = vpow.pop %v1664
  %v1666 = vmul.f32 %v1593, 1.442695
  %v1667 = vpow.pop %v1666
  %v1668 = vmul.f32 %v1594, 1.442695
  %v1669 = vpow.pop %v1668
  %v1670 = vmul.f32 %v1595, 1.442695
  %v1671 = vpow.pop %v1670
  %v1672 = vmul.f32 %v1596, 1.442695
  %v1673 = vpow.pop %v1672
  %v1674 = vmul.f32 %v1597, 1.442695
  %v1675 = vpow.pop %v1674
  %v1676 = vmul.f32 %v1598, 1.442695
  %v1677 = vpow.pop %v1676
  %v1678 = vmul.f32 %v1599, 1.442695
  %v1679 = vpow.pop %v1678
  %v1680 = vmul.f32 %v1600, 1.442695
  %v1681 = vpow.pop %v1680
  %v1682 = vmul.f32 %v1601, 1.442695
  %v1683 = vpow.pop %v1682
  %v1684 = vmul.f32 %v1602, 1.442695
  %v1685 = vpow.pop %v1684
  %v1686 = vmul.f32 %v1603, 1.442695
  %v1687 = vpow.pop %v1686
  %v1688 = vmul.f32 %v1604, 1.442695
  %v1689 = vpow.pop %v1688
  %v1690 = vmul.f32 %v1605, 1.442695
  %v1691 = vpow.pop %v1690
  %v1692 = vmul.f32 %v1606, 1.442695
  %v1693 = vpow.pop %v1692
  %v1694 = vmul.f32 %v1607, 1.442695
  %v1695 = vpow.pop %v1694
  %v1696 = vmul.f32 %v1608, 1.442695
  %v1697 = vpow.pop %v1696
  %v1698 = vmul.f32 %v1609, 1.442695
  %v1699 = vpow.pop %v1698
  %v1700 = vmul.f32 %v1610, 1.442695
  %v1701 = vpow.pop %v1700
  %v1702 = vmul.f32 %v1611, 1.442695
  %v1703 = vpow.pop %v1702
  %v1704 = vmul.f32 %v1612, 1.442695
  %v1705 = vpow.pop %v1704
  %v1706 = vmul.f32 %v1613, 1.442695
  %v1707 = vpow.pop %v1706
  %v1708 = vmul.f32 %v1614, 1.442695
  %v1709 = vpow.pop %v1708
  %v1710 = vmul.f32 %v1615, 1.442695
  %v1711 = vpow.pop %v1710
  %v1712 = vmul.f32 %v1616, 1.442695
  %v1713 = vpow.pop %v1712
  %v1714 = vmul.f32 %v1617, 1.442695
  %v1715 = vpow.pop %v1714
  %v1716 = vmul.f32 %v1618, 1.442695
  %v1717 = vpow.pop %v1716
  %v1718 = vmul.f32 %v1619, 1.442695
  %v1719 = vpow.pop %v1718
  %v1720 = vmul.f32 %v1620, 1.442695
  %v1721 = vpow.pop %v1720
  %v1722 = vmul.f32 %v1621, 1.442695
  %v1723 = vpow.pop %v1722
  %v1724 = vmul.f32 %v1622, 1.442695
  %v1725 = vpow.pop %v1724
  %v1726 = vmul.f32 %v1623, 1.442695
  %v1727 = vpow.pop %v1726
  %v1728 = vmul.f32 %v1624, 1.442695
  %v1729 = vpow.pop %v1728
  %v1730 = vmul.f32 %v1625, 1.442695
  %v1731 = vpow.pop %v1730
  %v1732 = vmul.f32 %v1626, 1.442695
  %v1733 = vpow.pop %v1732
  %v1734 = vmul.f32 %v1627, 1.442695
  %v1735 = vpow.pop %v1734
  %v1736 = vmul.f32 %v1628, 1.442695
  %v1737 = vpow.pop %v1736
  %v1738 = vmul.f32 %v1629, 1.442695
  %v1739 = vpow.pop %v1738
  %v1740 = vmul.f32 %v1630, 1.442695
  %v1741 = vpow.pop %v1740
  %v1742 = vmul.f32 %v1631, 1.442695
  %v1743 = vpow.pop %v1742
  %v1744 = vmul.f32 %v1632, 1.442695
  %v1745 = vpow.pop %v1744
  %v1746 = vmul.f32 %v1633, 1.442695
  %v1747 = vpow.pop %v1746
  %v1748 = vmul.f32 %v1634, 1.442695
  %v1749 = vpow.pop %v1748
  %v1750 = vmul.f32 %v1635, 1.442695
  %v1751 = vpow.pop %v1750
  %v1752 = vmul.f32 %v1636, 1.442695
  %v1753 = vpow.pop %v1752
  %v1754 = vmul.f32 %v1637, 1.442695
  %v1755 = vpow.pop %v1754
  %v1756 = vmul.f32 %v1638, 1.442695
  %v1757 = vpow.pop %v1756
  %v1758 = vmul.f32 %v1639, 1.442695
  %v1759 = vpow.pop %v1758
  %v1760 = vmul.f32 %v1640, 1.442695
  %v1761 = vpow.pop %v1760
  %v1762 = vmul.f32 %v1641, 1.442695
  %v1763 = vpow.pop %v1762
  %v1764 = vmul.f32 %v1642, 1.442695
  %v1765 = vpow.pop %v1764
  %v1766 = vmul.f32 %v1643, 1.442695
  %v1767 = vpow.pop %v1766
  %v1768 = vmul.f32 %v1644, 1.442695
  %v1769 = vpow.pop %v1768
  %v1770 = vmul.f32 %v1645, 1.442695
  %v1771 = vpow.pop %v1770
  %v1772 = vmul.f32 %v1646, 1.442695
  %v1773 = vpow.pop %v1772
  %v1774 = vmul.f32 %v1647, 1.442695
  %v1775 = vpow.pop %v1774
  %v1776 = vadd.f32 %v1649, 1.0
  %v1777 = vadd.f32 %v1651, 1.0
  %v1778 = vadd.f32 %v1653, 1.0
  %v1779 = vadd.f32 %v1655, 1.0
  %v1780 = vadd.f32 %v1657, 1.0
  %v1781 = vadd.f32 %v1659, 1.0
  %v1782 = vadd.f32 %v1661, 1.0
  %v1783 = vadd.f32 %v1663, 1.0
  %v1784 = vadd.f32 %v1665, 1.0
  %v1785 = vadd.f32 %v1667, 1.0
  %v1786 = vadd.f32 %v1669, 1.0
  %v1787 = vadd.f32 %v1671, 1.0
  %v1788 = vadd.f32 %v1673, 1.0
  %v1789 = vadd.f32 %v1675, 1.0
  %v1790 = vadd.f32 %v1677, 1.0
  %v1791 = vadd.f32 %v1679, 1.0
  %v1792 = vadd.f32 %v1681, 1.0
  %v1793 = vadd.f32 %v1683, 1.0
  %v1794 = vadd.f32 %v1685, 1.0
  %v1795 = vadd.f32 %v1687, 1.0
  %v1796 = vadd.f32 %v1689, 1.0
  %v1797 = vadd.f32 %v1691, 1.0
  %v1798 = vadd.f32 %v1693, 1.0
  %v1799 = vadd.f32 %v1695, 1.0
  %v1800 = vadd.f32 %v1697, 1.0
  %v1801 = vadd.f32 %v1699, 1.0
  %v1802 = vadd.f32 %v1701, 1.0
  %v1803 = vadd.f32 %v1703, 1.0
  %v1804 = vadd.f32 %v1705, 1.0
  %v1805 = vadd.f32 %v1707, 1.0
  %v1806 = vadd.f32 %v1709, 1.0
  %v1807 = vadd.f32 %v1711, 1.0
  %v1808 = vadd.f32 %v1713, 1.0
  %v1809 = vadd.f32 %v1715, 1.0
  %v1810 = vadd.f32 %v1717, 1.0
  %v1811 = vadd.f32 %v1719, 1.0
  %v1812 = vadd.f32 %v1721, 1.0
  %v1813 = vadd.f32 %v1723, 1.0
  %v1814 = vadd.f32 %v1725, 1.0
  %v1815 = vadd.f32 %v1727, 1.0
  %v1816 = vadd.f32 %v1729, 1.0
  %v1817 = vadd.f32 %v1731, 1.0
  %v1818 = vadd.f32 %v1733, 1.0
  %v1819 = vadd.f32 %v1735, 1.0
  %v1820 = vadd.f32 %v1737, 1.0
  %v1821 = vadd.f32 %v1739, 1.0
  %v1822 = vadd.f32 %v1741, 1.0
  %v1823 = vadd.f32 %v1743, 1.0
  %v1824 = vadd.f32 %v1745, 1.0
  %v1825 = vadd.f32 %v1747, 1.0
  %v1826 = vadd.f32 %v1749, 1.0
  %v1827 = vadd.f32 %v1751, 1.0
  %v1828 = vadd.f32 %v1753, 1.0
  %v1829 = vadd.f32 %v1755, 1.0
  %v1830 = vadd.f32 %v1757, 1.0
  %v1831 = vadd.f32 %v1759, 1.0
  %v1832 = vadd.f32 %v1761, 1.0
  %v1833 = vadd.f32 %v1763, 1.0
  %v1834 = vadd.f32 %v1765, 1.0
  %v1835 = vadd.f32 %v1767, 1.0
  %v1836 = vadd.f32 %v1769, 1.0
  %v1837 = vadd.f32 %v1771, 1.0
  %v1838 = vadd.f32 %v1773, 1.0
  %v1839 = vadd.f32 %v1775, 1.0
  %v1840 = vrcp.pop %v1776
  %v1841 = vmul.f32 1.0, %v1840
  %v1842 = vrcp.pop %v1777
  %v1843 = vmul.f32 1.0, %v1842
  %v1844 = vrcp.pop %v1778
  %v1845 = vmul.f32 1.0, %v1844
  %v1846 = vrcp.pop %v1779
  %v1847 = vmul.f32 1.0, %v1846
  %v1848 = vrcp.pop %v1780
  %v1849 = vmul.f32 1.0, %v1848
  %v1850 = vrcp.pop %v1781
  %v1851 = vmul.f32 1.0, %v1850
  %v1852 = vrcp.pop %v1782
  %v1853 = vmul.f32 1.0, %v1852
  %v1854 = vrcp.pop %v1783
  %v1855 = vmul.f32 1.0, %v1854
  %v1856 = vrcp.pop %v1784
  %v1857 = vmul.f32 1.0, %v1856
  %v1858 = vrcp.pop %v1785
  %v1859 = vmul.f32 1.0, %v1858
  %v1860 = vrcp.pop %v1786
  %v1861 = vmul.f32 1.0, %v1860
  %v1862 = vrcp.pop %v1787
  %v1863 = vmul.f32 1.0, %v1862
  %v1864 = vrcp.pop %v1788
  %v1865 = vmul.f32 1.0, %v1864
  %v1866 = vrcp.pop %v1789
  %v1867 = vmul.f32 1.0, %v1866
  %v1868 = vrcp.pop %v1790
  %v1869 = vmul.f32 1.0, %v1868
  %v1870 = vrcp.pop %v1791
  %v1871 = vmul.f32 1.0, %v1870
  %v1872 = vrcp.pop %v1792
  %v1873 = vmul.f32 1.0, %v1872
  %v1874 = vrcp.pop %v1793
  %v1875 = vmul.f32 1.0, %v1874
  %v1876 = vrcp.pop %v1794
  %v1877 = vmul.f32 1.0, %v1876
  %v1878 = vrcp.pop %v1795
  %v1879 = vmul.f32 1.0, %v1878
  %v1880 = vrcp.pop %v1796
  %v1881 = vmul.f32 1.0, %v1880
  %v1882 = vrcp.pop %v1797
  %v1883 = vmul.f32 1.0, %v1882
  %v1884 = vrcp.pop %v1798
  %v1885 = vmul.f32 1.0, %v1884
  %v1886 = vrcp.pop %v1799
  %v1887 = vmul.f32 1.0, %v1886
  %v1888 = vrcp.pop %v1800
  %v1889 = vmul.f32 1.0, %v1888
  %v1890 = vrcp.pop %v1801
  %v1891 = vmul.f32 1.0, %v1890
  %v1892 = vrcp.pop %v1802
  %v1893 = vmul.f32 1.0, %v1892
  %v1894 = vrcp.pop %v1803
  %v1895 = vmul.f32 1.0, %v1894
  %v1896 = vrcp.pop %v1804
  %v1897 = vmul.f32 1.0, %v1896
  %v1898 = vrcp.pop %v1805
  %v1899 = vmul.f32 1.0, %v1898
  %v1900 = vrcp.pop %v1806
  %v1901 = vmul.f32 1.0, %v1900
  %v1902 = vrcp.pop %v1807
  %v1903 = vmul.f32 1.0, %v1902
  %v1904 = vrcp.pop %v1808
  %v1905 = vmul.f32 1.0, %v1904
  %v1906 = vrcp.pop %v1809
  %v1907 = vmul.f32 1.0, %v1906
  %v1908 = vrcp.pop %v1810
  %v1909 = vmul.f32 1.0, %v1908
  %v1910 = vrcp.pop %v1811
  %v1911 = vmul.f32 1.0, %v1910
  %v1912 = vrcp.pop %v1812
  %v1913 = vmul.f32 1.0, %v1912
  %v1914 = vrcp.pop %v1813
  %v1915 = vmul.f32 1.0, %v1914
  %v1916 = vrcp.pop %v1814
  %v1917 = vmul.f32 1.0, %v1916
  %v1918 = vrcp.pop %v1815
  %v1919 = vmul.f32 1.0, %v1918
  %v1920 = vrcp.pop %v1816
  %v1921 = vmul.f32 1.0, %v1920
  %v1922 = vrcp.pop %v1817
  %v1923 = vmul.f32 1.0, %v1922
  %v1924 = vrcp.pop %v1818
  %v1925 = vmul.f32 1.0, %v1924
  %v1926 = vrcp.pop %v1819
  %v1927 = vmul.f32 1.0, %v1926
  %v1928 = vrcp.pop %v1820
  %v1929 = vmul.f32 1.0, %v1928
  %v1930 = vrcp.pop %v1821
  %v1931 = vmul.f32 1.0, %v1930
  %v1932 = vrcp.pop %v1822
  %v1933 = vmul.f32 1.0, %v1932
  %v1934 = vrcp.pop %v1823
  %v1935 = vmul.f32 1.0, %v1934
  %v1936 = vrcp.pop %v1824
  %v1937 = vmul.f32 1.0, %v1936
  %v1938 = vrcp.pop %v1825
  %v1939 = vmul.f32 1.0, %v1938
  %v1940 = vrcp.pop %v1826
  %v1941 = vmul.f32 1.0, %v1940
  %v1942 = vrcp.pop %v1827
  %v1943 = vmul.f32 1.0, %v1942
  %v1944 = vrcp.pop %v1828
  %v1945 = vmul.f32 1.0, %v1944
  %v1946 = vrcp.pop %v1829
  %v1947 = vmul.f32 1.0, %v1946
  %v1948 = vrcp.pop %v1830
  %v1949 = vmul.f32 1.0, %v1948
  %v1950 = vrcp.pop %v1831
  %v1951 = vmul.f32 1.0, %v1950
  %v1952 = vrcp.pop %v1832
  %v1953 = vmul.f32 1.0, %v1952
  %v1954 = vrcp.pop %v1833
  %v1955 = vmul.f32 1.0, %v1954
  %v1956 = vrcp.pop %v1834
  %v1957 = vmul.f32 1.0, %v1956
  %v1958 = vrcp.pop %v1835
  %v1959 = vmul.f32 1.0, %v1958
  %v1960 = vrcp.pop %v1836
  %v1961 = vmul.f32 1.0, %v1960
  %v1962 = vrcp.pop %v1837
  %v1963 = vmul.f32 1.0, %v1962
  %v1964 = vrcp.pop %v1838
  %v1965 = vmul.f32 1.0, %v1964
  %v1966 = vrcp.pop %v1839
  %v1967 = vmul.f32 1.0, %v1966
  %v1968 = vmul.f32 %v1266, %v1841
  %v1969 = vmul.f32 %v1271, %v1843
  %v1970 = vmul.f32 %v1276, %v1845
  %v1971 = vmul.f32 %v1281, %v1847
  %v1972 = vmul.f32 %v1286, %v1849
  %v1973 = vmul.f32 %v1291, %v1851
  %v1974 = vmul.f32 %v1296, %v1853
  %v1975 = vmul.f32 %v1301, %v1855
  %v1976 = vmul.f32 %v1306, %v1857
  %v1977 = vmul.f32 %v1311, %v1859
  %v1978 = vmul.f32 %v1316, %v1861
  %v1979 = vmul.f32 %v1321, %v1863
  %v1980 = vmul.f32 %v1326, %v1865
  %v1981 = vmul.f32 %v1331, %v1867
  %v1982 = vmul.f32 %v1336, %v1869
  %v1983 = vmul.f32 %v1341, %v1871
  %v1984 = vmul.f32 %v1346, %v1873
  %v1985 = vmul.f32 %v1351, %v1875
  %v1986 = vmul.f32 %v1356, %v1877
  %v1987 = vmul.f32 %v1361, %v1879
  %v1988 = vmul.f32 %v1366, %v1881
  %v1989 = vmul.f32 %v1371, %v1883
  %v1990 = vmul.f32 %v1376, %v1885
  %v1991 = vmul.f32 %v1381, %v1887
  %v1992 = vmul.f32 %v1386, %v1889
  %v1993 = vmul.f32 %v1391, %v1891
  %v1994 = vmul.f32 %v1396, %v1893
  %v1995 = vmul.f32 %v1401, %v1895
  %v1996 = vmul.f32 %v1406, %v1897
  %v1997 = vmul.f32 %v1411, %v1899
  %v1998 = vmul.f32 %v1416, %v1901
  %v1999 = vmul.f32 %v1421, %v1903
  %v2000 = vmul.f32 %v1426, %v1905
  %v2001 = vmul.f32 %v1431, %v1907
  %v2002 = vmul.f32 %v1436, %v1909
  %v2003 = vmul.f32 %v1441, %v1911
  %v2004 = vmul.f32 %v1446, %v1913
  %v2005 = vmul.f32 %v1451, %v1915
  %v2006 = vmul.f32 %v1456, %v1917
  %v2007 = vmul.f32 %v1461, %v1919
  %v2008 = vmul.f32 %v1466, %v1921
  %v2009 = vmul.f32 %v1471, %v1923
  %v2010 = vmul.f32 %v1476, %v1925
  %v2011 = vmul.f32 %v1481, %v1927
  %v2012 = vmul.f32 %v1486, %v1929
  %v2013 = vmul.f32 %v1491, %v1931
  %v2014 = vmul.f32 %v1496, %v1933
  %v2015 = vmul.f32 %v1501, %v1935
  %v2016 = vmul.f32 %v1506, %v1937
  %v2017 = vmul.f32 %v1511, %v1939
  %v2018 = vmul.f32 %v1516, %v1941
  %v2019 = vmul.f32 %v1521, %v1943
  %v2020 = vmul.f32 %v1526, %v1945
  %v2021 = vmul.f32 %v1531, %v1947
  %v2022 = vmul.f32 %v1536, %v1949
  %v2023 = vmul.f32 %v1541, %v1951
  %v2024 = vmul.f32 %v1546, %v1953
  %v2025 = vmul.f32 %v1551, %v1955
  %v2026 = vmul.f32 %v1556, %v1957
  %v2027 = vmul.f32 %v1561, %v1959
  %v2028 = vmul.f32 %v1566, %v1961
  %v2029 = vmul.f32 %v1571, %v1963
  %v2030 = vmul.f32 %v1576, %v1965
  %v2031 = vmul.f32 %v1581, %v1967
  %2032 = vst.msk [vmem:[%s6] sm:$0xff] %vm94, %v1968
  %2033 = vst.msk [vmem:[%s6 + $0x8] sm:$0xff] %vm94, %v1969
  %2034 = vst.msk [vmem:[%s6 + $0x10] sm:$0xff] %vm94, %v1970
  %2035 = vst.msk [vmem:[%s6 + $0x18] sm:$0xff] %vm94, %v1971
  %2036 = vst.msk [vmem:[%s6 + $0x20] sm:$0xff] %vm94, %v1972
  %2037 = vst.msk [vmem:[%s6 + $0x28] sm:$0xff] %vm94, %v1973
  %2038 = vst.msk [vmem:[%s6 + $0x30] sm:$0xff] %vm94, %v1974
  %2039 = vst.msk [vmem:[%s6 + $0x38] sm:$0xff] %vm94, %v1975
  %2040 = vst.msk [vmem:[%s6 + $0x40] sm:$0xff] %vm94, %v1976
  %2041 = vst.msk [vmem:[%s6 + $0x48] sm:$0xff] %vm94, %v1977
  %2042 = vst.msk [vmem:[%s6 + $0x50] sm:$0xff] %vm94, %v1978
  %2043 = vst.msk [vmem:[%s6 + $0x58] sm:$0xff] %vm94, %v1979
  %2044 = vst.msk [vmem:[%s6 + $0x60] sm:$0xff] %vm94, %v1980
  %2045 = vst.msk [vmem:[%s6 + $0x68] sm:$0xff] %vm94, %v1981
  %2046 = vst.msk [vmem:[%s6 + $0x70] sm:$0xff] %vm94, %v1982
  %2047 = vst.msk [vmem:[%s6 + $0x78] sm:$0xff] %vm94, %v1983
  %2048 = vst.msk [vmem:[%s6 + $0x80] sm:$0xff] %vm94, %v1984
  %2049 = vst.msk [vmem:[%s6 + $0x88] sm:$0xff] %vm94, %v1985
  %2050 = vst.msk [vmem:[%s6 + $0x90] sm:$0xff] %vm94, %v1986
  %2051 = vst.msk [vmem:[%s6 + $0x98] sm:$0xff] %vm94, %v1987
  %2052 = vst.msk [vmem:[%s6 + $0xa0] sm:$0xff] %vm94, %v1988
  %2053 = vst.msk [vmem:[%s6 + $0xa8] sm:$0xff] %vm94, %v1989
  %2054 = vst.msk [vmem:[%s6 + $0xb0] sm:$0xff] %vm94, %v1990
  %2055 = vst.msk [vmem:[%s6 + $0xb8] sm:$0xff] %vm94, %v1991
  %2056 = vst.msk [vmem:[%s6 + $0xc0] sm:$0xff] %vm94, %v1992
  %2057 = vst.msk [vmem:[%s6 + $0xc8] sm:$0xff] %vm94, %v1993
  %2058 = vst.msk [vmem:[%s6 + $0xd0] sm:$0xff] %vm94, %v1994
  %2059 = vst.msk [vmem:[%s6 + $0xd8] sm:$0xff] %vm94, %v1995
  %2060 = vst.msk [vmem:[%s6 + $0xe0] sm:$0xff] %vm94, %v1996
  %2061 = vst.msk [vmem:[%s6 + $0xe8] sm:$0xff] %vm94, %v1997
  %2062 = vst.msk [vmem:[%s6 + $0xf0] sm:$0xff] %vm94, %v1998
  %2063 = vst.msk [vmem:[%s6 + $0xf8] sm:$0xff] %vm94, %v1999
  %2064 = vst.msk [vmem:[%s6 + $0x100] sm:$0xff] %vm94, %v2000
  %2065 = vst.msk [vmem:[%s6 + $0x108] sm:$0xff] %vm94, %v2001
  %2066 = vst.msk [vmem:[%s6 + $0x110] sm:$0xff] %vm94, %v2002
  %2067 = vst.msk [vmem:[%s6 + $0x118] sm:$0xff] %vm94, %v2003
  %2068 = vst.msk [vmem:[%s6 + $0x120] sm:$0xff] %vm94, %v2004
  %2069 = vst.msk [vmem:[%s6 + $0x128] sm:$0xff] %vm94, %v2005
  %2070 = vst.msk [vmem:[%s6 + $0x130] sm:$0xff] %vm94, %v2006
  %2071 = vst.msk [vmem:[%s6 + $0x138] sm:$0xff] %vm94, %v2007
  %2072 = vst.msk [vmem:[%s6 + $0x140] sm:$0xff] %vm94, %v2008
  %2073 = vst.msk [vmem:[%s6 + $0x148] sm:$0xff] %vm94, %v2009
  %2074 = vst.msk [vmem:[%s6 + $0x150] sm:$0xff] %vm94, %v2010
  %2075 = vst.msk [vmem:[%s6 + $0x158] sm:$0xff] %vm94, %v2011
  %2076 = vst.msk [vmem:[%s6 + $0x160] sm:$0xff] %vm94, %v2012
  %2077 = vst.msk [vmem:[%s6 + $0x168] sm:$0xff] %vm94, %v2013
  %2078 = vst.msk [vmem:[%s6 + $0x170] sm:$0xff] %vm94, %v2014
  %2079 = vst.msk [vmem:[%s6 + $0x178] sm:$0xff] %vm94, %v2015
  %2080 = vst.msk [vmem:[%s6 + $0x180] sm:$0xff] %vm94, %v2016
  %2081 = vst.msk [vmem:[%s6 + $0x188] sm:$0xff] %vm94, %v2017
  %2082 = vst.msk [vmem:[%s6 + $0x190] sm:$0xff] %vm94, %v2018
  %2083 = vst.msk [vmem:[%s6 + $0x198] sm:$0xff] %vm94, %v2019
  %2084 = vst.msk [vmem:[%s6 + $0x1a0] sm:$0xff] %vm94, %v2020
  %2085 = vst.msk [vmem:[%s6 + $0x1a8] sm:$0xff] %vm94, %v2021
  %2086 = vst.msk [vmem:[%s6 + $0x1b0] sm:$0xff] %vm94, %v2022
  %2087 = vst.msk [vmem:[%s6 + $0x1b8] sm:$0xff] %vm94, %v2023
  %2088 = vst.msk [vmem:[%s6 + $0x1c0] sm:$0xff] %vm94, %v2024
  %2089 = vst.msk [vmem:[%s6 + $0x1c8] sm:$0xff] %vm94, %v2025
  %2090 = vst.msk [vmem:[%s6 + $0x1d0] sm:$0xff] %vm94, %v2026
  %2091 = vst.msk [vmem:[%s6 + $0x1d8] sm:$0xff] %vm94, %v2027
  %2092 = vst.msk [vmem:[%s6 + $0x1e0] sm:$0xff] %vm94, %v2028
  %2093 = vst.msk [vmem:[%s6 + $0x1e8] sm:$0xff] %vm94, %v2029
  %2094 = vst.msk [vmem:[%s6 + $0x1f0] sm:$0xff] %vm94, %v2030
  %2095 = vst.msk [vmem:[%s6 + $0x1f8] sm:$0xff] %vm94, %v2031
  // Predicated region
  $region22: #{c3_forward.3} parent=0 // pred_check
    _
  $region23: #{c3_forward.3} parent=0 // pred_check_branch
    %2097 = sbr.rel (0) target = $region25
  $region24: #{c3_forward.3} parent=0 // pred_region
    _
  $region25: #{c3_forward.3} parent=0 // pred_fallthru
    _
  // Predicated region
  $region26: #{c3_forward.3} parent=0 // pred_check
    _
  $region27: #{c3_forward.3} parent=0 // pred_check_branch
    %2099 = sbr.rel (0) target = $region29
  $region28: #{c3_forward.3} parent=0 // pred_region
    _
  $region29: #{c3_forward.3} parent=0 // pred_fallthru
    _
  // Predicated region
  $region30: #{c3_forward.3} parent=0 // pred_check
    _
  $region31: #{c3_forward.3} parent=0 // pred_check_branch
    %2101 = sbr.rel (0) target = $region33
  $region32: #{c3_forward.3} parent=0 // pred_region
    _
  $region33: #{c3_forward.3} parent=0 // pred_fallthru
    _
  // Predicated region
  $region34: #{c3_forward.3} parent=0 // pred_check
    _
  $region35: #{c3_forward.3} parent=0 // pred_check_branch
    %2103 = sbr.rel (0) target = $region37
  $region36: #{c3_forward.3} parent=0 // pred_region
    _
  $region37: #{c3_forward.3} parent=0 // pred_fallthru
    _

// kernel: c3_forward.5
$region0: #{c3_forward.5}
  #allocation0 [shape = 'u32[]', space=smem, size = 0x4, offset = 0x4, fixed_abs, tag = 'smem constant byte address 0x4 - core index']
  #allocation1 [shape = 'u32[144,128]{1,0:T(1,128)}', space=vmem, size = 0x12000, scoped, tag = 'internal scratch']
  %s0 = inlined_call_operand.vmem [shape: f32[512,4], index: 0, kind: input, shape index: {}]
  %s1 = inlined_call_operand.vmem [shape: f32[512,4], index: 1, kind: input, shape index: {}]
  %s2 = inlined_call_operand.vmem [shape: f32[4,8], index: 2, kind: input, shape index: {}]
  %s3 = inlined_call_operand.vmem [shape: f32[4,8], index: 3, kind: input, shape index: {}]
  %s4 = inlined_call_operand.vmem [shape: f32[1,8], index: 4, kind: input, shape index: {}]
  %s5 = inlined_call_operand.vmem [shape: f32[512,8], index: 5, kind: output, shape index: {}]
  %s6 = sld [smem:[#allocation0]]
  $region30: #{c3_forward.5} parent=0
    _
  %s8 = ssub.s32 1, %s6
  %s9 = scalar_select 0, %s8, %s6
  // Predicated region
  $region2: #{c3_forward.5} parent=0 // pred_check
    _
  $region3: #{c3_forward.5} parent=0 // pred_check_branch
    %11 = sbr.rel (0) target = $region5
  $region4: #{c3_forward.5} parent=0 // pred_region
    _
  $region5: #{c3_forward.5} parent=0 // pred_fallthru
    _
  // Predicated region
  $region6: #{c3_forward.5} parent=0 // pred_check
    _
  $region7: #{c3_forward.5} parent=0 // pred_check_branch
    %13 = sbr.rel (0) target = $region9
  $region8: #{c3_forward.5} parent=0 // pred_region
    _
  $region9: #{c3_forward.5} parent=0 // pred_fallthru
    _
  // Predicated region
  $region10: #{c3_forward.5} parent=0 // pred_check
    _
  $region11: #{c3_forward.5} parent=0 // pred_check_branch
    %15 = sbr.rel (0) target = $region13
  $region12: #{c3_forward.5} parent=0 // pred_region
    _
  $region13: #{c3_forward.5} parent=0 // pred_fallthru
    _
  // Predicated region
  $region14: #{c3_forward.5} parent=0 // pred_check
    _
  $region15: #{c3_forward.5} parent=0 // pred_check_branch
    %17 = sbr.rel (0) target = $region17
  $region16: #{c3_forward.5} parent=0 // pred_region
    _
  $region17: #{c3_forward.5} parent=0 // pred_fallthru
    _
  // Predicated region
  $region18: #{c3_forward.5} parent=0 // pred_check
    _
  $region19: #{c3_forward.5} parent=0 // pred_check_branch
    %19 = sbr.rel (0) target = $region21
  $region20: #{c3_forward.5} parent=0 // pred_region
    _
  $region21: #{c3_forward.5} parent=0 // pred_fallthru
    _
  %v20 = vld [vmem:[%s0] sm:$0xff]
  %v21 = vld [vmem:[%s0 + $0x8] sm:$0xff]
  %v22 = vld [vmem:[%s0 + $0x10] sm:$0xff]
  %v23 = vld [vmem:[%s0 + $0x18] sm:$0xff]
  %v24 = vld [vmem:[%s0 + $0x20] sm:$0xff]
  %v25 = vld [vmem:[%s0 + $0x28] sm:$0xff]
  %v26 = vld [vmem:[%s0 + $0x30] sm:$0xff]
  %v27 = vld [vmem:[%s0 + $0x38] sm:$0xff]
  %v28 = vld [vmem:[%s0 + $0x40] sm:$0xff]
  %v29 = vld [vmem:[%s0 + $0x48] sm:$0xff]
  %v30 = vld [vmem:[%s0 + $0x50] sm:$0xff]
  %v31 = vld [vmem:[%s0 + $0x58] sm:$0xff]
  %v32 = vld [vmem:[%s0 + $0x60] sm:$0xff]
  %v33 = vld [vmem:[%s0 + $0x68] sm:$0xff]
  %v34 = vld [vmem:[%s0 + $0x70] sm:$0xff]
  %v35 = vld [vmem:[%s0 + $0x78] sm:$0xff]
  %v36 = vld [vmem:[%s0 + $0x80] sm:$0xff]
  %v37 = vld [vmem:[%s0 + $0x88] sm:$0xff]
  %v38 = vld [vmem:[%s0 + $0x90] sm:$0xff]
  %v39 = vld [vmem:[%s0 + $0x98] sm:$0xff]
  %v40 = vld [vmem:[%s0 + $0xa0] sm:$0xff]
  %v41 = vld [vmem:[%s0 + $0xa8] sm:$0xff]
  %v42 = vld [vmem:[%s0 + $0xb0] sm:$0xff]
  %v43 = vld [vmem:[%s0 + $0xb8] sm:$0xff]
  %v44 = vld [vmem:[%s0 + $0xc0] sm:$0xff]
  %v45 = vld [vmem:[%s0 + $0xc8] sm:$0xff]
  %v46 = vld [vmem:[%s0 + $0xd0] sm:$0xff]
  %v47 = vld [vmem:[%s0 + $0xd8] sm:$0xff]
  %v48 = vld [vmem:[%s0 + $0xe0] sm:$0xff]
  %v49 = vld [vmem:[%s0 + $0xe8] sm:$0xff]
  %v50 = vld [vmem:[%s0 + $0xf0] sm:$0xff]
  %v51 = vld [vmem:[%s0 + $0xf8] sm:$0xff]
  %v52 = vld [vmem:[%s0 + $0x100] sm:$0xff]
  %v53 = vld [vmem:[%s0 + $0x108] sm:$0xff]
  %v54 = vld [vmem:[%s0 + $0x110] sm:$0xff]
  %v55 = vld [vmem:[%s0 + $0x118] sm:$0xff]
  %v56 = vld [vmem:[%s0 + $0x120] sm:$0xff]
  %v57 = vld [vmem:[%s0 + $0x128] sm:$0xff]
  %v58 = vld [vmem:[%s0 + $0x130] sm:$0xff]
  %v59 = vld [vmem:[%s0 + $0x138] sm:$0xff]
  %v60 = vld [vmem:[%s0 + $0x140] sm:$0xff]
  %v61 = vld [vmem:[%s0 + $0x148] sm:$0xff]
  %v62 = vld [vmem:[%s0 + $0x150] sm:$0xff]
  %v63 = vld [vmem:[%s0 + $0x158] sm:$0xff]
  %v64 = vld [vmem:[%s0 + $0x160] sm:$0xff]
  %v65 = vld [vmem:[%s0 + $0x168] sm:$0xff]
  %v66 = vld [vmem:[%s0 + $0x170] sm:$0xff]
  %v67 = vld [vmem:[%s0 + $0x178] sm:$0xff]
  %v68 = vld [vmem:[%s0 + $0x180] sm:$0xff]
  %v69 = vld [vmem:[%s0 + $0x188] sm:$0xff]
  %v70 = vld [vmem:[%s0 + $0x190] sm:$0xff]
  %v71 = vld [vmem:[%s0 + $0x198] sm:$0xff]
  %v72 = vld [vmem:[%s0 + $0x1a0] sm:$0xff]
  %v73 = vld [vmem:[%s0 + $0x1a8] sm:$0xff]
  %v74 = vld [vmem:[%s0 + $0x1b0] sm:$0xff]
  %v75 = vld [vmem:[%s0 + $0x1b8] sm:$0xff]
  %v76 = vld [vmem:[%s0 + $0x1c0] sm:$0xff]
  %v77 = vld [vmem:[%s0 + $0x1c8] sm:$0xff]
  %v78 = vld [vmem:[%s0 + $0x1d0] sm:$0xff]
  %v79 = vld [vmem:[%s0 + $0x1d8] sm:$0xff]
  %v80 = vld [vmem:[%s0 + $0x1e0] sm:$0xff]
  %v81 = vld [vmem:[%s0 + $0x1e8] sm:$0xff]
  %v82 = vld [vmem:[%s0 + $0x1f0] sm:$0xff]
  %v83 = vld [vmem:[%s0 + $0x1f8] sm:$0xff]
  %v84 = vld [vmem:[%s2] sm:$0xf]
  %v85 = vld [vmem:[%s1] sm:$0xff]
  %v86 = vld [vmem:[%s1 + $0x8] sm:$0xff]
  %v87 = vld [vmem:[%s1 + $0x10] sm:$0xff]
  %v88 = vld [vmem:[%s1 + $0x18] sm:$0xff]
  %v89 = vld [vmem:[%s1 + $0x20] sm:$0xff]
  %v90 = vld [vmem:[%s1 + $0x28] sm:$0xff]
  %v91 = vld [vmem:[%s1 + $0x30] sm:$0xff]
  %v92 = vld [vmem:[%s1 + $0x38] sm:$0xff]
  %v93 = vld [vmem:[%s1 + $0x40] sm:$0xff]
  %v94 = vld [vmem:[%s1 + $0x48] sm:$0xff]
  %v95 = vld [vmem:[%s1 + $0x50] sm:$0xff]
  %v96 = vld [vmem:[%s1 + $0x58] sm:$0xff]
  %v97 = vld [vmem:[%s1 + $0x60] sm:$0xff]
  %v98 = vld [vmem:[%s1 + $0x68] sm:$0xff]
  %v99 = vld [vmem:[%s1 + $0x70] sm:$0xff]
  %v100 = vld [vmem:[%s1 + $0x78] sm:$0xff]
  %v101 = vld [vmem:[%s1 + $0x80] sm:$0xff]
  %v102 = vld [vmem:[%s1 + $0x88] sm:$0xff]
  %v103 = vld [vmem:[%s1 + $0x90] sm:$0xff]
  %v104 = vld [vmem:[%s1 + $0x98] sm:$0xff]
  %v105 = vld [vmem:[%s1 + $0xa0] sm:$0xff]
  %v106 = vld [vmem:[%s1 + $0xa8] sm:$0xff]
  %v107 = vld [vmem:[%s1 + $0xb0] sm:$0xff]
  %v108 = vld [vmem:[%s1 + $0xb8] sm:$0xff]
  %v109 = vld [vmem:[%s1 + $0xc0] sm:$0xff]
  %v110 = vld [vmem:[%s1 + $0xc8] sm:$0xff]
  %v111 = vld [vmem:[%s1 + $0xd0] sm:$0xff]
  %v112 = vld [vmem:[%s1 + $0xd8] sm:$0xff]
  %v113 = vld [vmem:[%s1 + $0xe0] sm:$0xff]
  %v114 = vld [vmem:[%s1 + $0xe8] sm:$0xff]
  %v115 = vld [vmem:[%s1 + $0xf0] sm:$0xff]
  %v116 = vld [vmem:[%s1 + $0xf8] sm:$0xff]
  %v117 = vld [vmem:[%s1 + $0x100] sm:$0xff]
  %v118 = vld [vmem:[%s1 + $0x108] sm:$0xff]
  %v119 = vld [vmem:[%s1 + $0x110] sm:$0xff]
  %v120 = vld [vmem:[%s1 + $0x118] sm:$0xff]
  %v121 = vld [vmem:[%s1 + $0x120] sm:$0xff]
  %v122 = vld [vmem:[%s1 + $0x128] sm:$0xff]
  %v123 = vld [vmem:[%s1 + $0x130] sm:$0xff]
  %v124 = vld [vmem:[%s1 + $0x138] sm:$0xff]
  %v125 = vld [vmem:[%s1 + $0x140] sm:$0xff]
  %v126 = vld [vmem:[%s1 + $0x148] sm:$0xff]
  %v127 = vld [vmem:[%s1 + $0x150] sm:$0xff]
  %v128 = vld [vmem:[%s1 + $0x158] sm:$0xff]
  %v129 = vld [vmem:[%s1 + $0x160] sm:$0xff]
  %v130 = vld [vmem:[%s1 + $0x168] sm:$0xff]
  %v131 = vld [vmem:[%s1 + $0x170] sm:$0xff]
  %v132 = vld [vmem:[%s1 + $0x178] sm:$0xff]
  %v133 = vld [vmem:[%s1 + $0x180] sm:$0xff]
  %v134 = vld [vmem:[%s1 + $0x188] sm:$0xff]
  %v135 = vld [vmem:[%s1 + $0x190] sm:$0xff]
  %v136 = vld [vmem:[%s1 + $0x198] sm:$0xff]
  %v137 = vld [vmem:[%s1 + $0x1a0] sm:$0xff]
  %v138 = vld [vmem:[%s1 + $0x1a8] sm:$0xff]
  %v139 = vld [vmem:[%s1 + $0x1b0] sm:$0xff]
  %v140 = vld [vmem:[%s1 + $0x1b8] sm:$0xff]
  %v141 = vld [vmem:[%s1 + $0x1c0] sm:$0xff]
  %v142 = vld [vmem:[%s1 + $0x1c8] sm:$0xff]
  %v143 = vld [vmem:[%s1 + $0x1d0] sm:$0xff]
  %v144 = vld [vmem:[%s1 + $0x1d8] sm:$0xff]
  %v145 = vld [vmem:[%s1 + $0x1e0] sm:$0xff]
  %v146 = vld [vmem:[%s1 + $0x1e8] sm:$0xff]
  %v147 = vld [vmem:[%s1 + $0x1f0] sm:$0xff]
  %v148 = vld [vmem:[%s1 + $0x1f8] sm:$0xff]
  %v149 = vld [vmem:[%s3] sm:$0xf]
  %vm150 = vcmask 31744
  %v152 = vsel %vm150, %v85, 0
  %v155 = vsel %vm150, %v86, 0
  %v158 = vsel %vm150, %v87, 0
  %v161 = vsel %vm150, %v88, 0
  %v164 = vsel %vm150, %v89, 0
  %v167 = vsel %vm150, %v90, 0
  %v170 = vsel %vm150, %v91, 0
  %v173 = vsel %vm150, %v92, 0
  %v176 = vsel %vm150, %v93, 0
  %v179 = vsel %vm150, %v94, 0
  %v182 = vsel %vm150, %v95, 0
  %v185 = vsel %vm150, %v96, 0
  %v188 = vsel %vm150, %v97, 0
  %v191 = vsel %vm150, %v98, 0
  %v194 = vsel %vm150, %v99, 0
  %v197 = vsel %vm150, %v100, 0
  %v200 = vsel %vm150, %v101, 0
  %v203 = vsel %vm150, %v102, 0
  %v206 = vsel %vm150, %v103, 0
  %v209 = vsel %vm150, %v104, 0
  %v212 = vsel %vm150, %v105, 0
  %v215 = vsel %vm150, %v106, 0
  %v218 = vsel %vm150, %v107, 0
  %v221 = vsel %vm150, %v108, 0
  %v224 = vsel %vm150, %v109, 0
  %v227 = vsel %vm150, %v110, 0
  %v230 = vsel %vm150, %v111, 0
  %v233 = vsel %vm150, %v112, 0
  %v236 = vsel %vm150, %v113, 0
  %v239 = vsel %vm150, %v114, 0
  %v242 = vsel %vm150, %v115, 0
  %v245 = vsel %vm150, %v116, 0
  %v248 = vsel %vm150, %v117, 0
  %v251 = vsel %vm150, %v118, 0
  %v254 = vsel %vm150, %v119, 0
  %v257 = vsel %vm150, %v120, 0
  %v260 = vsel %vm150, %v121, 0
  %v263 = vsel %vm150, %v122, 0
  %v266 = vsel %vm150, %v123, 0
  %v269 = vsel %vm150, %v124, 0
  %v272 = vsel %vm150, %v125, 0
  %v275 = vsel %vm150, %v126, 0
  %v278 = vsel %vm150, %v127, 0
  %v281 = vsel %vm150, %v128, 0
  %v284 = vsel %vm150, %v129, 0
  %v287 = vsel %vm150, %v130, 0
  %v290 = vsel %vm150, %v131, 0
  %v293 = vsel %vm150, %v132, 0
  %v296 = vsel %vm150, %v133, 0
  %v299 = vsel %vm150, %v134, 0
  %v302 = vsel %vm150, %v135, 0
  %v305 = vsel %vm150, %v136, 0
  %v308 = vsel %vm150, %v137, 0
  %v311 = vsel %vm150, %v138, 0
  %v314 = vsel %vm150, %v139, 0
  %v317 = vsel %vm150, %v140, 0
  %v320 = vsel %vm150, %v141, 0
  %v323 = vsel %vm150, %v142, 0
  %v326 = vsel %vm150, %v143, 0
  %v329 = vsel %vm150, %v144, 0
  %v332 = vsel %vm150, %v145, 0
  %v335 = vsel %vm150, %v146, 0
  %v338 = vsel %vm150, %v147, 0
  %v341 = vsel %vm150, %v148, 0
  %vm343 = vcmask 1043456
  %v345 = vsel %vm343, %v149, 0
  %347 = vmatprep.subr.mxu0 0.0
  %348 = vmatpush1.msra.mxu0 %v345
  %349 = vmatprep.subr.mxu0 0.0
  %350 = vmatpush1.msra.mxu0 0.0
  %351 = vmatprep.subr.mxu0 0.0
  %352 = vmatpush1.msra.mxu0 0.0
  %353 = vmatprep.subr.mxu0 0.0
  %354 = vmatpush1.msra.mxu0 0.0
  %355 = vmatprep.subr.mxu0 0.0
  %356 = vmatpush1.msra.mxu0 0.0
  %357 = vmatprep.subr.mxu0 0.0
  %358 = vmatpush1.msra.mxu0 0.0
  %359 = vmatprep.subr.mxu0 0.0
  %360 = vmatpush1.msra.mxu0 0.0
  %361 = vmatprep.subr.mxu0 0.0
  %362 = vmatpush1.msra.mxu0 0.0
  %363 = vmatprep.subr.mxu0 0.0
  %364 = vmatpush1.msra.mxu0 0.0
  %365 = vmatprep.subr.mxu0 0.0
  %366 = vmatpush1.msra.mxu0 0.0
  %367 = vmatprep.subr.mxu0 0.0
  %368 = vmatpush1.msra.mxu0 0.0
  %369 = vmatprep.subr.mxu0 0.0
  %370 = vmatpush1.msra.mxu0 0.0
  %371 = vmatprep.subr.mxu0 0.0
  %372 = vmatpush1.msra.mxu0 0.0
  %373 = vmatprep.subr.mxu0 0.0
  %374 = vmatpush1.msra.mxu0 0.0
  %375 = vmatprep.subr.mxu0 0.0
  %376 = vmatpush1.msra.mxu0 0.0
  %377 = vmatprep.subr.mxu0 0.0
  %378 = vmatpush1.msra.mxu0 0.0
  %379 = vmatprep.subr.mxu0 0.0
  %380 = vmatpush1.msra.mxu0 0.0
  %381 = vmatprep.subr.mxu0 0.0
  %382 = vmatpush1.msra.mxu0 0.0
  %383 = vmatprep.subr.mxu0 0.0
  %384 = vmatpush1.msra.mxu0 0.0
  %385 = vmatprep.subr.mxu0 0.0
  %386 = vmatpush1.msra.mxu0 0.0
  %387 = vmatprep.subr.mxu0 0.0
  %388 = vmatpush1.msra.mxu0 0.0
  %389 = vmatprep.subr.mxu0 0.0
  %390 = vmatpush1.msra.mxu0 0.0
  %391 = vmatprep.subr.mxu0 0.0
  %392 = vmatpush1.msra.mxu0 0.0
  %393 = vmatprep.subr.mxu0 0.0
  %394 = vmatpush1.msra.mxu0 0.0
  %395 = vmatprep.subr.mxu0 0.0
  %396 = vmatpush1.msra.mxu0 0.0
  %397 = vmatprep.subr.mxu0 0.0
  %398 = vmatpush1.msra.mxu0 0.0
  %399 = vmatprep.subr.mxu0 0.0
  %400 = vmatpush1.msra.mxu0 0.0
  %401 = vmatprep.subr.mxu0 0.0
  %402 = vmatpush1.msra.mxu0 0.0
  %403 = vmatprep.subr.mxu0 0.0
  %404 = vmatpush1.msra.mxu0 0.0
  %405 = vmatprep.subr.mxu0 0.0
  %406 = vmatpush1.msra.mxu0 0.0
  %407 = vmatprep.subr.mxu0 0.0
  %408 = vmatpush1.msra.mxu0 0.0
  %409 = vmatprep.subr.mxu0 0.0
  %410 = vmatpush1.msra.mxu0 0.0
  %411 = vmatprep.mubr.f32.mxu0 0.0
  %412 = vmatmul.mubr.f32.gmra.mrb[0].mxu0 %v152
  %v413 = vpop.f32.mrb[0].mxu0
  %v414 = vadd.f32 0.0, %v413
  %v415 = vpop.f32.mrb[0].mxu0
  %416 = vmatprep.mubr.f32.mxu0 0.0
  %417 = vmatmul.mubr.f32.gmra.mrb[0].mxu0 %v155
  %v418 = vpop.f32.mrb[0].mxu0
  %v419 = vadd.f32 0.0, %v418
  %v420 = vpop.f32.mrb[0].mxu0
  %421 = vmatprep.mubr.f32.mxu0 0.0
  %422 = vmatmul.mubr.f32.gmra.mrb[0].mxu0 %v158
  %v423 = vpop.f32.mrb[0].mxu0
  %v424 = vadd.f32 0.0, %v423
  %v425 = vpop.f32.mrb[0].mxu0
  %426 = vmatprep.mubr.f32.mxu0 0.0
  %427 = vmatmul.mubr.f32.gmra.mrb[0].mxu0 %v161
  %v428 = vpop.f32.mrb[0].mxu0
  %v429 = vadd.f32 0.0, %v428
  %v430 = vpop.f32.mrb[0].mxu0
  %431 = vmatprep.mubr.f32.mxu0 0.0
  %432 = vmatmul.mubr.f32.gmra.mrb[0].mxu0 %v164
  %v433 = vpop.f32.mrb[0].mxu0
  %v434 = vadd.f32 0.0, %v433
  %v435 = vpop.f32.mrb[0].mxu0
  %436 = vmatprep.mubr.f32.mxu0 0.0
  %437 = vmatmul.mubr.f32.gmra.mrb[0].mxu0 %v167
  %v438 = vpop.f32.mrb[0].mxu0
  %v439 = vadd.f32 0.0, %v438
  %v440 = vpop.f32.mrb[0].mxu0
  %441 = vmatprep.mubr.f32.mxu0 0.0
  %442 = vmatmul.mubr.f32.gmra.mrb[0].mxu0 %v170
  %v443 = vpop.f32.mrb[0].mxu0
  %v444 = vadd.f32 0.0, %v443
  %v445 = vpop.f32.mrb[0].mxu0
  %446 = vmatprep.mubr.f32.mxu0 0.0
  %447 = vmatmul.mubr.f32.gmra.mrb[0].mxu0 %v173
  %v448 = vpop.f32.mrb[0].mxu0
  %v449 = vadd.f32 0.0, %v448
  %v450 = vpop.f32.mrb[0].mxu0
  %451 = vmatprep.mubr.f32.mxu0 0.0
  %452 = vmatmul.mubr.f32.gmra.mrb[0].mxu0 %v176
  %v453 = vpop.f32.mrb[0].mxu0
  %v454 = vadd.f32 0.0, %v453
  %v455 = vpop.f32.mrb[0].mxu0
  %456 = vmatprep.mubr.f32.mxu0 0.0
  %457 = vmatmul.mubr.f32.gmra.mrb[0].mxu0 %v179
  %v458 = vpop.f32.mrb[0].mxu0
  %v459 = vadd.f32 0.0, %v458
  %v460 = vpop.f32.mrb[0].mxu0
  %461 = vmatprep.mubr.f32.mxu0 0.0
  %462 = vmatmul.mubr.f32.gmra.mrb[0].mxu0 %v182
  %v463 = vpop.f32.mrb[0].mxu0
  %v464 = vadd.f32 0.0, %v463
  %v465 = vpop.f32.mrb[0].mxu0
  %466 = vmatprep.mubr.f32.mxu0 0.0
  %467 = vmatmul.mubr.f32.gmra.mrb[0].mxu0 %v185
  %v468 = vpop.f32.mrb[0].mxu0
  %v469 = vadd.f32 0.0, %v468
  %v470 = vpop.f32.mrb[0].mxu0
  %471 = vmatprep.mubr.f32.mxu0 0.0
  %472 = vmatmul.mubr.f32.gmra.mrb[0].mxu0 %v188
  %v473 = vpop.f32.mrb[0].mxu0
  %v474 = vadd.f32 0.0, %v473
  %v475 = vpop.f32.mrb[0].mxu0
  %476 = vmatprep.mubr.f32.mxu0 0.0
  %477 = vmatmul.mubr.f32.gmra.mrb[0].mxu0 %v191
  %v478 = vpop.f32.mrb[0].mxu0
  %v479 = vadd.f32 0.0, %v478
  %v480 = vpop.f32.mrb[0].mxu0
  %481 = vmatprep.mubr.f32.mxu0 0.0
  %482 = vmatmul.mubr.f32.gmra.mrb[0].mxu0 %v194
  %v483 = vpop.f32.mrb[0].mxu0
  %v484 = vadd.f32 0.0, %v483
  %v485 = vpop.f32.mrb[0].mxu0
  %486 = vmatprep.mubr.f32.mxu0 0.0
  %487 = vmatmul.mubr.f32.gmra.mrb[0].mxu0 %v197
  %v488 = vpop.f32.mrb[0].mxu0
  %v489 = vadd.f32 0.0, %v488
  %v490 = vpop.f32.mrb[0].mxu0
  %491 = vmatprep.mubr.f32.mxu0 0.0
  %492 = vmatmul.mubr.f32.gmra.mrb[0].mxu0 %v200
  %v493 = vpop.f32.mrb[0].mxu0
  %v494 = vadd.f32 0.0, %v493
  %v495 = vpop.f32.mrb[0].mxu0
  %496 = vmatprep.mubr.f32.mxu0 0.0
  %497 = vmatmul.mubr.f32.gmra.mrb[0].mxu0 %v203
  %v498 = vpop.f32.mrb[0].mxu0
  %v499 = vadd.f32 0.0, %v498
  %v500 = vpop.f32.mrb[0].mxu0
  %501 = vmatprep.mubr.f32.mxu0 0.0
  %502 = vmatmul.mubr.f32.gmra.mrb[0].mxu0 %v206
  %v503 = vpop.f32.mrb[0].mxu0
  %v504 = vadd.f32 0.0, %v503
  %v505 = vpop.f32.mrb[0].mxu0
  %506 = vmatprep.mubr.f32.mxu0 0.0
  %507 = vmatmul.mubr.f32.gmra.mrb[0].mxu0 %v209
  %v508 = vpop.f32.mrb[0].mxu0
  %v509 = vadd.f32 0.0, %v508
  %v510 = vpop.f32.mrb[0].mxu0
  %511 = vmatprep.mubr.f32.mxu0 0.0
  %512 = vmatmul.mubr.f32.gmra.mrb[0].mxu0 %v212
  %v513 = vpop.f32.mrb[0].mxu0
  %v514 = vadd.f32 0.0, %v513
  %v515 = vpop.f32.mrb[0].mxu0
  %516 = vmatprep.mubr.f32.mxu0 0.0
  %517 = vmatmul.mubr.f32.gmra.mrb[0].mxu0 %v215
  %v518 = vpop.f32.mrb[0].mxu0
  %v519 = vadd.f32 0.0, %v518
  %v520 = vpop.f32.mrb[0].mxu0
  %521 = vmatprep.mubr.f32.mxu0 0.0
  %522 = vmatmul.mubr.f32.gmra.mrb[0].mxu0 %v218
  %v523 = vpop.f32.mrb[0].mxu0
  %v524 = vadd.f32 0.0, %v523
  %v525 = vpop.f32.mrb[0].mxu0
  %526 = vmatprep.mubr.f32.mxu0 0.0
  %527 = vmatmul.mubr.f32.gmra.mrb[0].mxu0 %v221
  %v528 = vpop.f32.mrb[0].mxu0
  %v529 = vadd.f32 0.0, %v528
  %v530 = vpop.f32.mrb[0].mxu0
  %531 = vmatprep.mubr.f32.mxu0 0.0
  %532 = vmatmul.mubr.f32.gmra.mrb[0].mxu0 %v224
  %v533 = vpop.f32.mrb[0].mxu0
  %v534 = vadd.f32 0.0, %v533
  %v535 = vpop.f32.mrb[0].mxu0
  %536 = vmatprep.mubr.f32.mxu0 0.0
  %537 = vmatmul.mubr.f32.gmra.mrb[0].mxu0 %v227
  %v538 = vpop.f32.mrb[0].mxu0
  %v539 = vadd.f32 0.0, %v538
  %v540 = vpop.f32.mrb[0].mxu0
  %541 = vmatprep.mubr.f32.mxu0 0.0
  %542 = vmatmul.mubr.f32.gmra.mrb[0].mxu0 %v230
  %v543 = vpop.f32.mrb[0].mxu0
  %v544 = vadd.f32 0.0, %v543
  %v545 = vpop.f32.mrb[0].mxu0
  %546 = vmatprep.mubr.f32.mxu0 0.0
  %547 = vmatmul.mubr.f32.gmra.mrb[0].mxu0 %v233
  %v548 = vpop.f32.mrb[0].mxu0
  %v549 = vadd.f32 0.0, %v548
  %v550 = vpop.f32.mrb[0].mxu0
  %551 = vmatprep.mubr.f32.mxu0 0.0
  %552 = vmatmul.mubr.f32.gmra.mrb[0].mxu0 %v236
  %v553 = vpop.f32.mrb[0].mxu0
  %v554 = vadd.f32 0.0, %v553
  %v555 = vpop.f32.mrb[0].mxu0
  %556 = vmatprep.mubr.f32.mxu0 0.0
  %557 = vmatmul.mubr.f32.gmra.mrb[0].mxu0 %v239
  %v558 = vpop.f32.mrb[0].mxu0
  %v559 = vadd.f32 0.0, %v558
  %v560 = vpop.f32.mrb[0].mxu0
  %561 = vmatprep.mubr.f32.mxu0 0.0
  %562 = vmatmul.mubr.f32.gmra.mrb[0].mxu0 %v242
  %v563 = vpop.f32.mrb[0].mxu0
  %v564 = vadd.f32 0.0, %v563
  %v565 = vpop.f32.mrb[0].mxu0
  %566 = vmatprep.mubr.f32.mxu0 0.0
  %567 = vmatmul.mubr.f32.gmra.mrb[0].mxu0 %v245
  %v568 = vpop.f32.mrb[0].mxu0
  %v569 = vadd.f32 0.0, %v568
  %v570 = vpop.f32.mrb[0].mxu0
  %571 = vmatprep.mubr.f32.mxu0 0.0
  %572 = vmatmul.mubr.f32.gmra.mrb[0].mxu0 %v248
  %v573 = vpop.f32.mrb[0].mxu0
  %v574 = vadd.f32 0.0, %v573
  %v575 = vpop.f32.mrb[0].mxu0
  %576 = vmatprep.mubr.f32.mxu0 0.0
  %577 = vmatmul.mubr.f32.gmra.mrb[0].mxu0 %v251
  %v578 = vpop.f32.mrb[0].mxu0
  %v579 = vadd.f32 0.0, %v578
  %v580 = vpop.f32.mrb[0].mxu0
  %581 = vmatprep.mubr.f32.mxu0 0.0
  %582 = vmatmul.mubr.f32.gmra.mrb[0].mxu0 %v254
  %v583 = vpop.f32.mrb[0].mxu0
  %v584 = vadd.f32 0.0, %v583
  %v585 = vpop.f32.mrb[0].mxu0
  %586 = vmatprep.mubr.f32.mxu0 0.0
  %587 = vmatmul.mubr.f32.gmra.mrb[0].mxu0 %v257
  %v588 = vpop.f32.mrb[0].mxu0
  %v589 = vadd.f32 0.0, %v588
  %v590 = vpop.f32.mrb[0].mxu0
  %591 = vmatprep.mubr.f32.mxu0 0.0
  %592 = vmatmul.mubr.f32.gmra.mrb[0].mxu0 %v260
  %v593 = vpop.f32.mrb[0].mxu0
  %v594 = vadd.f32 0.0, %v593
  %v595 = vpop.f32.mrb[0].mxu0
  %596 = vmatprep.mubr.f32.mxu0 0.0
  %597 = vmatmul.mubr.f32.gmra.mrb[0].mxu0 %v263
  %v598 = vpop.f32.mrb[0].mxu0
  %v599 = vadd.f32 0.0, %v598
  %v600 = vpop.f32.mrb[0].mxu0
  %601 = vmatprep.mubr.f32.mxu0 0.0
  %602 = vmatmul.mubr.f32.gmra.mrb[0].mxu0 %v266
  %v603 = vpop.f32.mrb[0].mxu0
  %v604 = vadd.f32 0.0, %v603
  %v605 = vpop.f32.mrb[0].mxu0
  %606 = vmatprep.mubr.f32.mxu0 0.0
  %607 = vmatmul.mubr.f32.gmra.mrb[0].mxu0 %v269
  %v608 = vpop.f32.mrb[0].mxu0
  %v609 = vadd.f32 0.0, %v608
  %v610 = vpop.f32.mrb[0].mxu0
  %611 = vmatprep.mubr.f32.mxu0 0.0
  %612 = vmatmul.mubr.f32.gmra.mrb[0].mxu0 %v272
  %v613 = vpop.f32.mrb[0].mxu0
  %v614 = vadd.f32 0.0, %v613
  %v615 = vpop.f32.mrb[0].mxu0
  %616 = vmatprep.mubr.f32.mxu0 0.0
  %617 = vmatmul.mubr.f32.gmra.mrb[0].mxu0 %v275
  %v618 = vpop.f32.mrb[0].mxu0
  %v619 = vadd.f32 0.0, %v618
  %v620 = vpop.f32.mrb[0].mxu0
  %621 = vmatprep.mubr.f32.mxu0 0.0
  %622 = vmatmul.mubr.f32.gmra.mrb[0].mxu0 %v278
  %v623 = vpop.f32.mrb[0].mxu0
  %v624 = vadd.f32 0.0, %v623
  %v625 = vpop.f32.mrb[0].mxu0
  %626 = vmatprep.mubr.f32.mxu0 0.0
  %627 = vmatmul.mubr.f32.gmra.mrb[0].mxu0 %v281
  %v628 = vpop.f32.mrb[0].mxu0
  %v629 = vadd.f32 0.0, %v628
  %v630 = vpop.f32.mrb[0].mxu0
  %631 = vmatprep.mubr.f32.mxu0 0.0
  %632 = vmatmul.mubr.f32.gmra.mrb[0].mxu0 %v284
  %v633 = vpop.f32.mrb[0].mxu0
  %v634 = vadd.f32 0.0, %v633
  %v635 = vpop.f32.mrb[0].mxu0
  %636 = vmatprep.mubr.f32.mxu0 0.0
  %637 = vmatmul.mubr.f32.gmra.mrb[0].mxu0 %v287
  %v638 = vpop.f32.mrb[0].mxu0
  %v639 = vadd.f32 0.0, %v638
  %v640 = vpop.f32.mrb[0].mxu0
  %641 = vmatprep.mubr.f32.mxu0 0.0
  %642 = vmatmul.mubr.f32.gmra.mrb[0].mxu0 %v290
  %v643 = vpop.f32.mrb[0].mxu0
  %v644 = vadd.f32 0.0, %v643
  %v645 = vpop.f32.mrb[0].mxu0
  %646 = vmatprep.mubr.f32.mxu0 0.0
  %647 = vmatmul.mubr.f32.gmra.mrb[0].mxu0 %v293
  %v648 = vpop.f32.mrb[0].mxu0
  %v649 = vadd.f32 0.0, %v648
  %v650 = vpop.f32.mrb[0].mxu0
  %651 = vmatprep.mubr.f32.mxu0 0.0
  %652 = vmatmul.mubr.f32.gmra.mrb[0].mxu0 %v296
  %v653 = vpop.f32.mrb[0].mxu0
  %v654 = vadd.f32 0.0, %v653
  %v655 = vpop.f32.mrb[0].mxu0
  %656 = vmatprep.mubr.f32.mxu0 0.0
  %657 = vmatmul.mubr.f32.gmra.mrb[0].mxu0 %v299
  %v658 = vpop.f32.mrb[0].mxu0
  %v659 = vadd.f32 0.0, %v658
  %v660 = vpop.f32.mrb[0].mxu0
  %661 = vmatprep.mubr.f32.mxu0 0.0
  %662 = vmatmul.mubr.f32.gmra.mrb[0].mxu0 %v302
  %v663 = vpop.f32.mrb[0].mxu0
  %v664 = vadd.f32 0.0, %v663
  %v665 = vpop.f32.mrb[0].mxu0
  %666 = vmatprep.mubr.f32.mxu0 0.0
  %667 = vmatmul.mubr.f32.gmra.mrb[0].mxu0 %v305
  %v668 = vpop.f32.mrb[0].mxu0
  %v669 = vadd.f32 0.0, %v668
  %v670 = vpop.f32.mrb[0].mxu0
  %671 = vmatprep.mubr.f32.mxu0 0.0
  %672 = vmatmul.mubr.f32.gmra.mrb[0].mxu0 %v308
  %v673 = vpop.f32.mrb[0].mxu0
  %v674 = vadd.f32 0.0, %v673
  %v675 = vpop.f32.mrb[0].mxu0
  %676 = vmatprep.mubr.f32.mxu0 0.0
  %677 = vmatmul.mubr.f32.gmra.mrb[0].mxu0 %v311
  %v678 = vpop.f32.mrb[0].mxu0
  %v679 = vadd.f32 0.0, %v678
  %v680 = vpop.f32.mrb[0].mxu0
  %681 = vmatprep.mubr.f32.mxu0 0.0
  %682 = vmatmul.mubr.f32.gmra.mrb[0].mxu0 %v314
  %v683 = vpop.f32.mrb[0].mxu0
  %v684 = vadd.f32 0.0, %v683
  %v685 = vpop.f32.mrb[0].mxu0
  %686 = vmatprep.mubr.f32.mxu0 0.0
  %687 = vmatmul.mubr.f32.gmra.mrb[0].mxu0 %v317
  %v688 = vpop.f32.mrb[0].mxu0
  %v689 = vadd.f32 0.0, %v688
  %v690 = vpop.f32.mrb[0].mxu0
  %691 = vmatprep.mubr.f32.mxu0 0.0
  %692 = vmatmul.mubr.f32.gmra.mrb[0].mxu0 %v320
  %v693 = vpop.f32.mrb[0].mxu0
  %v694 = vadd.f32 0.0, %v693
  %v695 = vpop.f32.mrb[0].mxu0
  %696 = vmatprep.mubr.f32.mxu0 0.0
  %697 = vmatmul.mubr.f32.gmra.mrb[0].mxu0 %v323
  %v698 = vpop.f32.mrb[0].mxu0
  %v699 = vadd.f32 0.0, %v698
  %v700 = vpop.f32.mrb[0].mxu0
  %701 = vmatprep.mubr.f32.mxu0 0.0
  %702 = vmatmul.mubr.f32.gmra.mrb[0].mxu0 %v326
  %v703 = vpop.f32.mrb[0].mxu0
  %v704 = vadd.f32 0.0, %v703
  %v705 = vpop.f32.mrb[0].mxu0
  %706 = vmatprep.mubr.f32.mxu0 0.0
  %707 = vmatmul.mubr.f32.gmra.mrb[0].mxu0 %v329
  %v708 = vpop.f32.mrb[0].mxu0
  %v709 = vadd.f32 0.0, %v708
  %v710 = vpop.f32.mrb[0].mxu0
  %711 = vmatprep.mubr.f32.mxu0 0.0
  %712 = vmatmul.mubr.f32.gmra.mrb[0].mxu0 %v332
  %v713 = vpop.f32.mrb[0].mxu0
  %v714 = vadd.f32 0.0, %v713
  %v715 = vpop.f32.mrb[0].mxu0
  %716 = vmatprep.mubr.f32.mxu0 0.0
  %717 = vmatmul.mubr.f32.gmra.mrb[0].mxu0 %v335
  %v718 = vpop.f32.mrb[0].mxu0
  %v719 = vadd.f32 0.0, %v718
  %v720 = vpop.f32.mrb[0].mxu0
  %721 = vmatprep.mubr.f32.mxu0 0.0
  %722 = vmatmul.mubr.f32.gmra.mrb[0].mxu0 %v338
  %v723 = vpop.f32.mrb[0].mxu0
  %v724 = vadd.f32 0.0, %v723
  %v725 = vpop.f32.mrb[0].mxu0
  %726 = vmatprep.mubr.f32.mxu0 0.0
  %727 = vmatmul.mubr.f32.gmra.mrb[0].mxu0 %v341
  %v728 = vpop.f32.mrb[0].mxu0
  %v729 = vadd.f32 0.0, %v728
  %v730 = vpop.f32.mrb[0].mxu0
  %731 = vdwg.mxu0
  %v733 = vsel %vm150, %v20, 0
  %v736 = vsel %vm150, %v21, 0
  %v739 = vsel %vm150, %v22, 0
  %v742 = vsel %vm150, %v23, 0
  %v745 = vsel %vm150, %v24, 0
  %v748 = vsel %vm150, %v25, 0
  %v751 = vsel %vm150, %v26, 0
  %v754 = vsel %vm150, %v27, 0
  %v757 = vsel %vm150, %v28, 0
  %v760 = vsel %vm150, %v29, 0
  %v763 = vsel %vm150, %v30, 0
  %v766 = vsel %vm150, %v31, 0
  %v769 = vsel %vm150, %v32, 0
  %v772 = vsel %vm150, %v33, 0
  %v775 = vsel %vm150, %v34, 0
  %v778 = vsel %vm150, %v35, 0
  %v781 = vsel %vm150, %v36, 0
  %v784 = vsel %vm150, %v37, 0
  %v787 = vsel %vm150, %v38, 0
  %v790 = vsel %vm150, %v39, 0
  %v793 = vsel %vm150, %v40, 0
  %v796 = vsel %vm150, %v41, 0
  %v799 = vsel %vm150, %v42, 0
  %v802 = vsel %vm150, %v43, 0
  %v805 = vsel %vm150, %v44, 0
  %v808 = vsel %vm150, %v45, 0
  %v811 = vsel %vm150, %v46, 0
  %v814 = vsel %vm150, %v47, 0
  %v817 = vsel %vm150, %v48, 0
  %v820 = vsel %vm150, %v49, 0
  %v823 = vsel %vm150, %v50, 0
  %v826 = vsel %vm150, %v51, 0
  %v829 = vsel %vm150, %v52, 0
  %v832 = vsel %vm150, %v53, 0
  %v835 = vsel %vm150, %v54, 0
  %v838 = vsel %vm150, %v55, 0
  %v841 = vsel %vm150, %v56, 0
  %v844 = vsel %vm150, %v57, 0
  %v847 = vsel %vm150, %v58, 0
  %v850 = vsel %vm150, %v59, 0
  %v853 = vsel %vm150, %v60, 0
  %v856 = vsel %vm150, %v61, 0
  %v859 = vsel %vm150, %v62, 0
  %v862 = vsel %vm150, %v63, 0
  %v865 = vsel %vm150, %v64, 0
  %v868 = vsel %vm150, %v65, 0
  %v871 = vsel %vm150, %v66, 0
  %v874 = vsel %vm150, %v67, 0
  %v877 = vsel %vm150, %v68, 0
  %v880 = vsel %vm150, %v69, 0
  %v883 = vsel %vm150, %v70, 0
  %v886 = vsel %vm150, %v71, 0
  %v889 = vsel %vm150, %v72, 0
  %v892 = vsel %vm150, %v73, 0
  %v895 = vsel %vm150, %v74, 0
  %v898 = vsel %vm150, %v75, 0
  %v901 = vsel %vm150, %v76, 0
  %v904 = vsel %vm150, %v77, 0
  %v907 = vsel %vm150, %v78, 0
  %v910 = vsel %vm150, %v79, 0
  %v913 = vsel %vm150, %v80, 0
  %v916 = vsel %vm150, %v81, 0
  %v919 = vsel %vm150, %v82, 0
  %v922 = vsel %vm150, %v83, 0
  %v925 = vsel %vm343, %v84, 0
  %927 = vmatprep.subr.mxu0 0.0
  %928 = vmatpush1.msra.mxu0 %v925
  %929 = vmatprep.subr.mxu0 0.0
  %930 = vmatpush1.msra.mxu0 0.0
  %931 = vmatprep.subr.mxu0 0.0
  %932 = vmatpush1.msra.mxu0 0.0
  %933 = vmatprep.subr.mxu0 0.0
  %934 = vmatpush1.msra.mxu0 0.0
  %935 = vmatprep.subr.mxu0 0.0
  %936 = vmatpush1.msra.mxu0 0.0
  %937 = vmatprep.subr.mxu0 0.0
  %938 = vmatpush1.msra.mxu0 0.0
  %939 = vmatprep.subr.mxu0 0.0
  %940 = vmatpush1.msra.mxu0 0.0
  %941 = vmatprep.subr.mxu0 0.0
  %942 = vmatpush1.msra.mxu0 0.0
  %943 = vmatprep.subr.mxu0 0.0
  %944 = vmatpush1.msra.mxu0 0.0
  %945 = vmatprep.subr.mxu0 0.0
  %946 = vmatpush1.msra.mxu0 0.0
  %947 = vmatprep.subr.mxu0 0.0
  %948 = vmatpush1.msra.mxu0 0.0
  %949 = vmatprep.subr.mxu0 0.0
  %950 = vmatpush1.msra.mxu0 0.0
  %951 = vmatprep.subr.mxu0 0.0
  %952 = vmatpush1.msra.mxu0 0.0
  %953 = vmatprep.subr.mxu0 0.0
  %954 = vmatpush1.msra.mxu0 0.0
  %955 = vmatprep.subr.mxu0 0.0
  %956 = vmatpush1.msra.mxu0 0.0
  %957 = vmatprep.subr.mxu0 0.0
  %958 = vmatpush1.msra.mxu0 0.0
  %959 = vmatprep.subr.mxu0 0.0
  %960 = vmatpush1.msra.mxu0 0.0
  %961 = vmatprep.subr.mxu0 0.0
  %962 = vmatpush1.msra.mxu0 0.0
  %963 = vmatprep.subr.mxu0 0.0
  %964 = vmatpush1.msra.mxu0 0.0
  %965 = vmatprep.subr.mxu0 0.0
  %966 = vmatpush1.msra.mxu0 0.0
  %967 = vmatprep.subr.mxu0 0.0
  %968 = vmatpush1.msra.mxu0 0.0
  %969 = vmatprep.subr.mxu0 0.0
  %970 = vmatpush1.msra.mxu0 0.0
  %971 = vmatprep.subr.mxu0 0.0
  %972 = vmatpush1.msra.mxu0 0.0
  %973 = vmatprep.subr.mxu0 0.0
  %974 = vmatpush1.msra.mxu0 0.0
  %975 = vmatprep.subr.mxu0 0.0
  %976 = vmatpush1.msra.mxu0 0.0
  %977 = vmatprep.subr.mxu0 0.0
  %978 = vmatpush1.msra.mxu0 0.0
  %979 = vmatprep.subr.mxu0 0.0
  %980 = vmatpush1.msra.mxu0 0.0
  %981 = vmatprep.subr.mxu0 0.0
  %982 = vmatpush1.msra.mxu0 0.0
  %983 = vmatprep.subr.mxu0 0.0
  %984 = vmatpush1.msra.mxu0 0.0
  %985 = vmatprep.subr.mxu0 0.0
  %986 = vmatpush1.msra.mxu0 0.0
  %987 = vmatprep.subr.mxu0 0.0
  %988 = vmatpush1.msra.mxu0 0.0
  %989 = vmatprep.subr.mxu0 0.0
  %990 = vmatpush1.msra.mxu0 0.0
  %991 = vmatprep.mubr.f32.mxu0 0.0
  %992 = vmatmul.mubr.f32.gmra.mrb[0].mxu0 %v733
  %v993 = vpop.f32.mrb[0].mxu0
  %v994 = vadd.f32 %v414, %v993
  %v995 = vpop.f32.mrb[0].mxu0
  %996 = vmatprep.mubr.f32.mxu0 0.0
  %997 = vmatmul.mubr.f32.gmra.mrb[0].mxu0 %v736
  %v998 = vpop.f32.mrb[0].mxu0
  %v999 = vadd.f32 %v419, %v998
  %v1000 = vpop.f32.mrb[0].mxu0
  %1001 = vmatprep.mubr.f32.mxu0 0.0
  %1002 = vmatmul.mubr.f32.gmra.mrb[0].mxu0 %v739
  %v1003 = vpop.f32.mrb[0].mxu0
  %v1004 = vadd.f32 %v424, %v1003
  %v1005 = vpop.f32.mrb[0].mxu0
  %1006 = vmatprep.mubr.f32.mxu0 0.0
  %1007 = vmatmul.mubr.f32.gmra.mrb[0].mxu0 %v742
  %v1008 = vpop.f32.mrb[0].mxu0
  %v1009 = vadd.f32 %v429, %v1008
  %v1010 = vpop.f32.mrb[0].mxu0
  %1011 = vmatprep.mubr.f32.mxu0 0.0
  %1012 = vmatmul.mubr.f32.gmra.mrb[0].mxu0 %v745
  %v1013 = vpop.f32.mrb[0].mxu0
  %v1014 = vadd.f32 %v434, %v1013
  %v1015 = vpop.f32.mrb[0].mxu0
  %1016 = vmatprep.mubr.f32.mxu0 0.0
  %1017 = vmatmul.mubr.f32.gmra.mrb[0].mxu0 %v748
  %v1018 = vpop.f32.mrb[0].mxu0
  %v1019 = vadd.f32 %v439, %v1018
  %v1020 = vpop.f32.mrb[0].mxu0
  %1021 = vmatprep.mubr.f32.mxu0 0.0
  %1022 = vmatmul.mubr.f32.gmra.mrb[0].mxu0 %v751
  %v1023 = vpop.f32.mrb[0].mxu0
  %v1024 = vadd.f32 %v444, %v1023
  %v1025 = vpop.f32.mrb[0].mxu0
  %1026 = vmatprep.mubr.f32.mxu0 0.0
  %1027 = vmatmul.mubr.f32.gmra.mrb[0].mxu0 %v754
  %v1028 = vpop.f32.mrb[0].mxu0
  %v1029 = vadd.f32 %v449, %v1028
  %v1030 = vpop.f32.mrb[0].mxu0
  %1031 = vmatprep.mubr.f32.mxu0 0.0
  %1032 = vmatmul.mubr.f32.gmra.mrb[0].mxu0 %v757
  %v1033 = vpop.f32.mrb[0].mxu0
  %v1034 = vadd.f32 %v454, %v1033
  %v1035 = vpop.f32.mrb[0].mxu0
  %1036 = vmatprep.mubr.f32.mxu0 0.0
  %1037 = vmatmul.mubr.f32.gmra.mrb[0].mxu0 %v760
  %v1038 = vpop.f32.mrb[0].mxu0
  %v1039 = vadd.f32 %v459, %v1038
  %v1040 = vpop.f32.mrb[0].mxu0
  %1041 = vmatprep.mubr.f32.mxu0 0.0
  %1042 = vmatmul.mubr.f32.gmra.mrb[0].mxu0 %v763
  %v1043 = vpop.f32.mrb[0].mxu0
  %v1044 = vadd.f32 %v464, %v1043
  %v1045 = vpop.f32.mrb[0].mxu0
  %1046 = vmatprep.mubr.f32.mxu0 0.0
  %1047 = vmatmul.mubr.f32.gmra.mrb[0].mxu0 %v766
  %v1048 = vpop.f32.mrb[0].mxu0
  %v1049 = vadd.f32 %v469, %v1048
  %v1050 = vpop.f32.mrb[0].mxu0
  %1051 = vmatprep.mubr.f32.mxu0 0.0
  %1052 = vmatmul.mubr.f32.gmra.mrb[0].mxu0 %v769
  %v1053 = vpop.f32.mrb[0].mxu0
  %v1054 = vadd.f32 %v474, %v1053
  %v1055 = vpop.f32.mrb[0].mxu0
  %1056 = vmatprep.mubr.f32.mxu0 0.0
  %1057 = vmatmul.mubr.f32.gmra.mrb[0].mxu0 %v772
  %v1058 = vpop.f32.mrb[0].mxu0
  %v1059 = vadd.f32 %v479, %v1058
  %v1060 = vpop.f32.mrb[0].mxu0
  %1061 = vmatprep.mubr.f32.mxu0 0.0
  %1062 = vmatmul.mubr.f32.gmra.mrb[0].mxu0 %v775
  %v1063 = vpop.f32.mrb[0].mxu0
  %v1064 = vadd.f32 %v484, %v1063
  %v1065 = vpop.f32.mrb[0].mxu0
  %1066 = vmatprep.mubr.f32.mxu0 0.0
  %1067 = vmatmul.mubr.f32.gmra.mrb[0].mxu0 %v778
  %v1068 = vpop.f32.mrb[0].mxu0
  %v1069 = vadd.f32 %v489, %v1068
  %v1070 = vpop.f32.mrb[0].mxu0
  %1071 = vmatprep.mubr.f32.mxu0 0.0
  %1072 = vmatmul.mubr.f32.gmra.mrb[0].mxu0 %v781
  %v1073 = vpop.f32.mrb[0].mxu0
  %v1074 = vadd.f32 %v494, %v1073
  %v1075 = vpop.f32.mrb[0].mxu0
  %1076 = vmatprep.mubr.f32.mxu0 0.0
  %1077 = vmatmul.mubr.f32.gmra.mrb[0].mxu0 %v784
  %v1078 = vpop.f32.mrb[0].mxu0
  %v1079 = vadd.f32 %v499, %v1078
  %v1080 = vpop.f32.mrb[0].mxu0
  %1081 = vmatprep.mubr.f32.mxu0 0.0
  %1082 = vmatmul.mubr.f32.gmra.mrb[0].mxu0 %v787
  %v1083 = vpop.f32.mrb[0].mxu0
  %v1084 = vadd.f32 %v504, %v1083
  %v1085 = vpop.f32.mrb[0].mxu0
  %1086 = vmatprep.mubr.f32.mxu0 0.0
  %1087 = vmatmul.mubr.f32.gmra.mrb[0].mxu0 %v790
  %v1088 = vpop.f32.mrb[0].mxu0
  %v1089 = vadd.f32 %v509, %v1088
  %v1090 = vpop.f32.mrb[0].mxu0
  %1091 = vmatprep.mubr.f32.mxu0 0.0
  %1092 = vmatmul.mubr.f32.gmra.mrb[0].mxu0 %v793
  %v1093 = vpop.f32.mrb[0].mxu0
  %v1094 = vadd.f32 %v514, %v1093
  %v1095 = vpop.f32.mrb[0].mxu0
  %1096 = vmatprep.mubr.f32.mxu0 0.0
  %1097 = vmatmul.mubr.f32.gmra.mrb[0].mxu0 %v796
  %v1098 = vpop.f32.mrb[0].mxu0
  %v1099 = vadd.f32 %v519, %v1098
  %v1100 = vpop.f32.mrb[0].mxu0
  %1101 = vmatprep.mubr.f32.mxu0 0.0
  %1102 = vmatmul.mubr.f32.gmra.mrb[0].mxu0 %v799
  %v1103 = vpop.f32.mrb[0].mxu0
  %v1104 = vadd.f32 %v524, %v1103
  %v1105 = vpop.f32.mrb[0].mxu0
  %1106 = vmatprep.mubr.f32.mxu0 0.0
  %1107 = vmatmul.mubr.f32.gmra.mrb[0].mxu0 %v802
  %v1108 = vpop.f32.mrb[0].mxu0
  %v1109 = vadd.f32 %v529, %v1108
  %v1110 = vpop.f32.mrb[0].mxu0
  %1111 = vmatprep.mubr.f32.mxu0 0.0
  %1112 = vmatmul.mubr.f32.gmra.mrb[0].mxu0 %v805
  %v1113 = vpop.f32.mrb[0].mxu0
  %v1114 = vadd.f32 %v534, %v1113
  %v1115 = vpop.f32.mrb[0].mxu0
  %1116 = vmatprep.mubr.f32.mxu0 0.0
  %1117 = vmatmul.mubr.f32.gmra.mrb[0].mxu0 %v808
  %v1118 = vpop.f32.mrb[0].mxu0
  %v1119 = vadd.f32 %v539, %v1118
  %v1120 = vpop.f32.mrb[0].mxu0
  %1121 = vmatprep.mubr.f32.mxu0 0.0
  %1122 = vmatmul.mubr.f32.gmra.mrb[0].mxu0 %v811
  %v1123 = vpop.f32.mrb[0].mxu0
  %v1124 = vadd.f32 %v544, %v1123
  %v1125 = vpop.f32.mrb[0].mxu0
  %1126 = vmatprep.mubr.f32.mxu0 0.0
  %1127 = vmatmul.mubr.f32.gmra.mrb[0].mxu0 %v814
  %v1128 = vpop.f32.mrb[0].mxu0
  %v1129 = vadd.f32 %v549, %v1128
  %v1130 = vpop.f32.mrb[0].mxu0
  %1131 = vmatprep.mubr.f32.mxu0 0.0
  %1132 = vmatmul.mubr.f32.gmra.mrb[0].mxu0 %v817
  %v1133 = vpop.f32.mrb[0].mxu0
  %v1134 = vadd.f32 %v554, %v1133
  %v1135 = vpop.f32.mrb[0].mxu0
  %1136 = vmatprep.mubr.f32.mxu0 0.0
  %1137 = vmatmul.mubr.f32.gmra.mrb[0].mxu0 %v820
  %v1138 = vpop.f32.mrb[0].mxu0
  %v1139 = vadd.f32 %v559, %v1138
  %v1140 = vpop.f32.mrb[0].mxu0
  %1141 = vmatprep.mubr.f32.mxu0 0.0
  %1142 = vmatmul.mubr.f32.gmra.mrb[0].mxu0 %v823
  %v1143 = vpop.f32.mrb[0].mxu0
  %v1144 = vadd.f32 %v564, %v1143
  %v1145 = vpop.f32.mrb[0].mxu0
  %1146 = vmatprep.mubr.f32.mxu0 0.0
  %1147 = vmatmul.mubr.f32.gmra.mrb[0].mxu0 %v826
  %v1148 = vpop.f32.mrb[0].mxu0
  %v1149 = vadd.f32 %v569, %v1148
  %v1150 = vpop.f32.mrb[0].mxu0
  %1151 = vmatprep.mubr.f32.mxu0 0.0
  %1152 = vmatmul.mubr.f32.gmra.mrb[0].mxu0 %v829
  %v1153 = vpop.f32.mrb[0].mxu0
  %v1154 = vadd.f32 %v574, %v1153
  %v1155 = vpop.f32.mrb[0].mxu0
  %1156 = vmatprep.mubr.f32.mxu0 0.0
  %1157 = vmatmul.mubr.f32.gmra.mrb[0].mxu0 %v832
  %v1158 = vpop.f32.mrb[0].mxu0
  %v1159 = vadd.f32 %v579, %v1158
  %v1160 = vpop.f32.mrb[0].mxu0
  %1161 = vmatprep.mubr.f32.mxu0 0.0
  %1162 = vmatmul.mubr.f32.gmra.mrb[0].mxu0 %v835
  %v1163 = vpop.f32.mrb[0].mxu0
  %v1164 = vadd.f32 %v584, %v1163
  %v1165 = vpop.f32.mrb[0].mxu0
  %1166 = vmatprep.mubr.f32.mxu0 0.0
  %1167 = vmatmul.mubr.f32.gmra.mrb[0].mxu0 %v838
  %v1168 = vpop.f32.mrb[0].mxu0
  %v1169 = vadd.f32 %v589, %v1168
  %v1170 = vpop.f32.mrb[0].mxu0
  %1171 = vmatprep.mubr.f32.mxu0 0.0
  %1172 = vmatmul.mubr.f32.gmra.mrb[0].mxu0 %v841
  %v1173 = vpop.f32.mrb[0].mxu0
  %v1174 = vadd.f32 %v594, %v1173
  %v1175 = vpop.f32.mrb[0].mxu0
  %1176 = vmatprep.mubr.f32.mxu0 0.0
  %1177 = vmatmul.mubr.f32.gmra.mrb[0].mxu0 %v844
  %v1178 = vpop.f32.mrb[0].mxu0
  %v1179 = vadd.f32 %v599, %v1178
  %v1180 = vpop.f32.mrb[0].mxu0
  %1181 = vmatprep.mubr.f32.mxu0 0.0
  %1182 = vmatmul.mubr.f32.gmra.mrb[0].mxu0 %v847
  %v1183 = vpop.f32.mrb[0].mxu0
  %v1184 = vadd.f32 %v604, %v1183
  %v1185 = vpop.f32.mrb[0].mxu0
  %1186 = vmatprep.mubr.f32.mxu0 0.0
  %1187 = vmatmul.mubr.f32.gmra.mrb[0].mxu0 %v850
  %v1188 = vpop.f32.mrb[0].mxu0
  %v1189 = vadd.f32 %v609, %v1188
  %v1190 = vpop.f32.mrb[0].mxu0
  %1191 = vmatprep.mubr.f32.mxu0 0.0
  %1192 = vmatmul.mubr.f32.gmra.mrb[0].mxu0 %v853
  %v1193 = vpop.f32.mrb[0].mxu0
  %v1194 = vadd.f32 %v614, %v1193
  %v1195 = vpop.f32.mrb[0].mxu0
  %1196 = vmatprep.mubr.f32.mxu0 0.0
  %1197 = vmatmul.mubr.f32.gmra.mrb[0].mxu0 %v856
  %v1198 = vpop.f32.mrb[0].mxu0
  %v1199 = vadd.f32 %v619, %v1198
  %v1200 = vpop.f32.mrb[0].mxu0
  %1201 = vmatprep.mubr.f32.mxu0 0.0
  %1202 = vmatmul.mubr.f32.gmra.mrb[0].mxu0 %v859
  %v1203 = vpop.f32.mrb[0].mxu0
  %v1204 = vadd.f32 %v624, %v1203
  %v1205 = vpop.f32.mrb[0].mxu0
  %1206 = vmatprep.mubr.f32.mxu0 0.0
  %1207 = vmatmul.mubr.f32.gmra.mrb[0].mxu0 %v862
  %v1208 = vpop.f32.mrb[0].mxu0
  %v1209 = vadd.f32 %v629, %v1208
  %v1210 = vpop.f32.mrb[0].mxu0
  %1211 = vmatprep.mubr.f32.mxu0 0.0
  %1212 = vmatmul.mubr.f32.gmra.mrb[0].mxu0 %v865
  %v1213 = vpop.f32.mrb[0].mxu0
  %v1214 = vadd.f32 %v634, %v1213
  %v1215 = vpop.f32.mrb[0].mxu0
  %1216 = vmatprep.mubr.f32.mxu0 0.0
  %1217 = vmatmul.mubr.f32.gmra.mrb[0].mxu0 %v868
  %v1218 = vpop.f32.mrb[0].mxu0
  %v1219 = vadd.f32 %v639, %v1218
  %v1220 = vpop.f32.mrb[0].mxu0
  %1221 = vmatprep.mubr.f32.mxu0 0.0
  %1222 = vmatmul.mubr.f32.gmra.mrb[0].mxu0 %v871
  %v1223 = vpop.f32.mrb[0].mxu0
  %v1224 = vadd.f32 %v644, %v1223
  %v1225 = vpop.f32.mrb[0].mxu0
  %1226 = vmatprep.mubr.f32.mxu0 0.0
  %1227 = vmatmul.mubr.f32.gmra.mrb[0].mxu0 %v874
  %v1228 = vpop.f32.mrb[0].mxu0
  %v1229 = vadd.f32 %v649, %v1228
  %v1230 = vpop.f32.mrb[0].mxu0
  %1231 = vmatprep.mubr.f32.mxu0 0.0
  %1232 = vmatmul.mubr.f32.gmra.mrb[0].mxu0 %v877
  %v1233 = vpop.f32.mrb[0].mxu0
  %v1234 = vadd.f32 %v654, %v1233
  %v1235 = vpop.f32.mrb[0].mxu0
  %1236 = vmatprep.mubr.f32.mxu0 0.0
  %1237 = vmatmul.mubr.f32.gmra.mrb[0].mxu0 %v880
  %v1238 = vpop.f32.mrb[0].mxu0
  %v1239 = vadd.f32 %v659, %v1238
  %v1240 = vpop.f32.mrb[0].mxu0
  %1241 = vmatprep.mubr.f32.mxu0 0.0
  %1242 = vmatmul.mubr.f32.gmra.mrb[0].mxu0 %v883
  %v1243 = vpop.f32.mrb[0].mxu0
  %v1244 = vadd.f32 %v664, %v1243
  %v1245 = vpop.f32.mrb[0].mxu0
  %1246 = vmatprep.mubr.f32.mxu0 0.0
  %1247 = vmatmul.mubr.f32.gmra.mrb[0].mxu0 %v886
  %v1248 = vpop.f32.mrb[0].mxu0
  %v1249 = vadd.f32 %v669, %v1248
  %v1250 = vpop.f32.mrb[0].mxu0
  %1251 = vmatprep.mubr.f32.mxu0 0.0
  %1252 = vmatmul.mubr.f32.gmra.mrb[0].mxu0 %v889
  %v1253 = vpop.f32.mrb[0].mxu0
  %v1254 = vadd.f32 %v674, %v1253
  %v1255 = vpop.f32.mrb[0].mxu0
  %1256 = vmatprep.mubr.f32.mxu0 0.0
  %1257 = vmatmul.mubr.f32.gmra.mrb[0].mxu0 %v892
  %v1258 = vpop.f32.mrb[0].mxu0
  %v1259 = vadd.f32 %v679, %v1258
  %v1260 = vpop.f32.mrb[0].mxu0
  %1261 = vmatprep.mubr.f32.mxu0 0.0
  %1262 = vmatmul.mubr.f32.gmra.mrb[0].mxu0 %v895
  %v1263 = vpop.f32.mrb[0].mxu0
  %v1264 = vadd.f32 %v684, %v1263
  %v1265 = vpop.f32.mrb[0].mxu0
  %1266 = vmatprep.mubr.f32.mxu0 0.0
  %1267 = vmatmul.mubr.f32.gmra.mrb[0].mxu0 %v898
  %v1268 = vpop.f32.mrb[0].mxu0
  %v1269 = vadd.f32 %v689, %v1268
  %v1270 = vpop.f32.mrb[0].mxu0
  %1271 = vmatprep.mubr.f32.mxu0 0.0
  %1272 = vmatmul.mubr.f32.gmra.mrb[0].mxu0 %v901
  %v1273 = vpop.f32.mrb[0].mxu0
  %v1274 = vadd.f32 %v694, %v1273
  %v1275 = vpop.f32.mrb[0].mxu0
  %1276 = vmatprep.mubr.f32.mxu0 0.0
  %1277 = vmatmul.mubr.f32.gmra.mrb[0].mxu0 %v904
  %v1278 = vpop.f32.mrb[0].mxu0
  %v1279 = vadd.f32 %v699, %v1278
  %v1280 = vpop.f32.mrb[0].mxu0
  %1281 = vmatprep.mubr.f32.mxu0 0.0
  %1282 = vmatmul.mubr.f32.gmra.mrb[0].mxu0 %v907
  %v1283 = vpop.f32.mrb[0].mxu0
  %v1284 = vadd.f32 %v704, %v1283
  %v1285 = vpop.f32.mrb[0].mxu0
  %1286 = vmatprep.mubr.f32.mxu0 0.0
  %1287 = vmatmul.mubr.f32.gmra.mrb[0].mxu0 %v910
  %v1288 = vpop.f32.mrb[0].mxu0
  %v1289 = vadd.f32 %v709, %v1288
  %v1290 = vpop.f32.mrb[0].mxu0
  %1291 = vmatprep.mubr.f32.mxu0 0.0
  %1292 = vmatmul.mubr.f32.gmra.mrb[0].mxu0 %v913
  %v1293 = vpop.f32.mrb[0].mxu0
  %v1294 = vadd.f32 %v714, %v1293
  %v1295 = vpop.f32.mrb[0].mxu0
  %1296 = vmatprep.mubr.f32.mxu0 0.0
  %1297 = vmatmul.mubr.f32.gmra.mrb[0].mxu0 %v916
  %v1298 = vpop.f32.mrb[0].mxu0
  %v1299 = vadd.f32 %v719, %v1298
  %v1300 = vpop.f32.mrb[0].mxu0
  %1301 = vmatprep.mubr.f32.mxu0 0.0
  %1302 = vmatmul.mubr.f32.gmra.mrb[0].mxu0 %v919
  %v1303 = vpop.f32.mrb[0].mxu0
  %v1304 = vadd.f32 %v724, %v1303
  %v1305 = vpop.f32.mrb[0].mxu0
  %1306 = vmatprep.mubr.f32.mxu0 0.0
  %1307 = vmatmul.mubr.f32.gmra.mrb[0].mxu0 %v922
  %v1308 = vpop.f32.mrb[0].mxu0
  %v1309 = vadd.f32 %v729, %v1308
  %v1310 = vpop.f32.mrb[0].mxu0
  %1311 = vdwg.mxu0
  %v1312 = vld [vmem:[%s4] sm:$0x1]
  %v1314 = vlaneseq
  %v1315 = vshrl.u32 %v1314, 7
  %v1316 = vsub.s32 0, %v1315
  %v1317 = vrot.slane %v1312, %v1316
  %v1319 = vadd.f32 %v994, %v1317
  %v1320 = vadd.f32 %v999, %v1317
  %v1321 = vadd.f32 %v1004, %v1317
  %v1322 = vadd.f32 %v1009, %v1317
  %v1323 = vadd.f32 %v1014, %v1317
  %v1324 = vadd.f32 %v1019, %v1317
  %v1325 = vadd.f32 %v1024, %v1317
  %v1326 = vadd.f32 %v1029, %v1317
  %v1327 = vadd.f32 %v1034, %v1317
  %v1328 = vadd.f32 %v1039, %v1317
  %v1329 = vadd.f32 %v1044, %v1317
  %v1330 = vadd.f32 %v1049, %v1317
  %v1331 = vadd.f32 %v1054, %v1317
  %v1332 = vadd.f32 %v1059, %v1317
  %v1333 = vadd.f32 %v1064, %v1317
  %v1334 = vadd.f32 %v1069, %v1317
  %v1335 = vadd.f32 %v1074, %v1317
  %v1336 = vadd.f32 %v1079, %v1317
  %v1337 = vadd.f32 %v1084, %v1317
  %v1338 = vadd.f32 %v1089, %v1317
  %v1339 = vadd.f32 %v1094, %v1317
  %v1340 = vadd.f32 %v1099, %v1317
  %v1341 = vadd.f32 %v1104, %v1317
  %v1342 = vadd.f32 %v1109, %v1317
  %v1343 = vadd.f32 %v1114, %v1317
  %v1344 = vadd.f32 %v1119, %v1317
  %v1345 = vadd.f32 %v1124, %v1317
  %v1346 = vadd.f32 %v1129, %v1317
  %v1347 = vadd.f32 %v1134, %v1317
  %v1348 = vadd.f32 %v1139, %v1317
  %v1349 = vadd.f32 %v1144, %v1317
  %v1350 = vadd.f32 %v1149, %v1317
  %v1351 = vadd.f32 %v1154, %v1317
  %v1352 = vadd.f32 %v1159, %v1317
  %v1353 = vadd.f32 %v1164, %v1317
  %v1354 = vadd.f32 %v1169, %v1317
  %v1355 = vadd.f32 %v1174, %v1317
  %v1356 = vadd.f32 %v1179, %v1317
  %v1357 = vadd.f32 %v1184, %v1317
  %v1358 = vadd.f32 %v1189, %v1317
  %v1359 = vadd.f32 %v1194, %v1317
  %v1360 = vadd.f32 %v1199, %v1317
  %v1361 = vadd.f32 %v1204, %v1317
  %v1362 = vadd.f32 %v1209, %v1317
  %v1363 = vadd.f32 %v1214, %v1317
  %v1364 = vadd.f32 %v1219, %v1317
  %v1365 = vadd.f32 %v1224, %v1317
  %v1366 = vadd.f32 %v1229, %v1317
  %v1367 = vadd.f32 %v1234, %v1317
  %v1368 = vadd.f32 %v1239, %v1317
  %v1369 = vadd.f32 %v1244, %v1317
  %v1370 = vadd.f32 %v1249, %v1317
  %v1371 = vadd.f32 %v1254, %v1317
  %v1372 = vadd.f32 %v1259, %v1317
  %v1373 = vadd.f32 %v1264, %v1317
  %v1374 = vadd.f32 %v1269, %v1317
  %v1375 = vadd.f32 %v1274, %v1317
  %v1376 = vadd.f32 %v1279, %v1317
  %v1377 = vadd.f32 %v1284, %v1317
  %v1378 = vadd.f32 %v1289, %v1317
  %v1379 = vadd.f32 %v1294, %v1317
  %v1380 = vadd.f32 %v1299, %v1317
  %v1381 = vadd.f32 %v1304, %v1317
  %v1382 = vadd.f32 %v1309, %v1317
  %v1383 = vxor.u32 %v1319, 2147483648
  %v1384 = vxor.u32 %v1320, 2147483648
  %v1385 = vxor.u32 %v1321, 2147483648
  %v1386 = vxor.u32 %v1322, 2147483648
  %v1387 = vxor.u32 %v1323, 2147483648
  %v1388 = vxor.u32 %v1324, 2147483648
  %v1389 = vxor.u32 %v1325, 2147483648
  %v1390 = vxor.u32 %v1326, 2147483648
  %v1391 = vxor.u32 %v1327, 2147483648
  %v1392 = vxor.u32 %v1328, 2147483648
  %v1393 = vxor.u32 %v1329, 2147483648
  %v1394 = vxor.u32 %v1330, 2147483648
  %v1395 = vxor.u32 %v1331, 2147483648
  %v1396 = vxor.u32 %v1332, 2147483648
  %v1397 = vxor.u32 %v1333, 2147483648
  %v1398 = vxor.u32 %v1334, 2147483648
  %v1399 = vxor.u32 %v1335, 2147483648
  %v1400 = vxor.u32 %v1336, 2147483648
  %v1401 = vxor.u32 %v1337, 2147483648
  %v1402 = vxor.u32 %v1338, 2147483648
  %v1403 = vxor.u32 %v1339, 2147483648
  %v1404 = vxor.u32 %v1340, 2147483648
  %v1405 = vxor.u32 %v1341, 2147483648
  %v1406 = vxor.u32 %v1342, 2147483648
  %v1407 = vxor.u32 %v1343, 2147483648
  %v1408 = vxor.u32 %v1344, 2147483648
  %v1409 = vxor.u32 %v1345, 2147483648
  %v1410 = vxor.u32 %v1346, 2147483648
  %v1411 = vxor.u32 %v1347, 2147483648
  %v1412 = vxor.u32 %v1348, 2147483648
  %v1413 = vxor.u32 %v1349, 2147483648
  %v1414 = vxor.u32 %v1350, 2147483648
  %v1415 = vxor.u32 %v1351, 2147483648
  %v1416 = vxor.u32 %v1352, 2147483648
  %v1417 = vxor.u32 %v1353, 2147483648
  %v1418 = vxor.u32 %v1354, 2147483648
  %v1419 = vxor.u32 %v1355, 2147483648
  %v1420 = vxor.u32 %v1356, 2147483648
  %v1421 = vxor.u32 %v1357, 2147483648
  %v1422 = vxor.u32 %v1358, 2147483648
  %v1423 = vxor.u32 %v1359, 2147483648
  %v1424 = vxor.u32 %v1360, 2147483648
  %v1425 = vxor.u32 %v1361, 2147483648
  %v1426 = vxor.u32 %v1362, 2147483648
  %v1427 = vxor.u32 %v1363, 2147483648
  %v1428 = vxor.u32 %v1364, 2147483648
  %v1429 = vxor.u32 %v1365, 2147483648
  %v1430 = vxor.u32 %v1366, 2147483648
  %v1431 = vxor.u32 %v1367, 2147483648
  %v1432 = vxor.u32 %v1368, 2147483648
  %v1433 = vxor.u32 %v1369, 2147483648
  %v1434 = vxor.u32 %v1370, 2147483648
  %v1435 = vxor.u32 %v1371, 2147483648
  %v1436 = vxor.u32 %v1372, 2147483648
  %v1437 = vxor.u32 %v1373, 2147483648
  %v1438 = vxor.u32 %v1374, 2147483648
  %v1439 = vxor.u32 %v1375, 2147483648
  %v1440 = vxor.u32 %v1376, 2147483648
  %v1441 = vxor.u32 %v1377, 2147483648
  %v1442 = vxor.u32 %v1378, 2147483648
  %v1443 = vxor.u32 %v1379, 2147483648
  %v1444 = vxor.u32 %v1380, 2147483648
  %v1445 = vxor.u32 %v1381, 2147483648
  %v1446 = vxor.u32 %v1382, 2147483648
  %v1447 = vmul.f32 %v1383, 1.442695
  %v1448 = vpow.pop %v1447
  %v1449 = vmul.f32 %v1384, 1.442695
  %v1450 = vpow.pop %v1449
  %v1451 = vmul.f32 %v1385, 1.442695
  %v1452 = vpow.pop %v1451
  %v1453 = vmul.f32 %v1386, 1.442695
  %v1454 = vpow.pop %v1453
  %v1455 = vmul.f32 %v1387, 1.442695
  %v1456 = vpow.pop %v1455
  %v1457 = vmul.f32 %v1388, 1.442695
  %v1458 = vpow.pop %v1457
  %v1459 = vmul.f32 %v1389, 1.442695
  %v1460 = vpow.pop %v1459
  %v1461 = vmul.f32 %v1390, 1.442695
  %v1462 = vpow.pop %v1461
  %v1463 = vmul.f32 %v1391, 1.442695
  %v1464 = vpow.pop %v1463
  %v1465 = vmul.f32 %v1392, 1.442695
  %v1466 = vpow.pop %v1465
  %v1467 = vmul.f32 %v1393, 1.442695
  %v1468 = vpow.pop %v1467
  %v1469 = vmul.f32 %v1394, 1.442695
  %v1470 = vpow.pop %v1469
  %v1471 = vmul.f32 %v1395, 1.442695
  %v1472 = vpow.pop %v1471
  %v1473 = vmul.f32 %v1396, 1.442695
  %v1474 = vpow.pop %v1473
  %v1475 = vmul.f32 %v1397, 1.442695
  %v1476 = vpow.pop %v1475
  %v1477 = vmul.f32 %v1398, 1.442695
  %v1478 = vpow.pop %v1477
  %v1479 = vmul.f32 %v1399, 1.442695
  %v1480 = vpow.pop %v1479
  %v1481 = vmul.f32 %v1400, 1.442695
  %v1482 = vpow.pop %v1481
  %v1483 = vmul.f32 %v1401, 1.442695
  %v1484 = vpow.pop %v1483
  %v1485 = vmul.f32 %v1402, 1.442695
  %v1486 = vpow.pop %v1485
  %v1487 = vmul.f32 %v1403, 1.442695
  %v1488 = vpow.pop %v1487
  %v1489 = vmul.f32 %v1404, 1.442695
  %v1490 = vpow.pop %v1489
  %v1491 = vmul.f32 %v1405, 1.442695
  %v1492 = vpow.pop %v1491
  %v1493 = vmul.f32 %v1406, 1.442695
  %v1494 = vpow.pop %v1493
  %v1495 = vmul.f32 %v1407, 1.442695
  %v1496 = vpow.pop %v1495
  %v1497 = vmul.f32 %v1408, 1.442695
  %v1498 = vpow.pop %v1497
  %v1499 = vmul.f32 %v1409, 1.442695
  %v1500 = vpow.pop %v1499
  %v1501 = vmul.f32 %v1410, 1.442695
  %v1502 = vpow.pop %v1501
  %v1503 = vmul.f32 %v1411, 1.442695
  %v1504 = vpow.pop %v1503
  %v1505 = vmul.f32 %v1412, 1.442695
  %v1506 = vpow.pop %v1505
  %v1507 = vmul.f32 %v1413, 1.442695
  %v1508 = vpow.pop %v1507
  %v1509 = vmul.f32 %v1414, 1.442695
  %v1510 = vpow.pop %v1509
  %v1511 = vmul.f32 %v1415, 1.442695
  %v1512 = vpow.pop %v1511
  %v1513 = vmul.f32 %v1416, 1.442695
  %v1514 = vpow.pop %v1513
  %v1515 = vmul.f32 %v1417, 1.442695
  %v1516 = vpow.pop %v1515
  %v1517 = vmul.f32 %v1418, 1.442695
  %v1518 = vpow.pop %v1517
  %v1519 = vmul.f32 %v1419, 1.442695
  %v1520 = vpow.pop %v1519
  %v1521 = vmul.f32 %v1420, 1.442695
  %v1522 = vpow.pop %v1521
  %v1523 = vmul.f32 %v1421, 1.442695
  %v1524 = vpow.pop %v1523
  %v1525 = vmul.f32 %v1422, 1.442695
  %v1526 = vpow.pop %v1525
  %v1527 = vmul.f32 %v1423, 1.442695
  %v1528 = vpow.pop %v1527
  %v1529 = vmul.f32 %v1424, 1.442695
  %v1530 = vpow.pop %v1529
  %v1531 = vmul.f32 %v1425, 1.442695
  %v1532 = vpow.pop %v1531
  %v1533 = vmul.f32 %v1426, 1.442695
  %v1534 = vpow.pop %v1533
  %v1535 = vmul.f32 %v1427, 1.442695
  %v1536 = vpow.pop %v1535
  %v1537 = vmul.f32 %v1428, 1.442695
  %v1538 = vpow.pop %v1537
  %v1539 = vmul.f32 %v1429, 1.442695
  %v1540 = vpow.pop %v1539
  %v1541 = vmul.f32 %v1430, 1.442695
  %v1542 = vpow.pop %v1541
  %v1543 = vmul.f32 %v1431, 1.442695
  %v1544 = vpow.pop %v1543
  %v1545 = vmul.f32 %v1432, 1.442695
  %v1546 = vpow.pop %v1545
  %v1547 = vmul.f32 %v1433, 1.442695
  %v1548 = vpow.pop %v1547
  %v1549 = vmul.f32 %v1434, 1.442695
  %v1550 = vpow.pop %v1549
  %v1551 = vmul.f32 %v1435, 1.442695
  %v1552 = vpow.pop %v1551
  %v1553 = vmul.f32 %v1436, 1.442695
  %v1554 = vpow.pop %v1553
  %v1555 = vmul.f32 %v1437, 1.442695
  %v1556 = vpow.pop %v1555
  %v1557 = vmul.f32 %v1438, 1.442695
  %v1558 = vpow.pop %v1557
  %v1559 = vmul.f32 %v1439, 1.442695
  %v1560 = vpow.pop %v1559
  %v1561 = vmul.f32 %v1440, 1.442695
  %v1562 = vpow.pop %v1561
  %v1563 = vmul.f32 %v1441, 1.442695
  %v1564 = vpow.pop %v1563
  %v1565 = vmul.f32 %v1442, 1.442695
  %v1566 = vpow.pop %v1565
  %v1567 = vmul.f32 %v1443, 1.442695
  %v1568 = vpow.pop %v1567
  %v1569 = vmul.f32 %v1444, 1.442695
  %v1570 = vpow.pop %v1569
  %v1571 = vmul.f32 %v1445, 1.442695
  %v1572 = vpow.pop %v1571
  %v1573 = vmul.f32 %v1446, 1.442695
  %v1574 = vpow.pop %v1573
  %v1575 = vadd.f32 %v1448, 1.0
  %v1576 = vadd.f32 %v1450, 1.0
  %v1577 = vadd.f32 %v1452, 1.0
  %v1578 = vadd.f32 %v1454, 1.0
  %v1579 = vadd.f32 %v1456, 1.0
  %v1580 = vadd.f32 %v1458, 1.0
  %v1581 = vadd.f32 %v1460, 1.0
  %v1582 = vadd.f32 %v1462, 1.0
  %v1583 = vadd.f32 %v1464, 1.0
  %v1584 = vadd.f32 %v1466, 1.0
  %v1585 = vadd.f32 %v1468, 1.0
  %v1586 = vadd.f32 %v1470, 1.0
  %v1587 = vadd.f32 %v1472, 1.0
  %v1588 = vadd.f32 %v1474, 1.0
  %v1589 = vadd.f32 %v1476, 1.0
  %v1590 = vadd.f32 %v1478, 1.0
  %v1591 = vadd.f32 %v1480, 1.0
  %v1592 = vadd.f32 %v1482, 1.0
  %v1593 = vadd.f32 %v1484, 1.0
  %v1594 = vadd.f32 %v1486, 1.0
  %v1595 = vadd.f32 %v1488, 1.0
  %v1596 = vadd.f32 %v1490, 1.0
  %v1597 = vadd.f32 %v1492, 1.0
  %v1598 = vadd.f32 %v1494, 1.0
  %v1599 = vadd.f32 %v1496, 1.0
  %v1600 = vadd.f32 %v1498, 1.0
  %v1601 = vadd.f32 %v1500, 1.0
  %v1602 = vadd.f32 %v1502, 1.0
  %v1603 = vadd.f32 %v1504, 1.0
  %v1604 = vadd.f32 %v1506, 1.0
  %v1605 = vadd.f32 %v1508, 1.0
  %v1606 = vadd.f32 %v1510, 1.0
  %v1607 = vadd.f32 %v1512, 1.0
  %v1608 = vadd.f32 %v1514, 1.0
  %v1609 = vadd.f32 %v1516, 1.0
  %v1610 = vadd.f32 %v1518, 1.0
  %v1611 = vadd.f32 %v1520, 1.0
  %v1612 = vadd.f32 %v1522, 1.0
  %v1613 = vadd.f32 %v1524, 1.0
  %v1614 = vadd.f32 %v1526, 1.0
  %v1615 = vadd.f32 %v1528, 1.0
  %v1616 = vadd.f32 %v1530, 1.0
  %v1617 = vadd.f32 %v1532, 1.0
  %v1618 = vadd.f32 %v1534, 1.0
  %v1619 = vadd.f32 %v1536, 1.0
  %v1620 = vadd.f32 %v1538, 1.0
  %v1621 = vadd.f32 %v1540, 1.0
  %v1622 = vadd.f32 %v1542, 1.0
  %v1623 = vadd.f32 %v1544, 1.0
  %v1624 = vadd.f32 %v1546, 1.0
  %v1625 = vadd.f32 %v1548, 1.0
  %v1626 = vadd.f32 %v1550, 1.0
  %v1627 = vadd.f32 %v1552, 1.0
  %v1628 = vadd.f32 %v1554, 1.0
  %v1629 = vadd.f32 %v1556, 1.0
  %v1630 = vadd.f32 %v1558, 1.0
  %v1631 = vadd.f32 %v1560, 1.0
  %v1632 = vadd.f32 %v1562, 1.0
  %v1633 = vadd.f32 %v1564, 1.0
  %v1634 = vadd.f32 %v1566, 1.0
  %v1635 = vadd.f32 %v1568, 1.0
  %v1636 = vadd.f32 %v1570, 1.0
  %v1637 = vadd.f32 %v1572, 1.0
  %v1638 = vadd.f32 %v1574, 1.0
  %v1639 = vrcp.pop %v1575
  %v1640 = vmul.f32 1.0, %v1639
  %v1641 = vrcp.pop %v1576
  %v1642 = vmul.f32 1.0, %v1641
  %v1643 = vrcp.pop %v1577
  %v1644 = vmul.f32 1.0, %v1643
  %v1645 = vrcp.pop %v1578
  %v1646 = vmul.f32 1.0, %v1645
  %v1647 = vrcp.pop %v1579
  %v1648 = vmul.f32 1.0, %v1647
  %v1649 = vrcp.pop %v1580
  %v1650 = vmul.f32 1.0, %v1649
  %v1651 = vrcp.pop %v1581
  %v1652 = vmul.f32 1.0, %v1651
  %v1653 = vrcp.pop %v1582
  %v1654 = vmul.f32 1.0, %v1653
  %v1655 = vrcp.pop %v1583
  %v1656 = vmul.f32 1.0, %v1655
  %v1657 = vrcp.pop %v1584
  %v1658 = vmul.f32 1.0, %v1657
  %v1659 = vrcp.pop %v1585
  %v1660 = vmul.f32 1.0, %v1659
  %v1661 = vrcp.pop %v1586
  %v1662 = vmul.f32 1.0, %v1661
  %v1663 = vrcp.pop %v1587
  %v1664 = vmul.f32 1.0, %v1663
  %v1665 = vrcp.pop %v1588
  %v1666 = vmul.f32 1.0, %v1665
  %v1667 = vrcp.pop %v1589
  %v1668 = vmul.f32 1.0, %v1667
  %v1669 = vrcp.pop %v1590
  %v1670 = vmul.f32 1.0, %v1669
  %v1671 = vrcp.pop %v1591
  %v1672 = vmul.f32 1.0, %v1671
  %v1673 = vrcp.pop %v1592
  %v1674 = vmul.f32 1.0, %v1673
  %v1675 = vrcp.pop %v1593
  %v1676 = vmul.f32 1.0, %v1675
  %v1677 = vrcp.pop %v1594
  %v1678 = vmul.f32 1.0, %v1677
  %v1679 = vrcp.pop %v1595
  %v1680 = vmul.f32 1.0, %v1679
  %v1681 = vrcp.pop %v1596
  %v1682 = vmul.f32 1.0, %v1681
  %v1683 = vrcp.pop %v1597
  %v1684 = vmul.f32 1.0, %v1683
  %v1685 = vrcp.pop %v1598
  %v1686 = vmul.f32 1.0, %v1685
  %v1687 = vrcp.pop %v1599
  %v1688 = vmul.f32 1.0, %v1687
  %v1689 = vrcp.pop %v1600
  %v1690 = vmul.f32 1.0, %v1689
  %v1691 = vrcp.pop %v1601
  %v1692 = vmul.f32 1.0, %v1691
  %v1693 = vrcp.pop %v1602
  %v1694 = vmul.f32 1.0, %v1693
  %v1695 = vrcp.pop %v1603
  %v1696 = vmul.f32 1.0, %v1695
  %v1697 = vrcp.pop %v1604
  %v1698 = vmul.f32 1.0, %v1697
  %v1699 = vrcp.pop %v1605
  %v1700 = vmul.f32 1.0, %v1699
  %v1701 = vrcp.pop %v1606
  %v1702 = vmul.f32 1.0, %v1701
  %v1703 = vrcp.pop %v1607
  %v1704 = vmul.f32 1.0, %v1703
  %v1705 = vrcp.pop %v1608
  %v1706 = vmul.f32 1.0, %v1705
  %v1707 = vrcp.pop %v1609
  %v1708 = vmul.f32 1.0, %v1707
  %v1709 = vrcp.pop %v1610
  %v1710 = vmul.f32 1.0, %v1709
  %v1711 = vrcp.pop %v1611
  %v1712 = vmul.f32 1.0, %v1711
  %v1713 = vrcp.pop %v1612
  %v1714 = vmul.f32 1.0, %v1713
  %v1715 = vrcp.pop %v1613
  %v1716 = vmul.f32 1.0, %v1715
  %v1717 = vrcp.pop %v1614
  %v1718 = vmul.f32 1.0, %v1717
  %v1719 = vrcp.pop %v1615
  %v1720 = vmul.f32 1.0, %v1719
  %v1721 = vrcp.pop %v1616
  %v1722 = vmul.f32 1.0, %v1721
  %v1723 = vrcp.pop %v1617
  %v1724 = vmul.f32 1.0, %v1723
  %v1725 = vrcp.pop %v1618
  %v1726 = vmul.f32 1.0, %v1725
  %v1727 = vrcp.pop %v1619
  %v1728 = vmul.f32 1.0, %v1727
  %v1729 = vrcp.pop %v1620
  %v1730 = vmul.f32 1.0, %v1729
  %v1731 = vrcp.pop %v1621
  %v1732 = vmul.f32 1.0, %v1731
  %v1733 = vrcp.pop %v1622
  %v1734 = vmul.f32 1.0, %v1733
  %v1735 = vrcp.pop %v1623
  %v1736 = vmul.f32 1.0, %v1735
  %v1737 = vrcp.pop %v1624
  %v1738 = vmul.f32 1.0, %v1737
  %v1739 = vrcp.pop %v1625
  %v1740 = vmul.f32 1.0, %v1739
  %v1741 = vrcp.pop %v1626
  %v1742 = vmul.f32 1.0, %v1741
  %v1743 = vrcp.pop %v1627
  %v1744 = vmul.f32 1.0, %v1743
  %v1745 = vrcp.pop %v1628
  %v1746 = vmul.f32 1.0, %v1745
  %v1747 = vrcp.pop %v1629
  %v1748 = vmul.f32 1.0, %v1747
  %v1749 = vrcp.pop %v1630
  %v1750 = vmul.f32 1.0, %v1749
  %v1751 = vrcp.pop %v1631
  %v1752 = vmul.f32 1.0, %v1751
  %v1753 = vrcp.pop %v1632
  %v1754 = vmul.f32 1.0, %v1753
  %v1755 = vrcp.pop %v1633
  %v1756 = vmul.f32 1.0, %v1755
  %v1757 = vrcp.pop %v1634
  %v1758 = vmul.f32 1.0, %v1757
  %v1759 = vrcp.pop %v1635
  %v1760 = vmul.f32 1.0, %v1759
  %v1761 = vrcp.pop %v1636
  %v1762 = vmul.f32 1.0, %v1761
  %v1763 = vrcp.pop %v1637
  %v1764 = vmul.f32 1.0, %v1763
  %v1765 = vrcp.pop %v1638
  %v1766 = vmul.f32 1.0, %v1765
  %v1767 = vmul.f32 %v1319, %v1640
  %v1768 = vmul.f32 %v1320, %v1642
  %v1769 = vmul.f32 %v1321, %v1644
  %v1770 = vmul.f32 %v1322, %v1646
  %v1771 = vmul.f32 %v1323, %v1648
  %v1772 = vmul.f32 %v1324, %v1650
  %v1773 = vmul.f32 %v1325, %v1652
  %v1774 = vmul.f32 %v1326, %v1654
  %v1775 = vmul.f32 %v1327, %v1656
  %v1776 = vmul.f32 %v1328, %v1658
  %v1777 = vmul.f32 %v1329, %v1660
  %v1778 = vmul.f32 %v1330, %v1662
  %v1779 = vmul.f32 %v1331, %v1664
  %v1780 = vmul.f32 %v1332, %v1666
  %v1781 = vmul.f32 %v1333, %v1668
  %v1782 = vmul.f32 %v1334, %v1670
  %v1783 = vmul.f32 %v1335, %v1672
  %v1784 = vmul.f32 %v1336, %v1674
  %v1785 = vmul.f32 %v1337, %v1676
  %v1786 = vmul.f32 %v1338, %v1678
  %v1787 = vmul.f32 %v1339, %v1680
  %v1788 = vmul.f32 %v1340, %v1682
  %v1789 = vmul.f32 %v1341, %v1684
  %v1790 = vmul.f32 %v1342, %v1686
  %v1791 = vmul.f32 %v1343, %v1688
  %v1792 = vmul.f32 %v1344, %v1690
  %v1793 = vmul.f32 %v1345, %v1692
  %v1794 = vmul.f32 %v1346, %v1694
  %v1795 = vmul.f32 %v1347, %v1696
  %v1796 = vmul.f32 %v1348, %v1698
  %v1797 = vmul.f32 %v1349, %v1700
  %v1798 = vmul.f32 %v1350, %v1702
  %v1799 = vmul.f32 %v1351, %v1704
  %v1800 = vmul.f32 %v1352, %v1706
  %v1801 = vmul.f32 %v1353, %v1708
  %v1802 = vmul.f32 %v1354, %v1710
  %v1803 = vmul.f32 %v1355, %v1712
  %v1804 = vmul.f32 %v1356, %v1714
  %v1805 = vmul.f32 %v1357, %v1716
  %v1806 = vmul.f32 %v1358, %v1718
  %v1807 = vmul.f32 %v1359, %v1720
  %v1808 = vmul.f32 %v1360, %v1722
  %v1809 = vmul.f32 %v1361, %v1724
  %v1810 = vmul.f32 %v1362, %v1726
  %v1811 = vmul.f32 %v1363, %v1728
  %v1812 = vmul.f32 %v1364, %v1730
  %v1813 = vmul.f32 %v1365, %v1732
  %v1814 = vmul.f32 %v1366, %v1734
  %v1815 = vmul.f32 %v1367, %v1736
  %v1816 = vmul.f32 %v1368, %v1738
  %v1817 = vmul.f32 %v1369, %v1740
  %v1818 = vmul.f32 %v1370, %v1742
  %v1819 = vmul.f32 %v1371, %v1744
  %v1820 = vmul.f32 %v1372, %v1746
  %v1821 = vmul.f32 %v1373, %v1748
  %v1822 = vmul.f32 %v1374, %v1750
  %v1823 = vmul.f32 %v1375, %v1752
  %v1824 = vmul.f32 %v1376, %v1754
  %v1825 = vmul.f32 %v1377, %v1756
  %v1826 = vmul.f32 %v1378, %v1758
  %v1827 = vmul.f32 %v1379, %v1760
  %v1828 = vmul.f32 %v1380, %v1762
  %v1829 = vmul.f32 %v1381, %v1764
  %v1830 = vmul.f32 %v1382, %v1766
  %vm1831 = vcmask 64512
  %1832 = vst.msk [vmem:[%s5] sm:$0xff] %vm1831, %v1767
  %1833 = vst.msk [vmem:[%s5 + $0x8] sm:$0xff] %vm1831, %v1768
  %1834 = vst.msk [vmem:[%s5 + $0x10] sm:$0xff] %vm1831, %v1769
  %1835 = vst.msk [vmem:[%s5 + $0x18] sm:$0xff] %vm1831, %v1770
  %1836 = vst.msk [vmem:[%s5 + $0x20] sm:$0xff] %vm1831, %v1771
  %1837 = vst.msk [vmem:[%s5 + $0x28] sm:$0xff] %vm1831, %v1772
  %1838 = vst.msk [vmem:[%s5 + $0x30] sm:$0xff] %vm1831, %v1773
  %1839 = vst.msk [vmem:[%s5 + $0x38] sm:$0xff] %vm1831, %v1774
  %1840 = vst.msk [vmem:[%s5 + $0x40] sm:$0xff] %vm1831, %v1775
  %1841 = vst.msk [vmem:[%s5 + $0x48] sm:$0xff] %vm1831, %v1776
  %1842 = vst.msk [vmem:[%s5 + $0x50] sm:$0xff] %vm1831, %v1777
  %1843 = vst.msk [vmem:[%s5 + $0x58] sm:$0xff] %vm1831, %v1778
  %1844 = vst.msk [vmem:[%s5 + $0x60] sm:$0xff] %vm1831, %v1779
  %1845 = vst.msk [vmem:[%s5 + $0x68] sm:$0xff] %vm1831, %v1780
  %1846 = vst.msk [vmem:[%s5 + $0x70] sm:$0xff] %vm1831, %v1781
  %1847 = vst.msk [vmem:[%s5 + $0x78] sm:$0xff] %vm1831, %v1782
  %1848 = vst.msk [vmem:[%s5 + $0x80] sm:$0xff] %vm1831, %v1783
  %1849 = vst.msk [vmem:[%s5 + $0x88] sm:$0xff] %vm1831, %v1784
  %1850 = vst.msk [vmem:[%s5 + $0x90] sm:$0xff] %vm1831, %v1785
  %1851 = vst.msk [vmem:[%s5 + $0x98] sm:$0xff] %vm1831, %v1786
  %1852 = vst.msk [vmem:[%s5 + $0xa0] sm:$0xff] %vm1831, %v1787
  %1853 = vst.msk [vmem:[%s5 + $0xa8] sm:$0xff] %vm1831, %v1788
  %1854 = vst.msk [vmem:[%s5 + $0xb0] sm:$0xff] %vm1831, %v1789
  %1855 = vst.msk [vmem:[%s5 + $0xb8] sm:$0xff] %vm1831, %v1790
  %1856 = vst.msk [vmem:[%s5 + $0xc0] sm:$0xff] %vm1831, %v1791
  %1857 = vst.msk [vmem:[%s5 + $0xc8] sm:$0xff] %vm1831, %v1792
  %1858 = vst.msk [vmem:[%s5 + $0xd0] sm:$0xff] %vm1831, %v1793
  %1859 = vst.msk [vmem:[%s5 + $0xd8] sm:$0xff] %vm1831, %v1794
  %1860 = vst.msk [vmem:[%s5 + $0xe0] sm:$0xff] %vm1831, %v1795
  %1861 = vst.msk [vmem:[%s5 + $0xe8] sm:$0xff] %vm1831, %v1796
  %1862 = vst.msk [vmem:[%s5 + $0xf0] sm:$0xff] %vm1831, %v1797
  %1863 = vst.msk [vmem:[%s5 + $0xf8] sm:$0xff] %vm1831, %v1798
  %1864 = vst.msk [vmem:[%s5 + $0x100] sm:$0xff] %vm1831, %v1799
  %1865 = vst.msk [vmem:[%s5 + $0x108] sm:$0xff] %vm1831, %v1800
  %1866 = vst.msk [vmem:[%s5 + $0x110] sm:$0xff] %vm1831, %v1801
  %1867 = vst.msk [vmem:[%s5 + $0x118] sm:$0xff] %vm1831, %v1802
  %1868 = vst.msk [vmem:[%s5 + $0x120] sm:$0xff] %vm1831, %v1803
  %1869 = vst.msk [vmem:[%s5 + $0x128] sm:$0xff] %vm1831, %v1804
  %1870 = vst.msk [vmem:[%s5 + $0x130] sm:$0xff] %vm1831, %v1805
  %1871 = vst.msk [vmem:[%s5 + $0x138] sm:$0xff] %vm1831, %v1806
  %1872 = vst.msk [vmem:[%s5 + $0x140] sm:$0xff] %vm1831, %v1807
  %1873 = vst.msk [vmem:[%s5 + $0x148] sm:$0xff] %vm1831, %v1808
  %1874 = vst.msk [vmem:[%s5 + $0x150] sm:$0xff] %vm1831, %v1809
  %1875 = vst.msk [vmem:[%s5 + $0x158] sm:$0xff] %vm1831, %v1810
  %1876 = vst.msk [vmem:[%s5 + $0x160] sm:$0xff] %vm1831, %v1811
  %1877 = vst.msk [vmem:[%s5 + $0x168] sm:$0xff] %vm1831, %v1812
  %1878 = vst.msk [vmem:[%s5 + $0x170] sm:$0xff] %vm1831, %v1813
  %1879 = vst.msk [vmem:[%s5 + $0x178] sm:$0xff] %vm1831, %v1814
  %1880 = vst.msk [vmem:[%s5 + $0x180] sm:$0xff] %vm1831, %v1815
  %1881 = vst.msk [vmem:[%s5 + $0x188] sm:$0xff] %vm1831, %v1816
  %1882 = vst.msk [vmem:[%s5 + $0x190] sm:$0xff] %vm1831, %v1817
  %1883 = vst.msk [vmem:[%s5 + $0x198] sm:$0xff] %vm1831, %v1818
  %1884 = vst.msk [vmem:[%s5 + $0x1a0] sm:$0xff] %vm1831, %v1819
  %1885 = vst.msk [vmem:[%s5 + $0x1a8] sm:$0xff] %vm1831, %v1820
  %1886 = vst.msk [vmem:[%s5 + $0x1b0] sm:$0xff] %vm1831, %v1821
  %1887 = vst.msk [vmem:[%s5 + $0x1b8] sm:$0xff] %vm1831, %v1822
  %1888 = vst.msk [vmem:[%s5 + $0x1c0] sm:$0xff] %vm1831, %v1823
  %1889 = vst.msk [vmem:[%s5 + $0x1c8] sm:$0xff] %vm1831, %v1824
  %1890 = vst.msk [vmem:[%s5 + $0x1d0] sm:$0xff] %vm1831, %v1825
  %1891 = vst.msk [vmem:[%s5 + $0x1d8] sm:$0xff] %vm1831, %v1826
  %1892 = vst.msk [vmem:[%s5 + $0x1e0] sm:$0xff] %vm1831, %v1827
  %1893 = vst.msk [vmem:[%s5 + $0x1e8] sm:$0xff] %vm1831, %v1828
  %1894 = vst.msk [vmem:[%s5 + $0x1f0] sm:$0xff] %vm1831, %v1829
  %1895 = vst.msk [vmem:[%s5 + $0x1f8] sm:$0xff] %vm1831, %v1830
  // Predicated region
  $region22: #{c3_forward.5} parent=0 // pred_check
    _
  $region23: #{c3_forward.5} parent=0 // pred_check_branch
    %1897 = sbr.rel (0) target = $region25
  $region24: #{c3_forward.5} parent=0 // pred_region
    _
  $region25: #{c3_forward.5} parent=0 // pred_fallthru
    _
  // Predicated region
  $region26: #{c3_forward.5} parent=0 // pred_check
    _
  $region27: #{c3_forward.5} parent=0 // pred_check_branch
    %1899 = sbr.rel (0) target = $region29
  $region28: #{c3_forward.5} parent=0 // pred_region
    _
  $region29: #{c3_forward.5} parent=0 // pred_fallthru
    _

// kernel: c3_forward.4
$region0: #{c3_forward.4}
  #allocation0 [shape = 'u32[]', space=smem, size = 0x4, offset = 0x4, fixed_abs, tag = 'smem constant byte address 0x4 - core index']
  #allocation1 [shape = 'u32[144,128]{1,0:T(1,128)}', space=vmem, size = 0x12000, scoped, tag = 'internal scratch']
  #allocation2 [shape = 'f32[362,4]{1,0:T(8,128)}', space=vmem, size = 0x2e000, scoped, tag = 'scratch operand']
  %s0 = inlined_call_operand.vmem [shape: f32[2,324,4], index: 0, kind: input, shape index: {}]
  %s1 = inlined_call_operand.vmem [shape: f32[324,1], index: 1, kind: input, shape index: {}]
  %s2 = inlined_call_operand.vmem [shape: f32[4,4], index: 2, kind: input, shape index: {}]
  %s3 = inlined_call_operand.vmem [shape: f32[1,4], index: 3, kind: input, shape index: {}]
  %s4 = inlined_call_operand.vmem [shape: f32[36,4], index: 4, kind: input, shape index: {}]
  %s5 = inlined_call_operand.vmem [shape: f32[1,4], index: 5, kind: input, shape index: {}]
  %s6 = inlined_call_operand.vmem [shape: f32[2,324,4], index: 6, kind: output, shape index: {}]
  %s7 = sld [smem:[#allocation0]]
  $region57: #{c3_forward.4} parent=0
    _
  %s9 = ssub.s32 1, %s7
  %s10 = scalar_select 0, %s9, %s7
  loop: start=0, step=1, limit=4
  $region2: #{c3_forward.4} parent=0 // loop_pre_header
    _
  $region3: #{c3_forward.4} parent=0 // loop_header
    %s12 = sphi 0, %s16
    %p13 = scmp.ge.s32.totalorder %s12, 4
    %s22 = sphi 0, %s24
    %s25 = sphi 0, %s22
    %s26 = sphi 0, %s25
    %s42 = sphi 0, %s26
    %s46 = sphi 0, %s46
    %s48 = sphi 0, %s46
    %s49 = sphi 0, %s48
    %s63 = sphi 0, %s49
    %s67 = sphi 0, %s67
    %s69 = sphi 0, %s67
    %s70 = sphi 0, %s69
    %s84 = sphi 0, %s70
    %s88 = sphi 0, %s88
    %s90 = sphi 0, %s88
    %s91 = sphi 0, %s90
    %s105 = sphi 0, %s91
    %s109 = sphi 0, %s109
    %s111 = sphi 0, %s109
    %s112 = sphi 0, %s111
    %s126 = sphi 0, %s112
    %s130 = sphi 0, %s130
    %s132 = sphi 0, %s130
    %s133 = sphi 0, %s132
    %s147 = sphi 0, %s133
    %s153 = sphi 0, %s155
    %s156 = sphi 0, %s153
    %s157 = sphi 0, %s156
    %s173 = sphi 0, %s157
  $region4: #{c3_forward.4} parent=0 // loop_header_branch
    %15 = sbr.rel (%p13) target = $region8
  $region5: #{c3_forward.4} parent=0 // loop_body
    %s17 = ssub.s32 %s12, 1
    %s18 = ssub.s32 %s12, 2
    %s19 = sadd.s32 %s12, 1
    %s20 = ssub.s32 %s12, %s19
    %p21 = scmp.eq.s32.totalorder %s20, 0
    %s23 = sadd.s32 %s22, 1
    %s24 = scalar_select %p21, %s22, %s23
    %p27 = pneg %p21
    %p28 = scmp.eq.s32.totalorder %s12, 1
    %p29 = por %p27, %p28
    %p30 = scmp.ne.s32.totalorder %s22, %s25
    %p31 = scmp.eq.s32.totalorder %s12, 0
    %p32 = por %p30, %p31
    %p33 = scmp.ne.s32.totalorder %s22, %s25
    %p34 = scmp.eq.s32.totalorder %s17, 1
    %p35 = por %p33, %p34
    %p36 = scmp.ne.s32.totalorder %s25, %s26
    %p37 = scmp.eq.s32.totalorder %s17, 0
    %p38 = por %p36, %p37
    %p39 = scmp.ne.s32.totalorder %s25, %s26
    %p40 = scmp.eq.s32.totalorder %s18, 1
    %p41 = por %p39, %p40
    %p43 = scmp.ne.s32.totalorder %s26, %s42
    %p44 = scmp.eq.s32.totalorder %s18, 0
    %p45 = por %p43, %p44
    %s47 = sadd.s32 %s46, 1
    %p50 = scmp.eq.s32.totalorder %s12, 1
    %p51 = scmp.ne.s32.totalorder %s46, %s48
    %p52 = scmp.eq.s32.totalorder %s12, 0
    %p53 = por %p51, %p52
    %p54 = scmp.ne.s32.totalorder %s46, %s48
    %p55 = scmp.eq.s32.totalorder %s17, 1
    %p56 = por %p54, %p55
    %p57 = scmp.ne.s32.totalorder %s48, %s49
    %p58 = scmp.eq.s32.totalorder %s17, 0
    %p59 = por %p57, %p58
    %p60 = scmp.ne.s32.totalorder %s48, %s49
    %p61 = scmp.eq.s32.totalorder %s18, 1
    %p62 = por %p60, %p61
    %p64 = scmp.ne.s32.totalorder %s49, %s63
    %p65 = scmp.eq.s32.totalorder %s18, 0
    %p66 = por %p64, %p65
    %s68 = sadd.s32 %s67, 1
    %p71 = scmp.eq.s32.totalorder %s12, 1
    %p72 = scmp.ne.s32.totalorder %s67, %s69
    %p73 = scmp.eq.s32.totalorder %s12, 0
    %p74 = por %p72, %p73
    %p75 = scmp.ne.s32.totalorder %s67, %s69
    %p76 = scmp.eq.s32.totalorder %s17, 1
    %p77 = por %p75, %p76
    %p78 = scmp.ne.s32.totalorder %s69, %s70
    %p79 = scmp.eq.s32.totalorder %s17, 0
    %p80 = por %p78, %p79
    %p81 = scmp.ne.s32.totalorder %s69, %s70
    %p82 = scmp.eq.s32.totalorder %s18, 1
    %p83 = por %p81, %p82
    %p85 = scmp.ne.s32.totalorder %s70, %s84
    %p86 = scmp.eq.s32.totalorder %s18, 0
    %p87 = por %p85, %p86
    %s89 = sadd.s32 %s88, 1
    %p92 = scmp.eq.s32.totalorder %s12, 1
    %p93 = scmp.ne.s32.totalorder %s88, %s90
    %p94 = scmp.eq.s32.totalorder %s12, 0
    %p95 = por %p93, %p94
    %p96 = scmp.ne.s32.totalorder %s88, %s90
    %p97 = scmp.eq.s32.totalorder %s17, 1
    %p98 = por %p96, %p97
    %p99 = scmp.ne.s32.totalorder %s90, %s91
    %p100 = scmp.eq.s32.totalorder %s17, 0
    %p101 = por %p99, %p100
    %p102 = scmp.ne.s32.totalorder %s90, %s91
    %p103 = scmp.eq.s32.totalorder %s18, 1
    %p104 = por %p102, %p103
    %p106 = scmp.ne.s32.totalorder %s91, %s105
    %p107 = scmp.eq.s32.totalorder %s18, 0
    %p108 = por %p106, %p107
    %s110 = sadd.s32 %s109, 1
    %p113 = scmp.eq.s32.totalorder %s12, 1
    %p114 = scmp.ne.s32.totalorder %s109, %s111
    %p115 = scmp.eq.s32.totalorder %s12, 0
    %p116 = por %p114, %p115
    %p117 = scmp.ne.s32.totalorder %s109, %s111
    %p118 = scmp.eq.s32.totalorder %s17, 1
    %p119 = por %p117, %p118
    %p120 = scmp.ne.s32.totalorder %s111, %s112
    %p121 = scmp.eq.s32.totalorder %s17, 0
    %p122 = por %p120, %p121
    %p123 = scmp.ne.s32.totalorder %s111, %s112
    %p124 = scmp.eq.s32.totalorder %s18, 1
    %p125 = por %p123, %p124
    %p127 = scmp.ne.s32.totalorder %s112, %s126
    %p128 = scmp.eq.s32.totalorder %s18, 0
    %p129 = por %p127, %p128
    %s131 = sadd.s32 %s130, 1
    %p134 = scmp.eq.s32.totalorder %s12, 1
    %p135 = scmp.ne.s32.totalorder %s130, %s132
    %p136 = scmp.eq.s32.totalorder %s12, 0
    %p137 = por %p135, %p136
    %p138 = scmp.ne.s32.totalorder %s130, %s132
    %p139 = scmp.eq.s32.totalorder %s17, 1
    %p140 = por %p138, %p139
    %p141 = scmp.ne.s32.totalorder %s132, %s133
    %p142 = scmp.eq.s32.totalorder %s17, 0
    %p143 = por %p141, %p142
    %p144 = scmp.ne.s32.totalorder %s132, %s133
    %p145 = scmp.eq.s32.totalorder %s18, 1
    %p146 = por %p144, %p145
    %p148 = scmp.ne.s32.totalorder %s133, %s147
    %p149 = scmp.eq.s32.totalorder %s18, 0
    %p150 = por %p148, %p149
    %s151 = ssub.s32 %s12, %s19
    %p152 = scmp.eq.s32.totalorder %s151, 0
    %s154 = sadd.s32 %s153, 1
    %s155 = scalar_select %p152, %s153, %s154
    %p158 = pneg %p152
    %p159 = scmp.eq.s32.totalorder %s12, 1
    %p160 = por %p158, %p159
    %p161 = scmp.ne.s32.totalorder %s153, %s156
    %p162 = scmp.eq.s32.totalorder %s12, 0
    %p163 = por %p161, %p162
    %p164 = scmp.ne.s32.totalorder %s153, %s156
    %p165 = scmp.eq.s32.totalorder %s17, 1
    %p166 = por %p164, %p165
    %p167 = scmp.ne.s32.totalorder %s156, %s157
    %p168 = scmp.eq.s32.totalorder %s17, 0
    %p169 = por %p167, %p168
    %p170 = scmp.ne.s32.totalorder %s156, %s157
    %p171 = scmp.eq.s32.totalorder %s18, 1
    %p172 = por %p170, %p171
    %p174 = scmp.ne.s32.totalorder %s157, %s173
    %p175 = scmp.eq.s32.totalorder %s18, 0
    %p176 = por %p174, %p175
    %p177 = scmp.le.s32.totalorder 1, %s12
    %p178 = scmp.lt.s32.totalorder %s12, 3
    %p179 = pnand %p177, %p178
    %p180 = pneg %p179
    // Predicated region
    $region9: #{c3_forward.4} parent=5 // pred_check
      _
    $region10: #{c3_forward.4} parent=5 // pred_check_branch
      %182 = sbr.rel (%p179) target = $region12
    $region11: #{c3_forward.4} parent=5 // pred_region
      %s183 = ssub.s32 %s12, 1
      // Predicated region
      $region13: #{c3_forward.4} parent=11 // pred_check
        %p184 = pneg %p59
      $region14: #{c3_forward.4} parent=11 // pred_check_branch
        %186 = sbr.rel (%p184) target = $region16
      $region15: #{c3_forward.4} parent=11 // pred_region
        _
      $region16: #{c3_forward.4} parent=11 // pred_fallthru
        _
      // Predicated region
      $region17: #{c3_forward.4} parent=11 // pred_check
        %p187 = pneg %p80
      $region18: #{c3_forward.4} parent=11 // pred_check_branch
        %189 = sbr.rel (%p187) target = $region20
      $region19: #{c3_forward.4} parent=11 // pred_region
        _
      $region20: #{c3_forward.4} parent=11 // pred_fallthru
        _
      // Predicated region
      $region21: #{c3_forward.4} parent=11 // pred_check
        %p190 = pneg %p101
      $region22: #{c3_forward.4} parent=11 // pred_check_branch
        %192 = sbr.rel (%p190) target = $region24
      $region23: #{c3_forward.4} parent=11 // pred_region
        _
      $region24: #{c3_forward.4} parent=11 // pred_fallthru
        _
      // Predicated region
      $region25: #{c3_forward.4} parent=11 // pred_check
        %p193 = pneg %p122
      $region26: #{c3_forward.4} parent=11 // pred_check_branch
        %195 = sbr.rel (%p193) target = $region28
      $region27: #{c3_forward.4} parent=11 // pred_region
        _
      $region28: #{c3_forward.4} parent=11 // pred_fallthru
        _
      // Predicated region
      $region29: #{c3_forward.4} parent=11 // pred_check
        %p196 = pneg %p143
      $region30: #{c3_forward.4} parent=11 // pred_check_branch
        %198 = sbr.rel (%p196) target = $region32
      $region31: #{c3_forward.4} parent=11 // pred_region
        _
      $region32: #{c3_forward.4} parent=11 // pred_fallthru
        _
    $region12: #{c3_forward.4} parent=5 // pred_fallthru
      _
    %p199 = scmp.lt.s32.totalorder %s12, 2
    // Predicated region
    $region33: #{c3_forward.4} parent=5 // pred_check
      %p200 = pneg %p199
    $region34: #{c3_forward.4} parent=5 // pred_check_branch
      %202 = sbr.rel (%p200) target = $region36
    $region35: #{c3_forward.4} parent=5 // pred_region
      // Predicated region
      $region37: #{c3_forward.4} parent=35 // pred_check
        %p203 = pneg %p32
      $region38: #{c3_forward.4} parent=35 // pred_check_branch
        %205 = sbr.rel (%p203) target = $region40
      $region39: #{c3_forward.4} parent=35 // pred_region
        %p206 = scmp.lt.s32.totalorder %s12, 1
        %s207 = scalar_select %p206, %s12, 1
        %s208 = smul.addr %s207, 41
        %s209 = smul.addr %s208, 8
        %s210 = scalar_lea.vmem %s0, %s209
      $region40: #{c3_forward.4} parent=35 // pred_fallthru
        _
    $region36: #{c3_forward.4} parent=5 // pred_fallthru
      _
    %p211 = scmp.le.s32.totalorder 1, %s12
    %p212 = scmp.lt.s32.totalorder %s12, 3
    %p213 = pnand %p211, %p212
    %p214 = pneg %p213
    // Predicated region
    $region41: #{c3_forward.4} parent=5 // pred_check
      _
    $region42: #{c3_forward.4} parent=5 // pred_check_branch
      %216 = sbr.rel (%p213) target = $region44
    $region43: #{c3_forward.4} parent=5 // pred_region
      %s217 = ssub.s32 %s12, 1
      %p218 = scmp.lt.s32.totalorder %s17, 1
      %s219 = scalar_select %p218, %s17, 1
      %s220 = smul.addr %s219, 41
      %s221 = smul.addr %s220, 8
      %s222 = scalar_lea.vmem %s0, %s221
      %p223 = pneg %p38
      %p224 = pneg %p35
      %p225 = pneg %p59
      %p226 = pneg %p56
      %p227 = pneg %p80
      %p228 = pneg %p77
      %p229 = pneg %p101
      %p230 = pneg %p98
      %p231 = pneg %p122
      %p232 = pneg %p119
      %p233 = pneg %p143
      %p234 = pneg %p140
      %p235 = pneg %p169
      %p236 = pneg %p166
      %p237 = scmp.lt.s32.totalorder %s17, 1
      %s238 = scalar_select %p237, %s17, 1
      %s239 = smul.addr %s238, 41
      %s240 = smul.addr %s239, 8
      %s241 = scalar_lea.vmem %s6, %s240
      %p242 = scmp.lt.s32.totalorder %s17, 1
      %s243 = scalar_select %p242, %s17, 1
      %s244 = smul.addr %s243, 41
      %s245 = smul.addr %s244, 8
      %s246 = scalar_lea.vmem %s0, %s245
      %p247 = scmp.lt.s32.totalorder %s17, 1
      %s248 = scalar_select %p247, %s17, 1
      %s249 = smul.addr %s248, 41
      %s250 = smul.addr %s249, 8
      %s251 = scalar_lea.vmem %s6, %s250
      %v252 = vld [vmem:[%s246] sm:$0xff]
      %v253 = vld [vmem:[%s246 + $0x8] sm:$0xff]
      %v254 = vld [vmem:[%s246 + $0x10] sm:$0xff]
      %v255 = vld [vmem:[%s246 + $0x18] sm:$0xff]
      %v256 = vld [vmem:[%s246 + $0x20] sm:$0xff]
      %v257 = vld [vmem:[%s246 + $0x28] sm:$0xff]
      %v258 = vld [vmem:[%s246 + $0x30] sm:$0xff]
      %v259 = vld [vmem:[%s246 + $0x38] sm:$0xff]
      %v260 = vld [vmem:[%s246 + $0x40] sm:$0xff]
      %v261 = vld [vmem:[%s246 + $0x48] sm:$0xff]
      %v262 = vld [vmem:[%s246 + $0x50] sm:$0xff]
      %v263 = vld [vmem:[%s246 + $0x58] sm:$0xff]
      %v264 = vld [vmem:[%s246 + $0x60] sm:$0xff]
      %v265 = vld [vmem:[%s246 + $0x68] sm:$0xff]
      %v266 = vld [vmem:[%s246 + $0x70] sm:$0xff]
      %v267 = vld [vmem:[%s246 + $0x78] sm:$0xff]
      %v268 = vld [vmem:[%s246 + $0x80] sm:$0xff]
      %v269 = vld [vmem:[%s246 + $0x88] sm:$0xff]
      %v270 = vld [vmem:[%s246 + $0x90] sm:$0xff]
      %v271 = vld [vmem:[%s246 + $0x98] sm:$0xff]
      %v272 = vld [vmem:[%s246 + $0xa0] sm:$0xff]
      %v273 = vld [vmem:[%s246 + $0xa8] sm:$0xff]
      %v274 = vld [vmem:[%s246 + $0xb0] sm:$0xff]
      %v275 = vld [vmem:[%s246 + $0xb8] sm:$0xff]
      %v276 = vld [vmem:[%s246 + $0xc0] sm:$0xff]
      %v277 = vld [vmem:[%s246 + $0xc8] sm:$0xff]
      %v278 = vld [vmem:[%s246 + $0xd0] sm:$0xff]
      %v279 = vld [vmem:[%s246 + $0xd8] sm:$0xff]
      %v280 = vld [vmem:[%s246 + $0xe0] sm:$0xff]
      %v281 = vld [vmem:[%s246 + $0xe8] sm:$0xff]
      %v282 = vld [vmem:[%s246 + $0xf0] sm:$0xff]
      %v283 = vld [vmem:[%s246 + $0xf8] sm:$0xff]
      %v284 = vld [vmem:[%s246 + $0x100] sm:$0xff]
      %v285 = vld [vmem:[%s246 + $0x108] sm:$0xff]
      %v286 = vld [vmem:[%s246 + $0x110] sm:$0xff]
      %v287 = vld [vmem:[%s246 + $0x118] sm:$0xff]
      %v288 = vld [vmem:[%s246 + $0x120] sm:$0xff]
      %v289 = vld [vmem:[%s246 + $0x128] sm:$0xff]
      %v290 = vld [vmem:[%s246 + $0x130] sm:$0xff]
      %v291 = vld [vmem:[%s246 + $0x138] sm:$0xff]
      %v292 = vld [vmem:[%s246 + $0x140] sm:$0xf]
      %v293 = vld [vmem:[%s2] sm:$0xf]
      %v294 = vld [vmem:[%s3] sm:$0x1]
      %v296 = vlaneseq
      %v297 = vshrl.u32 %v296, 7
      %v298 = vsub.s32 0, %v297
      %v299 = vrot.slane %v294, %v298
      %vm301 = vcmask 31744
      %v303 = vsel %vm301, %v252, 0
      %v306 = vsel %vm301, %v253, 0
      %v309 = vsel %vm301, %v254, 0
      %v312 = vsel %vm301, %v255, 0
      %v315 = vsel %vm301, %v256, 0
      %v318 = vsel %vm301, %v257, 0
      %v321 = vsel %vm301, %v258, 0
      %v324 = vsel %vm301, %v259, 0
      %v327 = vsel %vm301, %v260, 0
      %v330 = vsel %vm301, %v261, 0
      %v333 = vsel %vm301, %v262, 0
      %v336 = vsel %vm301, %v263, 0
      %v339 = vsel %vm301, %v264, 0
      %v342 = vsel %vm301, %v265, 0
      %v345 = vsel %vm301, %v266, 0
      %v348 = vsel %vm301, %v267, 0
      %v351 = vsel %vm301, %v268, 0
      %v354 = vsel %vm301, %v269, 0
      %v357 = vsel %vm301, %v270, 0
      %v360 = vsel %vm301, %v271, 0
      %v363 = vsel %vm301, %v272, 0
      %v366 = vsel %vm301, %v273, 0
      %v369 = vsel %vm301, %v274, 0
      %v372 = vsel %vm301, %v275, 0
      %v375 = vsel %vm301, %v276, 0
      %v378 = vsel %vm301, %v277, 0
      %v381 = vsel %vm301, %v278, 0
      %v384 = vsel %vm301, %v279, 0
      %v387 = vsel %vm301, %v280, 0
      %v390 = vsel %vm301, %v281, 0
      %v393 = vsel %vm301, %v282, 0
      %v396 = vsel %vm301, %v283, 0
      %v399 = vsel %vm301, %v284, 0
      %v402 = vsel %vm301, %v285, 0
      %v405 = vsel %vm301, %v286, 0
      %v408 = vsel %vm301, %v287, 0
      %v411 = vsel %vm301, %v288, 0
      %v414 = vsel %vm301, %v289, 0
      %v417 = vsel %vm301, %v290, 0
      %v420 = vsel %vm301, %v291, 0
      %v423 = vsel %vm301, %v292, 0
      %vm425 = vcmask 1043456
      %v427 = vsel %vm425, %v293, 0
      %429 = vmatprep.subr.mxu0 0.0
      %430 = vmatpush1.msra.mxu0 %v427
      %431 = vmatprep.subr.mxu0 0.0
      %432 = vmatpush1.msra.mxu0 0.0
      %433 = vmatprep.subr.mxu0 0.0
      %434 = vmatpush1.msra.mxu0 0.0
      %435 = vmatprep.subr.mxu0 0.0
      %436 = vmatpush1.msra.mxu0 0.0
      %437 = vmatprep.subr.mxu0 0.0
      %438 = vmatpush1.msra.mxu0 0.0
      %439 = vmatprep.subr.mxu0 0.0
      %440 = vmatpush1.msra.mxu0 0.0
      %441 = vmatprep.subr.mxu0 0.0
      %442 = vmatpush1.msra.mxu0 0.0
      %443 = vmatprep.subr.mxu0 0.0
      %444 = vmatpush1.msra.mxu0 0.0
      %445 = vmatprep.subr.mxu0 0.0
      %446 = vmatpush1.msra.mxu0 0.0
      %447 = vmatprep.subr.mxu0 0.0
      %448 = vmatpush1.msra.mxu0 0.0
      %449 = vmatprep.subr.mxu0 0.0
      %450 = vmatpush1.msra.mxu0 0.0
      %451 = vmatprep.subr.mxu0 0.0
      %452 = vmatpush1.msra.mxu0 0.0
      %453 = vmatprep.subr.mxu0 0.0
      %454 = vmatpush1.msra.mxu0 0.0
      %455 = vmatprep.subr.mxu0 0.0
      %456 = vmatpush1.msra.mxu0 0.0
      %457 = vmatprep.subr.mxu0 0.0
      %458 = vmatpush1.msra.mxu0 0.0
      %459 = vmatprep.subr.mxu0 0.0
      %460 = vmatpush1.msra.mxu0 0.0
      %461 = vmatprep.subr.mxu0 0.0
      %462 = vmatpush1.msra.mxu0 0.0
      %463 = vmatprep.subr.mxu0 0.0
      %464 = vmatpush1.msra.mxu0 0.0
      %465 = vmatprep.subr.mxu0 0.0
      %466 = vmatpush1.msra.mxu0 0.0
      %467 = vmatprep.subr.mxu0 0.0
      %468 = vmatpush1.msra.mxu0 0.0
      %469 = vmatprep.subr.mxu0 0.0
      %470 = vmatpush1.msra.mxu0 0.0
      %471 = vmatprep.subr.mxu0 0.0
      %472 = vmatpush1.msra.mxu0 0.0
      %473 = vmatprep.subr.mxu0 0.0
      %474 = vmatpush1.msra.mxu0 0.0
      %475 = vmatprep.subr.mxu0 0.0
      %476 = vmatpush1.msra.mxu0 0.0
      %477 = vmatprep.subr.mxu0 0.0
      %478 = vmatpush1.msra.mxu0 0.0
      %479 = vmatprep.subr.mxu0 0.0
      %480 = vmatpush1.msra.mxu0 0.0
      %481 = vmatprep.subr.mxu0 0.0
      %482 = vmatpush1.msra.mxu0 0.0
      %483 = vmatprep.subr.mxu0 0.0
      %484 = vmatpush1.msra.mxu0 0.0
      %485 = vmatprep.subr.mxu0 0.0
      %486 = vmatpush1.msra.mxu0 0.0
      %487 = vmatprep.subr.mxu0 0.0
      %488 = vmatpush1.msra.mxu0 0.0
      %489 = vmatprep.subr.mxu0 0.0
      %490 = vmatpush1.msra.mxu0 0.0
      %491 = vmatprep.subr.mxu0 0.0
      %492 = vmatpush1.msra.mxu0 0.0
      %493 = vmatprep.mubr.f32.mxu0 0.0
      %494 = vmatmul.mubr.f32.gmra.mrb[0].mxu0 %v303
      %v495 = vpop.f32.mrb[0].mxu0
      %v496 = vadd.f32 %v299, %v495
      %v497 = vpop.f32.mrb[0].mxu0
      %498 = vmatprep.mubr.f32.mxu0 0.0
      %499 = vmatmul.mubr.f32.gmra.mrb[0].mxu0 %v306
      %v500 = vpop.f32.mrb[0].mxu0
      %v501 = vadd.f32 %v299, %v500
      %v502 = vpop.f32.mrb[0].mxu0
      %503 = vmatprep.mubr.f32.mxu0 0.0
      %504 = vmatmul.mubr.f32.gmra.mrb[0].mxu0 %v309
      %v505 = vpop.f32.mrb[0].mxu0
      %v506 = vadd.f32 %v299, %v505
      %v507 = vpop.f32.mrb[0].mxu0
      %508 = vmatprep.mubr.f32.mxu0 0.0
      %509 = vmatmul.mubr.f32.gmra.mrb[0].mxu0 %v312
      %v510 = vpop.f32.mrb[0].mxu0
      %v511 = vadd.f32 %v299, %v510
      %v512 = vpop.f32.mrb[0].mxu0
      %513 = vmatprep.mubr.f32.mxu0 0.0
      %514 = vmatmul.mubr.f32.gmra.mrb[0].mxu0 %v315
      %v515 = vpop.f32.mrb[0].mxu0
      %v516 = vadd.f32 %v299, %v515
      %v517 = vpop.f32.mrb[0].mxu0
      %518 = vmatprep.mubr.f32.mxu0 0.0
      %519 = vmatmul.mubr.f32.gmra.mrb[0].mxu0 %v318
      %v520 = vpop.f32.mrb[0].mxu0
      %v521 = vadd.f32 %v299, %v520
      %v522 = vpop.f32.mrb[0].mxu0
      %523 = vmatprep.mubr.f32.mxu0 0.0
      %524 = vmatmul.mubr.f32.gmra.mrb[0].mxu0 %v321
      %v525 = vpop.f32.mrb[0].mxu0
      %v526 = vadd.f32 %v299, %v525
      %v527 = vpop.f32.mrb[0].mxu0
      %528 = vmatprep.mubr.f32.mxu0 0.0
      %529 = vmatmul.mubr.f32.gmra.mrb[0].mxu0 %v324
      %v530 = vpop.f32.mrb[0].mxu0
      %v531 = vadd.f32 %v299, %v530
      %v532 = vpop.f32.mrb[0].mxu0
      %533 = vmatprep.mubr.f32.mxu0 0.0
      %534 = vmatmul.mubr.f32.gmra.mrb[0].mxu0 %v327
      %v535 = vpop.f32.mrb[0].mxu0
      %v536 = vadd.f32 %v299, %v535
      %v537 = vpop.f32.mrb[0].mxu0
      %538 = vmatprep.mubr.f32.mxu0 0.0
      %539 = vmatmul.mubr.f32.gmra.mrb[0].mxu0 %v330
      %v540 = vpop.f32.mrb[0].mxu0
      %v541 = vadd.f32 %v299, %v540
      %v542 = vpop.f32.mrb[0].mxu0
      %543 = vmatprep.mubr.f32.mxu0 0.0
      %544 = vmatmul.mubr.f32.gmra.mrb[0].mxu0 %v333
      %v545 = vpop.f32.mrb[0].mxu0
      %v546 = vadd.f32 %v299, %v545
      %v547 = vpop.f32.mrb[0].mxu0
      %548 = vmatprep.mubr.f32.mxu0 0.0
      %549 = vmatmul.mubr.f32.gmra.mrb[0].mxu0 %v336
      %v550 = vpop.f32.mrb[0].mxu0
      %v551 = vadd.f32 %v299, %v550
      %v552 = vpop.f32.mrb[0].mxu0
      %553 = vmatprep.mubr.f32.mxu0 0.0
      %554 = vmatmul.mubr.f32.gmra.mrb[0].mxu0 %v339
      %v555 = vpop.f32.mrb[0].mxu0
      %v556 = vadd.f32 %v299, %v555
      %v557 = vpop.f32.mrb[0].mxu0
      %558 = vmatprep.mubr.f32.mxu0 0.0
      %559 = vmatmul.mubr.f32.gmra.mrb[0].mxu0 %v342
      %v560 = vpop.f32.mrb[0].mxu0
      %v561 = vadd.f32 %v299, %v560
      %v562 = vpop.f32.mrb[0].mxu0
      %563 = vmatprep.mubr.f32.mxu0 0.0
      %564 = vmatmul.mubr.f32.gmra.mrb[0].mxu0 %v345
      %v565 = vpop.f32.mrb[0].mxu0
      %v566 = vadd.f32 %v299, %v565
      %v567 = vpop.f32.mrb[0].mxu0
      %568 = vmatprep.mubr.f32.mxu0 0.0
      %569 = vmatmul.mubr.f32.gmra.mrb[0].mxu0 %v348
      %v570 = vpop.f32.mrb[0].mxu0
      %v571 = vadd.f32 %v299, %v570
      %v572 = vpop.f32.mrb[0].mxu0
      %573 = vmatprep.mubr.f32.mxu0 0.0
      %574 = vmatmul.mubr.f32.gmra.mrb[0].mxu0 %v351
      %v575 = vpop.f32.mrb[0].mxu0
      %v576 = vadd.f32 %v299, %v575
      %v577 = vpop.f32.mrb[0].mxu0
      %578 = vmatprep.mubr.f32.mxu0 0.0
      %579 = vmatmul.mubr.f32.gmra.mrb[0].mxu0 %v354
      %v580 = vpop.f32.mrb[0].mxu0
      %v581 = vadd.f32 %v299, %v580
      %v582 = vpop.f32.mrb[0].mxu0
      %583 = vmatprep.mubr.f32.mxu0 0.0
      %584 = vmatmul.mubr.f32.gmra.mrb[0].mxu0 %v357
      %v585 = vpop.f32.mrb[0].mxu0
      %v586 = vadd.f32 %v299, %v585
      %v587 = vpop.f32.mrb[0].mxu0
      %588 = vmatprep.mubr.f32.mxu0 0.0
      %589 = vmatmul.mubr.f32.gmra.mrb[0].mxu0 %v360
      %v590 = vpop.f32.mrb[0].mxu0
      %v591 = vadd.f32 %v299, %v590
      %v592 = vpop.f32.mrb[0].mxu0
      %593 = vmatprep.mubr.f32.mxu0 0.0
      %594 = vmatmul.mubr.f32.gmra.mrb[0].mxu0 %v363
      %v595 = vpop.f32.mrb[0].mxu0
      %v596 = vadd.f32 %v299, %v595
      %v597 = vpop.f32.mrb[0].mxu0
      %598 = vmatprep.mubr.f32.mxu0 0.0
      %599 = vmatmul.mubr.f32.gmra.mrb[0].mxu0 %v366
      %v600 = vpop.f32.mrb[0].mxu0
      %v601 = vadd.f32 %v299, %v600
      %v602 = vpop.f32.mrb[0].mxu0
      %603 = vmatprep.mubr.f32.mxu0 0.0
      %604 = vmatmul.mubr.f32.gmra.mrb[0].mxu0 %v369
      %v605 = vpop.f32.mrb[0].mxu0
      %v606 = vadd.f32 %v299, %v605
      %v607 = vpop.f32.mrb[0].mxu0
      %608 = vmatprep.mubr.f32.mxu0 0.0
      %609 = vmatmul.mubr.f32.gmra.mrb[0].mxu0 %v372
      %v610 = vpop.f32.mrb[0].mxu0
      %v611 = vadd.f32 %v299, %v610
      %v612 = vpop.f32.mrb[0].mxu0
      %613 = vmatprep.mubr.f32.mxu0 0.0
      %614 = vmatmul.mubr.f32.gmra.mrb[0].mxu0 %v375
      %v615 = vpop.f32.mrb[0].mxu0
      %v616 = vadd.f32 %v299, %v615
      %v617 = vpop.f32.mrb[0].mxu0
      %618 = vmatprep.mubr.f32.mxu0 0.0
      %619 = vmatmul.mubr.f32.gmra.mrb[0].mxu0 %v378
      %v620 = vpop.f32.mrb[0].mxu0
      %v621 = vadd.f32 %v299, %v620
      %v622 = vpop.f32.mrb[0].mxu0
      %623 = vmatprep.mubr.f32.mxu0 0.0
      %624 = vmatmul.mubr.f32.gmra.mrb[0].mxu0 %v381
      %v625 = vpop.f32.mrb[0].mxu0
      %v626 = vadd.f32 %v299, %v625
      %v627 = vpop.f32.mrb[0].mxu0
      %628 = vmatprep.mubr.f32.mxu0 0.0
      %629 = vmatmul.mubr.f32.gmra.mrb[0].mxu0 %v384
      %v630 = vpop.f32.mrb[0].mxu0
      %v631 = vadd.f32 %v299, %v630
      %v632 = vpop.f32.mrb[0].mxu0
      %633 = vmatprep.mubr.f32.mxu0 0.0
      %634 = vmatmul.mubr.f32.gmra.mrb[0].mxu0 %v387
      %v635 = vpop.f32.mrb[0].mxu0
      %v636 = vadd.f32 %v299, %v635
      %v637 = vpop.f32.mrb[0].mxu0
      %638 = vmatprep.mubr.f32.mxu0 0.0
      %639 = vmatmul.mubr.f32.gmra.mrb[0].mxu0 %v390
      %v640 = vpop.f32.mrb[0].mxu0
      %v641 = vadd.f32 %v299, %v640
      %v642 = vpop.f32.mrb[0].mxu0
      %643 = vmatprep.mubr.f32.mxu0 0.0
      %644 = vmatmul.mubr.f32.gmra.mrb[0].mxu0 %v393
      %v645 = vpop.f32.mrb[0].mxu0
      %v646 = vadd.f32 %v299, %v645
      %v647 = vpop.f32.mrb[0].mxu0
      %648 = vmatprep.mubr.f32.mxu0 0.0
      %649 = vmatmul.mubr.f32.gmra.mrb[0].mxu0 %v396
      %v650 = vpop.f32.mrb[0].mxu0
      %v651 = vadd.f32 %v299, %v650
      %v652 = vpop.f32.mrb[0].mxu0
      %653 = vmatprep.mubr.f32.mxu0 0.0
      %654 = vmatmul.mubr.f32.gmra.mrb[0].mxu0 %v399
      %v655 = vpop.f32.mrb[0].mxu0
      %v656 = vadd.f32 %v299, %v655
      %v657 = vpop.f32.mrb[0].mxu0
      %658 = vmatprep.mubr.f32.mxu0 0.0
      %659 = vmatmul.mubr.f32.gmra.mrb[0].mxu0 %v402
      %v660 = vpop.f32.mrb[0].mxu0
      %v661 = vadd.f32 %v299, %v660
      %v662 = vpop.f32.mrb[0].mxu0
      %663 = vmatprep.mubr.f32.mxu0 0.0
      %664 = vmatmul.mubr.f32.gmra.mrb[0].mxu0 %v405
      %v665 = vpop.f32.mrb[0].mxu0
      %v666 = vadd.f32 %v299, %v665
      %v667 = vpop.f32.mrb[0].mxu0
      %668 = vmatprep.mubr.f32.mxu0 0.0
      %669 = vmatmul.mubr.f32.gmra.mrb[0].mxu0 %v408
      %v670 = vpop.f32.mrb[0].mxu0
      %v671 = vadd.f32 %v299, %v670
      %v672 = vpop.f32.mrb[0].mxu0
      %673 = vmatprep.mubr.f32.mxu0 0.0
      %674 = vmatmul.mubr.f32.gmra.mrb[0].mxu0 %v411
      %v675 = vpop.f32.mrb[0].mxu0
      %v676 = vadd.f32 %v299, %v675
      %v677 = vpop.f32.mrb[0].mxu0
      %678 = vmatprep.mubr.f32.mxu0 0.0
      %679 = vmatmul.mubr.f32.gmra.mrb[0].mxu0 %v414
      %v680 = vpop.f32.mrb[0].mxu0
      %v681 = vadd.f32 %v299, %v680
      %v682 = vpop.f32.mrb[0].mxu0
      %683 = vmatprep.mubr.f32.mxu0 0.0
      %684 = vmatmul.mubr.f32.gmra.mrb[0].mxu0 %v417
      %v685 = vpop.f32.mrb[0].mxu0
      %v686 = vadd.f32 %v299, %v685
      %v687 = vpop.f32.mrb[0].mxu0
      %688 = vmatprep.mubr.f32.mxu0 0.0
      %689 = vmatmul.mubr.f32.gmra.mrb[0].mxu0 %v420
      %v690 = vpop.f32.mrb[0].mxu0
      %v691 = vadd.f32 %v299, %v690
      %v692 = vpop.f32.mrb[0].mxu0
      %693 = vmatprep.mubr.f32.mxu0 0.0
      %694 = vmatmul.mubr.f32.gmra.mrb[0].mxu0 %v423
      %v695 = vpop.f32.mrb[0].mxu0
      %v696 = vadd.f32 %v299, %v695
      %v697 = vpop.f32.mrb[0].mxu0
      %698 = vdwg.mxu0
      %v699 = vxor.u32 %v496, 2147483648
      %v700 = vxor.u32 %v501, 2147483648
      %v701 = vxor.u32 %v506, 2147483648
      %v702 = vxor.u32 %v511, 2147483648
      %v703 = vxor.u32 %v516, 2147483648
      %v704 = vxor.u32 %v521, 2147483648
      %v705 = vxor.u32 %v526, 2147483648
      %v706 = vxor.u32 %v531, 2147483648
      %v707 = vxor.u32 %v536, 2147483648
      %v708 = vxor.u32 %v541, 2147483648
      %v709 = vxor.u32 %v546, 2147483648
      %v710 = vxor.u32 %v551, 2147483648
      %v711 = vxor.u32 %v556, 2147483648
      %v712 = vxor.u32 %v561, 2147483648
      %v713 = vxor.u32 %v566, 2147483648
      %v714 = vxor.u32 %v571, 2147483648
      %v715 = vxor.u32 %v576, 2147483648
      %v716 = vxor.u32 %v581, 2147483648
      %v717 = vxor.u32 %v586, 2147483648
      %v718 = vxor.u32 %v591, 2147483648
      %v719 = vxor.u32 %v596, 2147483648
      %v720 = vxor.u32 %v601, 2147483648
      %v721 = vxor.u32 %v606, 2147483648
      %v722 = vxor.u32 %v611, 2147483648
      %v723 = vxor.u32 %v616, 2147483648
      %v724 = vxor.u32 %v621, 2147483648
      %v725 = vxor.u32 %v626, 2147483648
      %v726 = vxor.u32 %v631, 2147483648
      %v727 = vxor.u32 %v636, 2147483648
      %v728 = vxor.u32 %v641, 2147483648
      %v729 = vxor.u32 %v646, 2147483648
      %v730 = vxor.u32 %v651, 2147483648
      %v731 = vxor.u32 %v656, 2147483648
      %v732 = vxor.u32 %v661, 2147483648
      %v733 = vxor.u32 %v666, 2147483648
      %v734 = vxor.u32 %v671, 2147483648
      %v735 = vxor.u32 %v676, 2147483648
      %v736 = vxor.u32 %v681, 2147483648
      %v737 = vxor.u32 %v686, 2147483648
      %v738 = vxor.u32 %v691, 2147483648
      %v739 = vxor.u32 %v696, 2147483648
      %v740 = vmul.f32 %v699, 1.442695
      %v741 = vpow.pop %v740
      %v742 = vmul.f32 %v700, 1.442695
      %v743 = vpow.pop %v742
      %v744 = vmul.f32 %v701, 1.442695
      %v745 = vpow.pop %v744
      %v746 = vmul.f32 %v702, 1.442695
      %v747 = vpow.pop %v746
      %v748 = vmul.f32 %v703, 1.442695
      %v749 = vpow.pop %v748
      %v750 = vmul.f32 %v704, 1.442695
      %v751 = vpow.pop %v750
      %v752 = vmul.f32 %v705, 1.442695
      %v753 = vpow.pop %v752
      %v754 = vmul.f32 %v706, 1.442695
      %v755 = vpow.pop %v754
      %v756 = vmul.f32 %v707, 1.442695
      %v757 = vpow.pop %v756
      %v758 = vmul.f32 %v708, 1.442695
      %v759 = vpow.pop %v758
      %v760 = vmul.f32 %v709, 1.442695
      %v761 = vpow.pop %v760
      %v762 = vmul.f32 %v710, 1.442695
      %v763 = vpow.pop %v762
      %v764 = vmul.f32 %v711, 1.442695
      %v765 = vpow.pop %v764
      %v766 = vmul.f32 %v712, 1.442695
      %v767 = vpow.pop %v766
      %v768 = vmul.f32 %v713, 1.442695
      %v769 = vpow.pop %v768
      %v770 = vmul.f32 %v714, 1.442695
      %v771 = vpow.pop %v770
      %v772 = vmul.f32 %v715, 1.442695
      %v773 = vpow.pop %v772
      %v774 = vmul.f32 %v716, 1.442695
      %v775 = vpow.pop %v774
      %v776 = vmul.f32 %v717, 1.442695
      %v777 = vpow.pop %v776
      %v778 = vmul.f32 %v718, 1.442695
      %v779 = vpow.pop %v778
      %v780 = vmul.f32 %v719, 1.442695
      %v781 = vpow.pop %v780
      %v782 = vmul.f32 %v720, 1.442695
      %v783 = vpow.pop %v782
      %v784 = vmul.f32 %v721, 1.442695
      %v785 = vpow.pop %v784
      %v786 = vmul.f32 %v722, 1.442695
      %v787 = vpow.pop %v786
      %v788 = vmul.f32 %v723, 1.442695
      %v789 = vpow.pop %v788
      %v790 = vmul.f32 %v724, 1.442695
      %v791 = vpow.pop %v790
      %v792 = vmul.f32 %v725, 1.442695
      %v793 = vpow.pop %v792
      %v794 = vmul.f32 %v726, 1.442695
      %v795 = vpow.pop %v794
      %v796 = vmul.f32 %v727, 1.442695
      %v797 = vpow.pop %v796
      %v798 = vmul.f32 %v728, 1.442695
      %v799 = vpow.pop %v798
      %v800 = vmul.f32 %v729, 1.442695
      %v801 = vpow.pop %v800
      %v802 = vmul.f32 %v730, 1.442695
      %v803 = vpow.pop %v802
      %v804 = vmul.f32 %v731, 1.442695
      %v805 = vpow.pop %v804
      %v806 = vmul.f32 %v732, 1.442695
      %v807 = vpow.pop %v806
      %v808 = vmul.f32 %v733, 1.442695
      %v809 = vpow.pop %v808
      %v810 = vmul.f32 %v734, 1.442695
      %v811 = vpow.pop %v810
      %v812 = vmul.f32 %v735, 1.442695
      %v813 = vpow.pop %v812
      %v814 = vmul.f32 %v736, 1.442695
      %v815 = vpow.pop %v814
      %v816 = vmul.f32 %v737, 1.442695
      %v817 = vpow.pop %v816
      %v818 = vmul.f32 %v738, 1.442695
      %v819 = vpow.pop %v818
      %v820 = vmul.f32 %v739, 1.442695
      %v821 = vpow.pop %v820
      %v822 = vadd.f32 %v741, 1.0
      %v823 = vadd.f32 %v743, 1.0
      %v824 = vadd.f32 %v745, 1.0
      %v825 = vadd.f32 %v747, 1.0
      %v826 = vadd.f32 %v749, 1.0
      %v827 = vadd.f32 %v751, 1.0
      %v828 = vadd.f32 %v753, 1.0
      %v829 = vadd.f32 %v755, 1.0
      %v830 = vadd.f32 %v757, 1.0
      %v831 = vadd.f32 %v759, 1.0
      %v832 = vadd.f32 %v761, 1.0
      %v833 = vadd.f32 %v763, 1.0
      %v834 = vadd.f32 %v765, 1.0
      %v835 = vadd.f32 %v767, 1.0
      %v836 = vadd.f32 %v769, 1.0
      %v837 = vadd.f32 %v771, 1.0
      %v838 = vadd.f32 %v773, 1.0
      %v839 = vadd.f32 %v775, 1.0
      %v840 = vadd.f32 %v777, 1.0
      %v841 = vadd.f32 %v779, 1.0
      %v842 = vadd.f32 %v781, 1.0
      %v843 = vadd.f32 %v783, 1.0
      %v844 = vadd.f32 %v785, 1.0
      %v845 = vadd.f32 %v787, 1.0
      %v846 = vadd.f32 %v789, 1.0
      %v847 = vadd.f32 %v791, 1.0
      %v848 = vadd.f32 %v793, 1.0
      %v849 = vadd.f32 %v795, 1.0
      %v850 = vadd.f32 %v797, 1.0
      %v851 = vadd.f32 %v799, 1.0
      %v852 = vadd.f32 %v801, 1.0
      %v853 = vadd.f32 %v803, 1.0
      %v854 = vadd.f32 %v805, 1.0
      %v855 = vadd.f32 %v807, 1.0
      %v856 = vadd.f32 %v809, 1.0
      %v857 = vadd.f32 %v811, 1.0
      %v858 = vadd.f32 %v813, 1.0
      %v859 = vadd.f32 %v815, 1.0
      %v860 = vadd.f32 %v817, 1.0
      %v861 = vadd.f32 %v819, 1.0
      %v862 = vadd.f32 %v821, 1.0
      %v863 = vrcp.pop %v822
      %v864 = vmul.f32 1.0, %v863
      %v865 = vrcp.pop %v823
      %v866 = vmul.f32 1.0, %v865
      %v867 = vrcp.pop %v824
      %v868 = vmul.f32 1.0, %v867
      %v869 = vrcp.pop %v825
      %v870 = vmul.f32 1.0, %v869
      %v871 = vrcp.pop %v826
      %v872 = vmul.f32 1.0, %v871
      %v873 = vrcp.pop %v827
      %v874 = vmul.f32 1.0, %v873
      %v875 = vrcp.pop %v828
      %v876 = vmul.f32 1.0, %v875
      %v877 = vrcp.pop %v829
      %v878 = vmul.f32 1.0, %v877
      %v879 = vrcp.pop %v830
      %v880 = vmul.f32 1.0, %v879
      %v881 = vrcp.pop %v831
      %v882 = vmul.f32 1.0, %v881
      %v883 = vrcp.pop %v832
      %v884 = vmul.f32 1.0, %v883
      %v885 = vrcp.pop %v833
      %v886 = vmul.f32 1.0, %v885
      %v887 = vrcp.pop %v834
      %v888 = vmul.f32 1.0, %v887
      %v889 = vrcp.pop %v835
      %v890 = vmul.f32 1.0, %v889
      %v891 = vrcp.pop %v836
      %v892 = vmul.f32 1.0, %v891
      %v893 = vrcp.pop %v837
      %v894 = vmul.f32 1.0, %v893
      %v895 = vrcp.pop %v838
      %v896 = vmul.f32 1.0, %v895
      %v897 = vrcp.pop %v839
      %v898 = vmul.f32 1.0, %v897
      %v899 = vrcp.pop %v840
      %v900 = vmul.f32 1.0, %v899
      %v901 = vrcp.pop %v841
      %v902 = vmul.f32 1.0, %v901
      %v903 = vrcp.pop %v842
      %v904 = vmul.f32 1.0, %v903
      %v905 = vrcp.pop %v843
      %v906 = vmul.f32 1.0, %v905
      %v907 = vrcp.pop %v844
      %v908 = vmul.f32 1.0, %v907
      %v909 = vrcp.pop %v845
      %v910 = vmul.f32 1.0, %v909
      %v911 = vrcp.pop %v846
      %v912 = vmul.f32 1.0, %v911
      %v913 = vrcp.pop %v847
      %v914 = vmul.f32 1.0, %v913
      %v915 = vrcp.pop %v848
      %v916 = vmul.f32 1.0, %v915
      %v917 = vrcp.pop %v849
      %v918 = vmul.f32 1.0, %v917
      %v919 = vrcp.pop %v850
      %v920 = vmul.f32 1.0, %v919
      %v921 = vrcp.pop %v851
      %v922 = vmul.f32 1.0, %v921
      %v923 = vrcp.pop %v852
      %v924 = vmul.f32 1.0, %v923
      %v925 = vrcp.pop %v853
      %v926 = vmul.f32 1.0, %v925
      %v927 = vrcp.pop %v854
      %v928 = vmul.f32 1.0, %v927
      %v929 = vrcp.pop %v855
      %v930 = vmul.f32 1.0, %v929
      %v931 = vrcp.pop %v856
      %v932 = vmul.f32 1.0, %v931
      %v933 = vrcp.pop %v857
      %v934 = vmul.f32 1.0, %v933
      %v935 = vrcp.pop %v858
      %v936 = vmul.f32 1.0, %v935
      %v937 = vrcp.pop %v859
      %v938 = vmul.f32 1.0, %v937
      %v939 = vrcp.pop %v860
      %v940 = vmul.f32 1.0, %v939
      %v941 = vrcp.pop %v861
      %v942 = vmul.f32 1.0, %v941
      %v943 = vrcp.pop %v862
      %v944 = vmul.f32 1.0, %v943
      %v945 = vmul.f32 %v496, %v864
      %v946 = vmul.f32 %v501, %v866
      %v947 = vmul.f32 %v506, %v868
      %v948 = vmul.f32 %v511, %v870
      %v949 = vmul.f32 %v516, %v872
      %v950 = vmul.f32 %v521, %v874
      %v951 = vmul.f32 %v526, %v876
      %v952 = vmul.f32 %v531, %v878
      %v953 = vmul.f32 %v536, %v880
      %v954 = vmul.f32 %v541, %v882
      %v955 = vmul.f32 %v546, %v884
      %v956 = vmul.f32 %v551, %v886
      %v957 = vmul.f32 %v556, %v888
      %v958 = vmul.f32 %v561, %v890
      %v959 = vmul.f32 %v566, %v892
      %v960 = vmul.f32 %v571, %v894
      %v961 = vmul.f32 %v576, %v896
      %v962 = vmul.f32 %v581, %v898
      %v963 = vmul.f32 %v586, %v900
      %v964 = vmul.f32 %v591, %v902
      %v965 = vmul.f32 %v596, %v904
      %v966 = vmul.f32 %v601, %v906
      %v967 = vmul.f32 %v606, %v908
      %v968 = vmul.f32 %v611, %v910
      %v969 = vmul.f32 %v616, %v912
      %v970 = vmul.f32 %v621, %v914
      %v971 = vmul.f32 %v626, %v916
      %v972 = vmul.f32 %v631, %v918
      %v973 = vmul.f32 %v636, %v920
      %v974 = vmul.f32 %v641, %v922
      %v975 = vmul.f32 %v646, %v924
      %v976 = vmul.f32 %v651, %v926
      %v977 = vmul.f32 %v656, %v928
      %v978 = vmul.f32 %v661, %v930
      %v979 = vmul.f32 %v666, %v932
      %v980 = vmul.f32 %v671, %v934
      %v981 = vmul.f32 %v676, %v936
      %v982 = vmul.f32 %v681, %v938
      %v983 = vmul.f32 %v686, %v940
      %v984 = vmul.f32 %v691, %v942
      %v985 = vmul.f32 %v696, %v944
      %v986 = vld [vmem:[%s1] sm:$0xff]
      %v987 = vld [vmem:[%s1 + $0x8] sm:$0xff]
      %v988 = vld [vmem:[%s1 + $0x10] sm:$0xff]
      %v989 = vld [vmem:[%s1 + $0x18] sm:$0xff]
      %v990 = vld [vmem:[%s1 + $0x20] sm:$0xff]
      %v991 = vld [vmem:[%s1 + $0x28] sm:$0xff]
      %v992 = vld [vmem:[%s1 + $0x30] sm:$0xff]
      %v993 = vld [vmem:[%s1 + $0x38] sm:$0xff]
      %v994 = vld [vmem:[%s1 + $0x40] sm:$0xff]
      %v995 = vld [vmem:[%s1 + $0x48] sm:$0xff]
      %v996 = vld [vmem:[%s1 + $0x50] sm:$0xff]
      %v997 = vld [vmem:[%s1 + $0x58] sm:$0xff]
      %v998 = vld [vmem:[%s1 + $0x60] sm:$0xff]
      %v999 = vld [vmem:[%s1 + $0x68] sm:$0xff]
      %v1000 = vld [vmem:[%s1 + $0x70] sm:$0xff]
      %v1001 = vld [vmem:[%s1 + $0x78] sm:$0xff]
      %v1002 = vld [vmem:[%s1 + $0x80] sm:$0xff]
      %v1003 = vld [vmem:[%s1 + $0x88] sm:$0xff]
      %v1004 = vld [vmem:[%s1 + $0x90] sm:$0xff]
      %v1005 = vld [vmem:[%s1 + $0x98] sm:$0xff]
      %v1006 = vld [vmem:[%s1 + $0xa0] sm:$0xff]
      %v1007 = vld [vmem:[%s1 + $0xa8] sm:$0xff]
      %v1008 = vld [vmem:[%s1 + $0xb0] sm:$0xff]
      %v1009 = vld [vmem:[%s1 + $0xb8] sm:$0xff]
      %v1010 = vld [vmem:[%s1 + $0xc0] sm:$0xff]
      %v1011 = vld [vmem:[%s1 + $0xc8] sm:$0xff]
      %v1012 = vld [vmem:[%s1 + $0xd0] sm:$0xff]
      %v1013 = vld [vmem:[%s1 + $0xd8] sm:$0xff]
      %v1014 = vld [vmem:[%s1 + $0xe0] sm:$0xff]
      %v1015 = vld [vmem:[%s1 + $0xe8] sm:$0xff]
      %v1016 = vld [vmem:[%s1 + $0xf0] sm:$0xff]
      %v1017 = vld [vmem:[%s1 + $0xf8] sm:$0xff]
      %v1018 = vld [vmem:[%s1 + $0x100] sm:$0xff]
      %v1019 = vld [vmem:[%s1 + $0x108] sm:$0xff]
      %v1020 = vld [vmem:[%s1 + $0x110] sm:$0xff]
      %v1021 = vld [vmem:[%s1 + $0x118] sm:$0xff]
      %v1022 = vld [vmem:[%s1 + $0x120] sm:$0xff]
      %v1023 = vld [vmem:[%s1 + $0x128] sm:$0xff]
      %v1024 = vld [vmem:[%s1 + $0x130] sm:$0xff]
      %v1025 = vld [vmem:[%s1 + $0x138] sm:$0xff]
      %v1026 = vld [vmem:[%s1 + $0x140] sm:$0xf]
      %1028 = vset.pattern.permute.xlu0 0
      %1029 = vperm.xlu0 %1028, %v986
      %v1030 = vpop.permute.xlu0 %1029
      %1033 = vset.pattern.permute.xlu0 0
      %1034 = vperm.xlu0 %1033, %v987
      %v1035 = vpop.permute.xlu0 %1034
      %1038 = vset.pattern.permute.xlu0 0
      %1039 = vperm.xlu0 %1038, %v988
      %v1040 = vpop.permute.xlu0 %1039
      %1043 = vset.pattern.permute.xlu0 0
      %1044 = vperm.xlu0 %1043, %v989
      %v1045 = vpop.permute.xlu0 %1044
      %1048 = vset.pattern.permute.xlu0 0
      %1049 = vperm.xlu0 %1048, %v990
      %v1050 = vpop.permute.xlu0 %1049
      %1053 = vset.pattern.permute.xlu0 0
      %1054 = vperm.xlu0 %1053, %v991
      %v1055 = vpop.permute.xlu0 %1054
      %1058 = vset.pattern.permute.xlu0 0
      %1059 = vperm.xlu0 %1058, %v992
      %v1060 = vpop.permute.xlu0 %1059
      %1063 = vset.pattern.permute.xlu0 0
      %1064 = vperm.xlu0 %1063, %v993
      %v1065 = vpop.permute.xlu0 %1064
      %1068 = vset.pattern.permute.xlu0 0
      %1069 = vperm.xlu0 %1068, %v994
      %v1070 = vpop.permute.xlu0 %1069
      %1073 = vset.pattern.permute.xlu0 0
      %1074 = vperm.xlu0 %1073, %v995
      %v1075 = vpop.permute.xlu0 %1074
      %1078 = vset.pattern.permute.xlu0 0
      %1079 = vperm.xlu0 %1078, %v996
      %v1080 = vpop.permute.xlu0 %1079
      %1083 = vset.pattern.permute.xlu0 0
      %1084 = vperm.xlu0 %1083, %v997
      %v1085 = vpop.permute.xlu0 %1084
      %1088 = vset.pattern.permute.xlu0 0
      %1089 = vperm.xlu0 %1088, %v998
      %v1090 = vpop.permute.xlu0 %1089
      %1093 = vset.pattern.permute.xlu0 0
      %1094 = vperm.xlu0 %1093, %v999
      %v1095 = vpop.permute.xlu0 %1094
      %1098 = vset.pattern.permute.xlu0 0
      %1099 = vperm.xlu0 %1098, %v1000
      %v1100 = vpop.permute.xlu0 %1099
      %1103 = vset.pattern.permute.xlu0 0
      %1104 = vperm.xlu0 %1103, %v1001
      %v1105 = vpop.permute.xlu0 %1104
      %1108 = vset.pattern.permute.xlu0 0
      %1109 = vperm.xlu0 %1108, %v1002
      %v1110 = vpop.permute.xlu0 %1109
      %1113 = vset.pattern.permute.xlu0 0
      %1114 = vperm.xlu0 %1113, %v1003
      %v1115 = vpop.permute.xlu0 %1114
      %1118 = vset.pattern.permute.xlu0 0
      %1119 = vperm.xlu0 %1118, %v1004
      %v1120 = vpop.permute.xlu0 %1119
      %1123 = vset.pattern.permute.xlu0 0
      %1124 = vperm.xlu0 %1123, %v1005
      %v1125 = vpop.permute.xlu0 %1124
      %1128 = vset.pattern.permute.xlu0 0
      %1129 = vperm.xlu0 %1128, %v1006
      %v1130 = vpop.permute.xlu0 %1129
      %1133 = vset.pattern.permute.xlu0 0
      %1134 = vperm.xlu0 %1133, %v1007
      %v1135 = vpop.permute.xlu0 %1134
      %1138 = vset.pattern.permute.xlu0 0
      %1139 = vperm.xlu0 %1138, %v1008
      %v1140 = vpop.permute.xlu0 %1139
      %1143 = vset.pattern.permute.xlu0 0
      %1144 = vperm.xlu0 %1143, %v1009
      %v1145 = vpop.permute.xlu0 %1144
      %1148 = vset.pattern.permute.xlu0 0
      %1149 = vperm.xlu0 %1148, %v1010
      %v1150 = vpop.permute.xlu0 %1149
      %1153 = vset.pattern.permute.xlu0 0
      %1154 = vperm.xlu0 %1153, %v1011
      %v1155 = vpop.permute.xlu0 %1154
      %1158 = vset.pattern.permute.xlu0 0
      %1159 = vperm.xlu0 %1158, %v1012
      %v1160 = vpop.permute.xlu0 %1159
      %1163 = vset.pattern.permute.xlu0 0
      %1164 = vperm.xlu0 %1163, %v1013
      %v1165 = vpop.permute.xlu0 %1164
      %1168 = vset.pattern.permute.xlu0 0
      %1169 = vperm.xlu0 %1168, %v1014
      %v1170 = vpop.permute.xlu0 %1169
      %1173 = vset.pattern.permute.xlu0 0
      %1174 = vperm.xlu0 %1173, %v1015
      %v1175 = vpop.permute.xlu0 %1174
      %1178 = vset.pattern.permute.xlu0 0
      %1179 = vperm.xlu0 %1178, %v1016
      %v1180 = vpop.permute.xlu0 %1179
      %1183 = vset.pattern.permute.xlu0 0
      %1184 = vperm.xlu0 %1183, %v1017
      %v1185 = vpop.permute.xlu0 %1184
      %1188 = vset.pattern.permute.xlu0 0
      %1189 = vperm.xlu0 %1188, %v1018
      %v1190 = vpop.permute.xlu0 %1189
      %1193 = vset.pattern.permute.xlu0 0
      %1194 = vperm.xlu0 %1193, %v1019
      %v1195 = vpop.permute.xlu0 %1194
      %1198 = vset.pattern.permute.xlu0 0
      %1199 = vperm.xlu0 %1198, %v1020
      %v1200 = vpop.permute.xlu0 %1199
      %1203 = vset.pattern.permute.xlu0 0
      %1204 = vperm.xlu0 %1203, %v1021
      %v1205 = vpop.permute.xlu0 %1204
      %1208 = vset.pattern.permute.xlu0 0
      %1209 = vperm.xlu0 %1208, %v1022
      %v1210 = vpop.permute.xlu0 %1209
      %1213 = vset.pattern.permute.xlu0 0
      %1214 = vperm.xlu0 %1213, %v1023
      %v1215 = vpop.permute.xlu0 %1214
      %1218 = vset.pattern.permute.xlu0 0
      %1219 = vperm.xlu0 %1218, %v1024
      %v1220 = vpop.permute.xlu0 %1219
      %1223 = vset.pattern.permute.xlu0 0
      %1224 = vperm.xlu0 %1223, %v1025
      %v1225 = vpop.permute.xlu0 %1224
      %1228 = vset.pattern.permute.xlu0 0
      %1229 = vperm.xlu0 %1228, %v1026
      %v1230 = vpop.permute.xlu0 %1229
      %v1232 = vmul.f32 %v945, %v1030
      %v1233 = vmul.f32 %v946, %v1035
      %v1234 = vmul.f32 %v947, %v1040
      %v1235 = vmul.f32 %v948, %v1045
      %v1236 = vmul.f32 %v949, %v1050
      %v1237 = vmul.f32 %v950, %v1055
      %v1238 = vmul.f32 %v951, %v1060
      %v1239 = vmul.f32 %v952, %v1065
      %v1240 = vmul.f32 %v953, %v1070
      %v1241 = vmul.f32 %v954, %v1075
      %v1242 = vmul.f32 %v955, %v1080
      %v1243 = vmul.f32 %v956, %v1085
      %v1244 = vmul.f32 %v957, %v1090
      %v1245 = vmul.f32 %v958, %v1095
      %v1246 = vmul.f32 %v959, %v1100
      %v1247 = vmul.f32 %v960, %v1105
      %v1248 = vmul.f32 %v961, %v1110
      %v1249 = vmul.f32 %v962, %v1115
      %v1250 = vmul.f32 %v963, %v1120
      %v1251 = vmul.f32 %v964, %v1125
      %v1252 = vmul.f32 %v965, %v1130
      %v1253 = vmul.f32 %v966, %v1135
      %v1254 = vmul.f32 %v967, %v1140
      %v1255 = vmul.f32 %v968, %v1145
      %v1256 = vmul.f32 %v969, %v1150
      %v1257 = vmul.f32 %v970, %v1155
      %v1258 = vmul.f32 %v971, %v1160
      %v1259 = vmul.f32 %v972, %v1165
      %v1260 = vmul.f32 %v973, %v1170
      %v1261 = vmul.f32 %v974, %v1175
      %v1262 = vmul.f32 %v975, %v1180
      %v1263 = vmul.f32 %v976, %v1185
      %v1264 = vmul.f32 %v977, %v1190
      %v1265 = vmul.f32 %v978, %v1195
      %v1266 = vmul.f32 %v979, %v1200
      %v1267 = vmul.f32 %v980, %v1205
      %v1268 = vmul.f32 %v981, %v1210
      %v1269 = vmul.f32 %v982, %v1215
      %v1270 = vmul.f32 %v983, %v1220
      %v1271 = vmul.f32 %v984, %v1225
      %v1272 = vmul.f32 %v985, %v1230
      %1273 = vst.msk [vmem:[#allocation2] sm:$0xff] %vm301, 0.0
      %1274 = vst.msk [vmem:[#allocation2 + $0x8] sm:$0xff] %vm301, 0.0
      %1275 = vst.msk [vmem:[#allocation2 + $0x10] sm:$0xff] %vm301, 0.0
      %1276 = vst.msk [vmem:[#allocation2 + $0x18] sm:$0xff] %vm301, 0.0
      %1277 = vst.msk [vmem:[#allocation2 + $0x20] sm:$0xff] %vm301, 0.0
      %1278 = vst.msk [vmem:[#allocation2 + $0x28] sm:$0xff] %vm301, 0.0
      %1279 = vst.msk [vmem:[#allocation2 + $0x30] sm:$0xff] %vm301, 0.0
      %1280 = vst.msk [vmem:[#allocation2 + $0x38] sm:$0xff] %vm301, 0.0
      %1281 = vst.msk [vmem:[#allocation2 + $0x40] sm:$0xff] %vm301, 0.0
      %1282 = vst.msk [vmem:[#allocation2 + $0x48] sm:$0xff] %vm301, 0.0
      %1283 = vst.msk [vmem:[#allocation2 + $0x50] sm:$0xff] %vm301, 0.0
      %1284 = vst.msk [vmem:[#allocation2 + $0x58] sm:$0xff] %vm301, 0.0
      %1285 = vst.msk [vmem:[#allocation2 + $0x60] sm:$0xff] %vm301, 0.0
      %1286 = vst.msk [vmem:[#allocation2 + $0x68] sm:$0xff] %vm301, 0.0
      %1287 = vst.msk [vmem:[#allocation2 + $0x70] sm:$0xff] %vm301, 0.0
      %1288 = vst.msk [vmem:[#allocation2 + $0x78] sm:$0xff] %vm301, 0.0
      %1289 = vst.msk [vmem:[#allocation2 + $0x80] sm:$0xff] %vm301, 0.0
      %1290 = vst.msk [vmem:[#allocation2 + $0x88] sm:$0xff] %vm301, 0.0
      %1291 = vst.msk [vmem:[#allocation2 + $0x90] sm:$0xff] %vm301, 0.0
      %1292 = vst.msk [vmem:[#allocation2 + $0x98] sm:$0xff] %vm301, 0.0
      %1293 = vst.msk [vmem:[#allocation2 + $0xa0] sm:$0xff] %vm301, 0.0
      %1294 = vst.msk [vmem:[#allocation2 + $0xa8] sm:$0xff] %vm301, 0.0
      %1295 = vst.msk [vmem:[#allocation2 + $0xb0] sm:$0xff] %vm301, 0.0
      %1296 = vst.msk [vmem:[#allocation2 + $0xb8] sm:$0xff] %vm301, 0.0
      %1297 = vst.msk [vmem:[#allocation2 + $0xc0] sm:$0xff] %vm301, 0.0
      %1298 = vst.msk [vmem:[#allocation2 + $0xc8] sm:$0xff] %vm301, 0.0
      %1299 = vst.msk [vmem:[#allocation2 + $0xd0] sm:$0xff] %vm301, 0.0
      %1300 = vst.msk [vmem:[#allocation2 + $0xd8] sm:$0xff] %vm301, 0.0
      %1301 = vst.msk [vmem:[#allocation2 + $0xe0] sm:$0xff] %vm301, 0.0
      %1302 = vst.msk [vmem:[#allocation2 + $0xe8] sm:$0xff] %vm301, 0.0
      %1303 = vst.msk [vmem:[#allocation2 + $0xf0] sm:$0xff] %vm301, 0.0
      %1304 = vst.msk [vmem:[#allocation2 + $0xf8] sm:$0xff] %vm301, 0.0
      %1305 = vst.msk [vmem:[#allocation2 + $0x100] sm:$0xff] %vm301, 0.0
      %1306 = vst.msk [vmem:[#allocation2 + $0x108] sm:$0xff] %vm301, 0.0
      %1307 = vst.msk [vmem:[#allocation2 + $0x110] sm:$0xff] %vm301, 0.0
      %1308 = vst.msk [vmem:[#allocation2 + $0x118] sm:$0xff] %vm301, 0.0
      %1309 = vst.msk [vmem:[#allocation2 + $0x120] sm:$0xff] %vm301, 0.0
      %1310 = vst.msk [vmem:[#allocation2 + $0x128] sm:$0xff] %vm301, 0.0
      %1311 = vst.msk [vmem:[#allocation2 + $0x130] sm:$0xff] %vm301, 0.0
      %1312 = vst.msk [vmem:[#allocation2 + $0x138] sm:$0xff] %vm301, 0.0
      %1313 = vst.msk [vmem:[#allocation2 + $0x140] sm:$0xff] %vm301, 0.0
      %1314 = vst.msk [vmem:[#allocation2 + $0x148] sm:$0xff] %vm301, 0.0
      %1315 = vst.msk [vmem:[#allocation2 + $0x150] sm:$0xff] %vm301, 0.0
      %1316 = vst.msk [vmem:[#allocation2 + $0x158] sm:$0xff] %vm301, 0.0
      %1317 = vst.msk [vmem:[#allocation2 + $0x160] sm:$0xff] %vm301, 0.0
      %vm1318 = vcmask 25600
      %1319 = vst.msk [vmem:[#allocation2 + $0x168] sm:$0x3] %vm1318, 0.0
      %1320 = vst.msk [vmem:[#allocation2 + $0x13] sm:$0xff] %vm301, %v1232
      %1321 = vst.msk [vmem:[#allocation2 + $0x1b] sm:$0xff] %vm301, %v1233
      %1322 = vst.msk [vmem:[#allocation2 + $0x23] sm:$0xff] %vm301, %v1234
      %1323 = vst.msk [vmem:[#allocation2 + $0x2b] sm:$0xff] %vm301, %v1235
      %1324 = vst.msk [vmem:[#allocation2 + $0x33] sm:$0xff] %vm301, %v1236
      %1325 = vst.msk [vmem:[#allocation2 + $0x3b] sm:$0xff] %vm301, %v1237
      %1326 = vst.msk [vmem:[#allocation2 + $0x43] sm:$0xff] %vm301, %v1238
      %1327 = vst.msk [vmem:[#allocation2 + $0x4b] sm:$0xff] %vm301, %v1239
      %1328 = vst.msk [vmem:[#allocation2 + $0x53] sm:$0xff] %vm301, %v1240
      %1329 = vst.msk [vmem:[#allocation2 + $0x5b] sm:$0xff] %vm301, %v1241
      %1330 = vst.msk [vmem:[#allocation2 + $0x63] sm:$0xff] %vm301, %v1242
      %1331 = vst.msk [vmem:[#allocation2 + $0x6b] sm:$0xff] %vm301, %v1243
      %1332 = vst.msk [vmem:[#allocation2 + $0x73] sm:$0xff] %vm301, %v1244
      %1333 = vst.msk [vmem:[#allocation2 + $0x7b] sm:$0xff] %vm301, %v1245
      %1334 = vst.msk [vmem:[#allocation2 + $0x83] sm:$0xff] %vm301, %v1246
      %1335 = vst.msk [vmem:[#allocation2 + $0x8b] sm:$0xff] %vm301, %v1247
      %1336 = vst.msk [vmem:[#allocation2 + $0x93] sm:$0xff] %vm301, %v1248
      %1337 = vst.msk [vmem:[#allocation2 + $0x9b] sm:$0xff] %vm301, %v1249
      %1338 = vst.msk [vmem:[#allocation2 + $0xa3] sm:$0xff] %vm301, %v1250
      %1339 = vst.msk [vmem:[#allocation2 + $0xab] sm:$0xff] %vm301, %v1251
      %1340 = vst.msk [vmem:[#allocation2 + $0xb3] sm:$0xff] %vm301, %v1252
      %1341 = vst.msk [vmem:[#allocation2 + $0xbb] sm:$0xff] %vm301, %v1253
      %1342 = vst.msk [vmem:[#allocation2 + $0xc3] sm:$0xff] %vm301, %v1254
      %1343 = vst.msk [vmem:[#allocation2 + $0xcb] sm:$0xff] %vm301, %v1255
      %1344 = vst.msk [vmem:[#allocation2 + $0xd3] sm:$0xff] %vm301, %v1256
      %1345 = vst.msk [vmem:[#allocation2 + $0xdb] sm:$0xff] %vm301, %v1257
      %1346 = vst.msk [vmem:[#allocation2 + $0xe3] sm:$0xff] %vm301, %v1258
      %1347 = vst.msk [vmem:[#allocation2 + $0xeb] sm:$0xff] %vm301, %v1259
      %1348 = vst.msk [vmem:[#allocation2 + $0xf3] sm:$0xff] %vm301, %v1260
      %1349 = vst.msk [vmem:[#allocation2 + $0xfb] sm:$0xff] %vm301, %v1261
      %1350 = vst.msk [vmem:[#allocation2 + $0x103] sm:$0xff] %vm301, %v1262
      %1351 = vst.msk [vmem:[#allocation2 + $0x10b] sm:$0xff] %vm301, %v1263
      %1352 = vst.msk [vmem:[#allocation2 + $0x113] sm:$0xff] %vm301, %v1264
      %1353 = vst.msk [vmem:[#allocation2 + $0x11b] sm:$0xff] %vm301, %v1265
      %1354 = vst.msk [vmem:[#allocation2 + $0x123] sm:$0xff] %vm301, %v1266
      %1355 = vst.msk [vmem:[#allocation2 + $0x12b] sm:$0xff] %vm301, %v1267
      %1356 = vst.msk [vmem:[#allocation2 + $0x133] sm:$0xff] %vm301, %v1268
      %1357 = vst.msk [vmem:[#allocation2 + $0x13b] sm:$0xff] %vm301, %v1269
      %1358 = vst.msk [vmem:[#allocation2 + $0x143] sm:$0xff] %vm301, %v1270
      %1359 = vst.msk [vmem:[#allocation2 + $0x14b] sm:$0xff] %vm301, %v1271
      %vm1360 = vcmask 27648
      %1361 = vst.msk [vmem:[#allocation2 + $0x153] sm:$0xf] %vm1360, %v1272
      %v1362 = vld [vmem:[#allocation2] sm:$0xff]
      %v1363 = vld [vmem:[#allocation2 + $0x8] sm:$0xff]
      %v1364 = vld [vmem:[#allocation2 + $0x10] sm:$0xff]
      %v1365 = vld [vmem:[#allocation2 + $0x18] sm:$0xff]
      %v1366 = vld [vmem:[#allocation2 + $0x20] sm:$0xff]
      %v1367 = vld [vmem:[#allocation2 + $0x28] sm:$0xff]
      %v1368 = vld [vmem:[#allocation2 + $0x30] sm:$0xff]
      %v1369 = vld [vmem:[#allocation2 + $0x38] sm:$0xff]
      %v1370 = vld [vmem:[#allocation2 + $0x40] sm:$0xff]
      %v1371 = vld [vmem:[#allocation2 + $0x48] sm:$0xff]
      %v1372 = vld [vmem:[#allocation2 + $0x50] sm:$0xff]
      %v1373 = vld [vmem:[#allocation2 + $0x58] sm:$0xff]
      %v1374 = vld [vmem:[#allocation2 + $0x60] sm:$0xff]
      %v1375 = vld [vmem:[#allocation2 + $0x68] sm:$0xff]
      %v1376 = vld [vmem:[#allocation2 + $0x70] sm:$0xff]
      %v1377 = vld [vmem:[#allocation2 + $0x78] sm:$0xff]
      %v1378 = vld [vmem:[#allocation2 + $0x80] sm:$0xff]
      %v1379 = vld [vmem:[#allocation2 + $0x88] sm:$0xff]
      %v1380 = vld [vmem:[#allocation2 + $0x90] sm:$0xff]
      %v1381 = vld [vmem:[#allocation2 + $0x98] sm:$0xff]
      %v1382 = vld [vmem:[#allocation2 + $0xa0] sm:$0xff]
      %v1383 = vld [vmem:[#allocation2 + $0xa8] sm:$0xff]
      %v1384 = vld [vmem:[#allocation2 + $0xb0] sm:$0xff]
      %v1385 = vld [vmem:[#allocation2 + $0xb8] sm:$0xff]
      %v1386 = vld [vmem:[#allocation2 + $0xc0] sm:$0xff]
      %v1387 = vld [vmem:[#allocation2 + $0xc8] sm:$0xff]
      %v1388 = vld [vmem:[#allocation2 + $0xd0] sm:$0xff]
      %v1389 = vld [vmem:[#allocation2 + $0xd8] sm:$0xff]
      %v1390 = vld [vmem:[#allocation2 + $0xe0] sm:$0xff]
      %v1391 = vld [vmem:[#allocation2 + $0xe8] sm:$0xff]
      %v1392 = vld [vmem:[#allocation2 + $0xf0] sm:$0xff]
      %v1393 = vld [vmem:[#allocation2 + $0xf8] sm:$0xff]
      %v1394 = vld [vmem:[#allocation2 + $0x100] sm:$0xff]
      %v1395 = vld [vmem:[#allocation2 + $0x108] sm:$0xff]
      %v1396 = vld [vmem:[#allocation2 + $0x110] sm:$0xff]
      %v1397 = vld [vmem:[#allocation2 + $0x118] sm:$0xff]
      %v1398 = vld [vmem:[#allocation2 + $0x120] sm:$0xff]
      %v1399 = vld [vmem:[#allocation2 + $0x128] sm:$0xff]
      %v1400 = vld [vmem:[#allocation2 + $0x130] sm:$0xff]
      %v1401 = vld [vmem:[#allocation2 + $0x138] sm:$0xff]
      %v1402 = vld [vmem:[#allocation2 + $0x140] sm:$0xf]
      %v1403 = vld [vmem:[%s4] sm:$0xf]
      %v1404 = vld [vmem:[#allocation2 + $0x1] sm:$0xff]
      %v1405 = vld [vmem:[#allocation2 + $0x9] sm:$0xff]
      %v1406 = vld [vmem:[#allocation2 + $0x11] sm:$0xff]
      %v1407 = vld [vmem:[#allocation2 + $0x19] sm:$0xff]
      %v1408 = vld [vmem:[#allocation2 + $0x21] sm:$0xff]
      %v1409 = vld [vmem:[#allocation2 + $0x29] sm:$0xff]
      %v1410 = vld [vmem:[#allocation2 + $0x31] sm:$0xff]
      %v1411 = vld [vmem:[#allocation2 + $0x39] sm:$0xff]
      %v1412 = vld [vmem:[#allocation2 + $0x41] sm:$0xff]
      %v1413 = vld [vmem:[#allocation2 + $0x49] sm:$0xff]
      %v1414 = vld [vmem:[#allocation2 + $0x51] sm:$0xff]
      %v1415 = vld [vmem:[#allocation2 + $0x59] sm:$0xff]
      %v1416 = vld [vmem:[#allocation2 + $0x61] sm:$0xff]
      %v1417 = vld [vmem:[#allocation2 + $0x69] sm:$0xff]
      %v1418 = vld [vmem:[#allocation2 + $0x71] sm:$0xff]
      %v1419 = vld [vmem:[#allocation2 + $0x79] sm:$0xff]
      %v1420 = vld [vmem:[#allocation2 + $0x81] sm:$0xff]
      %v1421 = vld [vmem:[#allocation2 + $0x89] sm:$0xff]
      %v1422 = vld [vmem:[#allocation2 + $0x91] sm:$0xff]
      %v1423 = vld [vmem:[#allocation2 + $0x99] sm:$0xff]
      %v1424 = vld [vmem:[#allocation2 + $0xa1] sm:$0xff]
      %v1425 = vld [vmem:[#allocation2 + $0xa9] sm:$0xff]
      %v1426 = vld [vmem:[#allocation2 + $0xb1] sm:$0xff]
      %v1427 = vld [vmem:[#allocation2 + $0xb9] sm:$0xff]
      %v1428 = vld [vmem:[#allocation2 + $0xc1] sm:$0xff]
      %v1429 = vld [vmem:[#allocation2 + $0xc9] sm:$0xff]
      %v1430 = vld [vmem:[#allocation2 + $0xd1] sm:$0xff]
      %v1431 = vld [vmem:[#allocation2 + $0xd9] sm:$0xff]
      %v1432 = vld [vmem:[#allocation2 + $0xe1] sm:$0xff]
      %v1433 = vld [vmem:[#allocation2 + $0xe9] sm:$0xff]
      %v1434 = vld [vmem:[#allocation2 + $0xf1] sm:$0xff]
      %v1435 = vld [vmem:[#allocation2 + $0xf9] sm:$0xff]
      %v1436 = vld [vmem:[#allocation2 + $0x101] sm:$0xff]
      %v1437 = vld [vmem:[#allocation2 + $0x109] sm:$0xff]
      %v1438 = vld [vmem:[#allocation2 + $0x111] sm:$0xff]
      %v1439 = vld [vmem:[#allocation2 + $0x119] sm:$0xff]
      %v1440 = vld [vmem:[#allocation2 + $0x121] sm:$0xff]
      %v1441 = vld [vmem:[#allocation2 + $0x129] sm:$0xff]
      %v1442 = vld [vmem:[#allocation2 + $0x131] sm:$0xff]
      %v1443 = vld [vmem:[#allocation2 + $0x139] sm:$0xff]
      %v1444 = vld [vmem:[#allocation2 + $0x141] sm:$0xf]
      %v1445 = vld [vmem:[%s4 + $0x4] sm:$0xf]
      %v1447 = vsel %vm301, %v1404, 0
      %v1450 = vsel %vm301, %v1405, 0
      %v1453 = vsel %vm301, %v1406, 0
      %v1456 = vsel %vm301, %v1407, 0
      %v1459 = vsel %vm301, %v1408, 0
      %v1462 = vsel %vm301, %v1409, 0
      %v1465 = vsel %vm301, %v1410, 0
      %v1468 = vsel %vm301, %v1411, 0
      %v1471 = vsel %vm301, %v1412, 0
      %v1474 = vsel %vm301, %v1413, 0
      %v1477 = vsel %vm301, %v1414, 0
      %v1480 = vsel %vm301, %v1415, 0
      %v1483 = vsel %vm301, %v1416, 0
      %v1486 = vsel %vm301, %v1417, 0
      %v1489 = vsel %vm301, %v1418, 0
      %v1492 = vsel %vm301, %v1419, 0
      %v1495 = vsel %vm301, %v1420, 0
      %v1498 = vsel %vm301, %v1421, 0
      %v1501 = vsel %vm301, %v1422, 0
      %v1504 = vsel %vm301, %v1423, 0
      %v1507 = vsel %vm301, %v1424, 0
      %v1510 = vsel %vm301, %v1425, 0
      %v1513 = vsel %vm301, %v1426, 0
      %v1516 = vsel %vm301, %v1427, 0
      %v1519 = vsel %vm301, %v1428, 0
      %v1522 = vsel %vm301, %v1429, 0
      %v1525 = vsel %vm301, %v1430, 0
      %v1528 = vsel %vm301, %v1431, 0
      %v1531 = vsel %vm301, %v1432, 0
      %v1534 = vsel %vm301, %v1433, 0
      %v1537 = vsel %vm301, %v1434, 0
      %v1540 = vsel %vm301, %v1435, 0
      %v1543 = vsel %vm301, %v1436, 0
      %v1546 = vsel %vm301, %v1437, 0
      %v1549 = vsel %vm301, %v1438, 0
      %v1552 = vsel %vm301, %v1439, 0
      %v1555 = vsel %vm301, %v1440, 0
      %v1558 = vsel %vm301, %v1441, 0
      %v1561 = vsel %vm301, %v1442, 0
      %v1564 = vsel %vm301, %v1443, 0
      %v1567 = vsel %vm301, %v1444, 0
      %v1570 = vsel %vm425, %v1445, 0
      %1572 = vmatprep.subr.mxu0 0.0
      %1573 = vmatpush1.msra.mxu0 %v1570
      %1574 = vmatprep.subr.mxu0 0.0
      %1575 = vmatpush1.msra.mxu0 0.0
      %1576 = vmatprep.subr.mxu0 0.0
      %1577 = vmatpush1.msra.mxu0 0.0
      %1578 = vmatprep.subr.mxu0 0.0
      %1579 = vmatpush1.msra.mxu0 0.0
      %1580 = vmatprep.subr.mxu0 0.0
      %1581 = vmatpush1.msra.mxu0 0.0
      %1582 = vmatprep.subr.mxu0 0.0
      %1583 = vmatpush1.msra.mxu0 0.0
      %1584 = vmatprep.subr.mxu0 0.0
      %1585 = vmatpush1.msra.mxu0 0.0
      %1586 = vmatprep.subr.mxu0 0.0
      %1587 = vmatpush1.msra.mxu0 0.0
      %1588 = vmatprep.subr.mxu0 0.0
      %1589 = vmatpush1.msra.mxu0 0.0
      %1590 = vmatprep.subr.mxu0 0.0
      %1591 = vmatpush1.msra.mxu0 0.0
      %1592 = vmatprep.subr.mxu0 0.0
      %1593 = vmatpush1.msra.mxu0 0.0
      %1594 = vmatprep.subr.mxu0 0.0
      %1595 = vmatpush1.msra.mxu0 0.0
      %1596 = vmatprep.subr.mxu0 0.0
      %1597 = vmatpush1.msra.mxu0 0.0
      %1598 = vmatprep.subr.mxu0 0.0
      %1599 = vmatpush1.msra.mxu0 0.0
      %1600 = vmatprep.subr.mxu0 0.0
      %1601 = vmatpush1.msra.mxu0 0.0
      %1602 = vmatprep.subr.mxu0 0.0
      %1603 = vmatpush1.msra.mxu0 0.0
      %1604 = vmatprep.subr.mxu0 0.0
      %1605 = vmatpush1.msra.mxu0 0.0
      %1606 = vmatprep.subr.mxu0 0.0
      %1607 = vmatpush1.msra.mxu0 0.0
      %1608 = vmatprep.subr.mxu0 0.0
      %1609 = vmatpush1.msra.mxu0 0.0
      %1610 = vmatprep.subr.mxu0 0.0
      %1611 = vmatpush1.msra.mxu0 0.0
      %1612 = vmatprep.subr.mxu0 0.0
      %1613 = vmatpush1.msra.mxu0 0.0
      %1614 = vmatprep.subr.mxu0 0.0
      %1615 = vmatpush1.msra.mxu0 0.0
      %1616 = vmatprep.subr.mxu0 0.0
      %1617 = vmatpush1.msra.mxu0 0.0
      %1618 = vmatprep.subr.mxu0 0.0
      %1619 = vmatpush1.msra.mxu0 0.0
      %1620 = vmatprep.subr.mxu0 0.0
      %1621 = vmatpush1.msra.mxu0 0.0
      %1622 = vmatprep.subr.mxu0 0.0
      %1623 = vmatpush1.msra.mxu0 0.0
      %1624 = vmatprep.subr.mxu0 0.0
      %1625 = vmatpush1.msra.mxu0 0.0
      %1626 = vmatprep.subr.mxu0 0.0
      %1627 = vmatpush1.msra.mxu0 0.0
      %1628 = vmatprep.subr.mxu0 0.0
      %1629 = vmatpush1.msra.mxu0 0.0
      %1630 = vmatprep.subr.mxu0 0.0
      %1631 = vmatpush1.msra.mxu0 0.0
      %1632 = vmatprep.subr.mxu0 0.0
      %1633 = vmatpush1.msra.mxu0 0.0
      %1634 = vmatprep.subr.mxu0 0.0
      %1635 = vmatpush1.msra.mxu0 0.0
      %1636 = vmatprep.mubr.f32.mxu0 0.0
      %1637 = vmatmul.mubr.f32.gmra.mrb[0].mxu0 %v1447
      %v1638 = vpop.f32.mrb[0].mxu0
      %v1639 = vadd.f32 0.0, %v1638
      %v1640 = vpop.f32.mrb[0].mxu0
      %1641 = vmatprep.mubr.f32.mxu0 0.0
      %1642 = vmatmul.mubr.f32.gmra.mrb[0].mxu0 %v1450
      %v1643 = vpop.f32.mrb[0].mxu0
      %v1644 = vadd.f32 0.0, %v1643
      %v1645 = vpop.f32.mrb[0].mxu0
      %1646 = vmatprep.mubr.f32.mxu0 0.0
      %1647 = vmatmul.mubr.f32.gmra.mrb[0].mxu0 %v1453
      %v1648 = vpop.f32.mrb[0].mxu0
      %v1649 = vadd.f32 0.0, %v1648
      %v1650 = vpop.f32.mrb[0].mxu0
      %1651 = vmatprep.mubr.f32.mxu0 0.0
      %1652 = vmatmul.mubr.f32.gmra.mrb[0].mxu0 %v1456
      %v1653 = vpop.f32.mrb[0].mxu0
      %v1654 = vadd.f32 0.0, %v1653
      %v1655 = vpop.f32.mrb[0].mxu0
      %1656 = vmatprep.mubr.f32.mxu0 0.0
      %1657 = vmatmul.mubr.f32.gmra.mrb[0].mxu0 %v1459
      %v1658 = vpop.f32.mrb[0].mxu0
      %v1659 = vadd.f32 0.0, %v1658
      %v1660 = vpop.f32.mrb[0].mxu0
      %1661 = vmatprep.mubr.f32.mxu0 0.0
      %1662 = vmatmul.mubr.f32.gmra.mrb[0].mxu0 %v1462
      %v1663 = vpop.f32.mrb[0].mxu0
      %v1664 = vadd.f32 0.0, %v1663
      %v1665 = vpop.f32.mrb[0].mxu0
      %1666 = vmatprep.mubr.f32.mxu0 0.0
      %1667 = vmatmul.mubr.f32.gmra.mrb[0].mxu0 %v1465
      %v1668 = vpop.f32.mrb[0].mxu0
      %v1669 = vadd.f32 0.0, %v1668
      %v1670 = vpop.f32.mrb[0].mxu0
      %1671 = vmatprep.mubr.f32.mxu0 0.0
      %1672 = vmatmul.mubr.f32.gmra.mrb[0].mxu0 %v1468
      %v1673 = vpop.f32.mrb[0].mxu0
      %v1674 = vadd.f32 0.0, %v1673
      %v1675 = vpop.f32.mrb[0].mxu0
      %1676 = vmatprep.mubr.f32.mxu0 0.0
      %1677 = vmatmul.mubr.f32.gmra.mrb[0].mxu0 %v1471
      %v1678 = vpop.f32.mrb[0].mxu0
      %v1679 = vadd.f32 0.0, %v1678
      %v1680 = vpop.f32.mrb[0].mxu0
      %1681 = vmatprep.mubr.f32.mxu0 0.0
      %1682 = vmatmul.mubr.f32.gmra.mrb[0].mxu0 %v1474
      %v1683 = vpop.f32.mrb[0].mxu0
      %v1684 = vadd.f32 0.0, %v1683
      %v1685 = vpop.f32.mrb[0].mxu0
      %1686 = vmatprep.mubr.f32.mxu0 0.0
      %1687 = vmatmul.mubr.f32.gmra.mrb[0].mxu0 %v1477
      %v1688 = vpop.f32.mrb[0].mxu0
      %v1689 = vadd.f32 0.0, %v1688
      %v1690 = vpop.f32.mrb[0].mxu0
      %1691 = vmatprep.mubr.f32.mxu0 0.0
      %1692 = vmatmul.mubr.f32.gmra.mrb[0].mxu0 %v1480
      %v1693 = vpop.f32.mrb[0].mxu0
      %v1694 = vadd.f32 0.0, %v1693
      %v1695 = vpop.f32.mrb[0].mxu0
      %1696 = vmatprep.mubr.f32.mxu0 0.0
      %1697 = vmatmul.mubr.f32.gmra.mrb[0].mxu0 %v1483
      %v1698 = vpop.f32.mrb[0].mxu0
      %v1699 = vadd.f32 0.0, %v1698
      %v1700 = vpop.f32.mrb[0].mxu0
      %1701 = vmatprep.mubr.f32.mxu0 0.0
      %1702 = vmatmul.mubr.f32.gmra.mrb[0].mxu0 %v1486
      %v1703 = vpop.f32.mrb[0].mxu0
      %v1704 = vadd.f32 0.0, %v1703
      %v1705 = vpop.f32.mrb[0].mxu0
      %1706 = vmatprep.mubr.f32.mxu0 0.0
      %1707 = vmatmul.mubr.f32.gmra.mrb[0].mxu0 %v1489
      %v1708 = vpop.f32.mrb[0].mxu0
      %v1709 = vadd.f32 0.0, %v1708
      %v1710 = vpop.f32.mrb[0].mxu0
      %1711 = vmatprep.mubr.f32.mxu0 0.0
      %1712 = vmatmul.mubr.f32.gmra.mrb[0].mxu0 %v1492
      %v1713 = vpop.f32.mrb[0].mxu0
      %v1714 = vadd.f32 0.0, %v1713
      %v1715 = vpop.f32.mrb[0].mxu0
      %1716 = vmatprep.mubr.f32.mxu0 0.0
      %1717 = vmatmul.mubr.f32.gmra.mrb[0].mxu0 %v1495
      %v1718 = vpop.f32.mrb[0].mxu0
      %v1719 = vadd.f32 0.0, %v1718
      %v1720 = vpop.f32.mrb[0].mxu0
      %1721 = vmatprep.mubr.f32.mxu0 0.0
      %1722 = vmatmul.mubr.f32.gmra.mrb[0].mxu0 %v1498
      %v1723 = vpop.f32.mrb[0].mxu0
      %v1724 = vadd.f32 0.0, %v1723
      %v1725 = vpop.f32.mrb[0].mxu0
      %1726 = vmatprep.mubr.f32.mxu0 0.0
      %1727 = vmatmul.mubr.f32.gmra.mrb[0].mxu0 %v1501
      %v1728 = vpop.f32.mrb[0].mxu0
      %v1729 = vadd.f32 0.0, %v1728
      %v1730 = vpop.f32.mrb[0].mxu0
      %1731 = vmatprep.mubr.f32.mxu0 0.0
      %1732 = vmatmul.mubr.f32.gmra.mrb[0].mxu0 %v1504
      %v1733 = vpop.f32.mrb[0].mxu0
      %v1734 = vadd.f32 0.0, %v1733
      %v1735 = vpop.f32.mrb[0].mxu0
      %1736 = vmatprep.mubr.f32.mxu0 0.0
      %1737 = vmatmul.mubr.f32.gmra.mrb[0].mxu0 %v1507
      %v1738 = vpop.f32.mrb[0].mxu0
      %v1739 = vadd.f32 0.0, %v1738
      %v1740 = vpop.f32.mrb[0].mxu0
      %1741 = vmatprep.mubr.f32.mxu0 0.0
      %1742 = vmatmul.mubr.f32.gmra.mrb[0].mxu0 %v1510
      %v1743 = vpop.f32.mrb[0].mxu0
      %v1744 = vadd.f32 0.0, %v1743
      %v1745 = vpop.f32.mrb[0].mxu0
      %1746 = vmatprep.mubr.f32.mxu0 0.0
      %1747 = vmatmul.mubr.f32.gmra.mrb[0].mxu0 %v1513
      %v1748 = vpop.f32.mrb[0].mxu0
      %v1749 = vadd.f32 0.0, %v1748
      %v1750 = vpop.f32.mrb[0].mxu0
      %1751 = vmatprep.mubr.f32.mxu0 0.0
      %1752 = vmatmul.mubr.f32.gmra.mrb[0].mxu0 %v1516
      %v1753 = vpop.f32.mrb[0].mxu0
      %v1754 = vadd.f32 0.0, %v1753
      %v1755 = vpop.f32.mrb[0].mxu0
      %1756 = vmatprep.mubr.f32.mxu0 0.0
      %1757 = vmatmul.mubr.f32.gmra.mrb[0].mxu0 %v1519
      %v1758 = vpop.f32.mrb[0].mxu0
      %v1759 = vadd.f32 0.0, %v1758
      %v1760 = vpop.f32.mrb[0].mxu0
      %1761 = vmatprep.mubr.f32.mxu0 0.0
      %1762 = vmatmul.mubr.f32.gmra.mrb[0].mxu0 %v1522
      %v1763 = vpop.f32.mrb[0].mxu0
      %v1764 = vadd.f32 0.0, %v1763
      %v1765 = vpop.f32.mrb[0].mxu0
      %1766 = vmatprep.mubr.f32.mxu0 0.0
      %1767 = vmatmul.mubr.f32.gmra.mrb[0].mxu0 %v1525
      %v1768 = vpop.f32.mrb[0].mxu0
      %v1769 = vadd.f32 0.0, %v1768
      %v1770 = vpop.f32.mrb[0].mxu0
      %1771 = vmatprep.mubr.f32.mxu0 0.0
      %1772 = vmatmul.mubr.f32.gmra.mrb[0].mxu0 %v1528
      %v1773 = vpop.f32.mrb[0].mxu0
      %v1774 = vadd.f32 0.0, %v1773
      %v1775 = vpop.f32.mrb[0].mxu0
      %1776 = vmatprep.mubr.f32.mxu0 0.0
      %1777 = vmatmul.mubr.f32.gmra.mrb[0].mxu0 %v1531
      %v1778 = vpop.f32.mrb[0].mxu0
      %v1779 = vadd.f32 0.0, %v1778
      %v1780 = vpop.f32.mrb[0].mxu0
      %1781 = vmatprep.mubr.f32.mxu0 0.0
      %1782 = vmatmul.mubr.f32.gmra.mrb[0].mxu0 %v1534
      %v1783 = vpop.f32.mrb[0].mxu0
      %v1784 = vadd.f32 0.0, %v1783
      %v1785 = vpop.f32.mrb[0].mxu0
      %1786 = vmatprep.mubr.f32.mxu0 0.0
      %1787 = vmatmul.mubr.f32.gmra.mrb[0].mxu0 %v1537
      %v1788 = vpop.f32.mrb[0].mxu0
      %v1789 = vadd.f32 0.0, %v1788
      %v1790 = vpop.f32.mrb[0].mxu0
      %1791 = vmatprep.mubr.f32.mxu0 0.0
      %1792 = vmatmul.mubr.f32.gmra.mrb[0].mxu0 %v1540
      %v1793 = vpop.f32.mrb[0].mxu0
      %v1794 = vadd.f32 0.0, %v1793
      %v1795 = vpop.f32.mrb[0].mxu0
      %1796 = vmatprep.mubr.f32.mxu0 0.0
      %1797 = vmatmul.mubr.f32.gmra.mrb[0].mxu0 %v1543
      %v1798 = vpop.f32.mrb[0].mxu0
      %v1799 = vadd.f32 0.0, %v1798
      %v1800 = vpop.f32.mrb[0].mxu0
      %1801 = vmatprep.mubr.f32.mxu0 0.0
      %1802 = vmatmul.mubr.f32.gmra.mrb[0].mxu0 %v1546
      %v1803 = vpop.f32.mrb[0].mxu0
      %v1804 = vadd.f32 0.0, %v1803
      %v1805 = vpop.f32.mrb[0].mxu0
      %1806 = vmatprep.mubr.f32.mxu0 0.0
      %1807 = vmatmul.mubr.f32.gmra.mrb[0].mxu0 %v1549
      %v1808 = vpop.f32.mrb[0].mxu0
      %v1809 = vadd.f32 0.0, %v1808
      %v1810 = vpop.f32.mrb[0].mxu0
      %1811 = vmatprep.mubr.f32.mxu0 0.0
      %1812 = vmatmul.mubr.f32.gmra.mrb[0].mxu0 %v1552
      %v1813 = vpop.f32.mrb[0].mxu0
      %v1814 = vadd.f32 0.0, %v1813
      %v1815 = vpop.f32.mrb[0].mxu0
      %1816 = vmatprep.mubr.f32.mxu0 0.0
      %1817 = vmatmul.mubr.f32.gmra.mrb[0].mxu0 %v1555
      %v1818 = vpop.f32.mrb[0].mxu0
      %v1819 = vadd.f32 0.0, %v1818
      %v1820 = vpop.f32.mrb[0].mxu0
      %1821 = vmatprep.mubr.f32.mxu0 0.0
      %1822 = vmatmul.mubr.f32.gmra.mrb[0].mxu0 %v1558
      %v1823 = vpop.f32.mrb[0].mxu0
      %v1824 = vadd.f32 0.0, %v1823
      %v1825 = vpop.f32.mrb[0].mxu0
      %1826 = vmatprep.mubr.f32.mxu0 0.0
      %1827 = vmatmul.mubr.f32.gmra.mrb[0].mxu0 %v1561
      %v1828 = vpop.f32.mrb[0].mxu0
      %v1829 = vadd.f32 0.0, %v1828
      %v1830 = vpop.f32.mrb[0].mxu0
      %1831 = vmatprep.mubr.f32.mxu0 0.0
      %1832 = vmatmul.mubr.f32.gmra.mrb[0].mxu0 %v1564
      %v1833 = vpop.f32.mrb[0].mxu0
      %v1834 = vadd.f32 0.0, %v1833
      %v1835 = vpop.f32.mrb[0].mxu0
      %1836 = vmatprep.mubr.f32.mxu0 0.0
      %1837 = vmatmul.mubr.f32.gmra.mrb[0].mxu0 %v1567
      %v1838 = vpop.f32.mrb[0].mxu0
      %v1839 = vadd.f32 0.0, %v1838
      %v1840 = vpop.f32.mrb[0].mxu0
      %1841 = vdwg.mxu0
      %v1843 = vsel %vm301, %v1362, 0
      %v1846 = vsel %vm301, %v1363, 0
      %v1849 = vsel %vm301, %v1364, 0
      %v1852 = vsel %vm301, %v1365, 0
      %v1855 = vsel %vm301, %v1366, 0
      %v1858 = vsel %vm301, %v1367, 0
      %v1861 = vsel %vm301, %v1368, 0
      %v1864 = vsel %vm301, %v1369, 0
      %v1867 = vsel %vm301, %v1370, 0
      %v1870 = vsel %vm301, %v1371, 0
      %v1873 = vsel %vm301, %v1372, 0
      %v1876 = vsel %vm301, %v1373, 0
      %v1879 = vsel %vm301, %v1374, 0
      %v1882 = vsel %vm301, %v1375, 0
      %v1885 = vsel %vm301, %v1376, 0
      %v1888 = vsel %vm301, %v1377, 0
      %v1891 = vsel %vm301, %v1378, 0
      %v1894 = vsel %vm301, %v1379, 0
      %v1897 = vsel %vm301, %v1380, 0
      %v1900 = vsel %vm301, %v1381, 0
      %v1903 = vsel %vm301, %v1382, 0
      %v1906 = vsel %vm301, %v1383, 0
      %v1909 = vsel %vm301, %v1384, 0
      %v1912 = vsel %vm301, %v1385, 0
      %v1915 = vsel %vm301, %v1386, 0
      %v1918 = vsel %vm301, %v1387, 0
      %v1921 = vsel %vm301, %v1388, 0
      %v1924 = vsel %vm301, %v1389, 0
      %v1927 = vsel %vm301, %v1390, 0
      %v1930 = vsel %vm301, %v1391, 0
      %v1933 = vsel %vm301, %v1392, 0
      %v1936 = vsel %vm301, %v1393, 0
      %v1939 = vsel %vm301, %v1394, 0
      %v1942 = vsel %vm301, %v1395, 0
      %v1945 = vsel %vm301, %v1396, 0
      %v1948 = vsel %vm301, %v1397, 0
      %v1951 = vsel %vm301, %v1398, 0
      %v1954 = vsel %vm301, %v1399, 0
      %v1957 = vsel %vm301, %v1400, 0
      %v1960 = vsel %vm301, %v1401, 0
      %v1963 = vsel %vm301, %v1402, 0
      %v1966 = vsel %vm425, %v1403, 0
      %1968 = vmatprep.subr.mxu0 0.0
      %1969 = vmatpush1.msra.mxu0 %v1966
      %1970 = vmatprep.subr.mxu0 0.0
      %1971 = vmatpush1.msra.mxu0 0.0
      %1972 = vmatprep.subr.mxu0 0.0
      %1973 = vmatpush1.msra.mxu0 0.0
      %1974 = vmatprep.subr.mxu0 0.0
      %1975 = vmatpush1.msra.mxu0 0.0
      %1976 = vmatprep.subr.mxu0 0.0
      %1977 = vmatpush1.msra.mxu0 0.0
      %1978 = vmatprep.subr.mxu0 0.0
      %1979 = vmatpush1.msra.mxu0 0.0
      %1980 = vmatprep.subr.mxu0 0.0
      %1981 = vmatpush1.msra.mxu0 0.0
      %1982 = vmatprep.subr.mxu0 0.0
      %1983 = vmatpush1.msra.mxu0 0.0
      %1984 = vmatprep.subr.mxu0 0.0
      %1985 = vmatpush1.msra.mxu0 0.0
      %1986 = vmatprep.subr.mxu0 0.0
      %1987 = vmatpush1.msra.mxu0 0.0
      %1988 = vmatprep.subr.mxu0 0.0
      %1989 = vmatpush1.msra.mxu0 0.0
      %1990 = vmatprep.subr.mxu0 0.0
      %1991 = vmatpush1.msra.mxu0 0.0
      %1992 = vmatprep.subr.mxu0 0.0
      %1993 = vmatpush1.msra.mxu0 0.0
      %1994 = vmatprep.subr.mxu0 0.0
      %1995 = vmatpush1.msra.mxu0 0.0
      %1996 = vmatprep.subr.mxu0 0.0
      %1997 = vmatpush1.msra.mxu0 0.0
      %1998 = vmatprep.subr.mxu0 0.0
      %1999 = vmatpush1.msra.mxu0 0.0
      %2000 = vmatprep.subr.mxu0 0.0
      %2001 = vmatpush1.msra.mxu0 0.0
      %2002 = vmatprep.subr.mxu0 0.0
      %2003 = vmatpush1.msra.mxu0 0.0
      %2004 = vmatprep.subr.mxu0 0.0
      %2005 = vmatpush1.msra.mxu0 0.0
      %2006 = vmatprep.subr.mxu0 0.0
      %2007 = vmatpush1.msra.mxu0 0.0
      %2008 = vmatprep.subr.mxu0 0.0
      %2009 = vmatpush1.msra.mxu0 0.0
      %2010 = vmatprep.subr.mxu0 0.0
      %2011 = vmatpush1.msra.mxu0 0.0
      %2012 = vmatprep.subr.mxu0 0.0
      %2013 = vmatpush1.msra.mxu0 0.0
      %2014 = vmatprep.subr.mxu0 0.0
      %2015 = vmatpush1.msra.mxu0 0.0
      %2016 = vmatprep.subr.mxu0 0.0
      %2017 = vmatpush1.msra.mxu0 0.0
      %2018 = vmatprep.subr.mxu0 0.0
      %2019 = vmatpush1.msra.mxu0 0.0
      %2020 = vmatprep.subr.mxu0 0.0
      %2021 = vmatpush1.msra.mxu0 0.0
      %2022 = vmatprep.subr.mxu0 0.0
      %2023 = vmatpush1.msra.mxu0 0.0
      %2024 = vmatprep.subr.mxu0 0.0
      %2025 = vmatpush1.msra.mxu0 0.0
      %2026 = vmatprep.subr.mxu0 0.0
      %2027 = vmatpush1.msra.mxu0 0.0
      %2028 = vmatprep.subr.mxu0 0.0
      %2029 = vmatpush1.msra.mxu0 0.0
      %2030 = vmatprep.subr.mxu0 0.0
      %2031 = vmatpush1.msra.mxu0 0.0
      %2032 = vmatprep.mubr.f32.mxu0 0.0
      %2033 = vmatmul.mubr.f32.gmra.mrb[0].mxu0 %v1843
      %v2034 = vpop.f32.mrb[0].mxu0
      %v2035 = vadd.f32 %v1639, %v2034
      %v2036 = vpop.f32.mrb[0].mxu0
      %2037 = vmatprep.mubr.f32.mxu0 0.0
      %2038 = vmatmul.mubr.f32.gmra.mrb[0].mxu0 %v1846
      %v2039 = vpop.f32.mrb[0].mxu0
      %v2040 = vadd.f32 %v1644, %v2039
      %v2041 = vpop.f32.mrb[0].mxu0
      %2042 = vmatprep.mubr.f32.mxu0 0.0
      %2043 = vmatmul.mubr.f32.gmra.mrb[0].mxu0 %v1849
      %v2044 = vpop.f32.mrb[0].mxu0
      %v2045 = vadd.f32 %v1649, %v2044
      %v2046 = vpop.f32.mrb[0].mxu0
      %2047 = vmatprep.mubr.f32.mxu0 0.0
      %2048 = vmatmul.mubr.f32.gmra.mrb[0].mxu0 %v1852
      %v2049 = vpop.f32.mrb[0].mxu0
      %v2050 = vadd.f32 %v1654, %v2049
      %v2051 = vpop.f32.mrb[0].mxu0
      %2052 = vmatprep.mubr.f32.mxu0 0.0
      %2053 = vmatmul.mubr.f32.gmra.mrb[0].mxu0 %v1855
      %v2054 = vpop.f32.mrb[0].mxu0
      %v2055 = vadd.f32 %v1659, %v2054
      %v2056 = vpop.f32.mrb[0].mxu0
      %2057 = vmatprep.mubr.f32.mxu0 0.0
      %2058 = vmatmul.mubr.f32.gmra.mrb[0].mxu0 %v1858
      %v2059 = vpop.f32.mrb[0].mxu0
      %v2060 = vadd.f32 %v1664, %v2059
      %v2061 = vpop.f32.mrb[0].mxu0
      %2062 = vmatprep.mubr.f32.mxu0 0.0
      %2063 = vmatmul.mubr.f32.gmra.mrb[0].mxu0 %v1861
      %v2064 = vpop.f32.mrb[0].mxu0
      %v2065 = vadd.f32 %v1669, %v2064
      %v2066 = vpop.f32.mrb[0].mxu0
      %2067 = vmatprep.mubr.f32.mxu0 0.0
      %2068 = vmatmul.mubr.f32.gmra.mrb[0].mxu0 %v1864
      %v2069 = vpop.f32.mrb[0].mxu0
      %v2070 = vadd.f32 %v1674, %v2069
      %v2071 = vpop.f32.mrb[0].mxu0
      %2072 = vmatprep.mubr.f32.mxu0 0.0
      %2073 = vmatmul.mubr.f32.gmra.mrb[0].mxu0 %v1867
      %v2074 = vpop.f32.mrb[0].mxu0
      %v2075 = vadd.f32 %v1679, %v2074
      %v2076 = vpop.f32.mrb[0].mxu0
      %2077 = vmatprep.mubr.f32.mxu0 0.0
      %2078 = vmatmul.mubr.f32.gmra.mrb[0].mxu0 %v1870
      %v2079 = vpop.f32.mrb[0].mxu0
      %v2080 = vadd.f32 %v1684, %v2079
      %v2081 = vpop.f32.mrb[0].mxu0
      %2082 = vmatprep.mubr.f32.mxu0 0.0
      %2083 = vmatmul.mubr.f32.gmra.mrb[0].mxu0 %v1873
      %v2084 = vpop.f32.mrb[0].mxu0
      %v2085 = vadd.f32 %v1689, %v2084
      %v2086 = vpop.f32.mrb[0].mxu0
      %2087 = vmatprep.mubr.f32.mxu0 0.0
      %2088 = vmatmul.mubr.f32.gmra.mrb[0].mxu0 %v1876
      %v2089 = vpop.f32.mrb[0].mxu0
      %v2090 = vadd.f32 %v1694, %v2089
      %v2091 = vpop.f32.mrb[0].mxu0
      %2092 = vmatprep.mubr.f32.mxu0 0.0
      %2093 = vmatmul.mubr.f32.gmra.mrb[0].mxu0 %v1879
      %v2094 = vpop.f32.mrb[0].mxu0
      %v2095 = vadd.f32 %v1699, %v2094
      %v2096 = vpop.f32.mrb[0].mxu0
      %2097 = vmatprep.mubr.f32.mxu0 0.0
      %2098 = vmatmul.mubr.f32.gmra.mrb[0].mxu0 %v1882
      %v2099 = vpop.f32.mrb[0].mxu0
      %v2100 = vadd.f32 %v1704, %v2099
      %v2101 = vpop.f32.mrb[0].mxu0
      %2102 = vmatprep.mubr.f32.mxu0 0.0
      %2103 = vmatmul.mubr.f32.gmra.mrb[0].mxu0 %v1885
      %v2104 = vpop.f32.mrb[0].mxu0
      %v2105 = vadd.f32 %v1709, %v2104
      %v2106 = vpop.f32.mrb[0].mxu0
      %2107 = vmatprep.mubr.f32.mxu0 0.0
      %2108 = vmatmul.mubr.f32.gmra.mrb[0].mxu0 %v1888
      %v2109 = vpop.f32.mrb[0].mxu0
      %v2110 = vadd.f32 %v1714, %v2109
      %v2111 = vpop.f32.mrb[0].mxu0
      %2112 = vmatprep.mubr.f32.mxu0 0.0
      %2113 = vmatmul.mubr.f32.gmra.mrb[0].mxu0 %v1891
      %v2114 = vpop.f32.mrb[0].mxu0
      %v2115 = vadd.f32 %v1719, %v2114
      %v2116 = vpop.f32.mrb[0].mxu0
      %2117 = vmatprep.mubr.f32.mxu0 0.0
      %2118 = vmatmul.mubr.f32.gmra.mrb[0].mxu0 %v1894
      %v2119 = vpop.f32.mrb[0].mxu0
      %v2120 = vadd.f32 %v1724, %v2119
      %v2121 = vpop.f32.mrb[0].mxu0
      %2122 = vmatprep.mubr.f32.mxu0 0.0
      %2123 = vmatmul.mubr.f32.gmra.mrb[0].mxu0 %v1897
      %v2124 = vpop.f32.mrb[0].mxu0
      %v2125 = vadd.f32 %v1729, %v2124
      %v2126 = vpop.f32.mrb[0].mxu0
      %2127 = vmatprep.mubr.f32.mxu0 0.0
      %2128 = vmatmul.mubr.f32.gmra.mrb[0].mxu0 %v1900
      %v2129 = vpop.f32.mrb[0].mxu0
      %v2130 = vadd.f32 %v1734, %v2129
      %v2131 = vpop.f32.mrb[0].mxu0
      %2132 = vmatprep.mubr.f32.mxu0 0.0
      %2133 = vmatmul.mubr.f32.gmra.mrb[0].mxu0 %v1903
      %v2134 = vpop.f32.mrb[0].mxu0
      %v2135 = vadd.f32 %v1739, %v2134
      %v2136 = vpop.f32.mrb[0].mxu0
      %2137 = vmatprep.mubr.f32.mxu0 0.0
      %2138 = vmatmul.mubr.f32.gmra.mrb[0].mxu0 %v1906
      %v2139 = vpop.f32.mrb[0].mxu0
      %v2140 = vadd.f32 %v1744, %v2139
      %v2141 = vpop.f32.mrb[0].mxu0
      %2142 = vmatprep.mubr.f32.mxu0 0.0
      %2143 = vmatmul.mubr.f32.gmra.mrb[0].mxu0 %v1909
      %v2144 = vpop.f32.mrb[0].mxu0
      %v2145 = vadd.f32 %v1749, %v2144
      %v2146 = vpop.f32.mrb[0].mxu0
      %2147 = vmatprep.mubr.f32.mxu0 0.0
      %2148 = vmatmul.mubr.f32.gmra.mrb[0].mxu0 %v1912
      %v2149 = vpop.f32.mrb[0].mxu0
      %v2150 = vadd.f32 %v1754, %v2149
      %v2151 = vpop.f32.mrb[0].mxu0
      %2152 = vmatprep.mubr.f32.mxu0 0.0
      %2153 = vmatmul.mubr.f32.gmra.mrb[0].mxu0 %v1915
      %v2154 = vpop.f32.mrb[0].mxu0
      %v2155 = vadd.f32 %v1759, %v2154
      %v2156 = vpop.f32.mrb[0].mxu0
      %2157 = vmatprep.mubr.f32.mxu0 0.0
      %2158 = vmatmul.mubr.f32.gmra.mrb[0].mxu0 %v1918
      %v2159 = vpop.f32.mrb[0].mxu0
      %v2160 = vadd.f32 %v1764, %v2159
      %v2161 = vpop.f32.mrb[0].mxu0
      %2162 = vmatprep.mubr.f32.mxu0 0.0
      %2163 = vmatmul.mubr.f32.gmra.mrb[0].mxu0 %v1921
      %v2164 = vpop.f32.mrb[0].mxu0
      %v2165 = vadd.f32 %v1769, %v2164
      %v2166 = vpop.f32.mrb[0].mxu0
      %2167 = vmatprep.mubr.f32.mxu0 0.0
      %2168 = vmatmul.mubr.f32.gmra.mrb[0].mxu0 %v1924
      %v2169 = vpop.f32.mrb[0].mxu0
      %v2170 = vadd.f32 %v1774, %v2169
      %v2171 = vpop.f32.mrb[0].mxu0
      %2172 = vmatprep.mubr.f32.mxu0 0.0
      %2173 = vmatmul.mubr.f32.gmra.mrb[0].mxu0 %v1927
      %v2174 = vpop.f32.mrb[0].mxu0
      %v2175 = vadd.f32 %v1779, %v2174
      %v2176 = vpop.f32.mrb[0].mxu0
      %2177 = vmatprep.mubr.f32.mxu0 0.0
      %2178 = vmatmul.mubr.f32.gmra.mrb[0].mxu0 %v1930
      %v2179 = vpop.f32.mrb[0].mxu0
      %v2180 = vadd.f32 %v1784, %v2179
      %v2181 = vpop.f32.mrb[0].mxu0
      %2182 = vmatprep.mubr.f32.mxu0 0.0
      %2183 = vmatmul.mubr.f32.gmra.mrb[0].mxu0 %v1933
      %v2184 = vpop.f32.mrb[0].mxu0
      %v2185 = vadd.f32 %v1789, %v2184
      %v2186 = vpop.f32.mrb[0].mxu0
      %2187 = vmatprep.mubr.f32.mxu0 0.0
      %2188 = vmatmul.mubr.f32.gmra.mrb[0].mxu0 %v1936
      %v2189 = vpop.f32.mrb[0].mxu0
      %v2190 = vadd.f32 %v1794, %v2189
      %v2191 = vpop.f32.mrb[0].mxu0
      %2192 = vmatprep.mubr.f32.mxu0 0.0
      %2193 = vmatmul.mubr.f32.gmra.mrb[0].mxu0 %v1939
      %v2194 = vpop.f32.mrb[0].mxu0
      %v2195 = vadd.f32 %v1799, %v2194
      %v2196 = vpop.f32.mrb[0].mxu0
      %2197 = vmatprep.mubr.f32.mxu0 0.0
      %2198 = vmatmul.mubr.f32.gmra.mrb[0].mxu0 %v1942
      %v2199 = vpop.f32.mrb[0].mxu0
      %v2200 = vadd.f32 %v1804, %v2199
      %v2201 = vpop.f32.mrb[0].mxu0
      %2202 = vmatprep.mubr.f32.mxu0 0.0
      %2203 = vmatmul.mubr.f32.gmra.mrb[0].mxu0 %v1945
      %v2204 = vpop.f32.mrb[0].mxu0
      %v2205 = vadd.f32 %v1809, %v2204
      %v2206 = vpop.f32.mrb[0].mxu0
      %2207 = vmatprep.mubr.f32.mxu0 0.0
      %2208 = vmatmul.mubr.f32.gmra.mrb[0].mxu0 %v1948
      %v2209 = vpop.f32.mrb[0].mxu0
      %v2210 = vadd.f32 %v1814, %v2209
      %v2211 = vpop.f32.mrb[0].mxu0
      %2212 = vmatprep.mubr.f32.mxu0 0.0
      %2213 = vmatmul.mubr.f32.gmra.mrb[0].mxu0 %v1951
      %v2214 = vpop.f32.mrb[0].mxu0
      %v2215 = vadd.f32 %v1819, %v2214
      %v2216 = vpop.f32.mrb[0].mxu0
      %2217 = vmatprep.mubr.f32.mxu0 0.0
      %2218 = vmatmul.mubr.f32.gmra.mrb[0].mxu0 %v1954
      %v2219 = vpop.f32.mrb[0].mxu0
      %v2220 = vadd.f32 %v1824, %v2219
      %v2221 = vpop.f32.mrb[0].mxu0
      %2222 = vmatprep.mubr.f32.mxu0 0.0
      %2223 = vmatmul.mubr.f32.gmra.mrb[0].mxu0 %v1957
      %v2224 = vpop.f32.mrb[0].mxu0
      %v2225 = vadd.f32 %v1829, %v2224
      %v2226 = vpop.f32.mrb[0].mxu0
      %2227 = vmatprep.mubr.f32.mxu0 0.0
      %2228 = vmatmul.mubr.f32.gmra.mrb[0].mxu0 %v1960
      %v2229 = vpop.f32.mrb[0].mxu0
      %v2230 = vadd.f32 %v1834, %v2229
      %v2231 = vpop.f32.mrb[0].mxu0
      %2232 = vmatprep.mubr.f32.mxu0 0.0
      %2233 = vmatmul.mubr.f32.gmra.mrb[0].mxu0 %v1963
      %v2234 = vpop.f32.mrb[0].mxu0
      %v2235 = vadd.f32 %v1839, %v2234
      %v2236 = vpop.f32.mrb[0].mxu0
      %2237 = vdwg.mxu0
      %v2238 = vld [vmem:[#allocation2 + $0x2] sm:$0xff]
      %v2239 = vld [vmem:[#allocation2 + $0xa] sm:$0xff]
      %v2240 = vld [vmem:[#allocation2 + $0x12] sm:$0xff]
      %v2241 = vld [vmem:[#allocation2 + $0x1a] sm:$0xff]
      %v2242 = vld [vmem:[#allocation2 + $0x22] sm:$0xff]
      %v2243 = vld [vmem:[#allocation2 + $0x2a] sm:$0xff]
      %v2244 = vld [vmem:[#allocation2 + $0x32] sm:$0xff]
      %v2245 = vld [vmem:[#allocation2 + $0x3a] sm:$0xff]
      %v2246 = vld [vmem:[#allocation2 + $0x42] sm:$0xff]
      %v2247 = vld [vmem:[#allocation2 + $0x4a] sm:$0xff]
      %v2248 = vld [vmem:[#allocation2 + $0x52] sm:$0xff]
      %v2249 = vld [vmem:[#allocation2 + $0x5a] sm:$0xff]
      %v2250 = vld [vmem:[#allocation2 + $0x62] sm:$0xff]
      %v2251 = vld [vmem:[#allocation2 + $0x6a] sm:$0xff]
      %v2252 = vld [vmem:[#allocation2 + $0x72] sm:$0xff]
      %v2253 = vld [vmem:[#allocation2 + $0x7a] sm:$0xff]
      %v2254 = vld [vmem:[#allocation2 + $0x82] sm:$0xff]
      %v2255 = vld [vmem:[#allocation2 + $0x8a] sm:$0xff]
      %v2256 = vld [vmem:[#allocation2 + $0x92] sm:$0xff]
      %v2257 = vld [vmem:[#allocation2 + $0x9a] sm:$0xff]
      %v2258 = vld [vmem:[#allocation2 + $0xa2] sm:$0xff]
      %v2259 = vld [vmem:[#allocation2 + $0xaa] sm:$0xff]
      %v2260 = vld [vmem:[#allocation2 + $0xb2] sm:$0xff]
      %v2261 = vld [vmem:[#allocation2 + $0xba] sm:$0xff]
      %v2262 = vld [vmem:[#allocation2 + $0xc2] sm:$0xff]
      %v2263 = vld [vmem:[#allocation2 + $0xca] sm:$0xff]
      %v2264 = vld [vmem:[#allocation2 + $0xd2] sm:$0xff]
      %v2265 = vld [vmem:[#allocation2 + $0xda] sm:$0xff]
      %v2266 = vld [vmem:[#allocation2 + $0xe2] sm:$0xff]
      %v2267 = vld [vmem:[#allocation2 + $0xea] sm:$0xff]
      %v2268 = vld [vmem:[#allocation2 + $0xf2] sm:$0xff]
      %v2269 = vld [vmem:[#allocation2 + $0xfa] sm:$0xff]
      %v2270 = vld [vmem:[#allocation2 + $0x102] sm:$0xff]
      %v2271 = vld [vmem:[#allocation2 + $0x10a] sm:$0xff]
      %v2272 = vld [vmem:[#allocation2 + $0x112] sm:$0xff]
      %v2273 = vld [vmem:[#allocation2 + $0x11a] sm:$0xff]
      %v2274 = vld [vmem:[#allocation2 + $0x122] sm:$0xff]
      %v2275 = vld [vmem:[#allocation2 + $0x12a] sm:$0xff]
      %v2276 = vld [vmem:[#allocation2 + $0x132] sm:$0xff]
      %v2277 = vld [vmem:[#allocation2 + $0x13a] sm:$0xff]
      %v2278 = vld [vmem:[#allocation2 + $0x142] sm:$0xf]
      %v2279 = vld [vmem:[%s4 + $0x8] sm:$0xf]
      %v2281 = vsel %vm301, %v2238, 0
      %v2284 = vsel %vm301, %v2239, 0
      %v2287 = vsel %vm301, %v2240, 0
      %v2290 = vsel %vm301, %v2241, 0
      %v2293 = vsel %vm301, %v2242, 0
      %v2296 = vsel %vm301, %v2243, 0
      %v2299 = vsel %vm301, %v2244, 0
      %v2302 = vsel %vm301, %v2245, 0
      %v2305 = vsel %vm301, %v2246, 0
      %v2308 = vsel %vm301, %v2247, 0
      %v2311 = vsel %vm301, %v2248, 0
      %v2314 = vsel %vm301, %v2249, 0
      %v2317 = vsel %vm301, %v2250, 0
      %v2320 = vsel %vm301, %v2251, 0
      %v2323 = vsel %vm301, %v2252, 0
      %v2326 = vsel %vm301, %v2253, 0
      %v2329 = vsel %vm301, %v2254, 0
      %v2332 = vsel %vm301, %v2255, 0
      %v2335 = vsel %vm301, %v2256, 0
      %v2338 = vsel %vm301, %v2257, 0
      %v2341 = vsel %vm301, %v2258, 0
      %v2344 = vsel %vm301, %v2259, 0
      %v2347 = vsel %vm301, %v2260, 0
      %v2350 = vsel %vm301, %v2261, 0
      %v2353 = vsel %vm301, %v2262, 0
      %v2356 = vsel %vm301, %v2263, 0
      %v2359 = vsel %vm301, %v2264, 0
      %v2362 = vsel %vm301, %v2265, 0
      %v2365 = vsel %vm301, %v2266, 0
      %v2368 = vsel %vm301, %v2267, 0
      %v2371 = vsel %vm301, %v2268, 0
      %v2374 = vsel %vm301, %v2269, 0
      %v2377 = vsel %vm301, %v2270, 0
      %v2380 = vsel %vm301, %v2271, 0
      %v2383 = vsel %vm301, %v2272, 0
      %v2386 = vsel %vm301, %v2273, 0
      %v2389 = vsel %vm301, %v2274, 0
      %v2392 = vsel %vm301, %v2275, 0
      %v2395 = vsel %vm301, %v2276, 0
      %v2398 = vsel %vm301, %v2277, 0
      %v2401 = vsel %vm301, %v2278, 0
      %v2404 = vsel %vm425, %v2279, 0
      %2406 = vmatprep.subr.mxu0 0.0
      %2407 = vmatpush1.msra.mxu0 %v2404
      %2408 = vmatprep.subr.mxu0 0.0
      %2409 = vmatpush1.msra.mxu0 0.0
      %2410 = vmatprep.subr.mxu0 0.0
      %2411 = vmatpush1.msra.mxu0 0.0
      %2412 = vmatprep.subr.mxu0 0.0
      %2413 = vmatpush1.msra.mxu0 0.0
      %2414 = vmatprep.subr.mxu0 0.0
      %2415 = vmatpush1.msra.mxu0 0.0
      %2416 = vmatprep.subr.mxu0 0.0
      %2417 = vmatpush1.msra.mxu0 0.0
      %2418 = vmatprep.subr.mxu0 0.0
      %2419 = vmatpush1.msra.mxu0 0.0
      %2420 = vmatprep.subr.mxu0 0.0
      %2421 = vmatpush1.msra.mxu0 0.0
      %2422 = vmatprep.subr.mxu0 0.0
      %2423 = vmatpush1.msra.mxu0 0.0
      %2424 = vmatprep.subr.mxu0 0.0
      %2425 = vmatpush1.msra.mxu0 0.0
      %2426 = vmatprep.subr.mxu0 0.0
      %2427 = vmatpush1.msra.mxu0 0.0
      %2428 = vmatprep.subr.mxu0 0.0
      %2429 = vmatpush1.msra.mxu0 0.0
      %2430 = vmatprep.subr.mxu0 0.0
      %2431 = vmatpush1.msra.mxu0 0.0
      %2432 = vmatprep.subr.mxu0 0.0
      %2433 = vmatpush1.msra.mxu0 0.0
      %2434 = vmatprep.subr.mxu0 0.0
      %2435 = vmatpush1.msra.mxu0 0.0
      %2436 = vmatprep.subr.mxu0 0.0
      %2437 = vmatpush1.msra.mxu0 0.0
      %2438 = vmatprep.subr.mxu0 0.0
      %2439 = vmatpush1.msra.mxu0 0.0
      %2440 = vmatprep.subr.mxu0 0.0
      %2441 = vmatpush1.msra.mxu0 0.0
      %2442 = vmatprep.subr.mxu0 0.0
      %2443 = vmatpush1.msra.mxu0 0.0
      %2444 = vmatprep.subr.mxu0 0.0
      %2445 = vmatpush1.msra.mxu0 0.0
      %2446 = vmatprep.subr.mxu0 0.0
      %2447 = vmatpush1.msra.mxu0 0.0
      %2448 = vmatprep.subr.mxu0 0.0
      %2449 = vmatpush1.msra.mxu0 0.0
      %2450 = vmatprep.subr.mxu0 0.0
      %2451 = vmatpush1.msra.mxu0 0.0
      %2452 = vmatprep.subr.mxu0 0.0
      %2453 = vmatpush1.msra.mxu0 0.0
      %2454 = vmatprep.subr.mxu0 0.0
      %2455 = vmatpush1.msra.mxu0 0.0
      %2456 = vmatprep.subr.mxu0 0.0
      %2457 = vmatpush1.msra.mxu0 0.0
      %2458 = vmatprep.subr.mxu0 0.0
      %2459 = vmatpush1.msra.mxu0 0.0
      %2460 = vmatprep.subr.mxu0 0.0
      %2461 = vmatpush1.msra.mxu0 0.0
      %2462 = vmatprep.subr.mxu0 0.0
      %2463 = vmatpush1.msra.mxu0 0.0
      %2464 = vmatprep.subr.mxu0 0.0
      %2465 = vmatpush1.msra.mxu0 0.0
      %2466 = vmatprep.subr.mxu0 0.0
      %2467 = vmatpush1.msra.mxu0 0.0
      %2468 = vmatprep.subr.mxu0 0.0
      %2469 = vmatpush1.msra.mxu0 0.0
      %2470 = vmatprep.mubr.f32.mxu0 0.0
      %2471 = vmatmul.mubr.f32.gmra.mrb[0].mxu0 %v2281
      %v2472 = vpop.f32.mrb[0].mxu0
      %v2473 = vadd.f32 0.0, %v2472
      %v2474 = vpop.f32.mrb[0].mxu0
      %2475 = vmatprep.mubr.f32.mxu0 0.0
      %2476 = vmatmul.mubr.f32.gmra.mrb[0].mxu0 %v2284
      %v2477 = vpop.f32.mrb[0].mxu0
      %v2478 = vadd.f32 0.0, %v2477
      %v2479 = vpop.f32.mrb[0].mxu0
      %2480 = vmatprep.mubr.f32.mxu0 0.0
      %2481 = vmatmul.mubr.f32.gmra.mrb[0].mxu0 %v2287
      %v2482 = vpop.f32.mrb[0].mxu0
      %v2483 = vadd.f32 0.0, %v2482
      %v2484 = vpop.f32.mrb[0].mxu0
      %2485 = vmatprep.mubr.f32.mxu0 0.0
      %2486 = vmatmul.mubr.f32.gmra.mrb[0].mxu0 %v2290
      %v2487 = vpop.f32.mrb[0].mxu0
      %v2488 = vadd.f32 0.0, %v2487
      %v2489 = vpop.f32.mrb[0].mxu0
      %2490 = vmatprep.mubr.f32.mxu0 0.0
      %2491 = vmatmul.mubr.f32.gmra.mrb[0].mxu0 %v2293
      %v2492 = vpop.f32.mrb[0].mxu0
      %v2493 = vadd.f32 0.0, %v2492
      %v2494 = vpop.f32.mrb[0].mxu0
      %2495 = vmatprep.mubr.f32.mxu0 0.0
      %2496 = vmatmul.mubr.f32.gmra.mrb[0].mxu0 %v2296
      %v2497 = vpop.f32.mrb[0].mxu0
      %v2498 = vadd.f32 0.0, %v2497
      %v2499 = vpop.f32.mrb[0].mxu0
      %2500 = vmatprep.mubr.f32.mxu0 0.0
      %2501 = vmatmul.mubr.f32.gmra.mrb[0].mxu0 %v2299
      %v2502 = vpop.f32.mrb[0].mxu0
      %v2503 = vadd.f32 0.0, %v2502
      %v2504 = vpop.f32.mrb[0].mxu0
      %2505 = vmatprep.mubr.f32.mxu0 0.0
      %2506 = vmatmul.mubr.f32.gmra.mrb[0].mxu0 %v2302
      %v2507 = vpop.f32.mrb[0].mxu0
      %v2508 = vadd.f32 0.0, %v2507
      %v2509 = vpop.f32.mrb[0].mxu0
      %2510 = vmatprep.mubr.f32.mxu0 0.0
      %2511 = vmatmul.mubr.f32.gmra.mrb[0].mxu0 %v2305
      %v2512 = vpop.f32.mrb[0].mxu0
      %v2513 = vadd.f32 0.0, %v2512
      %v2514 = vpop.f32.mrb[0].mxu0
      %2515 = vmatprep.mubr.f32.mxu0 0.0
      %2516 = vmatmul.mubr.f32.gmra.mrb[0].mxu0 %v2308
      %v2517 = vpop.f32.mrb[0].mxu0
      %v2518 = vadd.f32 0.0, %v2517
      %v2519 = vpop.f32.mrb[0].mxu0
      %2520 = vmatprep.mubr.f32.mxu0 0.0
      %2521 = vmatmul.mubr.f32.gmra.mrb[0].mxu0 %v2311
      %v2522 = vpop.f32.mrb[0].mxu0
      %v2523 = vadd.f32 0.0, %v2522
      %v2524 = vpop.f32.mrb[0].mxu0
      %2525 = vmatprep.mubr.f32.mxu0 0.0
      %2526 = vmatmul.mubr.f32.gmra.mrb[0].mxu0 %v2314
      %v2527 = vpop.f32.mrb[0].mxu0
      %v2528 = vadd.f32 0.0, %v2527
      %v2529 = vpop.f32.mrb[0].mxu0
      %2530 = vmatprep.mubr.f32.mxu0 0.0
      %2531 = vmatmul.mubr.f32.gmra.mrb[0].mxu0 %v2317
      %v2532 = vpop.f32.mrb[0].mxu0
      %v2533 = vadd.f32 0.0, %v2532
      %v2534 = vpop.f32.mrb[0].mxu0
      %2535 = vmatprep.mubr.f32.mxu0 0.0
      %2536 = vmatmul.mubr.f32.gmra.mrb[0].mxu0 %v2320
      %v2537 = vpop.f32.mrb[0].mxu0
      %v2538 = vadd.f32 0.0, %v2537
      %v2539 = vpop.f32.mrb[0].mxu0
      %2540 = vmatprep.mubr.f32.mxu0 0.0
      %2541 = vmatmul.mubr.f32.gmra.mrb[0].mxu0 %v2323
      %v2542 = vpop.f32.mrb[0].mxu0
      %v2543 = vadd.f32 0.0, %v2542
      %v2544 = vpop.f32.mrb[0].mxu0
      %2545 = vmatprep.mubr.f32.mxu0 0.0
      %2546 = vmatmul.mubr.f32.gmra.mrb[0].mxu0 %v2326
      %v2547 = vpop.f32.mrb[0].mxu0
      %v2548 = vadd.f32 0.0, %v2547
      %v2549 = vpop.f32.mrb[0].mxu0
      %2550 = vmatprep.mubr.f32.mxu0 0.0
      %2551 = vmatmul.mubr.f32.gmra.mrb[0].mxu0 %v2329
      %v2552 = vpop.f32.mrb[0].mxu0
      %v2553 = vadd.f32 0.0, %v2552
      %v2554 = vpop.f32.mrb[0].mxu0
      %2555 = vmatprep.mubr.f32.mxu0 0.0
      %2556 = vmatmul.mubr.f32.gmra.mrb[0].mxu0 %v2332
      %v2557 = vpop.f32.mrb[0].mxu0
      %v2558 = vadd.f32 0.0, %v2557
      %v2559 = vpop.f32.mrb[0].mxu0
      %2560 = vmatprep.mubr.f32.mxu0 0.0
      %2561 = vmatmul.mubr.f32.gmra.mrb[0].mxu0 %v2335
      %v2562 = vpop.f32.mrb[0].mxu0
      %v2563 = vadd.f32 0.0, %v2562
      %v2564 = vpop.f32.mrb[0].mxu0
      %2565 = vmatprep.mubr.f32.mxu0 0.0
      %2566 = vmatmul.mubr.f32.gmra.mrb[0].mxu0 %v2338
      %v2567 = vpop.f32.mrb[0].mxu0
      %v2568 = vadd.f32 0.0, %v2567
      %v2569 = vpop.f32.mrb[0].mxu0
      %2570 = vmatprep.mubr.f32.mxu0 0.0
      %2571 = vmatmul.mubr.f32.gmra.mrb[0].mxu0 %v2341
      %v2572 = vpop.f32.mrb[0].mxu0
      %v2573 = vadd.f32 0.0, %v2572
      %v2574 = vpop.f32.mrb[0].mxu0
      %2575 = vmatprep.mubr.f32.mxu0 0.0
      %2576 = vmatmul.mubr.f32.gmra.mrb[0].mxu0 %v2344
      %v2577 = vpop.f32.mrb[0].mxu0
      %v2578 = vadd.f32 0.0, %v2577
      %v2579 = vpop.f32.mrb[0].mxu0
      %2580 = vmatprep.mubr.f32.mxu0 0.0
      %2581 = vmatmul.mubr.f32.gmra.mrb[0].mxu0 %v2347
      %v2582 = vpop.f32.mrb[0].mxu0
      %v2583 = vadd.f32 0.0, %v2582
      %v2584 = vpop.f32.mrb[0].mxu0
      %2585 = vmatprep.mubr.f32.mxu0 0.0
      %2586 = vmatmul.mubr.f32.gmra.mrb[0].mxu0 %v2350
      %v2587 = vpop.f32.mrb[0].mxu0
      %v2588 = vadd.f32 0.0, %v2587
      %v2589 = vpop.f32.mrb[0].mxu0
      %2590 = vmatprep.mubr.f32.mxu0 0.0
      %2591 = vmatmul.mubr.f32.gmra.mrb[0].mxu0 %v2353
      %v2592 = vpop.f32.mrb[0].mxu0
      %v2593 = vadd.f32 0.0, %v2592
      %v2594 = vpop.f32.mrb[0].mxu0
      %2595 = vmatprep.mubr.f32.mxu0 0.0
      %2596 = vmatmul.mubr.f32.gmra.mrb[0].mxu0 %v2356
      %v2597 = vpop.f32.mrb[0].mxu0
      %v2598 = vadd.f32 0.0, %v2597
      %v2599 = vpop.f32.mrb[0].mxu0
      %2600 = vmatprep.mubr.f32.mxu0 0.0
      %2601 = vmatmul.mubr.f32.gmra.mrb[0].mxu0 %v2359
      %v2602 = vpop.f32.mrb[0].mxu0
      %v2603 = vadd.f32 0.0, %v2602
      %v2604 = vpop.f32.mrb[0].mxu0
      %2605 = vmatprep.mubr.f32.mxu0 0.0
      %2606 = vmatmul.mubr.f32.gmra.mrb[0].mxu0 %v2362
      %v2607 = vpop.f32.mrb[0].mxu0
      %v2608 = vadd.f32 0.0, %v2607
      %v2609 = vpop.f32.mrb[0].mxu0
      %2610 = vmatprep.mubr.f32.mxu0 0.0
      %2611 = vmatmul.mubr.f32.gmra.mrb[0].mxu0 %v2365
      %v2612 = vpop.f32.mrb[0].mxu0
      %v2613 = vadd.f32 0.0, %v2612
      %v2614 = vpop.f32.mrb[0].mxu0
      %2615 = vmatprep.mubr.f32.mxu0 0.0
      %2616 = vmatmul.mubr.f32.gmra.mrb[0].mxu0 %v2368
      %v2617 = vpop.f32.mrb[0].mxu0
      %v2618 = vadd.f32 0.0, %v2617
      %v2619 = vpop.f32.mrb[0].mxu0
      %2620 = vmatprep.mubr.f32.mxu0 0.0
      %2621 = vmatmul.mubr.f32.gmra.mrb[0].mxu0 %v2371
      %v2622 = vpop.f32.mrb[0].mxu0
      %v2623 = vadd.f32 0.0, %v2622
      %v2624 = vpop.f32.mrb[0].mxu0
      %2625 = vmatprep.mubr.f32.mxu0 0.0
      %2626 = vmatmul.mubr.f32.gmra.mrb[0].mxu0 %v2374
      %v2627 = vpop.f32.mrb[0].mxu0
      %v2628 = vadd.f32 0.0, %v2627
      %v2629 = vpop.f32.mrb[0].mxu0
      %2630 = vmatprep.mubr.f32.mxu0 0.0
      %2631 = vmatmul.mubr.f32.gmra.mrb[0].mxu0 %v2377
      %v2632 = vpop.f32.mrb[0].mxu0
      %v2633 = vadd.f32 0.0, %v2632
      %v2634 = vpop.f32.mrb[0].mxu0
      %2635 = vmatprep.mubr.f32.mxu0 0.0
      %2636 = vmatmul.mubr.f32.gmra.mrb[0].mxu0 %v2380
      %v2637 = vpop.f32.mrb[0].mxu0
      %v2638 = vadd.f32 0.0, %v2637
      %v2639 = vpop.f32.mrb[0].mxu0
      %2640 = vmatprep.mubr.f32.mxu0 0.0
      %2641 = vmatmul.mubr.f32.gmra.mrb[0].mxu0 %v2383
      %v2642 = vpop.f32.mrb[0].mxu0
      %v2643 = vadd.f32 0.0, %v2642
      %v2644 = vpop.f32.mrb[0].mxu0
      %2645 = vmatprep.mubr.f32.mxu0 0.0
      %2646 = vmatmul.mubr.f32.gmra.mrb[0].mxu0 %v2386
      %v2647 = vpop.f32.mrb[0].mxu0
      %v2648 = vadd.f32 0.0, %v2647
      %v2649 = vpop.f32.mrb[0].mxu0
      %2650 = vmatprep.mubr.f32.mxu0 0.0
      %2651 = vmatmul.mubr.f32.gmra.mrb[0].mxu0 %v2389
      %v2652 = vpop.f32.mrb[0].mxu0
      %v2653 = vadd.f32 0.0, %v2652
      %v2654 = vpop.f32.mrb[0].mxu0
      %2655 = vmatprep.mubr.f32.mxu0 0.0
      %2656 = vmatmul.mubr.f32.gmra.mrb[0].mxu0 %v2392
      %v2657 = vpop.f32.mrb[0].mxu0
      %v2658 = vadd.f32 0.0, %v2657
      %v2659 = vpop.f32.mrb[0].mxu0
      %2660 = vmatprep.mubr.f32.mxu0 0.0
      %2661 = vmatmul.mubr.f32.gmra.mrb[0].mxu0 %v2395
      %v2662 = vpop.f32.mrb[0].mxu0
      %v2663 = vadd.f32 0.0, %v2662
      %v2664 = vpop.f32.mrb[0].mxu0
      %2665 = vmatprep.mubr.f32.mxu0 0.0
      %2666 = vmatmul.mubr.f32.gmra.mrb[0].mxu0 %v2398
      %v2667 = vpop.f32.mrb[0].mxu0
      %v2668 = vadd.f32 0.0, %v2667
      %v2669 = vpop.f32.mrb[0].mxu0
      %2670 = vmatprep.mubr.f32.mxu0 0.0
      %2671 = vmatmul.mubr.f32.gmra.mrb[0].mxu0 %v2401
      %v2672 = vpop.f32.mrb[0].mxu0
      %v2673 = vadd.f32 0.0, %v2672
      %v2674 = vpop.f32.mrb[0].mxu0
      %2675 = vdwg.mxu0
      %v2676 = vadd.f32 %v2035, %v2473
      %v2677 = vadd.f32 %v2040, %v2478
      %v2678 = vadd.f32 %v2045, %v2483
      %v2679 = vadd.f32 %v2050, %v2488
      %v2680 = vadd.f32 %v2055, %v2493
      %v2681 = vadd.f32 %v2060, %v2498
      %v2682 = vadd.f32 %v2065, %v2503
      %v2683 = vadd.f32 %v2070, %v2508
      %v2684 = vadd.f32 %v2075, %v2513
      %v2685 = vadd.f32 %v2080, %v2518
      %v2686 = vadd.f32 %v2085, %v2523
      %v2687 = vadd.f32 %v2090, %v2528
      %v2688 = vadd.f32 %v2095, %v2533
      %v2689 = vadd.f32 %v2100, %v2538
      %v2690 = vadd.f32 %v2105, %v2543
      %v2691 = vadd.f32 %v2110, %v2548
      %v2692 = vadd.f32 %v2115, %v2553
      %v2693 = vadd.f32 %v2120, %v2558
      %v2694 = vadd.f32 %v2125, %v2563
      %v2695 = vadd.f32 %v2130, %v2568
      %v2696 = vadd.f32 %v2135, %v2573
      %v2697 = vadd.f32 %v2140, %v2578
      %v2698 = vadd.f32 %v2145, %v2583
      %v2699 = vadd.f32 %v2150, %v2588
      %v2700 = vadd.f32 %v2155, %v2593
      %v2701 = vadd.f32 %v2160, %v2598
      %v2702 = vadd.f32 %v2165, %v2603
      %v2703 = vadd.f32 %v2170, %v2608
      %v2704 = vadd.f32 %v2175, %v2613
      %v2705 = vadd.f32 %v2180, %v2618
      %v2706 = vadd.f32 %v2185, %v2623
      %v2707 = vadd.f32 %v2190, %v2628
      %v2708 = vadd.f32 %v2195, %v2633
      %v2709 = vadd.f32 %v2200, %v2638
      %v2710 = vadd.f32 %v2205, %v2643
      %v2711 = vadd.f32 %v2210, %v2648
      %v2712 = vadd.f32 %v2215, %v2653
      %v2713 = vadd.f32 %v2220, %v2658
      %v2714 = vadd.f32 %v2225, %v2663
      %v2715 = vadd.f32 %v2230, %v2668
      %v2716 = vadd.f32 %v2235, %v2673
      %v2717 = vld [vmem:[#allocation2 + $0x12] sm:$0xff]
      %v2718 = vld [vmem:[#allocation2 + $0x1a] sm:$0xff]
      %v2719 = vld [vmem:[#allocation2 + $0x22] sm:$0xff]
      %v2720 = vld [vmem:[#allocation2 + $0x2a] sm:$0xff]
      %v2721 = vld [vmem:[#allocation2 + $0x32] sm:$0xff]
      %v2722 = vld [vmem:[#allocation2 + $0x3a] sm:$0xff]
      %v2723 = vld [vmem:[#allocation2 + $0x42] sm:$0xff]
      %v2724 = vld [vmem:[#allocation2 + $0x4a] sm:$0xff]
      %v2725 = vld [vmem:[#allocation2 + $0x52] sm:$0xff]
      %v2726 = vld [vmem:[#allocation2 + $0x5a] sm:$0xff]
      %v2727 = vld [vmem:[#allocation2 + $0x62] sm:$0xff]
      %v2728 = vld [vmem:[#allocation2 + $0x6a] sm:$0xff]
      %v2729 = vld [vmem:[#allocation2 + $0x72] sm:$0xff]
      %v2730 = vld [vmem:[#allocation2 + $0x7a] sm:$0xff]
      %v2731 = vld [vmem:[#allocation2 + $0x82] sm:$0xff]
      %v2732 = vld [vmem:[#allocation2 + $0x8a] sm:$0xff]
      %v2733 = vld [vmem:[#allocation2 + $0x92] sm:$0xff]
      %v2734 = vld [vmem:[#allocation2 + $0x9a] sm:$0xff]
      %v2735 = vld [vmem:[#allocation2 + $0xa2] sm:$0xff]
      %v2736 = vld [vmem:[#allocation2 + $0xaa] sm:$0xff]
      %v2737 = vld [vmem:[#allocation2 + $0xb2] sm:$0xff]
      %v2738 = vld [vmem:[#allocation2 + $0xba] sm:$0xff]
      %v2739 = vld [vmem:[#allocation2 + $0xc2] sm:$0xff]
      %v2740 = vld [vmem:[#allocation2 + $0xca] sm:$0xff]
      %v2741 = vld [vmem:[#allocation2 + $0xd2] sm:$0xff]
      %v2742 = vld [vmem:[#allocation2 + $0xda] sm:$0xff]
      %v2743 = vld [vmem:[#allocation2 + $0xe2] sm:$0xff]
      %v2744 = vld [vmem:[#allocation2 + $0xea] sm:$0xff]
      %v2745 = vld [vmem:[#allocation2 + $0xf2] sm:$0xff]
      %v2746 = vld [vmem:[#allocation2 + $0xfa] sm:$0xff]
      %v2747 = vld [vmem:[#allocation2 + $0x102] sm:$0xff]
      %v2748 = vld [vmem:[#allocation2 + $0x10a] sm:$0xff]
      %v2749 = vld [vmem:[#allocation2 + $0x112] sm:$0xff]
      %v2750 = vld [vmem:[#allocation2 + $0x11a] sm:$0xff]
      %v2751 = vld [vmem:[#allocation2 + $0x122] sm:$0xff]
      %v2752 = vld [vmem:[#allocation2 + $0x12a] sm:$0xff]
      %v2753 = vld [vmem:[#allocation2 + $0x132] sm:$0xff]
      %v2754 = vld [vmem:[#allocation2 + $0x13a] sm:$0xff]
      %v2755 = vld [vmem:[#allocation2 + $0x142] sm:$0xff]
      %v2756 = vld [vmem:[#allocation2 + $0x14a] sm:$0xff]
      %v2757 = vld [vmem:[#allocation2 + $0x152] sm:$0xf]
      %v2758 = vld [vmem:[%s4 + $0xc] sm:$0xf]
      %v2760 = vsel %vm301, %v2717, 0
      %v2763 = vsel %vm301, %v2718, 0
      %v2766 = vsel %vm301, %v2719, 0
      %v2769 = vsel %vm301, %v2720, 0
      %v2772 = vsel %vm301, %v2721, 0
      %v2775 = vsel %vm301, %v2722, 0
      %v2778 = vsel %vm301, %v2723, 0
      %v2781 = vsel %vm301, %v2724, 0
      %v2784 = vsel %vm301, %v2725, 0
      %v2787 = vsel %vm301, %v2726, 0
      %v2790 = vsel %vm301, %v2727, 0
      %v2793 = vsel %vm301, %v2728, 0
      %v2796 = vsel %vm301, %v2729, 0
      %v2799 = vsel %vm301, %v2730, 0
      %v2802 = vsel %vm301, %v2731, 0
      %v2805 = vsel %vm301, %v2732, 0
      %v2808 = vsel %vm301, %v2733, 0
      %v2811 = vsel %vm301, %v2734, 0
      %v2814 = vsel %vm301, %v2735, 0
      %v2817 = vsel %vm301, %v2736, 0
      %v2820 = vsel %vm301, %v2737, 0
      %v2823 = vsel %vm301, %v2738, 0
      %v2826 = vsel %vm301, %v2739, 0
      %v2829 = vsel %vm301, %v2740, 0
      %v2832 = vsel %vm301, %v2741, 0
      %v2835 = vsel %vm301, %v2742, 0
      %v2838 = vsel %vm301, %v2743, 0
      %v2841 = vsel %vm301, %v2744, 0
      %v2844 = vsel %vm301, %v2745, 0
      %v2847 = vsel %vm301, %v2746, 0
      %v2850 = vsel %vm301, %v2747, 0
      %v2853 = vsel %vm301, %v2748, 0
      %v2856 = vsel %vm301, %v2749, 0
      %v2859 = vsel %vm301, %v2750, 0
      %v2862 = vsel %vm301, %v2751, 0
      %v2865 = vsel %vm301, %v2752, 0
      %v2868 = vsel %vm301, %v2753, 0
      %v2871 = vsel %vm301, %v2754, 0
      %v2874 = vsel %vm301, %v2755, 0
      %v2877 = vsel %vm301, %v2756, 0
      %v2880 = vsel %vm301, %v2757, 0
      %v2883 = vsel %vm425, %v2758, 0
      %2885 = vmatprep.subr.mxu0 0.0
      %2886 = vmatpush1.msra.mxu0 %v2883
      %2887 = vmatprep.subr.mxu0 0.0
      %2888 = vmatpush1.msra.mxu0 0.0
      %2889 = vmatprep.subr.mxu0 0.0
      %2890 = vmatpush1.msra.mxu0 0.0
      %2891 = vmatprep.subr.mxu0 0.0
      %2892 = vmatpush1.msra.mxu0 0.0
      %2893 = vmatprep.subr.mxu0 0.0
      %2894 = vmatpush1.msra.mxu0 0.0
      %2895 = vmatprep.subr.mxu0 0.0
      %2896 = vmatpush1.msra.mxu0 0.0
      %2897 = vmatprep.subr.mxu0 0.0
      %2898 = vmatpush1.msra.mxu0 0.0
      %2899 = vmatprep.subr.mxu0 0.0
      %2900 = vmatpush1.msra.mxu0 0.0
      %2901 = vmatprep.subr.mxu0 0.0
      %2902 = vmatpush1.msra.mxu0 0.0
      %2903 = vmatprep.subr.mxu0 0.0
      %2904 = vmatpush1.msra.mxu0 0.0
      %2905 = vmatprep.subr.mxu0 0.0
      %2906 = vmatpush1.msra.mxu0 0.0
      %2907 = vmatprep.subr.mxu0 0.0
      %2908 = vmatpush1.msra.mxu0 0.0
      %2909 = vmatprep.subr.mxu0 0.0
      %2910 = vmatpush1.msra.mxu0 0.0
      %2911 = vmatprep.subr.mxu0 0.0
      %2912 = vmatpush1.msra.mxu0 0.0
      %2913 = vmatprep.subr.mxu0 0.0
      %2914 = vmatpush1.msra.mxu0 0.0
      %2915 = vmatprep.subr.mxu0 0.0
      %2916 = vmatpush1.msra.mxu0 0.0
      %2917 = vmatprep.subr.mxu0 0.0
      %2918 = vmatpush1.msra.mxu0 0.0
      %2919 = vmatprep.subr.mxu0 0.0
      %2920 = vmatpush1.msra.mxu0 0.0
      %2921 = vmatprep.subr.mxu0 0.0
      %2922 = vmatpush1.msra.mxu0 0.0
      %2923 = vmatprep.subr.mxu0 0.0
      %2924 = vmatpush1.msra.mxu0 0.0
      %2925 = vmatprep.subr.mxu0 0.0
      %2926 = vmatpush1.msra.mxu0 0.0
      %2927 = vmatprep.subr.mxu0 0.0
      %2928 = vmatpush1.msra.mxu0 0.0
      %2929 = vmatprep.subr.mxu0 0.0
      %2930 = vmatpush1.msra.mxu0 0.0
      %2931 = vmatprep.subr.mxu0 0.0
      %2932 = vmatpush1.msra.mxu0 0.0
      %2933 = vmatprep.subr.mxu0 0.0
      %2934 = vmatpush1.msra.mxu0 0.0
      %2935 = vmatprep.subr.mxu0 0.0
      %2936 = vmatpush1.msra.mxu0 0.0
      %2937 = vmatprep.subr.mxu0 0.0
      %2938 = vmatpush1.msra.mxu0 0.0
      %2939 = vmatprep.subr.mxu0 0.0
      %2940 = vmatpush1.msra.mxu0 0.0
      %2941 = vmatprep.subr.mxu0 0.0
      %2942 = vmatpush1.msra.mxu0 0.0
      %2943 = vmatprep.subr.mxu0 0.0
      %2944 = vmatpush1.msra.mxu0 0.0
      %2945 = vmatprep.subr.mxu0 0.0
      %2946 = vmatpush1.msra.mxu0 0.0
      %2947 = vmatprep.subr.mxu0 0.0
      %2948 = vmatpush1.msra.mxu0 0.0
      %2949 = vmatprep.mubr.f32.mxu0 0.0
      %2950 = vmatmul.mubr.f32.gmra.mrb[0].mxu0 %v2760
      %v2951 = vpop.f32.mrb[0].mxu0
      %v2952 = vadd.f32 0.0, %v2951
      %v2953 = vpop.f32.mrb[0].mxu0
      %2954 = vmatprep.mubr.f32.mxu0 0.0
      %2955 = vmatmul.mubr.f32.gmra.mrb[0].mxu0 %v2763
      %v2956 = vpop.f32.mrb[0].mxu0
      %v2957 = vadd.f32 0.0, %v2956
      %v2958 = vpop.f32.mrb[0].mxu0
      %2959 = vmatprep.mubr.f32.mxu0 0.0
      %2960 = vmatmul.mubr.f32.gmra.mrb[0].mxu0 %v2766
      %v2961 = vpop.f32.mrb[0].mxu0
      %v2962 = vadd.f32 0.0, %v2961
      %v2963 = vpop.f32.mrb[0].mxu0
      %2964 = vmatprep.mubr.f32.mxu0 0.0
      %2965 = vmatmul.mubr.f32.gmra.mrb[0].mxu0 %v2769
      %v2966 = vpop.f32.mrb[0].mxu0
      %v2967 = vadd.f32 0.0, %v2966
      %v2968 = vpop.f32.mrb[0].mxu0
      %2969 = vmatprep.mubr.f32.mxu0 0.0
      %2970 = vmatmul.mubr.f32.gmra.mrb[0].mxu0 %v2772
      %v2971 = vpop.f32.mrb[0].mxu0
      %v2972 = vadd.f32 0.0, %v2971
      %v2973 = vpop.f32.mrb[0].mxu0
      %2974 = vmatprep.mubr.f32.mxu0 0.0
      %2975 = vmatmul.mubr.f32.gmra.mrb[0].mxu0 %v2775
      %v2976 = vpop.f32.mrb[0].mxu0
      %v2977 = vadd.f32 0.0, %v2976
      %v2978 = vpop.f32.mrb[0].mxu0
      %2979 = vmatprep.mubr.f32.mxu0 0.0
      %2980 = vmatmul.mubr.f32.gmra.mrb[0].mxu0 %v2778
      %v2981 = vpop.f32.mrb[0].mxu0
      %v2982 = vadd.f32 0.0, %v2981
      %v2983 = vpop.f32.mrb[0].mxu0
      %2984 = vmatprep.mubr.f32.mxu0 0.0
      %2985 = vmatmul.mubr.f32.gmra.mrb[0].mxu0 %v2781
      %v2986 = vpop.f32.mrb[0].mxu0
      %v2987 = vadd.f32 0.0, %v2986
      %v2988 = vpop.f32.mrb[0].mxu0
      %2989 = vmatprep.mubr.f32.mxu0 0.0
      %2990 = vmatmul.mubr.f32.gmra.mrb[0].mxu0 %v2784
      %v2991 = vpop.f32.mrb[0].mxu0
      %v2992 = vadd.f32 0.0, %v2991
      %v2993 = vpop.f32.mrb[0].mxu0
      %2994 = vmatprep.mubr.f32.mxu0 0.0
      %2995 = vmatmul.mubr.f32.gmra.mrb[0].mxu0 %v2787
      %v2996 = vpop.f32.mrb[0].mxu0
      %v2997 = vadd.f32 0.0, %v2996
      %v2998 = vpop.f32.mrb[0].mxu0
      %2999 = vmatprep.mubr.f32.mxu0 0.0
      %3000 = vmatmul.mubr.f32.gmra.mrb[0].mxu0 %v2790
      %v3001 = vpop.f32.mrb[0].mxu0
      %v3002 = vadd.f32 0.0, %v3001
      %v3003 = vpop.f32.mrb[0].mxu0
      %3004 = vmatprep.mubr.f32.mxu0 0.0
      %3005 = vmatmul.mubr.f32.gmra.mrb[0].mxu0 %v2793
      %v3006 = vpop.f32.mrb[0].mxu0
      %v3007 = vadd.f32 0.0, %v3006
      %v3008 = vpop.f32.mrb[0].mxu0
      %3009 = vmatprep.mubr.f32.mxu0 0.0
      %3010 = vmatmul.mubr.f32.gmra.mrb[0].mxu0 %v2796
      %v3011 = vpop.f32.mrb[0].mxu0
      %v3012 = vadd.f32 0.0, %v3011
      %v3013 = vpop.f32.mrb[0].mxu0
      %3014 = vmatprep.mubr.f32.mxu0 0.0
      %3015 = vmatmul.mubr.f32.gmra.mrb[0].mxu0 %v2799
      %v3016 = vpop.f32.mrb[0].mxu0
      %v3017 = vadd.f32 0.0, %v3016
      %v3018 = vpop.f32.mrb[0].mxu0
      %3019 = vmatprep.mubr.f32.mxu0 0.0
      %3020 = vmatmul.mubr.f32.gmra.mrb[0].mxu0 %v2802
      %v3021 = vpop.f32.mrb[0].mxu0
      %v3022 = vadd.f32 0.0, %v3021
      %v3023 = vpop.f32.mrb[0].mxu0
      %3024 = vmatprep.mubr.f32.mxu0 0.0
      %3025 = vmatmul.mubr.f32.gmra.mrb[0].mxu0 %v2805
      %v3026 = vpop.f32.mrb[0].mxu0
      %v3027 = vadd.f32 0.0, %v3026
      %v3028 = vpop.f32.mrb[0].mxu0
      %3029 = vmatprep.mubr.f32.mxu0 0.0
      %3030 = vmatmul.mubr.f32.gmra.mrb[0].mxu0 %v2808
      %v3031 = vpop.f32.mrb[0].mxu0
      %v3032 = vadd.f32 0.0, %v3031
      %v3033 = vpop.f32.mrb[0].mxu0
      %3034 = vmatprep.mubr.f32.mxu0 0.0
      %3035 = vmatmul.mubr.f32.gmra.mrb[0].mxu0 %v2811
      %v3036 = vpop.f32.mrb[0].mxu0
      %v3037 = vadd.f32 0.0, %v3036
      %v3038 = vpop.f32.mrb[0].mxu0
      %3039 = vmatprep.mubr.f32.mxu0 0.0
      %3040 = vmatmul.mubr.f32.gmra.mrb[0].mxu0 %v2814
      %v3041 = vpop.f32.mrb[0].mxu0
      %v3042 = vadd.f32 0.0, %v3041
      %v3043 = vpop.f32.mrb[0].mxu0
      %3044 = vmatprep.mubr.f32.mxu0 0.0
      %3045 = vmatmul.mubr.f32.gmra.mrb[0].mxu0 %v2817
      %v3046 = vpop.f32.mrb[0].mxu0
      %v3047 = vadd.f32 0.0, %v3046
      %v3048 = vpop.f32.mrb[0].mxu0
      %3049 = vmatprep.mubr.f32.mxu0 0.0
      %3050 = vmatmul.mubr.f32.gmra.mrb[0].mxu0 %v2820
      %v3051 = vpop.f32.mrb[0].mxu0
      %v3052 = vadd.f32 0.0, %v3051
      %v3053 = vpop.f32.mrb[0].mxu0
      %3054 = vmatprep.mubr.f32.mxu0 0.0
      %3055 = vmatmul.mubr.f32.gmra.mrb[0].mxu0 %v2823
      %v3056 = vpop.f32.mrb[0].mxu0
      %v3057 = vadd.f32 0.0, %v3056
      %v3058 = vpop.f32.mrb[0].mxu0
      %3059 = vmatprep.mubr.f32.mxu0 0.0
      %3060 = vmatmul.mubr.f32.gmra.mrb[0].mxu0 %v2826
      %v3061 = vpop.f32.mrb[0].mxu0
      %v3062 = vadd.f32 0.0, %v3061
      %v3063 = vpop.f32.mrb[0].mxu0
      %3064 = vmatprep.mubr.f32.mxu0 0.0
      %3065 = vmatmul.mubr.f32.gmra.mrb[0].mxu0 %v2829
      %v3066 = vpop.f32.mrb[0].mxu0
      %v3067 = vadd.f32 0.0, %v3066
      %v3068 = vpop.f32.mrb[0].mxu0
      %3069 = vmatprep.mubr.f32.mxu0 0.0
      %3070 = vmatmul.mubr.f32.gmra.mrb[0].mxu0 %v2832
      %v3071 = vpop.f32.mrb[0].mxu0
      %v3072 = vadd.f32 0.0, %v3071
      %v3073 = vpop.f32.mrb[0].mxu0
      %3074 = vmatprep.mubr.f32.mxu0 0.0
      %3075 = vmatmul.mubr.f32.gmra.mrb[0].mxu0 %v2835
      %v3076 = vpop.f32.mrb[0].mxu0
      %v3077 = vadd.f32 0.0, %v3076
      %v3078 = vpop.f32.mrb[0].mxu0
      %3079 = vmatprep.mubr.f32.mxu0 0.0
      %3080 = vmatmul.mubr.f32.gmra.mrb[0].mxu0 %v2838
      %v3081 = vpop.f32.mrb[0].mxu0
      %v3082 = vadd.f32 0.0, %v3081
      %v3083 = vpop.f32.mrb[0].mxu0
      %3084 = vmatprep.mubr.f32.mxu0 0.0
      %3085 = vmatmul.mubr.f32.gmra.mrb[0].mxu0 %v2841
      %v3086 = vpop.f32.mrb[0].mxu0
      %v3087 = vadd.f32 0.0, %v3086
      %v3088 = vpop.f32.mrb[0].mxu0
      %3089 = vmatprep.mubr.f32.mxu0 0.0
      %3090 = vmatmul.mubr.f32.gmra.mrb[0].mxu0 %v2844
      %v3091 = vpop.f32.mrb[0].mxu0
      %v3092 = vadd.f32 0.0, %v3091
      %v3093 = vpop.f32.mrb[0].mxu0
      %3094 = vmatprep.mubr.f32.mxu0 0.0
      %3095 = vmatmul.mubr.f32.gmra.mrb[0].mxu0 %v2847
      %v3096 = vpop.f32.mrb[0].mxu0
      %v3097 = vadd.f32 0.0, %v3096
      %v3098 = vpop.f32.mrb[0].mxu0
      %3099 = vmatprep.mubr.f32.mxu0 0.0
      %3100 = vmatmul.mubr.f32.gmra.mrb[0].mxu0 %v2850
      %v3101 = vpop.f32.mrb[0].mxu0
      %v3102 = vadd.f32 0.0, %v3101
      %v3103 = vpop.f32.mrb[0].mxu0
      %3104 = vmatprep.mubr.f32.mxu0 0.0
      %3105 = vmatmul.mubr.f32.gmra.mrb[0].mxu0 %v2853
      %v3106 = vpop.f32.mrb[0].mxu0
      %v3107 = vadd.f32 0.0, %v3106
      %v3108 = vpop.f32.mrb[0].mxu0
      %3109 = vmatprep.mubr.f32.mxu0 0.0
      %3110 = vmatmul.mubr.f32.gmra.mrb[0].mxu0 %v2856
      %v3111 = vpop.f32.mrb[0].mxu0
      %v3112 = vadd.f32 0.0, %v3111
      %v3113 = vpop.f32.mrb[0].mxu0
      %3114 = vmatprep.mubr.f32.mxu0 0.0
      %3115 = vmatmul.mubr.f32.gmra.mrb[0].mxu0 %v2859
      %v3116 = vpop.f32.mrb[0].mxu0
      %v3117 = vadd.f32 0.0, %v3116
      %v3118 = vpop.f32.mrb[0].mxu0
      %3119 = vmatprep.mubr.f32.mxu0 0.0
      %3120 = vmatmul.mubr.f32.gmra.mrb[0].mxu0 %v2862
      %v3121 = vpop.f32.mrb[0].mxu0
      %v3122 = vadd.f32 0.0, %v3121
      %v3123 = vpop.f32.mrb[0].mxu0
      %3124 = vmatprep.mubr.f32.mxu0 0.0
      %3125 = vmatmul.mubr.f32.gmra.mrb[0].mxu0 %v2865
      %v3126 = vpop.f32.mrb[0].mxu0
      %v3127 = vadd.f32 0.0, %v3126
      %v3128 = vpop.f32.mrb[0].mxu0
      %3129 = vmatprep.mubr.f32.mxu0 0.0
      %3130 = vmatmul.mubr.f32.gmra.mrb[0].mxu0 %v2868
      %v3131 = vpop.f32.mrb[0].mxu0
      %v3132 = vadd.f32 0.0, %v3131
      %v3133 = vpop.f32.mrb[0].mxu0
      %3134 = vmatprep.mubr.f32.mxu0 0.0
      %3135 = vmatmul.mubr.f32.gmra.mrb[0].mxu0 %v2871
      %v3136 = vpop.f32.mrb[0].mxu0
      %v3137 = vadd.f32 0.0, %v3136
      %v3138 = vpop.f32.mrb[0].mxu0
      %3139 = vmatprep.mubr.f32.mxu0 0.0
      %3140 = vmatmul.mubr.f32.gmra.mrb[0].mxu0 %v2874
      %v3141 = vpop.f32.mrb[0].mxu0
      %v3142 = vadd.f32 0.0, %v3141
      %v3143 = vpop.f32.mrb[0].mxu0
      %3144 = vmatprep.mubr.f32.mxu0 0.0
      %3145 = vmatmul.mubr.f32.gmra.mrb[0].mxu0 %v2877
      %v3146 = vpop.f32.mrb[0].mxu0
      %v3147 = vadd.f32 0.0, %v3146
      %v3148 = vpop.f32.mrb[0].mxu0
      %3149 = vmatprep.mubr.f32.mxu0 0.0
      %3150 = vmatmul.mubr.f32.gmra.mrb[0].mxu0 %v2880
      %v3151 = vpop.f32.mrb[0].mxu0
      %v3152 = vadd.f32 0.0, %v3151
      %v3153 = vpop.f32.mrb[0].mxu0
      %3154 = vdwg.mxu0
      %v3155 = vadd.f32 %v2676, %v2952
      %v3156 = vadd.f32 %v2677, %v2957
      %v3157 = vadd.f32 %v2678, %v2962
      %v3158 = vadd.f32 %v2679, %v2967
      %v3159 = vadd.f32 %v2680, %v2972
      %v3160 = vadd.f32 %v2681, %v2977
      %v3161 = vadd.f32 %v2682, %v2982
      %v3162 = vadd.f32 %v2683, %v2987
      %v3163 = vadd.f32 %v2684, %v2992
      %v3164 = vadd.f32 %v2685, %v2997
      %v3165 = vadd.f32 %v2686, %v3002
      %v3166 = vadd.f32 %v2687, %v3007
      %v3167 = vadd.f32 %v2688, %v3012
      %v3168 = vadd.f32 %v2689, %v3017
      %v3169 = vadd.f32 %v2690, %v3022
      %v3170 = vadd.f32 %v2691, %v3027
      %v3171 = vadd.f32 %v2692, %v3032
      %v3172 = vadd.f32 %v2693, %v3037
      %v3173 = vadd.f32 %v2694, %v3042
      %v3174 = vadd.f32 %v2695, %v3047
      %v3175 = vadd.f32 %v2696, %v3052
      %v3176 = vadd.f32 %v2697, %v3057
      %v3177 = vadd.f32 %v2698, %v3062
      %v3178 = vadd.f32 %v2699, %v3067
      %v3179 = vadd.f32 %v2700, %v3072
      %v3180 = vadd.f32 %v2701, %v3077
      %v3181 = vadd.f32 %v2702, %v3082
      %v3182 = vadd.f32 %v2703, %v3087
      %v3183 = vadd.f32 %v2704, %v3092
      %v3184 = vadd.f32 %v2705, %v3097
      %v3185 = vadd.f32 %v2706, %v3102
      %v3186 = vadd.f32 %v2707, %v3107
      %v3187 = vadd.f32 %v2708, %v3112
      %v3188 = vadd.f32 %v2709, %v3117
      %v3189 = vadd.f32 %v2710, %v3122
      %v3190 = vadd.f32 %v2711, %v3127
      %v3191 = vadd.f32 %v2712, %v3132
      %v3192 = vadd.f32 %v2713, %v3137
      %v3193 = vadd.f32 %v2714, %v3142
      %v3194 = vadd.f32 %v2715, %v3147
      %v3195 = vadd.f32 %v2716, %v3152
      %v3196 = vld [vmem:[#allocation2 + $0x13] sm:$0xff]
      %v3197 = vld [vmem:[#allocation2 + $0x1b] sm:$0xff]
      %v3198 = vld [vmem:[#allocation2 + $0x23] sm:$0xff]
      %v3199 = vld [vmem:[#allocation2 + $0x2b] sm:$0xff]
      %v3200 = vld [vmem:[#allocation2 + $0x33] sm:$0xff]
      %v3201 = vld [vmem:[#allocation2 + $0x3b] sm:$0xff]
      %v3202 = vld [vmem:[#allocation2 + $0x43] sm:$0xff]
      %v3203 = vld [vmem:[#allocation2 + $0x4b] sm:$0xff]
      %v3204 = vld [vmem:[#allocation2 + $0x53] sm:$0xff]
      %v3205 = vld [vmem:[#allocation2 + $0x5b] sm:$0xff]
      %v3206 = vld [vmem:[#allocation2 + $0x63] sm:$0xff]
      %v3207 = vld [vmem:[#allocation2 + $0x6b] sm:$0xff]
      %v3208 = vld [vmem:[#allocation2 + $0x73] sm:$0xff]
      %v3209 = vld [vmem:[#allocation2 + $0x7b] sm:$0xff]
      %v3210 = vld [vmem:[#allocation2 + $0x83] sm:$0xff]
      %v3211 = vld [vmem:[#allocation2 + $0x8b] sm:$0xff]
      %v3212 = vld [vmem:[#allocation2 + $0x93] sm:$0xff]
      %v3213 = vld [vmem:[#allocation2 + $0x9b] sm:$0xff]
      %v3214 = vld [vmem:[#allocation2 + $0xa3] sm:$0xff]
      %v3215 = vld [vmem:[#allocation2 + $0xab] sm:$0xff]
      %v3216 = vld [vmem:[#allocation2 + $0xb3] sm:$0xff]
      %v3217 = vld [vmem:[#allocation2 + $0xbb] sm:$0xff]
      %v3218 = vld [vmem:[#allocation2 + $0xc3] sm:$0xff]
      %v3219 = vld [vmem:[#allocation2 + $0xcb] sm:$0xff]
      %v3220 = vld [vmem:[#allocation2 + $0xd3] sm:$0xff]
      %v3221 = vld [vmem:[#allocation2 + $0xdb] sm:$0xff]
      %v3222 = vld [vmem:[#allocation2 + $0xe3] sm:$0xff]
      %v3223 = vld [vmem:[#allocation2 + $0xeb] sm:$0xff]
      %v3224 = vld [vmem:[#allocation2 + $0xf3] sm:$0xff]
      %v3225 = vld [vmem:[#allocation2 + $0xfb] sm:$0xff]
      %v3226 = vld [vmem:[#allocation2 + $0x103] sm:$0xff]
      %v3227 = vld [vmem:[#allocation2 + $0x10b] sm:$0xff]
      %v3228 = vld [vmem:[#allocation2 + $0x113] sm:$0xff]
      %v3229 = vld [vmem:[#allocation2 + $0x11b] sm:$0xff]
      %v3230 = vld [vmem:[#allocation2 + $0x123] sm:$0xff]
      %v3231 = vld [vmem:[#allocation2 + $0x12b] sm:$0xff]
      %v3232 = vld [vmem:[#allocation2 + $0x133] sm:$0xff]
      %v3233 = vld [vmem:[#allocation2 + $0x13b] sm:$0xff]
      %v3234 = vld [vmem:[#allocation2 + $0x143] sm:$0xff]
      %v3235 = vld [vmem:[#allocation2 + $0x14b] sm:$0xff]
      %v3236 = vld [vmem:[#allocation2 + $0x153] sm:$0xf]
      %v3237 = vld [vmem:[%s4 + $0x10] sm:$0xf]
      %v3239 = vsel %vm301, %v3196, 0
      %v3242 = vsel %vm301, %v3197, 0
      %v3245 = vsel %vm301, %v3198, 0
      %v3248 = vsel %vm301, %v3199, 0
      %v3251 = vsel %vm301, %v3200, 0
      %v3254 = vsel %vm301, %v3201, 0
      %v3257 = vsel %vm301, %v3202, 0
      %v3260 = vsel %vm301, %v3203, 0
      %v3263 = vsel %vm301, %v3204, 0
      %v3266 = vsel %vm301, %v3205, 0
      %v3269 = vsel %vm301, %v3206, 0
      %v3272 = vsel %vm301, %v3207, 0
      %v3275 = vsel %vm301, %v3208, 0
      %v3278 = vsel %vm301, %v3209, 0
      %v3281 = vsel %vm301, %v3210, 0
      %v3284 = vsel %vm301, %v3211, 0
      %v3287 = vsel %vm301, %v3212, 0
      %v3290 = vsel %vm301, %v3213, 0
      %v3293 = vsel %vm301, %v3214, 0
      %v3296 = vsel %vm301, %v3215, 0
      %v3299 = vsel %vm301, %v3216, 0
      %v3302 = vsel %vm301, %v3217, 0
      %v3305 = vsel %vm301, %v3218, 0
      %v3308 = vsel %vm301, %v3219, 0
      %v3311 = vsel %vm301, %v3220, 0
      %v3314 = vsel %vm301, %v3221, 0
      %v3317 = vsel %vm301, %v3222, 0
      %v3320 = vsel %vm301, %v3223, 0
      %v3323 = vsel %vm301, %v3224, 0
      %v3326 = vsel %vm301, %v3225, 0
      %v3329 = vsel %vm301, %v3226, 0
      %v3332 = vsel %vm301, %v3227, 0
      %v3335 = vsel %vm301, %v3228, 0
      %v3338 = vsel %vm301, %v3229, 0
      %v3341 = vsel %vm301, %v3230, 0
      %v3344 = vsel %vm301, %v3231, 0
      %v3347 = vsel %vm301, %v3232, 0
      %v3350 = vsel %vm301, %v3233, 0
      %v3353 = vsel %vm301, %v3234, 0
      %v3356 = vsel %vm301, %v3235, 0
      %v3359 = vsel %vm301, %v3236, 0
      %v3362 = vsel %vm425, %v3237, 0
      %3364 = vmatprep.subr.mxu0 0.0
      %3365 = vmatpush1.msra.mxu0 %v3362
      %3366 = vmatprep.subr.mxu0 0.0
      %3367 = vmatpush1.msra.mxu0 0.0
      %3368 = vmatprep.subr.mxu0 0.0
      %3369 = vmatpush1.msra.mxu0 0.0
      %3370 = vmatprep.subr.mxu0 0.0
      %3371 = vmatpush1.msra.mxu0 0.0
      %3372 = vmatprep.subr.mxu0 0.0
      %3373 = vmatpush1.msra.mxu0 0.0
      %3374 = vmatprep.subr.mxu0 0.0
      %3375 = vmatpush1.msra.mxu0 0.0
      %3376 = vmatprep.subr.mxu0 0.0
      %3377 = vmatpush1.msra.mxu0 0.0
      %3378 = vmatprep.subr.mxu0 0.0
      %3379 = vmatpush1.msra.mxu0 0.0
      %3380 = vmatprep.subr.mxu0 0.0
      %3381 = vmatpush1.msra.mxu0 0.0
      %3382 = vmatprep.subr.mxu0 0.0
      %3383 = vmatpush1.msra.mxu0 0.0
      %3384 = vmatprep.subr.mxu0 0.0
      %3385 = vmatpush1.msra.mxu0 0.0
      %3386 = vmatprep.subr.mxu0 0.0
      %3387 = vmatpush1.msra.mxu0 0.0
      %3388 = vmatprep.subr.mxu0 0.0
      %3389 = vmatpush1.msra.mxu0 0.0
      %3390 = vmatprep.subr.mxu0 0.0
      %3391 = vmatpush1.msra.mxu0 0.0
      %3392 = vmatprep.subr.mxu0 0.0
      %3393 = vmatpush1.msra.mxu0 0.0
      %3394 = vmatprep.subr.mxu0 0.0
      %3395 = vmatpush1.msra.mxu0 0.0
      %3396 = vmatprep.subr.mxu0 0.0
      %3397 = vmatpush1.msra.mxu0 0.0
      %3398 = vmatprep.subr.mxu0 0.0
      %3399 = vmatpush1.msra.mxu0 0.0
      %3400 = vmatprep.subr.mxu0 0.0
      %3401 = vmatpush1.msra.mxu0 0.0
      %3402 = vmatprep.subr.mxu0 0.0
      %3403 = vmatpush1.msra.mxu0 0.0
      %3404 = vmatprep.subr.mxu0 0.0
      %3405 = vmatpush1.msra.mxu0 0.0
      %3406 = vmatprep.subr.mxu0 0.0
      %3407 = vmatpush1.msra.mxu0 0.0
      %3408 = vmatprep.subr.mxu0 0.0
      %3409 = vmatpush1.msra.mxu0 0.0
      %3410 = vmatprep.subr.mxu0 0.0
      %3411 = vmatpush1.msra.mxu0 0.0
      %3412 = vmatprep.subr.mxu0 0.0
      %3413 = vmatpush1.msra.mxu0 0.0
      %3414 = vmatprep.subr.mxu0 0.0
      %3415 = vmatpush1.msra.mxu0 0.0
      %3416 = vmatprep.subr.mxu0 0.0
      %3417 = vmatpush1.msra.mxu0 0.0
      %3418 = vmatprep.subr.mxu0 0.0
      %3419 = vmatpush1.msra.mxu0 0.0
      %3420 = vmatprep.subr.mxu0 0.0
      %3421 = vmatpush1.msra.mxu0 0.0
      %3422 = vmatprep.subr.mxu0 0.0
      %3423 = vmatpush1.msra.mxu0 0.0
      %3424 = vmatprep.subr.mxu0 0.0
      %3425 = vmatpush1.msra.mxu0 0.0
      %3426 = vmatprep.subr.mxu0 0.0
      %3427 = vmatpush1.msra.mxu0 0.0
      %3428 = vmatprep.mubr.f32.mxu0 0.0
      %3429 = vmatmul.mubr.f32.gmra.mrb[0].mxu0 %v3239
      %v3430 = vpop.f32.mrb[0].mxu0
      %v3431 = vadd.f32 0.0, %v3430
      %v3432 = vpop.f32.mrb[0].mxu0
      %3433 = vmatprep.mubr.f32.mxu0 0.0
      %3434 = vmatmul.mubr.f32.gmra.mrb[0].mxu0 %v3242
      %v3435 = vpop.f32.mrb[0].mxu0
      %v3436 = vadd.f32 0.0, %v3435
      %v3437 = vpop.f32.mrb[0].mxu0
      %3438 = vmatprep.mubr.f32.mxu0 0.0
      %3439 = vmatmul.mubr.f32.gmra.mrb[0].mxu0 %v3245
      %v3440 = vpop.f32.mrb[0].mxu0
      %v3441 = vadd.f32 0.0, %v3440
      %v3442 = vpop.f32.mrb[0].mxu0
      %3443 = vmatprep.mubr.f32.mxu0 0.0
      %3444 = vmatmul.mubr.f32.gmra.mrb[0].mxu0 %v3248
      %v3445 = vpop.f32.mrb[0].mxu0
      %v3446 = vadd.f32 0.0, %v3445
      %v3447 = vpop.f32.mrb[0].mxu0
      %3448 = vmatprep.mubr.f32.mxu0 0.0
      %3449 = vmatmul.mubr.f32.gmra.mrb[0].mxu0 %v3251
      %v3450 = vpop.f32.mrb[0].mxu0
      %v3451 = vadd.f32 0.0, %v3450
      %v3452 = vpop.f32.mrb[0].mxu0
      %3453 = vmatprep.mubr.f32.mxu0 0.0
      %3454 = vmatmul.mubr.f32.gmra.mrb[0].mxu0 %v3254
      %v3455 = vpop.f32.mrb[0].mxu0
      %v3456 = vadd.f32 0.0, %v3455
      %v3457 = vpop.f32.mrb[0].mxu0
      %3458 = vmatprep.mubr.f32.mxu0 0.0
      %3459 = vmatmul.mubr.f32.gmra.mrb[0].mxu0 %v3257
      %v3460 = vpop.f32.mrb[0].mxu0
      %v3461 = vadd.f32 0.0, %v3460
      %v3462 = vpop.f32.mrb[0].mxu0
      %3463 = vmatprep.mubr.f32.mxu0 0.0
      %3464 = vmatmul.mubr.f32.gmra.mrb[0].mxu0 %v3260
      %v3465 = vpop.f32.mrb[0].mxu0
      %v3466 = vadd.f32 0.0, %v3465
      %v3467 = vpop.f32.mrb[0].mxu0
      %3468 = vmatprep.mubr.f32.mxu0 0.0
      %3469 = vmatmul.mubr.f32.gmra.mrb[0].mxu0 %v3263
      %v3470 = vpop.f32.mrb[0].mxu0
      %v3471 = vadd.f32 0.0, %v3470
      %v3472 = vpop.f32.mrb[0].mxu0
      %3473 = vmatprep.mubr.f32.mxu0 0.0
      %3474 = vmatmul.mubr.f32.gmra.mrb[0].mxu0 %v3266
      %v3475 = vpop.f32.mrb[0].mxu0
      %v3476 = vadd.f32 0.0, %v3475
      %v3477 = vpop.f32.mrb[0].mxu0
      %3478 = vmatprep.mubr.f32.mxu0 0.0
      %3479 = vmatmul.mubr.f32.gmra.mrb[0].mxu0 %v3269
      %v3480 = vpop.f32.mrb[0].mxu0
      %v3481 = vadd.f32 0.0, %v3480
      %v3482 = vpop.f32.mrb[0].mxu0
      %3483 = vmatprep.mubr.f32.mxu0 0.0
      %3484 = vmatmul.mubr.f32.gmra.mrb[0].mxu0 %v3272
      %v3485 = vpop.f32.mrb[0].mxu0
      %v3486 = vadd.f32 0.0, %v3485
      %v3487 = vpop.f32.mrb[0].mxu0
      %3488 = vmatprep.mubr.f32.mxu0 0.0
      %3489 = vmatmul.mubr.f32.gmra.mrb[0].mxu0 %v3275
      %v3490 = vpop.f32.mrb[0].mxu0
      %v3491 = vadd.f32 0.0, %v3490
      %v3492 = vpop.f32.mrb[0].mxu0
      %3493 = vmatprep.mubr.f32.mxu0 0.0
      %3494 = vmatmul.mubr.f32.gmra.mrb[0].mxu0 %v3278
      %v3495 = vpop.f32.mrb[0].mxu0
      %v3496 = vadd.f32 0.0, %v3495
      %v3497 = vpop.f32.mrb[0].mxu0
      %3498 = vmatprep.mubr.f32.mxu0 0.0
      %3499 = vmatmul.mubr.f32.gmra.mrb[0].mxu0 %v3281
      %v3500 = vpop.f32.mrb[0].mxu0
      %v3501 = vadd.f32 0.0, %v3500
      %v3502 = vpop.f32.mrb[0].mxu0
      %3503 = vmatprep.mubr.f32.mxu0 0.0
      %3504 = vmatmul.mubr.f32.gmra.mrb[0].mxu0 %v3284
      %v3505 = vpop.f32.mrb[0].mxu0
      %v3506 = vadd.f32 0.0, %v3505
      %v3507 = vpop.f32.mrb[0].mxu0
      %3508 = vmatprep.mubr.f32.mxu0 0.0
      %3509 = vmatmul.mubr.f32.gmra.mrb[0].mxu0 %v3287
      %v3510 = vpop.f32.mrb[0].mxu0
      %v3511 = vadd.f32 0.0, %v3510
      %v3512 = vpop.f32.mrb[0].mxu0
      %3513 = vmatprep.mubr.f32.mxu0 0.0
      %3514 = vmatmul.mubr.f32.gmra.mrb[0].mxu0 %v3290
      %v3515 = vpop.f32.mrb[0].mxu0
      %v3516 = vadd.f32 0.0, %v3515
      %v3517 = vpop.f32.mrb[0].mxu0
      %3518 = vmatprep.mubr.f32.mxu0 0.0
      %3519 = vmatmul.mubr.f32.gmra.mrb[0].mxu0 %v3293
      %v3520 = vpop.f32.mrb[0].mxu0
      %v3521 = vadd.f32 0.0, %v3520
      %v3522 = vpop.f32.mrb[0].mxu0
      %3523 = vmatprep.mubr.f32.mxu0 0.0
      %3524 = vmatmul.mubr.f32.gmra.mrb[0].mxu0 %v3296
      %v3525 = vpop.f32.mrb[0].mxu0
      %v3526 = vadd.f32 0.0, %v3525
      %v3527 = vpop.f32.mrb[0].mxu0
      %3528 = vmatprep.mubr.f32.mxu0 0.0
      %3529 = vmatmul.mubr.f32.gmra.mrb[0].mxu0 %v3299
      %v3530 = vpop.f32.mrb[0].mxu0
      %v3531 = vadd.f32 0.0, %v3530
      %v3532 = vpop.f32.mrb[0].mxu0
      %3533 = vmatprep.mubr.f32.mxu0 0.0
      %3534 = vmatmul.mubr.f32.gmra.mrb[0].mxu0 %v3302
      %v3535 = vpop.f32.mrb[0].mxu0
      %v3536 = vadd.f32 0.0, %v3535
      %v3537 = vpop.f32.mrb[0].mxu0
      %3538 = vmatprep.mubr.f32.mxu0 0.0
      %3539 = vmatmul.mubr.f32.gmra.mrb[0].mxu0 %v3305
      %v3540 = vpop.f32.mrb[0].mxu0
      %v3541 = vadd.f32 0.0, %v3540
      %v3542 = vpop.f32.mrb[0].mxu0
      %3543 = vmatprep.mubr.f32.mxu0 0.0
      %3544 = vmatmul.mubr.f32.gmra.mrb[0].mxu0 %v3308
      %v3545 = vpop.f32.mrb[0].mxu0
      %v3546 = vadd.f32 0.0, %v3545
      %v3547 = vpop.f32.mrb[0].mxu0
      %3548 = vmatprep.mubr.f32.mxu0 0.0
      %3549 = vmatmul.mubr.f32.gmra.mrb[0].mxu0 %v3311
      %v3550 = vpop.f32.mrb[0].mxu0
      %v3551 = vadd.f32 0.0, %v3550
      %v3552 = vpop.f32.mrb[0].mxu0
      %3553 = vmatprep.mubr.f32.mxu0 0.0
      %3554 = vmatmul.mubr.f32.gmra.mrb[0].mxu0 %v3314
      %v3555 = vpop.f32.mrb[0].mxu0
      %v3556 = vadd.f32 0.0, %v3555
      %v3557 = vpop.f32.mrb[0].mxu0
      %3558 = vmatprep.mubr.f32.mxu0 0.0
      %3559 = vmatmul.mubr.f32.gmra.mrb[0].mxu0 %v3317
      %v3560 = vpop.f32.mrb[0].mxu0
      %v3561 = vadd.f32 0.0, %v3560
      %v3562 = vpop.f32.mrb[0].mxu0
      %3563 = vmatprep.mubr.f32.mxu0 0.0
      %3564 = vmatmul.mubr.f32.gmra.mrb[0].mxu0 %v3320
      %v3565 = vpop.f32.mrb[0].mxu0
      %v3566 = vadd.f32 0.0, %v3565
      %v3567 = vpop.f32.mrb[0].mxu0
      %3568 = vmatprep.mubr.f32.mxu0 0.0
      %3569 = vmatmul.mubr.f32.gmra.mrb[0].mxu0 %v3323
      %v3570 = vpop.f32.mrb[0].mxu0
      %v3571 = vadd.f32 0.0, %v3570
      %v3572 = vpop.f32.mrb[0].mxu0
      %3573 = vmatprep.mubr.f32.mxu0 0.0
      %3574 = vmatmul.mubr.f32.gmra.mrb[0].mxu0 %v3326
      %v3575 = vpop.f32.mrb[0].mxu0
      %v3576 = vadd.f32 0.0, %v3575
      %v3577 = vpop.f32.mrb[0].mxu0
      %3578 = vmatprep.mubr.f32.mxu0 0.0
      %3579 = vmatmul.mubr.f32.gmra.mrb[0].mxu0 %v3329
      %v3580 = vpop.f32.mrb[0].mxu0
      %v3581 = vadd.f32 0.0, %v3580
      %v3582 = vpop.f32.mrb[0].mxu0
      %3583 = vmatprep.mubr.f32.mxu0 0.0
      %3584 = vmatmul.mubr.f32.gmra.mrb[0].mxu0 %v3332
      %v3585 = vpop.f32.mrb[0].mxu0
      %v3586 = vadd.f32 0.0, %v3585
      %v3587 = vpop.f32.mrb[0].mxu0
      %3588 = vmatprep.mubr.f32.mxu0 0.0
      %3589 = vmatmul.mubr.f32.gmra.mrb[0].mxu0 %v3335
      %v3590 = vpop.f32.mrb[0].mxu0
      %v3591 = vadd.f32 0.0, %v3590
      %v3592 = vpop.f32.mrb[0].mxu0
      %3593 = vmatprep.mubr.f32.mxu0 0.0
      %3594 = vmatmul.mubr.f32.gmra.mrb[0].mxu0 %v3338
      %v3595 = vpop.f32.mrb[0].mxu0
      %v3596 = vadd.f32 0.0, %v3595
      %v3597 = vpop.f32.mrb[0].mxu0
      %3598 = vmatprep.mubr.f32.mxu0 0.0
      %3599 = vmatmul.mubr.f32.gmra.mrb[0].mxu0 %v3341
      %v3600 = vpop.f32.mrb[0].mxu0
      %v3601 = vadd.f32 0.0, %v3600
      %v3602 = vpop.f32.mrb[0].mxu0
      %3603 = vmatprep.mubr.f32.mxu0 0.0
      %3604 = vmatmul.mubr.f32.gmra.mrb[0].mxu0 %v3344
      %v3605 = vpop.f32.mrb[0].mxu0
      %v3606 = vadd.f32 0.0, %v3605
      %v3607 = vpop.f32.mrb[0].mxu0
      %3608 = vmatprep.mubr.f32.mxu0 0.0
      %3609 = vmatmul.mubr.f32.gmra.mrb[0].mxu0 %v3347
      %v3610 = vpop.f32.mrb[0].mxu0
      %v3611 = vadd.f32 0.0, %v3610
      %v3612 = vpop.f32.mrb[0].mxu0
      %3613 = vmatprep.mubr.f32.mxu0 0.0
      %3614 = vmatmul.mubr.f32.gmra.mrb[0].mxu0 %v3350
      %v3615 = vpop.f32.mrb[0].mxu0
      %v3616 = vadd.f32 0.0, %v3615
      %v3617 = vpop.f32.mrb[0].mxu0
      %3618 = vmatprep.mubr.f32.mxu0 0.0
      %3619 = vmatmul.mubr.f32.gmra.mrb[0].mxu0 %v3353
      %v3620 = vpop.f32.mrb[0].mxu0
      %v3621 = vadd.f32 0.0, %v3620
      %v3622 = vpop.f32.mrb[0].mxu0
      %3623 = vmatprep.mubr.f32.mxu0 0.0
      %3624 = vmatmul.mubr.f32.gmra.mrb[0].mxu0 %v3356
      %v3625 = vpop.f32.mrb[0].mxu0
      %v3626 = vadd.f32 0.0, %v3625
      %v3627 = vpop.f32.mrb[0].mxu0
      %3628 = vmatprep.mubr.f32.mxu0 0.0
      %3629 = vmatmul.mubr.f32.gmra.mrb[0].mxu0 %v3359
      %v3630 = vpop.f32.mrb[0].mxu0
      %v3631 = vadd.f32 0.0, %v3630
      %v3632 = vpop.f32.mrb[0].mxu0
      %3633 = vdwg.mxu0
      %v3634 = vadd.f32 %v3155, %v3431
      %v3635 = vadd.f32 %v3156, %v3436
      %v3636 = vadd.f32 %v3157, %v3441
      %v3637 = vadd.f32 %v3158, %v3446
      %v3638 = vadd.f32 %v3159, %v3451
      %v3639 = vadd.f32 %v3160, %v3456
      %v3640 = vadd.f32 %v3161, %v3461
      %v3641 = vadd.f32 %v3162, %v3466
      %v3642 = vadd.f32 %v3163, %v3471
      %v3643 = vadd.f32 %v3164, %v3476
      %v3644 = vadd.f32 %v3165, %v3481
      %v3645 = vadd.f32 %v3166, %v3486
      %v3646 = vadd.f32 %v3167, %v3491
      %v3647 = vadd.f32 %v3168, %v3496
      %v3648 = vadd.f32 %v3169, %v3501
      %v3649 = vadd.f32 %v3170, %v3506
      %v3650 = vadd.f32 %v3171, %v3511
      %v3651 = vadd.f32 %v3172, %v3516
      %v3652 = vadd.f32 %v3173, %v3521
      %v3653 = vadd.f32 %v3174, %v3526
      %v3654 = vadd.f32 %v3175, %v3531
      %v3655 = vadd.f32 %v3176, %v3536
      %v3656 = vadd.f32 %v3177, %v3541
      %v3657 = vadd.f32 %v3178, %v3546
      %v3658 = vadd.f32 %v3179, %v3551
      %v3659 = vadd.f32 %v3180, %v3556
      %v3660 = vadd.f32 %v3181, %v3561
      %v3661 = vadd.f32 %v3182, %v3566
      %v3662 = vadd.f32 %v3183, %v3571
      %v3663 = vadd.f32 %v3184, %v3576
      %v3664 = vadd.f32 %v3185, %v3581
      %v3665 = vadd.f32 %v3186, %v3586
      %v3666 = vadd.f32 %v3187, %v3591
      %v3667 = vadd.f32 %v3188, %v3596
      %v3668 = vadd.f32 %v3189, %v3601
      %v3669 = vadd.f32 %v3190, %v3606
      %v3670 = vadd.f32 %v3191, %v3611
      %v3671 = vadd.f32 %v3192, %v3616
      %v3672 = vadd.f32 %v3193, %v3621
      %v3673 = vadd.f32 %v3194, %v3626
      %v3674 = vadd.f32 %v3195, %v3631
      %v3675 = vld [vmem:[#allocation2 + $0x14] sm:$0xff]
      %v3676 = vld [vmem:[#allocation2 + $0x1c] sm:$0xff]
      %v3677 = vld [vmem:[#allocation2 + $0x24] sm:$0xff]
      %v3678 = vld [vmem:[#allocation2 + $0x2c] sm:$0xff]
      %v3679 = vld [vmem:[#allocation2 + $0x34] sm:$0xff]
      %v3680 = vld [vmem:[#allocation2 + $0x3c] sm:$0xff]
      %v3681 = vld [vmem:[#allocation2 + $0x44] sm:$0xff]
      %v3682 = vld [vmem:[#allocation2 + $0x4c] sm:$0xff]
      %v3683 = vld [vmem:[#allocation2 + $0x54] sm:$0xff]
      %v3684 = vld [vmem:[#allocation2 + $0x5c] sm:$0xff]
      %v3685 = vld [vmem:[#allocation2 + $0x64] sm:$0xff]
      %v3686 = vld [vmem:[#allocation2 + $0x6c] sm:$0xff]
      %v3687 = vld [vmem:[#allocation2 + $0x74] sm:$0xff]
      %v3688 = vld [vmem:[#allocation2 + $0x7c] sm:$0xff]
      %v3689 = vld [vmem:[#allocation2 + $0x84] sm:$0xff]
      %v3690 = vld [vmem:[#allocation2 + $0x8c] sm:$0xff]
      %v3691 = vld [vmem:[#allocation2 + $0x94] sm:$0xff]
      %v3692 = vld [vmem:[#allocation2 + $0x9c] sm:$0xff]
      %v3693 = vld [vmem:[#allocation2 + $0xa4] sm:$0xff]
      %v3694 = vld [vmem:[#allocation2 + $0xac] sm:$0xff]
      %v3695 = vld [vmem:[#allocation2 + $0xb4] sm:$0xff]
      %v3696 = vld [vmem:[#allocation2 + $0xbc] sm:$0xff]
      %v3697 = vld [vmem:[#allocation2 + $0xc4] sm:$0xff]
      %v3698 = vld [vmem:[#allocation2 + $0xcc] sm:$0xff]
      %v3699 = vld [vmem:[#allocation2 + $0xd4] sm:$0xff]
      %v3700 = vld [vmem:[#allocation2 + $0xdc] sm:$0xff]
      %v3701 = vld [vmem:[#allocation2 + $0xe4] sm:$0xff]
      %v3702 = vld [vmem:[#allocation2 + $0xec] sm:$0xff]
      %v3703 = vld [vmem:[#allocation2 + $0xf4] sm:$0xff]
      %v3704 = vld [vmem:[#allocation2 + $0xfc] sm:$0xff]
      %v3705 = vld [vmem:[#allocation2 + $0x104] sm:$0xff]
      %v3706 = vld [vmem:[#allocation2 + $0x10c] sm:$0xff]
      %v3707 = vld [vmem:[#allocation2 + $0x114] sm:$0xff]
      %v3708 = vld [vmem:[#allocation2 + $0x11c] sm:$0xff]
      %v3709 = vld [vmem:[#allocation2 + $0x124] sm:$0xff]
      %v3710 = vld [vmem:[#allocation2 + $0x12c] sm:$0xff]
      %v3711 = vld [vmem:[#allocation2 + $0x134] sm:$0xff]
      %v3712 = vld [vmem:[#allocation2 + $0x13c] sm:$0xff]
      %v3713 = vld [vmem:[#allocation2 + $0x144] sm:$0xff]
      %v3714 = vld [vmem:[#allocation2 + $0x14c] sm:$0xff]
      %v3715 = vld [vmem:[#allocation2 + $0x154] sm:$0xf]
      %v3716 = vld [vmem:[%s4 + $0x14] sm:$0xf]
      %v3718 = vsel %vm301, %v3675, 0
      %v3721 = vsel %vm301, %v3676, 0
      %v3724 = vsel %vm301, %v3677, 0
      %v3727 = vsel %vm301, %v3678, 0
      %v3730 = vsel %vm301, %v3679, 0
      %v3733 = vsel %vm301, %v3680, 0
      %v3736 = vsel %vm301, %v3681, 0
      %v3739 = vsel %vm301, %v3682, 0
      %v3742 = vsel %vm301, %v3683, 0
      %v3745 = vsel %vm301, %v3684, 0
      %v3748 = vsel %vm301, %v3685, 0
      %v3751 = vsel %vm301, %v3686, 0
      %v3754 = vsel %vm301, %v3687, 0
      %v3757 = vsel %vm301, %v3688, 0
      %v3760 = vsel %vm301, %v3689, 0
      %v3763 = vsel %vm301, %v3690, 0
      %v3766 = vsel %vm301, %v3691, 0
      %v3769 = vsel %vm301, %v3692, 0
      %v3772 = vsel %vm301, %v3693, 0
      %v3775 = vsel %vm301, %v3694, 0
      %v3778 = vsel %vm301, %v3695, 0
      %v3781 = vsel %vm301, %v3696, 0
      %v3784 = vsel %vm301, %v3697, 0
      %v3787 = vsel %vm301, %v3698, 0
      %v3790 = vsel %vm301, %v3699, 0
      %v3793 = vsel %vm301, %v3700, 0
      %v3796 = vsel %vm301, %v3701, 0
      %v3799 = vsel %vm301, %v3702, 0
      %v3802 = vsel %vm301, %v3703, 0
      %v3805 = vsel %vm301, %v3704, 0
      %v3808 = vsel %vm301, %v3705, 0
      %v3811 = vsel %vm301, %v3706, 0
      %v3814 = vsel %vm301, %v3707, 0
      %v3817 = vsel %vm301, %v3708, 0
      %v3820 = vsel %vm301, %v3709, 0
      %v3823 = vsel %vm301, %v3710, 0
      %v3826 = vsel %vm301, %v3711, 0
      %v3829 = vsel %vm301, %v3712, 0
      %v3832 = vsel %vm301, %v3713, 0
      %v3835 = vsel %vm301, %v3714, 0
      %v3838 = vsel %vm301, %v3715, 0
      %v3841 = vsel %vm425, %v3716, 0
      %3843 = vmatprep.subr.mxu0 0.0
      %3844 = vmatpush1.msra.mxu0 %v3841
      %3845 = vmatprep.subr.mxu0 0.0
      %3846 = vmatpush1.msra.mxu0 0.0
      %3847 = vmatprep.subr.mxu0 0.0
      %3848 = vmatpush1.msra.mxu0 0.0
      %3849 = vmatprep.subr.mxu0 0.0
      %3850 = vmatpush1.msra.mxu0 0.0
      %3851 = vmatprep.subr.mxu0 0.0
      %3852 = vmatpush1.msra.mxu0 0.0
      %3853 = vmatprep.subr.mxu0 0.0
      %3854 = vmatpush1.msra.mxu0 0.0
      %3855 = vmatprep.subr.mxu0 0.0
      %3856 = vmatpush1.msra.mxu0 0.0
      %3857 = vmatprep.subr.mxu0 0.0
      %3858 = vmatpush1.msra.mxu0 0.0
      %3859 = vmatprep.subr.mxu0 0.0
      %3860 = vmatpush1.msra.mxu0 0.0
      %3861 = vmatprep.subr.mxu0 0.0
      %3862 = vmatpush1.msra.mxu0 0.0
      %3863 = vmatprep.subr.mxu0 0.0
      %3864 = vmatpush1.msra.mxu0 0.0
      %3865 = vmatprep.subr.mxu0 0.0
      %3866 = vmatpush1.msra.mxu0 0.0
      %3867 = vmatprep.subr.mxu0 0.0
      %3868 = vmatpush1.msra.mxu0 0.0
      %3869 = vmatprep.subr.mxu0 0.0
      %3870 = vmatpush1.msra.mxu0 0.0
      %3871 = vmatprep.subr.mxu0 0.0
      %3872 = vmatpush1.msra.mxu0 0.0
      %3873 = vmatprep.subr.mxu0 0.0
      %3874 = vmatpush1.msra.mxu0 0.0
      %3875 = vmatprep.subr.mxu0 0.0
      %3876 = vmatpush1.msra.mxu0 0.0
      %3877 = vmatprep.subr.mxu0 0.0
      %3878 = vmatpush1.msra.mxu0 0.0
      %3879 = vmatprep.subr.mxu0 0.0
      %3880 = vmatpush1.msra.mxu0 0.0
      %3881 = vmatprep.subr.mxu0 0.0
      %3882 = vmatpush1.msra.mxu0 0.0
      %3883 = vmatprep.subr.mxu0 0.0
      %3884 = vmatpush1.msra.mxu0 0.0
      %3885 = vmatprep.subr.mxu0 0.0
      %3886 = vmatpush1.msra.mxu0 0.0
      %3887 = vmatprep.subr.mxu0 0.0
      %3888 = vmatpush1.msra.mxu0 0.0
      %3889 = vmatprep.subr.mxu0 0.0
      %3890 = vmatpush1.msra.mxu0 0.0
      %3891 = vmatprep.subr.mxu0 0.0
      %3892 = vmatpush1.msra.mxu0 0.0
      %3893 = vmatprep.subr.mxu0 0.0
      %3894 = vmatpush1.msra.mxu0 0.0
      %3895 = vmatprep.subr.mxu0 0.0
      %3896 = vmatpush1.msra.mxu0 0.0
      %3897 = vmatprep.subr.mxu0 0.0
      %3898 = vmatpush1.msra.mxu0 0.0
      %3899 = vmatprep.subr.mxu0 0.0
      %3900 = vmatpush1.msra.mxu0 0.0
      %3901 = vmatprep.subr.mxu0 0.0
      %3902 = vmatpush1.msra.mxu0 0.0
      %3903 = vmatprep.subr.mxu0 0.0
      %3904 = vmatpush1.msra.mxu0 0.0
      %3905 = vmatprep.subr.mxu0 0.0
      %3906 = vmatpush1.msra.mxu0 0.0
      %3907 = vmatprep.mubr.f32.mxu0 0.0
      %3908 = vmatmul.mubr.f32.gmra.mrb[0].mxu0 %v3718
      %v3909 = vpop.f32.mrb[0].mxu0
      %v3910 = vadd.f32 0.0, %v3909
      %v3911 = vpop.f32.mrb[0].mxu0
      %3912 = vmatprep.mubr.f32.mxu0 0.0
      %3913 = vmatmul.mubr.f32.gmra.mrb[0].mxu0 %v3721
      %v3914 = vpop.f32.mrb[0].mxu0
      %v3915 = vadd.f32 0.0, %v3914
      %v3916 = vpop.f32.mrb[0].mxu0
      %3917 = vmatprep.mubr.f32.mxu0 0.0
      %3918 = vmatmul.mubr.f32.gmra.mrb[0].mxu0 %v3724
      %v3919 = vpop.f32.mrb[0].mxu0
      %v3920 = vadd.f32 0.0, %v3919
      %v3921 = vpop.f32.mrb[0].mxu0
      %3922 = vmatprep.mubr.f32.mxu0 0.0
      %3923 = vmatmul.mubr.f32.gmra.mrb[0].mxu0 %v3727
      %v3924 = vpop.f32.mrb[0].mxu0
      %v3925 = vadd.f32 0.0, %v3924
      %v3926 = vpop.f32.mrb[0].mxu0
      %3927 = vmatprep.mubr.f32.mxu0 0.0
      %3928 = vmatmul.mubr.f32.gmra.mrb[0].mxu0 %v3730
      %v3929 = vpop.f32.mrb[0].mxu0
      %v3930 = vadd.f32 0.0, %v3929
      %v3931 = vpop.f32.mrb[0].mxu0
      %3932 = vmatprep.mubr.f32.mxu0 0.0
      %3933 = vmatmul.mubr.f32.gmra.mrb[0].mxu0 %v3733
      %v3934 = vpop.f32.mrb[0].mxu0
      %v3935 = vadd.f32 0.0, %v3934
      %v3936 = vpop.f32.mrb[0].mxu0
      %3937 = vmatprep.mubr.f32.mxu0 0.0
      %3938 = vmatmul.mubr.f32.gmra.mrb[0].mxu0 %v3736
      %v3939 = vpop.f32.mrb[0].mxu0
      %v3940 = vadd.f32 0.0, %v3939
      %v3941 = vpop.f32.mrb[0].mxu0
      %3942 = vmatprep.mubr.f32.mxu0 0.0
      %3943 = vmatmul.mubr.f32.gmra.mrb[0].mxu0 %v3739
      %v3944 = vpop.f32.mrb[0].mxu0
      %v3945 = vadd.f32 0.0, %v3944
      %v3946 = vpop.f32.mrb[0].mxu0
      %3947 = vmatprep.mubr.f32.mxu0 0.0
      %3948 = vmatmul.mubr.f32.gmra.mrb[0].mxu0 %v3742
      %v3949 = vpop.f32.mrb[0].mxu0
      %v3950 = vadd.f32 0.0, %v3949
      %v3951 = vpop.f32.mrb[0].mxu0
      %3952 = vmatprep.mubr.f32.mxu0 0.0
      %3953 = vmatmul.mubr.f32.gmra.mrb[0].mxu0 %v3745
      %v3954 = vpop.f32.mrb[0].mxu0
      %v3955 = vadd.f32 0.0, %v3954
      %v3956 = vpop.f32.mrb[0].mxu0
      %3957 = vmatprep.mubr.f32.mxu0 0.0
      %3958 = vmatmul.mubr.f32.gmra.mrb[0].mxu0 %v3748
      %v3959 = vpop.f32.mrb[0].mxu0
      %v3960 = vadd.f32 0.0, %v3959
      %v3961 = vpop.f32.mrb[0].mxu0
      %3962 = vmatprep.mubr.f32.mxu0 0.0
      %3963 = vmatmul.mubr.f32.gmra.mrb[0].mxu0 %v3751
      %v3964 = vpop.f32.mrb[0].mxu0
      %v3965 = vadd.f32 0.0, %v3964
      %v3966 = vpop.f32.mrb[0].mxu0
      %3967 = vmatprep.mubr.f32.mxu0 0.0
      %3968 = vmatmul.mubr.f32.gmra.mrb[0].mxu0 %v3754
      %v3969 = vpop.f32.mrb[0].mxu0
      %v3970 = vadd.f32 0.0, %v3969
      %v3971 = vpop.f32.mrb[0].mxu0
      %3972 = vmatprep.mubr.f32.mxu0 0.0
      %3973 = vmatmul.mubr.f32.gmra.mrb[0].mxu0 %v3757
      %v3974 = vpop.f32.mrb[0].mxu0
      %v3975 = vadd.f32 0.0, %v3974
      %v3976 = vpop.f32.mrb[0].mxu0
      %3977 = vmatprep.mubr.f32.mxu0 0.0
      %3978 = vmatmul.mubr.f32.gmra.mrb[0].mxu0 %v3760
      %v3979 = vpop.f32.mrb[0].mxu0
      %v3980 = vadd.f32 0.0, %v3979
      %v3981 = vpop.f32.mrb[0].mxu0
      %3982 = vmatprep.mubr.f32.mxu0 0.0
      %3983 = vmatmul.mubr.f32.gmra.mrb[0].mxu0 %v3763
      %v3984 = vpop.f32.mrb[0].mxu0
      %v3985 = vadd.f32 0.0, %v3984
      %v3986 = vpop.f32.mrb[0].mxu0
      %3987 = vmatprep.mubr.f32.mxu0 0.0
      %3988 = vmatmul.mubr.f32.gmra.mrb[0].mxu0 %v3766
      %v3989 = vpop.f32.mrb[0].mxu0
      %v3990 = vadd.f32 0.0, %v3989
      %v3991 = vpop.f32.mrb[0].mxu0
      %3992 = vmatprep.mubr.f32.mxu0 0.0
      %3993 = vmatmul.mubr.f32.gmra.mrb[0].mxu0 %v3769
      %v3994 = vpop.f32.mrb[0].mxu0
      %v3995 = vadd.f32 0.0, %v3994
      %v3996 = vpop.f32.mrb[0].mxu0
      %3997 = vmatprep.mubr.f32.mxu0 0.0
      %3998 = vmatmul.mubr.f32.gmra.mrb[0].mxu0 %v3772
      %v3999 = vpop.f32.mrb[0].mxu0
      %v4000 = vadd.f32 0.0, %v3999
      %v4001 = vpop.f32.mrb[0].mxu0
      %4002 = vmatprep.mubr.f32.mxu0 0.0
      %4003 = vmatmul.mubr.f32.gmra.mrb[0].mxu0 %v3775
      %v4004 = vpop.f32.mrb[0].mxu0
      %v4005 = vadd.f32 0.0, %v4004
      %v4006 = vpop.f32.mrb[0].mxu0
      %4007 = vmatprep.mubr.f32.mxu0 0.0
      %4008 = vmatmul.mubr.f32.gmra.mrb[0].mxu0 %v3778
      %v4009 = vpop.f32.mrb[0].mxu0
      %v4010 = vadd.f32 0.0, %v4009
      %v4011 = vpop.f32.mrb[0].mxu0
      %4012 = vmatprep.mubr.f32.mxu0 0.0
      %4013 = vmatmul.mubr.f32.gmra.mrb[0].mxu0 %v3781
      %v4014 = vpop.f32.mrb[0].mxu0
      %v4015 = vadd.f32 0.0, %v4014
      %v4016 = vpop.f32.mrb[0].mxu0
      %4017 = vmatprep.mubr.f32.mxu0 0.0
      %4018 = vmatmul.mubr.f32.gmra.mrb[0].mxu0 %v3784
      %v4019 = vpop.f32.mrb[0].mxu0
      %v4020 = vadd.f32 0.0, %v4019
      %v4021 = vpop.f32.mrb[0].mxu0
      %4022 = vmatprep.mubr.f32.mxu0 0.0
      %4023 = vmatmul.mubr.f32.gmra.mrb[0].mxu0 %v3787
      %v4024 = vpop.f32.mrb[0].mxu0
      %v4025 = vadd.f32 0.0, %v4024
      %v4026 = vpop.f32.mrb[0].mxu0
      %4027 = vmatprep.mubr.f32.mxu0 0.0
      %4028 = vmatmul.mubr.f32.gmra.mrb[0].mxu0 %v3790
      %v4029 = vpop.f32.mrb[0].mxu0
      %v4030 = vadd.f32 0.0, %v4029
      %v4031 = vpop.f32.mrb[0].mxu0
      %4032 = vmatprep.mubr.f32.mxu0 0.0
      %4033 = vmatmul.mubr.f32.gmra.mrb[0].mxu0 %v3793
      %v4034 = vpop.f32.mrb[0].mxu0
      %v4035 = vadd.f32 0.0, %v4034
      %v4036 = vpop.f32.mrb[0].mxu0
      %4037 = vmatprep.mubr.f32.mxu0 0.0
      %4038 = vmatmul.mubr.f32.gmra.mrb[0].mxu0 %v3796
      %v4039 = vpop.f32.mrb[0].mxu0
      %v4040 = vadd.f32 0.0, %v4039
      %v4041 = vpop.f32.mrb[0].mxu0
      %4042 = vmatprep.mubr.f32.mxu0 0.0
      %4043 = vmatmul.mubr.f32.gmra.mrb[0].mxu0 %v3799
      %v4044 = vpop.f32.mrb[0].mxu0
      %v4045 = vadd.f32 0.0, %v4044
      %v4046 = vpop.f32.mrb[0].mxu0
      %4047 = vmatprep.mubr.f32.mxu0 0.0
      %4048 = vmatmul.mubr.f32.gmra.mrb[0].mxu0 %v3802
      %v4049 = vpop.f32.mrb[0].mxu0
      %v4050 = vadd.f32 0.0, %v4049
      %v4051 = vpop.f32.mrb[0].mxu0
      %4052 = vmatprep.mubr.f32.mxu0 0.0
      %4053 = vmatmul.mubr.f32.gmra.mrb[0].mxu0 %v3805
      %v4054 = vpop.f32.mrb[0].mxu0
      %v4055 = vadd.f32 0.0, %v4054
      %v4056 = vpop.f32.mrb[0].mxu0
      %4057 = vmatprep.mubr.f32.mxu0 0.0
      %4058 = vmatmul.mubr.f32.gmra.mrb[0].mxu0 %v3808
      %v4059 = vpop.f32.mrb[0].mxu0
      %v4060 = vadd.f32 0.0, %v4059
      %v4061 = vpop.f32.mrb[0].mxu0
      %4062 = vmatprep.mubr.f32.mxu0 0.0
      %4063 = vmatmul.mubr.f32.gmra.mrb[0].mxu0 %v3811
      %v4064 = vpop.f32.mrb[0].mxu0
      %v4065 = vadd.f32 0.0, %v4064
      %v4066 = vpop.f32.mrb[0].mxu0
      %4067 = vmatprep.mubr.f32.mxu0 0.0
      %4068 = vmatmul.mubr.f32.gmra.mrb[0].mxu0 %v3814
      %v4069 = vpop.f32.mrb[0].mxu0
      %v4070 = vadd.f32 0.0, %v4069
      %v4071 = vpop.f32.mrb[0].mxu0
      %4072 = vmatprep.mubr.f32.mxu0 0.0
      %4073 = vmatmul.mubr.f32.gmra.mrb[0].mxu0 %v3817
      %v4074 = vpop.f32.mrb[0].mxu0
      %v4075 = vadd.f32 0.0, %v4074
      %v4076 = vpop.f32.mrb[0].mxu0
      %4077 = vmatprep.mubr.f32.mxu0 0.0
      %4078 = vmatmul.mubr.f32.gmra.mrb[0].mxu0 %v3820
      %v4079 = vpop.f32.mrb[0].mxu0
      %v4080 = vadd.f32 0.0, %v4079
      %v4081 = vpop.f32.mrb[0].mxu0
      %4082 = vmatprep.mubr.f32.mxu0 0.0
      %4083 = vmatmul.mubr.f32.gmra.mrb[0].mxu0 %v3823
      %v4084 = vpop.f32.mrb[0].mxu0
      %v4085 = vadd.f32 0.0, %v4084
      %v4086 = vpop.f32.mrb[0].mxu0
      %4087 = vmatprep.mubr.f32.mxu0 0.0
      %4088 = vmatmul.mubr.f32.gmra.mrb[0].mxu0 %v3826
      %v4089 = vpop.f32.mrb[0].mxu0
      %v4090 = vadd.f32 0.0, %v4089
      %v4091 = vpop.f32.mrb[0].mxu0
      %4092 = vmatprep.mubr.f32.mxu0 0.0
      %4093 = vmatmul.mubr.f32.gmra.mrb[0].mxu0 %v3829
      %v4094 = vpop.f32.mrb[0].mxu0
      %v4095 = vadd.f32 0.0, %v4094
      %v4096 = vpop.f32.mrb[0].mxu0
      %4097 = vmatprep.mubr.f32.mxu0 0.0
      %4098 = vmatmul.mubr.f32.gmra.mrb[0].mxu0 %v3832
      %v4099 = vpop.f32.mrb[0].mxu0
      %v4100 = vadd.f32 0.0, %v4099
      %v4101 = vpop.f32.mrb[0].mxu0
      %4102 = vmatprep.mubr.f32.mxu0 0.0
      %4103 = vmatmul.mubr.f32.gmra.mrb[0].mxu0 %v3835
      %v4104 = vpop.f32.mrb[0].mxu0
      %v4105 = vadd.f32 0.0, %v4104
      %v4106 = vpop.f32.mrb[0].mxu0
      %4107 = vmatprep.mubr.f32.mxu0 0.0
      %4108 = vmatmul.mubr.f32.gmra.mrb[0].mxu0 %v3838
      %v4109 = vpop.f32.mrb[0].mxu0
      %v4110 = vadd.f32 0.0, %v4109
      %v4111 = vpop.f32.mrb[0].mxu0
      %4112 = vdwg.mxu0
      %v4113 = vadd.f32 %v3634, %v3910
      %v4114 = vadd.f32 %v3635, %v3915
      %v4115 = vadd.f32 %v3636, %v3920
      %v4116 = vadd.f32 %v3637, %v3925
      %v4117 = vadd.f32 %v3638, %v3930
      %v4118 = vadd.f32 %v3639, %v3935
      %v4119 = vadd.f32 %v3640, %v3940
      %v4120 = vadd.f32 %v3641, %v3945
      %v4121 = vadd.f32 %v3642, %v3950
      %v4122 = vadd.f32 %v3643, %v3955
      %v4123 = vadd.f32 %v3644, %v3960
      %v4124 = vadd.f32 %v3645, %v3965
      %v4125 = vadd.f32 %v3646, %v3970
      %v4126 = vadd.f32 %v3647, %v3975
      %v4127 = vadd.f32 %v3648, %v3980
      %v4128 = vadd.f32 %v3649, %v3985
      %v4129 = vadd.f32 %v3650, %v3990
      %v4130 = vadd.f32 %v3651, %v3995
      %v4131 = vadd.f32 %v3652, %v4000
      %v4132 = vadd.f32 %v3653, %v4005
      %v4133 = vadd.f32 %v3654, %v4010
      %v4134 = vadd.f32 %v3655, %v4015
      %v4135 = vadd.f32 %v3656, %v4020
      %v4136 = vadd.f32 %v3657, %v4025
      %v4137 = vadd.f32 %v3658, %v4030
      %v4138 = vadd.f32 %v3659, %v4035
      %v4139 = vadd.f32 %v3660, %v4040
      %v4140 = vadd.f32 %v3661, %v4045
      %v4141 = vadd.f32 %v3662, %v4050
      %v4142 = vadd.f32 %v3663, %v4055
      %v4143 = vadd.f32 %v3664, %v4060
      %v4144 = vadd.f32 %v3665, %v4065
      %v4145 = vadd.f32 %v3666, %v4070
      %v4146 = vadd.f32 %v3667, %v4075
      %v4147 = vadd.f32 %v3668, %v4080
      %v4148 = vadd.f32 %v3669, %v4085
      %v4149 = vadd.f32 %v3670, %v4090
      %v4150 = vadd.f32 %v3671, %v4095
      %v4151 = vadd.f32 %v3672, %v4100
      %v4152 = vadd.f32 %v3673, %v4105
      %v4153 = vadd.f32 %v3674, %v4110
      %v4154 = vld [vmem:[#allocation2 + $0x24] sm:$0xff]
      %v4155 = vld [vmem:[#allocation2 + $0x2c] sm:$0xff]
      %v4156 = vld [vmem:[#allocation2 + $0x34] sm:$0xff]
      %v4157 = vld [vmem:[#allocation2 + $0x3c] sm:$0xff]
      %v4158 = vld [vmem:[#allocation2 + $0x44] sm:$0xff]
      %v4159 = vld [vmem:[#allocation2 + $0x4c] sm:$0xff]
      %v4160 = vld [vmem:[#allocation2 + $0x54] sm:$0xff]
      %v4161 = vld [vmem:[#allocation2 + $0x5c] sm:$0xff]
      %v4162 = vld [vmem:[#allocation2 + $0x64] sm:$0xff]
      %v4163 = vld [vmem:[#allocation2 + $0x6c] sm:$0xff]
      %v4164 = vld [vmem:[#allocation2 + $0x74] sm:$0xff]
      %v4165 = vld [vmem:[#allocation2 + $0x7c] sm:$0xff]
      %v4166 = vld [vmem:[#allocation2 + $0x84] sm:$0xff]
      %v4167 = vld [vmem:[#allocation2 + $0x8c] sm:$0xff]
      %v4168 = vld [vmem:[#allocation2 + $0x94] sm:$0xff]
      %v4169 = vld [vmem:[#allocation2 + $0x9c] sm:$0xff]
      %v4170 = vld [vmem:[#allocation2 + $0xa4] sm:$0xff]
      %v4171 = vld [vmem:[#allocation2 + $0xac] sm:$0xff]
      %v4172 = vld [vmem:[#allocation2 + $0xb4] sm:$0xff]
      %v4173 = vld [vmem:[#allocation2 + $0xbc] sm:$0xff]
      %v4174 = vld [vmem:[#allocation2 + $0xc4] sm:$0xff]
      %v4175 = vld [vmem:[#allocation2 + $0xcc] sm:$0xff]
      %v4176 = vld [vmem:[#allocation2 + $0xd4] sm:$0xff]
      %v4177 = vld [vmem:[#allocation2 + $0xdc] sm:$0xff]
      %v4178 = vld [vmem:[#allocation2 + $0xe4] sm:$0xff]
      %v4179 = vld [vmem:[#allocation2 + $0xec] sm:$0xff]
      %v4180 = vld [vmem:[#allocation2 + $0xf4] sm:$0xff]
      %v4181 = vld [vmem:[#allocation2 + $0xfc] sm:$0xff]
      %v4182 = vld [vmem:[#allocation2 + $0x104] sm:$0xff]
      %v4183 = vld [vmem:[#allocation2 + $0x10c] sm:$0xff]
      %v4184 = vld [vmem:[#allocation2 + $0x114] sm:$0xff]
      %v4185 = vld [vmem:[#allocation2 + $0x11c] sm:$0xff]
      %v4186 = vld [vmem:[#allocation2 + $0x124] sm:$0xff]
      %v4187 = vld [vmem:[#allocation2 + $0x12c] sm:$0xff]
      %v4188 = vld [vmem:[#allocation2 + $0x134] sm:$0xff]
      %v4189 = vld [vmem:[#allocation2 + $0x13c] sm:$0xff]
      %v4190 = vld [vmem:[#allocation2 + $0x144] sm:$0xff]
      %v4191 = vld [vmem:[#allocation2 + $0x14c] sm:$0xff]
      %v4192 = vld [vmem:[#allocation2 + $0x154] sm:$0xff]
      %v4193 = vld [vmem:[#allocation2 + $0x15c] sm:$0xff]
      %v4194 = vld [vmem:[#allocation2 + $0x164] sm:$0xf]
      %v4195 = vld [vmem:[%s4 + $0x18] sm:$0xf]
      %v4197 = vsel %vm301, %v4154, 0
      %v4200 = vsel %vm301, %v4155, 0
      %v4203 = vsel %vm301, %v4156, 0
      %v4206 = vsel %vm301, %v4157, 0
      %v4209 = vsel %vm301, %v4158, 0
      %v4212 = vsel %vm301, %v4159, 0
      %v4215 = vsel %vm301, %v4160, 0
      %v4218 = vsel %vm301, %v4161, 0
      %v4221 = vsel %vm301, %v4162, 0
      %v4224 = vsel %vm301, %v4163, 0
      %v4227 = vsel %vm301, %v4164, 0
      %v4230 = vsel %vm301, %v4165, 0
      %v4233 = vsel %vm301, %v4166, 0
      %v4236 = vsel %vm301, %v4167, 0
      %v4239 = vsel %vm301, %v4168, 0
      %v4242 = vsel %vm301, %v4169, 0
      %v4245 = vsel %vm301, %v4170, 0
      %v4248 = vsel %vm301, %v4171, 0
      %v4251 = vsel %vm301, %v4172, 0
      %v4254 = vsel %vm301, %v4173, 0
      %v4257 = vsel %vm301, %v4174, 0
      %v4260 = vsel %vm301, %v4175, 0
      %v4263 = vsel %vm301, %v4176, 0
      %v4266 = vsel %vm301, %v4177, 0
      %v4269 = vsel %vm301, %v4178, 0
      %v4272 = vsel %vm301, %v4179, 0
      %v4275 = vsel %vm301, %v4180, 0
      %v4278 = vsel %vm301, %v4181, 0
      %v4281 = vsel %vm301, %v4182, 0
      %v4284 = vsel %vm301, %v4183, 0
      %v4287 = vsel %vm301, %v4184, 0
      %v4290 = vsel %vm301, %v4185, 0
      %v4293 = vsel %vm301, %v4186, 0
      %v4296 = vsel %vm301, %v4187, 0
      %v4299 = vsel %vm301, %v4188, 0
      %v4302 = vsel %vm301, %v4189, 0
      %v4305 = vsel %vm301, %v4190, 0
      %v4308 = vsel %vm301, %v4191, 0
      %v4311 = vsel %vm301, %v4192, 0
      %v4314 = vsel %vm301, %v4193, 0
      %v4317 = vsel %vm301, %v4194, 0
      %v4320 = vsel %vm425, %v4195, 0
      %4322 = vmatprep.subr.mxu0 0.0
      %4323 = vmatpush1.msra.mxu0 %v4320
      %4324 = vmatprep.subr.mxu0 0.0
      %4325 = vmatpush1.msra.mxu0 0.0
      %4326 = vmatprep.subr.mxu0 0.0
      %4327 = vmatpush1.msra.mxu0 0.0
      %4328 = vmatprep.subr.mxu0 0.0
      %4329 = vmatpush1.msra.mxu0 0.0
      %4330 = vmatprep.subr.mxu0 0.0
      %4331 = vmatpush1.msra.mxu0 0.0
      %4332 = vmatprep.subr.mxu0 0.0
      %4333 = vmatpush1.msra.mxu0 0.0
      %4334 = vmatprep.subr.mxu0 0.0
      %4335 = vmatpush1.msra.mxu0 0.0
      %4336 = vmatprep.subr.mxu0 0.0
      %4337 = vmatpush1.msra.mxu0 0.0
      %4338 = vmatprep.subr.mxu0 0.0
      %4339 = vmatpush1.msra.mxu0 0.0
      %4340 = vmatprep.subr.mxu0 0.0
      %4341 = vmatpush1.msra.mxu0 0.0
      %4342 = vmatprep.subr.mxu0 0.0
      %4343 = vmatpush1.msra.mxu0 0.0
      %4344 = vmatprep.subr.mxu0 0.0
      %4345 = vmatpush1.msra.mxu0 0.0
      %4346 = vmatprep.subr.mxu0 0.0
      %4347 = vmatpush1.msra.mxu0 0.0
      %4348 = vmatprep.subr.mxu0 0.0
      %4349 = vmatpush1.msra.mxu0 0.0
      %4350 = vmatprep.subr.mxu0 0.0
      %4351 = vmatpush1.msra.mxu0 0.0
      %4352 = vmatprep.subr.mxu0 0.0
      %4353 = vmatpush1.msra.mxu0 0.0
      %4354 = vmatprep.subr.mxu0 0.0
      %4355 = vmatpush1.msra.mxu0 0.0
      %4356 = vmatprep.subr.mxu0 0.0
      %4357 = vmatpush1.msra.mxu0 0.0
      %4358 = vmatprep.subr.mxu0 0.0
      %4359 = vmatpush1.msra.mxu0 0.0
      %4360 = vmatprep.subr.mxu0 0.0
      %4361 = vmatpush1.msra.mxu0 0.0
      %4362 = vmatprep.subr.mxu0 0.0
      %4363 = vmatpush1.msra.mxu0 0.0
      %4364 = vmatprep.subr.mxu0 0.0
      %4365 = vmatpush1.msra.mxu0 0.0
      %4366 = vmatprep.subr.mxu0 0.0
      %4367 = vmatpush1.msra.mxu0 0.0
      %4368 = vmatprep.subr.mxu0 0.0
      %4369 = vmatpush1.msra.mxu0 0.0
      %4370 = vmatprep.subr.mxu0 0.0
      %4371 = vmatpush1.msra.mxu0 0.0
      %4372 = vmatprep.subr.mxu0 0.0
      %4373 = vmatpush1.msra.mxu0 0.0
      %4374 = vmatprep.subr.mxu0 0.0
      %4375 = vmatpush1.msra.mxu0 0.0
      %4376 = vmatprep.subr.mxu0 0.0
      %4377 = vmatpush1.msra.mxu0 0.0
      %4378 = vmatprep.subr.mxu0 0.0
      %4379 = vmatpush1.msra.mxu0 0.0
      %4380 = vmatprep.subr.mxu0 0.0
      %4381 = vmatpush1.msra.mxu0 0.0
      %4382 = vmatprep.subr.mxu0 0.0
      %4383 = vmatpush1.msra.mxu0 0.0
      %4384 = vmatprep.subr.mxu0 0.0
      %4385 = vmatpush1.msra.mxu0 0.0
      %4386 = vmatprep.mubr.f32.mxu0 0.0
      %4387 = vmatmul.mubr.f32.gmra.mrb[0].mxu0 %v4197
      %v4388 = vpop.f32.mrb[0].mxu0
      %v4389 = vadd.f32 0.0, %v4388
      %v4390 = vpop.f32.mrb[0].mxu0
      %4391 = vmatprep.mubr.f32.mxu0 0.0
      %4392 = vmatmul.mubr.f32.gmra.mrb[0].mxu0 %v4200
      %v4393 = vpop.f32.mrb[0].mxu0
      %v4394 = vadd.f32 0.0, %v4393
      %v4395 = vpop.f32.mrb[0].mxu0
      %4396 = vmatprep.mubr.f32.mxu0 0.0
      %4397 = vmatmul.mubr.f32.gmra.mrb[0].mxu0 %v4203
      %v4398 = vpop.f32.mrb[0].mxu0
      %v4399 = vadd.f32 0.0, %v4398
      %v4400 = vpop.f32.mrb[0].mxu0
      %4401 = vmatprep.mubr.f32.mxu0 0.0
      %4402 = vmatmul.mubr.f32.gmra.mrb[0].mxu0 %v4206
      %v4403 = vpop.f32.mrb[0].mxu0
      %v4404 = vadd.f32 0.0, %v4403
      %v4405 = vpop.f32.mrb[0].mxu0
      %4406 = vmatprep.mubr.f32.mxu0 0.0
      %4407 = vmatmul.mubr.f32.gmra.mrb[0].mxu0 %v4209
      %v4408 = vpop.f32.mrb[0].mxu0
      %v4409 = vadd.f32 0.0, %v4408
      %v4410 = vpop.f32.mrb[0].mxu0
      %4411 = vmatprep.mubr.f32.mxu0 0.0
      %4412 = vmatmul.mubr.f32.gmra.mrb[0].mxu0 %v4212
      %v4413 = vpop.f32.mrb[0].mxu0
      %v4414 = vadd.f32 0.0, %v4413
      %v4415 = vpop.f32.mrb[0].mxu0
      %4416 = vmatprep.mubr.f32.mxu0 0.0
      %4417 = vmatmul.mubr.f32.gmra.mrb[0].mxu0 %v4215
      %v4418 = vpop.f32.mrb[0].mxu0
      %v4419 = vadd.f32 0.0, %v4418
      %v4420 = vpop.f32.mrb[0].mxu0
      %4421 = vmatprep.mubr.f32.mxu0 0.0
      %4422 = vmatmul.mubr.f32.gmra.mrb[0].mxu0 %v4218
      %v4423 = vpop.f32.mrb[0].mxu0
      %v4424 = vadd.f32 0.0, %v4423
      %v4425 = vpop.f32.mrb[0].mxu0
      %4426 = vmatprep.mubr.f32.mxu0 0.0
      %4427 = vmatmul.mubr.f32.gmra.mrb[0].mxu0 %v4221
      %v4428 = vpop.f32.mrb[0].mxu0
      %v4429 = vadd.f32 0.0, %v4428
      %v4430 = vpop.f32.mrb[0].mxu0
      %4431 = vmatprep.mubr.f32.mxu0 0.0
      %4432 = vmatmul.mubr.f32.gmra.mrb[0].mxu0 %v4224
      %v4433 = vpop.f32.mrb[0].mxu0
      %v4434 = vadd.f32 0.0, %v4433
      %v4435 = vpop.f32.mrb[0].mxu0
      %4436 = vmatprep.mubr.f32.mxu0 0.0
      %4437 = vmatmul.mubr.f32.gmra.mrb[0].mxu0 %v4227
      %v4438 = vpop.f32.mrb[0].mxu0
      %v4439 = vadd.f32 0.0, %v4438
      %v4440 = vpop.f32.mrb[0].mxu0
      %4441 = vmatprep.mubr.f32.mxu0 0.0
      %4442 = vmatmul.mubr.f32.gmra.mrb[0].mxu0 %v4230
      %v4443 = vpop.f32.mrb[0].mxu0
      %v4444 = vadd.f32 0.0, %v4443
      %v4445 = vpop.f32.mrb[0].mxu0
      %4446 = vmatprep.mubr.f32.mxu0 0.0
      %4447 = vmatmul.mubr.f32.gmra.mrb[0].mxu0 %v4233
      %v4448 = vpop.f32.mrb[0].mxu0
      %v4449 = vadd.f32 0.0, %v4448
      %v4450 = vpop.f32.mrb[0].mxu0
      %4451 = vmatprep.mubr.f32.mxu0 0.0
      %4452 = vmatmul.mubr.f32.gmra.mrb[0].mxu0 %v4236
      %v4453 = vpop.f32.mrb[0].mxu0
      %v4454 = vadd.f32 0.0, %v4453
      %v4455 = vpop.f32.mrb[0].mxu0
      %4456 = vmatprep.mubr.f32.mxu0 0.0
      %4457 = vmatmul.mubr.f32.gmra.mrb[0].mxu0 %v4239
      %v4458 = vpop.f32.mrb[0].mxu0
      %v4459 = vadd.f32 0.0, %v4458
      %v4460 = vpop.f32.mrb[0].mxu0
      %4461 = vmatprep.mubr.f32.mxu0 0.0
      %4462 = vmatmul.mubr.f32.gmra.mrb[0].mxu0 %v4242
      %v4463 = vpop.f32.mrb[0].mxu0
      %v4464 = vadd.f32 0.0, %v4463
      %v4465 = vpop.f32.mrb[0].mxu0
      %4466 = vmatprep.mubr.f32.mxu0 0.0
      %4467 = vmatmul.mubr.f32.gmra.mrb[0].mxu0 %v4245
      %v4468 = vpop.f32.mrb[0].mxu0
      %v4469 = vadd.f32 0.0, %v4468
      %v4470 = vpop.f32.mrb[0].mxu0
      %4471 = vmatprep.mubr.f32.mxu0 0.0
      %4472 = vmatmul.mubr.f32.gmra.mrb[0].mxu0 %v4248
      %v4473 = vpop.f32.mrb[0].mxu0
      %v4474 = vadd.f32 0.0, %v4473
      %v4475 = vpop.f32.mrb[0].mxu0
      %4476 = vmatprep.mubr.f32.mxu0 0.0
      %4477 = vmatmul.mubr.f32.gmra.mrb[0].mxu0 %v4251
      %v4478 = vpop.f32.mrb[0].mxu0
      %v4479 = vadd.f32 0.0, %v4478
      %v4480 = vpop.f32.mrb[0].mxu0
      %4481 = vmatprep.mubr.f32.mxu0 0.0
      %4482 = vmatmul.mubr.f32.gmra.mrb[0].mxu0 %v4254
      %v4483 = vpop.f32.mrb[0].mxu0
      %v4484 = vadd.f32 0.0, %v4483
      %v4485 = vpop.f32.mrb[0].mxu0
      %4486 = vmatprep.mubr.f32.mxu0 0.0
      %4487 = vmatmul.mubr.f32.gmra.mrb[0].mxu0 %v4257
      %v4488 = vpop.f32.mrb[0].mxu0
      %v4489 = vadd.f32 0.0, %v4488
      %v4490 = vpop.f32.mrb[0].mxu0
      %4491 = vmatprep.mubr.f32.mxu0 0.0
      %4492 = vmatmul.mubr.f32.gmra.mrb[0].mxu0 %v4260
      %v4493 = vpop.f32.mrb[0].mxu0
      %v4494 = vadd.f32 0.0, %v4493
      %v4495 = vpop.f32.mrb[0].mxu0
      %4496 = vmatprep.mubr.f32.mxu0 0.0
      %4497 = vmatmul.mubr.f32.gmra.mrb[0].mxu0 %v4263
      %v4498 = vpop.f32.mrb[0].mxu0
      %v4499 = vadd.f32 0.0, %v4498
      %v4500 = vpop.f32.mrb[0].mxu0
      %4501 = vmatprep.mubr.f32.mxu0 0.0
      %4502 = vmatmul.mubr.f32.gmra.mrb[0].mxu0 %v4266
      %v4503 = vpop.f32.mrb[0].mxu0
      %v4504 = vadd.f32 0.0, %v4503
      %v4505 = vpop.f32.mrb[0].mxu0
      %4506 = vmatprep.mubr.f32.mxu0 0.0
      %4507 = vmatmul.mubr.f32.gmra.mrb[0].mxu0 %v4269
      %v4508 = vpop.f32.mrb[0].mxu0
      %v4509 = vadd.f32 0.0, %v4508
      %v4510 = vpop.f32.mrb[0].mxu0
      %4511 = vmatprep.mubr.f32.mxu0 0.0
      %4512 = vmatmul.mubr.f32.gmra.mrb[0].mxu0 %v4272
      %v4513 = vpop.f32.mrb[0].mxu0
      %v4514 = vadd.f32 0.0, %v4513
      %v4515 = vpop.f32.mrb[0].mxu0
      %4516 = vmatprep.mubr.f32.mxu0 0.0
      %4517 = vmatmul.mubr.f32.gmra.mrb[0].mxu0 %v4275
      %v4518 = vpop.f32.mrb[0].mxu0
      %v4519 = vadd.f32 0.0, %v4518
      %v4520 = vpop.f32.mrb[0].mxu0
      %4521 = vmatprep.mubr.f32.mxu0 0.0
      %4522 = vmatmul.mubr.f32.gmra.mrb[0].mxu0 %v4278
      %v4523 = vpop.f32.mrb[0].mxu0
      %v4524 = vadd.f32 0.0, %v4523
      %v4525 = vpop.f32.mrb[0].mxu0
      %4526 = vmatprep.mubr.f32.mxu0 0.0
      %4527 = vmatmul.mubr.f32.gmra.mrb[0].mxu0 %v4281
      %v4528 = vpop.f32.mrb[0].mxu0
      %v4529 = vadd.f32 0.0, %v4528
      %v4530 = vpop.f32.mrb[0].mxu0
      %4531 = vmatprep.mubr.f32.mxu0 0.0
      %4532 = vmatmul.mubr.f32.gmra.mrb[0].mxu0 %v4284
      %v4533 = vpop.f32.mrb[0].mxu0
      %v4534 = vadd.f32 0.0, %v4533
      %v4535 = vpop.f32.mrb[0].mxu0
      %4536 = vmatprep.mubr.f32.mxu0 0.0
      %4537 = vmatmul.mubr.f32.gmra.mrb[0].mxu0 %v4287
      %v4538 = vpop.f32.mrb[0].mxu0
      %v4539 = vadd.f32 0.0, %v4538
      %v4540 = vpop.f32.mrb[0].mxu0
      %4541 = vmatprep.mubr.f32.mxu0 0.0
      %4542 = vmatmul.mubr.f32.gmra.mrb[0].mxu0 %v4290
      %v4543 = vpop.f32.mrb[0].mxu0
      %v4544 = vadd.f32 0.0, %v4543
      %v4545 = vpop.f32.mrb[0].mxu0
      %4546 = vmatprep.mubr.f32.mxu0 0.0
      %4547 = vmatmul.mubr.f32.gmra.mrb[0].mxu0 %v4293
      %v4548 = vpop.f32.mrb[0].mxu0
      %v4549 = vadd.f32 0.0, %v4548
      %v4550 = vpop.f32.mrb[0].mxu0
      %4551 = vmatprep.mubr.f32.mxu0 0.0
      %4552 = vmatmul.mubr.f32.gmra.mrb[0].mxu0 %v4296
      %v4553 = vpop.f32.mrb[0].mxu0
      %v4554 = vadd.f32 0.0, %v4553
      %v4555 = vpop.f32.mrb[0].mxu0
      %4556 = vmatprep.mubr.f32.mxu0 0.0
      %4557 = vmatmul.mubr.f32.gmra.mrb[0].mxu0 %v4299
      %v4558 = vpop.f32.mrb[0].mxu0
      %v4559 = vadd.f32 0.0, %v4558
      %v4560 = vpop.f32.mrb[0].mxu0
      %4561 = vmatprep.mubr.f32.mxu0 0.0
      %4562 = vmatmul.mubr.f32.gmra.mrb[0].mxu0 %v4302
      %v4563 = vpop.f32.mrb[0].mxu0
      %v4564 = vadd.f32 0.0, %v4563
      %v4565 = vpop.f32.mrb[0].mxu0
      %4566 = vmatprep.mubr.f32.mxu0 0.0
      %4567 = vmatmul.mubr.f32.gmra.mrb[0].mxu0 %v4305
      %v4568 = vpop.f32.mrb[0].mxu0
      %v4569 = vadd.f32 0.0, %v4568
      %v4570 = vpop.f32.mrb[0].mxu0
      %4571 = vmatprep.mubr.f32.mxu0 0.0
      %4572 = vmatmul.mubr.f32.gmra.mrb[0].mxu0 %v4308
      %v4573 = vpop.f32.mrb[0].mxu0
      %v4574 = vadd.f32 0.0, %v4573
      %v4575 = vpop.f32.mrb[0].mxu0
      %4576 = vmatprep.mubr.f32.mxu0 0.0
      %4577 = vmatmul.mubr.f32.gmra.mrb[0].mxu0 %v4311
      %v4578 = vpop.f32.mrb[0].mxu0
      %v4579 = vadd.f32 0.0, %v4578
      %v4580 = vpop.f32.mrb[0].mxu0
      %4581 = vmatprep.mubr.f32.mxu0 0.0
      %4582 = vmatmul.mubr.f32.gmra.mrb[0].mxu0 %v4314
      %v4583 = vpop.f32.mrb[0].mxu0
      %v4584 = vadd.f32 0.0, %v4583
      %v4585 = vpop.f32.mrb[0].mxu0
      %4586 = vmatprep.mubr.f32.mxu0 0.0
      %4587 = vmatmul.mubr.f32.gmra.mrb[0].mxu0 %v4317
      %v4588 = vpop.f32.mrb[0].mxu0
      %v4589 = vadd.f32 0.0, %v4588
      %v4590 = vpop.f32.mrb[0].mxu0
      %4591 = vdwg.mxu0
      %v4592 = vadd.f32 %v4113, %v4389
      %v4593 = vadd.f32 %v4114, %v4394
      %v4594 = vadd.f32 %v4115, %v4399
      %v4595 = vadd.f32 %v4116, %v4404
      %v4596 = vadd.f32 %v4117, %v4409
      %v4597 = vadd.f32 %v4118, %v4414
      %v4598 = vadd.f32 %v4119, %v4419
      %v4599 = vadd.f32 %v4120, %v4424
      %v4600 = vadd.f32 %v4121, %v4429
      %v4601 = vadd.f32 %v4122, %v4434
      %v4602 = vadd.f32 %v4123, %v4439
      %v4603 = vadd.f32 %v4124, %v4444
      %v4604 = vadd.f32 %v4125, %v4449
      %v4605 = vadd.f32 %v4126, %v4454
      %v4606 = vadd.f32 %v4127, %v4459
      %v4607 = vadd.f32 %v4128, %v4464
      %v4608 = vadd.f32 %v4129, %v4469
      %v4609 = vadd.f32 %v4130, %v4474
      %v4610 = vadd.f32 %v4131, %v4479
      %v4611 = vadd.f32 %v4132, %v4484
      %v4612 = vadd.f32 %v4133, %v4489
      %v4613 = vadd.f32 %v4134, %v4494
      %v4614 = vadd.f32 %v4135, %v4499
      %v4615 = vadd.f32 %v4136, %v4504
      %v4616 = vadd.f32 %v4137, %v4509
      %v4617 = vadd.f32 %v4138, %v4514
      %v4618 = vadd.f32 %v4139, %v4519
      %v4619 = vadd.f32 %v4140, %v4524
      %v4620 = vadd.f32 %v4141, %v4529
      %v4621 = vadd.f32 %v4142, %v4534
      %v4622 = vadd.f32 %v4143, %v4539
      %v4623 = vadd.f32 %v4144, %v4544
      %v4624 = vadd.f32 %v4145, %v4549
      %v4625 = vadd.f32 %v4146, %v4554
      %v4626 = vadd.f32 %v4147, %v4559
      %v4627 = vadd.f32 %v4148, %v4564
      %v4628 = vadd.f32 %v4149, %v4569
      %v4629 = vadd.f32 %v4150, %v4574
      %v4630 = vadd.f32 %v4151, %v4579
      %v4631 = vadd.f32 %v4152, %v4584
      %v4632 = vadd.f32 %v4153, %v4589
      %v4633 = vld [vmem:[#allocation2 + $0x25] sm:$0xff]
      %v4634 = vld [vmem:[#allocation2 + $0x2d] sm:$0xff]
      %v4635 = vld [vmem:[#allocation2 + $0x35] sm:$0xff]
      %v4636 = vld [vmem:[#allocation2 + $0x3d] sm:$0xff]
      %v4637 = vld [vmem:[#allocation2 + $0x45] sm:$0xff]
      %v4638 = vld [vmem:[#allocation2 + $0x4d] sm:$0xff]
      %v4639 = vld [vmem:[#allocation2 + $0x55] sm:$0xff]
      %v4640 = vld [vmem:[#allocation2 + $0x5d] sm:$0xff]
      %v4641 = vld [vmem:[#allocation2 + $0x65] sm:$0xff]
      %v4642 = vld [vmem:[#allocation2 + $0x6d] sm:$0xff]
      %v4643 = vld [vmem:[#allocation2 + $0x75] sm:$0xff]
      %v4644 = vld [vmem:[#allocation2 + $0x7d] sm:$0xff]
      %v4645 = vld [vmem:[#allocation2 + $0x85] sm:$0xff]
      %v4646 = vld [vmem:[#allocation2 + $0x8d] sm:$0xff]
      %v4647 = vld [vmem:[#allocation2 + $0x95] sm:$0xff]
      %v4648 = vld [vmem:[#allocation2 + $0x9d] sm:$0xff]
      %v4649 = vld [vmem:[#allocation2 + $0xa5] sm:$0xff]
      %v4650 = vld [vmem:[#allocation2 + $0xad] sm:$0xff]
      %v4651 = vld [vmem:[#allocation2 + $0xb5] sm:$0xff]
      %v4652 = vld [vmem:[#allocation2 + $0xbd] sm:$0xff]
      %v4653 = vld [vmem:[#allocation2 + $0xc5] sm:$0xff]
      %v4654 = vld [vmem:[#allocation2 + $0xcd] sm:$0xff]
      %v4655 = vld [vmem:[#allocation2 + $0xd5] sm:$0xff]
      %v4656 = vld [vmem:[#allocation2 + $0xdd] sm:$0xff]
      %v4657 = vld [vmem:[#allocation2 + $0xe5] sm:$0xff]
      %v4658 = vld [vmem:[#allocation2 + $0xed] sm:$0xff]
      %v4659 = vld [vmem:[#allocation2 + $0xf5] sm:$0xff]
      %v4660 = vld [vmem:[#allocation2 + $0xfd] sm:$0xff]
      %v4661 = vld [vmem:[#allocation2 + $0x105] sm:$0xff]
      %v4662 = vld [vmem:[#allocation2 + $0x10d] sm:$0xff]
      %v4663 = vld [vmem:[#allocation2 + $0x115] sm:$0xff]
      %v4664 = vld [vmem:[#allocation2 + $0x11d] sm:$0xff]
      %v4665 = vld [vmem:[#allocation2 + $0x125] sm:$0xff]
      %v4666 = vld [vmem:[#allocation2 + $0x12d] sm:$0xff]
      %v4667 = vld [vmem:[#allocation2 + $0x135] sm:$0xff]
      %v4668 = vld [vmem:[#allocation2 + $0x13d] sm:$0xff]
      %v4669 = vld [vmem:[#allocation2 + $0x145] sm:$0xff]
      %v4670 = vld [vmem:[#allocation2 + $0x14d] sm:$0xff]
      %v4671 = vld [vmem:[#allocation2 + $0x155] sm:$0xff]
      %v4672 = vld [vmem:[#allocation2 + $0x15d] sm:$0xff]
      %v4673 = vld [vmem:[#allocation2 + $0x165] sm:$0xf]
      %v4674 = vld [vmem:[%s4 + $0x1c] sm:$0xf]
      %v4676 = vsel %vm301, %v4633, 0
      %v4679 = vsel %vm301, %v4634, 0
      %v4682 = vsel %vm301, %v4635, 0
      %v4685 = vsel %vm301, %v4636, 0
      %v4688 = vsel %vm301, %v4637, 0
      %v4691 = vsel %vm301, %v4638, 0
      %v4694 = vsel %vm301, %v4639, 0
      %v4697 = vsel %vm301, %v4640, 0
      %v4700 = vsel %vm301, %v4641, 0
      %v4703 = vsel %vm301, %v4642, 0
      %v4706 = vsel %vm301, %v4643, 0
      %v4709 = vsel %vm301, %v4644, 0
      %v4712 = vsel %vm301, %v4645, 0
      %v4715 = vsel %vm301, %v4646, 0
      %v4718 = vsel %vm301, %v4647, 0
      %v4721 = vsel %vm301, %v4648, 0
      %v4724 = vsel %vm301, %v4649, 0
      %v4727 = vsel %vm301, %v4650, 0
      %v4730 = vsel %vm301, %v4651, 0
      %v4733 = vsel %vm301, %v4652, 0
      %v4736 = vsel %vm301, %v4653, 0
      %v4739 = vsel %vm301, %v4654, 0
      %v4742 = vsel %vm301, %v4655, 0
      %v4745 = vsel %vm301, %v4656, 0
      %v4748 = vsel %vm301, %v4657, 0
      %v4751 = vsel %vm301, %v4658, 0
      %v4754 = vsel %vm301, %v4659, 0
      %v4757 = vsel %vm301, %v4660, 0
      %v4760 = vsel %vm301, %v4661, 0
      %v4763 = vsel %vm301, %v4662, 0
      %v4766 = vsel %vm301, %v4663, 0
      %v4769 = vsel %vm301, %v4664, 0
      %v4772 = vsel %vm301, %v4665, 0
      %v4775 = vsel %vm301, %v4666, 0
      %v4778 = vsel %vm301, %v4667, 0
      %v4781 = vsel %vm301, %v4668, 0
      %v4784 = vsel %vm301, %v4669, 0
      %v4787 = vsel %vm301, %v4670, 0
      %v4790 = vsel %vm301, %v4671, 0
      %v4793 = vsel %vm301, %v4672, 0
      %v4796 = vsel %vm301, %v4673, 0
      %v4799 = vsel %vm425, %v4674, 0
      %4801 = vmatprep.subr.mxu0 0.0
      %4802 = vmatpush1.msra.mxu0 %v4799
      %4803 = vmatprep.subr.mxu0 0.0
      %4804 = vmatpush1.msra.mxu0 0.0
      %4805 = vmatprep.subr.mxu0 0.0
      %4806 = vmatpush1.msra.mxu0 0.0
      %4807 = vmatprep.subr.mxu0 0.0
      %4808 = vmatpush1.msra.mxu0 0.0
      %4809 = vmatprep.subr.mxu0 0.0
      %4810 = vmatpush1.msra.mxu0 0.0
      %4811 = vmatprep.subr.mxu0 0.0
      %4812 = vmatpush1.msra.mxu0 0.0
      %4813 = vmatprep.subr.mxu0 0.0
      %4814 = vmatpush1.msra.mxu0 0.0
      %4815 = vmatprep.subr.mxu0 0.0
      %4816 = vmatpush1.msra.mxu0 0.0
      %4817 = vmatprep.subr.mxu0 0.0
      %4818 = vmatpush1.msra.mxu0 0.0
      %4819 = vmatprep.subr.mxu0 0.0
      %4820 = vmatpush1.msra.mxu0 0.0
      %4821 = vmatprep.subr.mxu0 0.0
      %4822 = vmatpush1.msra.mxu0 0.0
      %4823 = vmatprep.subr.mxu0 0.0
      %4824 = vmatpush1.msra.mxu0 0.0
      %4825 = vmatprep.subr.mxu0 0.0
      %4826 = vmatpush1.msra.mxu0 0.0
      %4827 = vmatprep.subr.mxu0 0.0
      %4828 = vmatpush1.msra.mxu0 0.0
      %4829 = vmatprep.subr.mxu0 0.0
      %4830 = vmatpush1.msra.mxu0 0.0
      %4831 = vmatprep.subr.mxu0 0.0
      %4832 = vmatpush1.msra.mxu0 0.0
      %4833 = vmatprep.subr.mxu0 0.0
      %4834 = vmatpush1.msra.mxu0 0.0
      %4835 = vmatprep.subr.mxu0 0.0
      %4836 = vmatpush1.msra.mxu0 0.0
      %4837 = vmatprep.subr.mxu0 0.0
      %4838 = vmatpush1.msra.mxu0 0.0
      %4839 = vmatprep.subr.mxu0 0.0
      %4840 = vmatpush1.msra.mxu0 0.0
      %4841 = vmatprep.subr.mxu0 0.0
      %4842 = vmatpush1.msra.mxu0 0.0
      %4843 = vmatprep.subr.mxu0 0.0
      %4844 = vmatpush1.msra.mxu0 0.0
      %4845 = vmatprep.subr.mxu0 0.0
      %4846 = vmatpush1.msra.mxu0 0.0
      %4847 = vmatprep.subr.mxu0 0.0
      %4848 = vmatpush1.msra.mxu0 0.0
      %4849 = vmatprep.subr.mxu0 0.0
      %4850 = vmatpush1.msra.mxu0 0.0
      %4851 = vmatprep.subr.mxu0 0.0
      %4852 = vmatpush1.msra.mxu0 0.0
      %4853 = vmatprep.subr.mxu0 0.0
      %4854 = vmatpush1.msra.mxu0 0.0
      %4855 = vmatprep.subr.mxu0 0.0
      %4856 = vmatpush1.msra.mxu0 0.0
      %4857 = vmatprep.subr.mxu0 0.0
      %4858 = vmatpush1.msra.mxu0 0.0
      %4859 = vmatprep.subr.mxu0 0.0
      %4860 = vmatpush1.msra.mxu0 0.0
      %4861 = vmatprep.subr.mxu0 0.0
      %4862 = vmatpush1.msra.mxu0 0.0
      %4863 = vmatprep.subr.mxu0 0.0
      %4864 = vmatpush1.msra.mxu0 0.0
      %4865 = vmatprep.mubr.f32.mxu0 0.0
      %4866 = vmatmul.mubr.f32.gmra.mrb[0].mxu0 %v4676
      %v4867 = vpop.f32.mrb[0].mxu0
      %v4868 = vadd.f32 0.0, %v4867
      %v4869 = vpop.f32.mrb[0].mxu0
      %4870 = vmatprep.mubr.f32.mxu0 0.0
      %4871 = vmatmul.mubr.f32.gmra.mrb[0].mxu0 %v4679
      %v4872 = vpop.f32.mrb[0].mxu0
      %v4873 = vadd.f32 0.0, %v4872
      %v4874 = vpop.f32.mrb[0].mxu0
      %4875 = vmatprep.mubr.f32.mxu0 0.0
      %4876 = vmatmul.mubr.f32.gmra.mrb[0].mxu0 %v4682
      %v4877 = vpop.f32.mrb[0].mxu0
      %v4878 = vadd.f32 0.0, %v4877
      %v4879 = vpop.f32.mrb[0].mxu0
      %4880 = vmatprep.mubr.f32.mxu0 0.0
      %4881 = vmatmul.mubr.f32.gmra.mrb[0].mxu0 %v4685
      %v4882 = vpop.f32.mrb[0].mxu0
      %v4883 = vadd.f32 0.0, %v4882
      %v4884 = vpop.f32.mrb[0].mxu0
      %4885 = vmatprep.mubr.f32.mxu0 0.0
      %4886 = vmatmul.mubr.f32.gmra.mrb[0].mxu0 %v4688
      %v4887 = vpop.f32.mrb[0].mxu0
      %v4888 = vadd.f32 0.0, %v4887
      %v4889 = vpop.f32.mrb[0].mxu0
      %4890 = vmatprep.mubr.f32.mxu0 0.0
      %4891 = vmatmul.mubr.f32.gmra.mrb[0].mxu0 %v4691
      %v4892 = vpop.f32.mrb[0].mxu0
      %v4893 = vadd.f32 0.0, %v4892
      %v4894 = vpop.f32.mrb[0].mxu0
      %4895 = vmatprep.mubr.f32.mxu0 0.0
      %4896 = vmatmul.mubr.f32.gmra.mrb[0].mxu0 %v4694
      %v4897 = vpop.f32.mrb[0].mxu0
      %v4898 = vadd.f32 0.0, %v4897
      %v4899 = vpop.f32.mrb[0].mxu0
      %4900 = vmatprep.mubr.f32.mxu0 0.0
      %4901 = vmatmul.mubr.f32.gmra.mrb[0].mxu0 %v4697
      %v4902 = vpop.f32.mrb[0].mxu0
      %v4903 = vadd.f32 0.0, %v4902
      %v4904 = vpop.f32.mrb[0].mxu0
      %4905 = vmatprep.mubr.f32.mxu0 0.0
      %4906 = vmatmul.mubr.f32.gmra.mrb[0].mxu0 %v4700
      %v4907 = vpop.f32.mrb[0].mxu0
      %v4908 = vadd.f32 0.0, %v4907
      %v4909 = vpop.f32.mrb[0].mxu0
      %4910 = vmatprep.mubr.f32.mxu0 0.0
      %4911 = vmatmul.mubr.f32.gmra.mrb[0].mxu0 %v4703
      %v4912 = vpop.f32.mrb[0].mxu0
      %v4913 = vadd.f32 0.0, %v4912
      %v4914 = vpop.f32.mrb[0].mxu0
      %4915 = vmatprep.mubr.f32.mxu0 0.0
      %4916 = vmatmul.mubr.f32.gmra.mrb[0].mxu0 %v4706
      %v4917 = vpop.f32.mrb[0].mxu0
      %v4918 = vadd.f32 0.0, %v4917
      %v4919 = vpop.f32.mrb[0].mxu0
      %4920 = vmatprep.mubr.f32.mxu0 0.0
      %4921 = vmatmul.mubr.f32.gmra.mrb[0].mxu0 %v4709
      %v4922 = vpop.f32.mrb[0].mxu0
      %v4923 = vadd.f32 0.0, %v4922
      %v4924 = vpop.f32.mrb[0].mxu0
      %4925 = vmatprep.mubr.f32.mxu0 0.0
      %4926 = vmatmul.mubr.f32.gmra.mrb[0].mxu0 %v4712
      %v4927 = vpop.f32.mrb[0].mxu0
      %v4928 = vadd.f32 0.0, %v4927
      %v4929 = vpop.f32.mrb[0].mxu0
      %4930 = vmatprep.mubr.f32.mxu0 0.0
      %4931 = vmatmul.mubr.f32.gmra.mrb[0].mxu0 %v4715
      %v4932 = vpop.f32.mrb[0].mxu0
      %v4933 = vadd.f32 0.0, %v4932
      %v4934 = vpop.f32.mrb[0].mxu0
      %4935 = vmatprep.mubr.f32.mxu0 0.0
      %4936 = vmatmul.mubr.f32.gmra.mrb[0].mxu0 %v4718
      %v4937 = vpop.f32.mrb[0].mxu0
      %v4938 = vadd.f32 0.0, %v4937
      %v4939 = vpop.f32.mrb[0].mxu0
      %4940 = vmatprep.mubr.f32.mxu0 0.0
      %4941 = vmatmul.mubr.f32.gmra.mrb[0].mxu0 %v4721
      %v4942 = vpop.f32.mrb[0].mxu0
      %v4943 = vadd.f32 0.0, %v4942
      %v4944 = vpop.f32.mrb[0].mxu0
      %4945 = vmatprep.mubr.f32.mxu0 0.0
      %4946 = vmatmul.mubr.f32.gmra.mrb[0].mxu0 %v4724
      %v4947 = vpop.f32.mrb[0].mxu0
      %v4948 = vadd.f32 0.0, %v4947
      %v4949 = vpop.f32.mrb[0].mxu0
      %4950 = vmatprep.mubr.f32.mxu0 0.0
      %4951 = vmatmul.mubr.f32.gmra.mrb[0].mxu0 %v4727
      %v4952 = vpop.f32.mrb[0].mxu0
      %v4953 = vadd.f32 0.0, %v4952
      %v4954 = vpop.f32.mrb[0].mxu0
      %4955 = vmatprep.mubr.f32.mxu0 0.0
      %4956 = vmatmul.mubr.f32.gmra.mrb[0].mxu0 %v4730
      %v4957 = vpop.f32.mrb[0].mxu0
      %v4958 = vadd.f32 0.0, %v4957
      %v4959 = vpop.f32.mrb[0].mxu0
      %4960 = vmatprep.mubr.f32.mxu0 0.0
      %4961 = vmatmul.mubr.f32.gmra.mrb[0].mxu0 %v4733
      %v4962 = vpop.f32.mrb[0].mxu0
      %v4963 = vadd.f32 0.0, %v4962
      %v4964 = vpop.f32.mrb[0].mxu0
      %4965 = vmatprep.mubr.f32.mxu0 0.0
      %4966 = vmatmul.mubr.f32.gmra.mrb[0].mxu0 %v4736
      %v4967 = vpop.f32.mrb[0].mxu0
      %v4968 = vadd.f32 0.0, %v4967
      %v4969 = vpop.f32.mrb[0].mxu0
      %4970 = vmatprep.mubr.f32.mxu0 0.0
      %4971 = vmatmul.mubr.f32.gmra.mrb[0].mxu0 %v4739
      %v4972 = vpop.f32.mrb[0].mxu0
      %v4973 = vadd.f32 0.0, %v4972
      %v4974 = vpop.f32.mrb[0].mxu0
      %4975 = vmatprep.mubr.f32.mxu0 0.0
      %4976 = vmatmul.mubr.f32.gmra.mrb[0].mxu0 %v4742
      %v4977 = vpop.f32.mrb[0].mxu0
      %v4978 = vadd.f32 0.0, %v4977
      %v4979 = vpop.f32.mrb[0].mxu0
      %4980 = vmatprep.mubr.f32.mxu0 0.0
      %4981 = vmatmul.mubr.f32.gmra.mrb[0].mxu0 %v4745
      %v4982 = vpop.f32.mrb[0].mxu0
      %v4983 = vadd.f32 0.0, %v4982
      %v4984 = vpop.f32.mrb[0].mxu0
      %4985 = vmatprep.mubr.f32.mxu0 0.0
      %4986 = vmatmul.mubr.f32.gmra.mrb[0].mxu0 %v4748
      %v4987 = vpop.f32.mrb[0].mxu0
      %v4988 = vadd.f32 0.0, %v4987
      %v4989 = vpop.f32.mrb[0].mxu0
      %4990 = vmatprep.mubr.f32.mxu0 0.0
      %4991 = vmatmul.mubr.f32.gmra.mrb[0].mxu0 %v4751
      %v4992 = vpop.f32.mrb[0].mxu0
      %v4993 = vadd.f32 0.0, %v4992
      %v4994 = vpop.f32.mrb[0].mxu0
      %4995 = vmatprep.mubr.f32.mxu0 0.0
      %4996 = vmatmul.mubr.f32.gmra.mrb[0].mxu0 %v4754
      %v4997 = vpop.f32.mrb[0].mxu0
      %v4998 = vadd.f32 0.0, %v4997
      %v4999 = vpop.f32.mrb[0].mxu0
      %5000 = vmatprep.mubr.f32.mxu0 0.0
      %5001 = vmatmul.mubr.f32.gmra.mrb[0].mxu0 %v4757
      %v5002 = vpop.f32.mrb[0].mxu0
      %v5003 = vadd.f32 0.0, %v5002
      %v5004 = vpop.f32.mrb[0].mxu0
      %5005 = vmatprep.mubr.f32.mxu0 0.0
      %5006 = vmatmul.mubr.f32.gmra.mrb[0].mxu0 %v4760
      %v5007 = vpop.f32.mrb[0].mxu0
      %v5008 = vadd.f32 0.0, %v5007
      %v5009 = vpop.f32.mrb[0].mxu0
      %5010 = vmatprep.mubr.f32.mxu0 0.0
      %5011 = vmatmul.mubr.f32.gmra.mrb[0].mxu0 %v4763
      %v5012 = vpop.f32.mrb[0].mxu0
      %v5013 = vadd.f32 0.0, %v5012
      %v5014 = vpop.f32.mrb[0].mxu0
      %5015 = vmatprep.mubr.f32.mxu0 0.0
      %5016 = vmatmul.mubr.f32.gmra.mrb[0].mxu0 %v4766
      %v5017 = vpop.f32.mrb[0].mxu0
      %v5018 = vadd.f32 0.0, %v5017
      %v5019 = vpop.f32.mrb[0].mxu0
      %5020 = vmatprep.mubr.f32.mxu0 0.0
      %5021 = vmatmul.mubr.f32.gmra.mrb[0].mxu0 %v4769
      %v5022 = vpop.f32.mrb[0].mxu0
      %v5023 = vadd.f32 0.0, %v5022
      %v5024 = vpop.f32.mrb[0].mxu0
      %5025 = vmatprep.mubr.f32.mxu0 0.0
      %5026 = vmatmul.mubr.f32.gmra.mrb[0].mxu0 %v4772
      %v5027 = vpop.f32.mrb[0].mxu0
      %v5028 = vadd.f32 0.0, %v5027
      %v5029 = vpop.f32.mrb[0].mxu0
      %5030 = vmatprep.mubr.f32.mxu0 0.0
      %5031 = vmatmul.mubr.f32.gmra.mrb[0].mxu0 %v4775
      %v5032 = vpop.f32.mrb[0].mxu0
      %v5033 = vadd.f32 0.0, %v5032
      %v5034 = vpop.f32.mrb[0].mxu0
      %5035 = vmatprep.mubr.f32.mxu0 0.0
      %5036 = vmatmul.mubr.f32.gmra.mrb[0].mxu0 %v4778
      %v5037 = vpop.f32.mrb[0].mxu0
      %v5038 = vadd.f32 0.0, %v5037
      %v5039 = vpop.f32.mrb[0].mxu0
      %5040 = vmatprep.mubr.f32.mxu0 0.0
      %5041 = vmatmul.mubr.f32.gmra.mrb[0].mxu0 %v4781
      %v5042 = vpop.f32.mrb[0].mxu0
      %v5043 = vadd.f32 0.0, %v5042
      %v5044 = vpop.f32.mrb[0].mxu0
      %5045 = vmatprep.mubr.f32.mxu0 0.0
      %5046 = vmatmul.mubr.f32.gmra.mrb[0].mxu0 %v4784
      %v5047 = vpop.f32.mrb[0].mxu0
      %v5048 = vadd.f32 0.0, %v5047
      %v5049 = vpop.f32.mrb[0].mxu0
      %5050 = vmatprep.mubr.f32.mxu0 0.0
      %5051 = vmatmul.mubr.f32.gmra.mrb[0].mxu0 %v4787
      %v5052 = vpop.f32.mrb[0].mxu0
      %v5053 = vadd.f32 0.0, %v5052
      %v5054 = vpop.f32.mrb[0].mxu0
      %5055 = vmatprep.mubr.f32.mxu0 0.0
      %5056 = vmatmul.mubr.f32.gmra.mrb[0].mxu0 %v4790
      %v5057 = vpop.f32.mrb[0].mxu0
      %v5058 = vadd.f32 0.0, %v5057
      %v5059 = vpop.f32.mrb[0].mxu0
      %5060 = vmatprep.mubr.f32.mxu0 0.0
      %5061 = vmatmul.mubr.f32.gmra.mrb[0].mxu0 %v4793
      %v5062 = vpop.f32.mrb[0].mxu0
      %v5063 = vadd.f32 0.0, %v5062
      %v5064 = vpop.f32.mrb[0].mxu0
      %5065 = vmatprep.mubr.f32.mxu0 0.0
      %5066 = vmatmul.mubr.f32.gmra.mrb[0].mxu0 %v4796
      %v5067 = vpop.f32.mrb[0].mxu0
      %v5068 = vadd.f32 0.0, %v5067
      %v5069 = vpop.f32.mrb[0].mxu0
      %5070 = vdwg.mxu0
      %v5071 = vadd.f32 %v4592, %v4868
      %v5072 = vadd.f32 %v4593, %v4873
      %v5073 = vadd.f32 %v4594, %v4878
      %v5074 = vadd.f32 %v4595, %v4883
      %v5075 = vadd.f32 %v4596, %v4888
      %v5076 = vadd.f32 %v4597, %v4893
      %v5077 = vadd.f32 %v4598, %v4898
      %v5078 = vadd.f32 %v4599, %v4903
      %v5079 = vadd.f32 %v4600, %v4908
      %v5080 = vadd.f32 %v4601, %v4913
      %v5081 = vadd.f32 %v4602, %v4918
      %v5082 = vadd.f32 %v4603, %v4923
      %v5083 = vadd.f32 %v4604, %v4928
      %v5084 = vadd.f32 %v4605, %v4933
      %v5085 = vadd.f32 %v4606, %v4938
      %v5086 = vadd.f32 %v4607, %v4943
      %v5087 = vadd.f32 %v4608, %v4948
      %v5088 = vadd.f32 %v4609, %v4953
      %v5089 = vadd.f32 %v4610, %v4958
      %v5090 = vadd.f32 %v4611, %v4963
      %v5091 = vadd.f32 %v4612, %v4968
      %v5092 = vadd.f32 %v4613, %v4973
      %v5093 = vadd.f32 %v4614, %v4978
      %v5094 = vadd.f32 %v4615, %v4983
      %v5095 = vadd.f32 %v4616, %v4988
      %v5096 = vadd.f32 %v4617, %v4993
      %v5097 = vadd.f32 %v4618, %v4998
      %v5098 = vadd.f32 %v4619, %v5003
      %v5099 = vadd.f32 %v4620, %v5008
      %v5100 = vadd.f32 %v4621, %v5013
      %v5101 = vadd.f32 %v4622, %v5018
      %v5102 = vadd.f32 %v4623, %v5023
      %v5103 = vadd.f32 %v4624, %v5028
      %v5104 = vadd.f32 %v4625, %v5033
      %v5105 = vadd.f32 %v4626, %v5038
      %v5106 = vadd.f32 %v4627, %v5043
      %v5107 = vadd.f32 %v4628, %v5048
      %v5108 = vadd.f32 %v4629, %v5053
      %v5109 = vadd.f32 %v4630, %v5058
      %v5110 = vadd.f32 %v4631, %v5063
      %v5111 = vadd.f32 %v4632, %v5068
      %v5112 = vld [vmem:[#allocation2 + $0x26] sm:$0xff]
      %v5113 = vld [vmem:[#allocation2 + $0x2e] sm:$0xff]
      %v5114 = vld [vmem:[#allocation2 + $0x36] sm:$0xff]
      %v5115 = vld [vmem:[#allocation2 + $0x3e] sm:$0xff]
      %v5116 = vld [vmem:[#allocation2 + $0x46] sm:$0xff]
      %v5117 = vld [vmem:[#allocation2 + $0x4e] sm:$0xff]
      %v5118 = vld [vmem:[#allocation2 + $0x56] sm:$0xff]
      %v5119 = vld [vmem:[#allocation2 + $0x5e] sm:$0xff]
      %v5120 = vld [vmem:[#allocation2 + $0x66] sm:$0xff]
      %v5121 = vld [vmem:[#allocation2 + $0x6e] sm:$0xff]
      %v5122 = vld [vmem:[#allocation2 + $0x76] sm:$0xff]
      %v5123 = vld [vmem:[#allocation2 + $0x7e] sm:$0xff]
      %v5124 = vld [vmem:[#allocation2 + $0x86] sm:$0xff]
      %v5125 = vld [vmem:[#allocation2 + $0x8e] sm:$0xff]
      %v5126 = vld [vmem:[#allocation2 + $0x96] sm:$0xff]
      %v5127 = vld [vmem:[#allocation2 + $0x9e] sm:$0xff]
      %v5128 = vld [vmem:[#allocation2 + $0xa6] sm:$0xff]
      %v5129 = vld [vmem:[#allocation2 + $0xae] sm:$0xff]
      %v5130 = vld [vmem:[#allocation2 + $0xb6] sm:$0xff]
      %v5131 = vld [vmem:[#allocation2 + $0xbe] sm:$0xff]
      %v5132 = vld [vmem:[#allocation2 + $0xc6] sm:$0xff]
      %v5133 = vld [vmem:[#allocation2 + $0xce] sm:$0xff]
      %v5134 = vld [vmem:[#allocation2 + $0xd6] sm:$0xff]
      %v5135 = vld [vmem:[#allocation2 + $0xde] sm:$0xff]
      %v5136 = vld [vmem:[#allocation2 + $0xe6] sm:$0xff]
      %v5137 = vld [vmem:[#allocation2 + $0xee] sm:$0xff]
      %v5138 = vld [vmem:[#allocation2 + $0xf6] sm:$0xff]
      %v5139 = vld [vmem:[#allocation2 + $0xfe] sm:$0xff]
      %v5140 = vld [vmem:[#allocation2 + $0x106] sm:$0xff]
      %v5141 = vld [vmem:[#allocation2 + $0x10e] sm:$0xff]
      %v5142 = vld [vmem:[#allocation2 + $0x116] sm:$0xff]
      %v5143 = vld [vmem:[#allocation2 + $0x11e] sm:$0xff]
      %v5144 = vld [vmem:[#allocation2 + $0x126] sm:$0xff]
      %v5145 = vld [vmem:[#allocation2 + $0x12e] sm:$0xff]
      %v5146 = vld [vmem:[#allocation2 + $0x136] sm:$0xff]
      %v5147 = vld [vmem:[#allocation2 + $0x13e] sm:$0xff]
      %v5148 = vld [vmem:[#allocation2 + $0x146] sm:$0xff]
      %v5149 = vld [vmem:[#allocation2 + $0x14e] sm:$0xff]
      %v5150 = vld [vmem:[#allocation2 + $0x156] sm:$0xff]
      %v5151 = vld [vmem:[#allocation2 + $0x15e] sm:$0xff]
      %v5152 = vld [vmem:[#allocation2 + $0x166] sm:$0xf]
      %v5153 = vld [vmem:[%s4 + $0x20] sm:$0xf]
      %v5155 = vsel %vm301, %v5112, 0
      %v5158 = vsel %vm301, %v5113, 0
      %v5161 = vsel %vm301, %v5114, 0
      %v5164 = vsel %vm301, %v5115, 0
      %v5167 = vsel %vm301, %v5116, 0
      %v5170 = vsel %vm301, %v5117, 0
      %v5173 = vsel %vm301, %v5118, 0
      %v5176 = vsel %vm301, %v5119, 0
      %v5179 = vsel %vm301, %v5120, 0
      %v5182 = vsel %vm301, %v5121, 0
      %v5185 = vsel %vm301, %v5122, 0
      %v5188 = vsel %vm301, %v5123, 0
      %v5191 = vsel %vm301, %v5124, 0
      %v5194 = vsel %vm301, %v5125, 0
      %v5197 = vsel %vm301, %v5126, 0
      %v5200 = vsel %vm301, %v5127, 0
      %v5203 = vsel %vm301, %v5128, 0
      %v5206 = vsel %vm301, %v5129, 0
      %v5209 = vsel %vm301, %v5130, 0
      %v5212 = vsel %vm301, %v5131, 0
      %v5215 = vsel %vm301, %v5132, 0
      %v5218 = vsel %vm301, %v5133, 0
      %v5221 = vsel %vm301, %v5134, 0
      %v5224 = vsel %vm301, %v5135, 0
      %v5227 = vsel %vm301, %v5136, 0
      %v5230 = vsel %vm301, %v5137, 0
      %v5233 = vsel %vm301, %v5138, 0
      %v5236 = vsel %vm301, %v5139, 0
      %v5239 = vsel %vm301, %v5140, 0
      %v5242 = vsel %vm301, %v5141, 0
      %v5245 = vsel %vm301, %v5142, 0
      %v5248 = vsel %vm301, %v5143, 0
      %v5251 = vsel %vm301, %v5144, 0
      %v5254 = vsel %vm301, %v5145, 0
      %v5257 = vsel %vm301, %v5146, 0
      %v5260 = vsel %vm301, %v5147, 0
      %v5263 = vsel %vm301, %v5148, 0
      %v5266 = vsel %vm301, %v5149, 0
      %v5269 = vsel %vm301, %v5150, 0
      %v5272 = vsel %vm301, %v5151, 0
      %v5275 = vsel %vm301, %v5152, 0
      %v5278 = vsel %vm425, %v5153, 0
      %5280 = vmatprep.subr.mxu0 0.0
      %5281 = vmatpush1.msra.mxu0 %v5278
      %5282 = vmatprep.subr.mxu0 0.0
      %5283 = vmatpush1.msra.mxu0 0.0
      %5284 = vmatprep.subr.mxu0 0.0
      %5285 = vmatpush1.msra.mxu0 0.0
      %5286 = vmatprep.subr.mxu0 0.0
      %5287 = vmatpush1.msra.mxu0 0.0
      %5288 = vmatprep.subr.mxu0 0.0
      %5289 = vmatpush1.msra.mxu0 0.0
      %5290 = vmatprep.subr.mxu0 0.0
      %5291 = vmatpush1.msra.mxu0 0.0
      %5292 = vmatprep.subr.mxu0 0.0
      %5293 = vmatpush1.msra.mxu0 0.0
      %5294 = vmatprep.subr.mxu0 0.0
      %5295 = vmatpush1.msra.mxu0 0.0
      %5296 = vmatprep.subr.mxu0 0.0
      %5297 = vmatpush1.msra.mxu0 0.0
      %5298 = vmatprep.subr.mxu0 0.0
      %5299 = vmatpush1.msra.mxu0 0.0
      %5300 = vmatprep.subr.mxu0 0.0
      %5301 = vmatpush1.msra.mxu0 0.0
      %5302 = vmatprep.subr.mxu0 0.0
      %5303 = vmatpush1.msra.mxu0 0.0
      %5304 = vmatprep.subr.mxu0 0.0
      %5305 = vmatpush1.msra.mxu0 0.0
      %5306 = vmatprep.subr.mxu0 0.0
      %5307 = vmatpush1.msra.mxu0 0.0
      %5308 = vmatprep.subr.mxu0 0.0
      %5309 = vmatpush1.msra.mxu0 0.0
      %5310 = vmatprep.subr.mxu0 0.0
      %5311 = vmatpush1.msra.mxu0 0.0
      %5312 = vmatprep.subr.mxu0 0.0
      %5313 = vmatpush1.msra.mxu0 0.0
      %5314 = vmatprep.subr.mxu0 0.0
      %5315 = vmatpush1.msra.mxu0 0.0
      %5316 = vmatprep.subr.mxu0 0.0
      %5317 = vmatpush1.msra.mxu0 0.0
      %5318 = vmatprep.subr.mxu0 0.0
      %5319 = vmatpush1.msra.mxu0 0.0
      %5320 = vmatprep.subr.mxu0 0.0
      %5321 = vmatpush1.msra.mxu0 0.0
      %5322 = vmatprep.subr.mxu0 0.0
      %5323 = vmatpush1.msra.mxu0 0.0
      %5324 = vmatprep.subr.mxu0 0.0
      %5325 = vmatpush1.msra.mxu0 0.0
      %5326 = vmatprep.subr.mxu0 0.0
      %5327 = vmatpush1.msra.mxu0 0.0
      %5328 = vmatprep.subr.mxu0 0.0
      %5329 = vmatpush1.msra.mxu0 0.0
      %5330 = vmatprep.subr.mxu0 0.0
      %5331 = vmatpush1.msra.mxu0 0.0
      %5332 = vmatprep.subr.mxu0 0.0
      %5333 = vmatpush1.msra.mxu0 0.0
      %5334 = vmatprep.subr.mxu0 0.0
      %5335 = vmatpush1.msra.mxu0 0.0
      %5336 = vmatprep.subr.mxu0 0.0
      %5337 = vmatpush1.msra.mxu0 0.0
      %5338 = vmatprep.subr.mxu0 0.0
      %5339 = vmatpush1.msra.mxu0 0.0
      %5340 = vmatprep.subr.mxu0 0.0
      %5341 = vmatpush1.msra.mxu0 0.0
      %5342 = vmatprep.subr.mxu0 0.0
      %5343 = vmatpush1.msra.mxu0 0.0
      %5344 = vmatprep.mubr.f32.mxu0 0.0
      %5345 = vmatmul.mubr.f32.gmra.mrb[0].mxu0 %v5155
      %v5346 = vpop.f32.mrb[0].mxu0
      %v5347 = vadd.f32 0.0, %v5346
      %v5348 = vpop.f32.mrb[0].mxu0
      %5349 = vmatprep.mubr.f32.mxu0 0.0
      %5350 = vmatmul.mubr.f32.gmra.mrb[0].mxu0 %v5158
      %v5351 = vpop.f32.mrb[0].mxu0
      %v5352 = vadd.f32 0.0, %v5351
      %v5353 = vpop.f32.mrb[0].mxu0
      %5354 = vmatprep.mubr.f32.mxu0 0.0
      %5355 = vmatmul.mubr.f32.gmra.mrb[0].mxu0 %v5161
      %v5356 = vpop.f32.mrb[0].mxu0
      %v5357 = vadd.f32 0.0, %v5356
      %v5358 = vpop.f32.mrb[0].mxu0
      %5359 = vmatprep.mubr.f32.mxu0 0.0
      %5360 = vmatmul.mubr.f32.gmra.mrb[0].mxu0 %v5164
      %v5361 = vpop.f32.mrb[0].mxu0
      %v5362 = vadd.f32 0.0, %v5361
      %v5363 = vpop.f32.mrb[0].mxu0
      %5364 = vmatprep.mubr.f32.mxu0 0.0
      %5365 = vmatmul.mubr.f32.gmra.mrb[0].mxu0 %v5167
      %v5366 = vpop.f32.mrb[0].mxu0
      %v5367 = vadd.f32 0.0, %v5366
      %v5368 = vpop.f32.mrb[0].mxu0
      %5369 = vmatprep.mubr.f32.mxu0 0.0
      %5370 = vmatmul.mubr.f32.gmra.mrb[0].mxu0 %v5170
      %v5371 = vpop.f32.mrb[0].mxu0
      %v5372 = vadd.f32 0.0, %v5371
      %v5373 = vpop.f32.mrb[0].mxu0
      %5374 = vmatprep.mubr.f32.mxu0 0.0
      %5375 = vmatmul.mubr.f32.gmra.mrb[0].mxu0 %v5173
      %v5376 = vpop.f32.mrb[0].mxu0
      %v5377 = vadd.f32 0.0, %v5376
      %v5378 = vpop.f32.mrb[0].mxu0
      %5379 = vmatprep.mubr.f32.mxu0 0.0
      %5380 = vmatmul.mubr.f32.gmra.mrb[0].mxu0 %v5176
      %v5381 = vpop.f32.mrb[0].mxu0
      %v5382 = vadd.f32 0.0, %v5381
      %v5383 = vpop.f32.mrb[0].mxu0
      %5384 = vmatprep.mubr.f32.mxu0 0.0
      %5385 = vmatmul.mubr.f32.gmra.mrb[0].mxu0 %v5179
      %v5386 = vpop.f32.mrb[0].mxu0
      %v5387 = vadd.f32 0.0, %v5386
      %v5388 = vpop.f32.mrb[0].mxu0
      %5389 = vmatprep.mubr.f32.mxu0 0.0
      %5390 = vmatmul.mubr.f32.gmra.mrb[0].mxu0 %v5182
      %v5391 = vpop.f32.mrb[0].mxu0
      %v5392 = vadd.f32 0.0, %v5391
      %v5393 = vpop.f32.mrb[0].mxu0
      %5394 = vmatprep.mubr.f32.mxu0 0.0
      %5395 = vmatmul.mubr.f32.gmra.mrb[0].mxu0 %v5185
      %v5396 = vpop.f32.mrb[0].mxu0
      %v5397 = vadd.f32 0.0, %v5396
      %v5398 = vpop.f32.mrb[0].mxu0
      %5399 = vmatprep.mubr.f32.mxu0 0.0
      %5400 = vmatmul.mubr.f32.gmra.mrb[0].mxu0 %v5188
      %v5401 = vpop.f32.mrb[0].mxu0
      %v5402 = vadd.f32 0.0, %v5401
      %v5403 = vpop.f32.mrb[0].mxu0
      %5404 = vmatprep.mubr.f32.mxu0 0.0
      %5405 = vmatmul.mubr.f32.gmra.mrb[0].mxu0 %v5191
      %v5406 = vpop.f32.mrb[0].mxu0
      %v5407 = vadd.f32 0.0, %v5406
      %v5408 = vpop.f32.mrb[0].mxu0
      %5409 = vmatprep.mubr.f32.mxu0 0.0
      %5410 = vmatmul.mubr.f32.gmra.mrb[0].mxu0 %v5194
      %v5411 = vpop.f32.mrb[0].mxu0
      %v5412 = vadd.f32 0.0, %v5411
      %v5413 = vpop.f32.mrb[0].mxu0
      %5414 = vmatprep.mubr.f32.mxu0 0.0
      %5415 = vmatmul.mubr.f32.gmra.mrb[0].mxu0 %v5197
      %v5416 = vpop.f32.mrb[0].mxu0
      %v5417 = vadd.f32 0.0, %v5416
      %v5418 = vpop.f32.mrb[0].mxu0
      %5419 = vmatprep.mubr.f32.mxu0 0.0
      %5420 = vmatmul.mubr.f32.gmra.mrb[0].mxu0 %v5200
      %v5421 = vpop.f32.mrb[0].mxu0
      %v5422 = vadd.f32 0.0, %v5421
      %v5423 = vpop.f32.mrb[0].mxu0
      %5424 = vmatprep.mubr.f32.mxu0 0.0
      %5425 = vmatmul.mubr.f32.gmra.mrb[0].mxu0 %v5203
      %v5426 = vpop.f32.mrb[0].mxu0
      %v5427 = vadd.f32 0.0, %v5426
      %v5428 = vpop.f32.mrb[0].mxu0
      %5429 = vmatprep.mubr.f32.mxu0 0.0
      %5430 = vmatmul.mubr.f32.gmra.mrb[0].mxu0 %v5206
      %v5431 = vpop.f32.mrb[0].mxu0
      %v5432 = vadd.f32 0.0, %v5431
      %v5433 = vpop.f32.mrb[0].mxu0
      %5434 = vmatprep.mubr.f32.mxu0 0.0
      %5435 = vmatmul.mubr.f32.gmra.mrb[0].mxu0 %v5209
      %v5436 = vpop.f32.mrb[0].mxu0
      %v5437 = vadd.f32 0.0, %v5436
      %v5438 = vpop.f32.mrb[0].mxu0
      %5439 = vmatprep.mubr.f32.mxu0 0.0
      %5440 = vmatmul.mubr.f32.gmra.mrb[0].mxu0 %v5212
      %v5441 = vpop.f32.mrb[0].mxu0
      %v5442 = vadd.f32 0.0, %v5441
      %v5443 = vpop.f32.mrb[0].mxu0
      %5444 = vmatprep.mubr.f32.mxu0 0.0
      %5445 = vmatmul.mubr.f32.gmra.mrb[0].mxu0 %v5215
      %v5446 = vpop.f32.mrb[0].mxu0
      %v5447 = vadd.f32 0.0, %v5446
      %v5448 = vpop.f32.mrb[0].mxu0
      %5449 = vmatprep.mubr.f32.mxu0 0.0
      %5450 = vmatmul.mubr.f32.gmra.mrb[0].mxu0 %v5218
      %v5451 = vpop.f32.mrb[0].mxu0
      %v5452 = vadd.f32 0.0, %v5451
      %v5453 = vpop.f32.mrb[0].mxu0
      %5454 = vmatprep.mubr.f32.mxu0 0.0
      %5455 = vmatmul.mubr.f32.gmra.mrb[0].mxu0 %v5221
      %v5456 = vpop.f32.mrb[0].mxu0
      %v5457 = vadd.f32 0.0, %v5456
      %v5458 = vpop.f32.mrb[0].mxu0
      %5459 = vmatprep.mubr.f32.mxu0 0.0
      %5460 = vmatmul.mubr.f32.gmra.mrb[0].mxu0 %v5224
      %v5461 = vpop.f32.mrb[0].mxu0
      %v5462 = vadd.f32 0.0, %v5461
      %v5463 = vpop.f32.mrb[0].mxu0
      %5464 = vmatprep.mubr.f32.mxu0 0.0
      %5465 = vmatmul.mubr.f32.gmra.mrb[0].mxu0 %v5227
      %v5466 = vpop.f32.mrb[0].mxu0
      %v5467 = vadd.f32 0.0, %v5466
      %v5468 = vpop.f32.mrb[0].mxu0
      %5469 = vmatprep.mubr.f32.mxu0 0.0
      %5470 = vmatmul.mubr.f32.gmra.mrb[0].mxu0 %v5230
      %v5471 = vpop.f32.mrb[0].mxu0
      %v5472 = vadd.f32 0.0, %v5471
      %v5473 = vpop.f32.mrb[0].mxu0
      %5474 = vmatprep.mubr.f32.mxu0 0.0
      %5475 = vmatmul.mubr.f32.gmra.mrb[0].mxu0 %v5233
      %v5476 = vpop.f32.mrb[0].mxu0
      %v5477 = vadd.f32 0.0, %v5476
      %v5478 = vpop.f32.mrb[0].mxu0
      %5479 = vmatprep.mubr.f32.mxu0 0.0
      %5480 = vmatmul.mubr.f32.gmra.mrb[0].mxu0 %v5236
      %v5481 = vpop.f32.mrb[0].mxu0
      %v5482 = vadd.f32 0.0, %v5481
      %v5483 = vpop.f32.mrb[0].mxu0
      %5484 = vmatprep.mubr.f32.mxu0 0.0
      %5485 = vmatmul.mubr.f32.gmra.mrb[0].mxu0 %v5239
      %v5486 = vpop.f32.mrb[0].mxu0
      %v5487 = vadd.f32 0.0, %v5486
      %v5488 = vpop.f32.mrb[0].mxu0
      %5489 = vmatprep.mubr.f32.mxu0 0.0
      %5490 = vmatmul.mubr.f32.gmra.mrb[0].mxu0 %v5242
      %v5491 = vpop.f32.mrb[0].mxu0
      %v5492 = vadd.f32 0.0, %v5491
      %v5493 = vpop.f32.mrb[0].mxu0
      %5494 = vmatprep.mubr.f32.mxu0 0.0
      %5495 = vmatmul.mubr.f32.gmra.mrb[0].mxu0 %v5245
      %v5496 = vpop.f32.mrb[0].mxu0
      %v5497 = vadd.f32 0.0, %v5496
      %v5498 = vpop.f32.mrb[0].mxu0
      %5499 = vmatprep.mubr.f32.mxu0 0.0
      %5500 = vmatmul.mubr.f32.gmra.mrb[0].mxu0 %v5248
      %v5501 = vpop.f32.mrb[0].mxu0
      %v5502 = vadd.f32 0.0, %v5501
      %v5503 = vpop.f32.mrb[0].mxu0
      %5504 = vmatprep.mubr.f32.mxu0 0.0
      %5505 = vmatmul.mubr.f32.gmra.mrb[0].mxu0 %v5251
      %v5506 = vpop.f32.mrb[0].mxu0
      %v5507 = vadd.f32 0.0, %v5506
      %v5508 = vpop.f32.mrb[0].mxu0
      %5509 = vmatprep.mubr.f32.mxu0 0.0
      %5510 = vmatmul.mubr.f32.gmra.mrb[0].mxu0 %v5254
      %v5511 = vpop.f32.mrb[0].mxu0
      %v5512 = vadd.f32 0.0, %v5511
      %v5513 = vpop.f32.mrb[0].mxu0
      %5514 = vmatprep.mubr.f32.mxu0 0.0
      %5515 = vmatmul.mubr.f32.gmra.mrb[0].mxu0 %v5257
      %v5516 = vpop.f32.mrb[0].mxu0
      %v5517 = vadd.f32 0.0, %v5516
      %v5518 = vpop.f32.mrb[0].mxu0
      %5519 = vmatprep.mubr.f32.mxu0 0.0
      %5520 = vmatmul.mubr.f32.gmra.mrb[0].mxu0 %v5260
      %v5521 = vpop.f32.mrb[0].mxu0
      %v5522 = vadd.f32 0.0, %v5521
      %v5523 = vpop.f32.mrb[0].mxu0
      %5524 = vmatprep.mubr.f32.mxu0 0.0
      %5525 = vmatmul.mubr.f32.gmra.mrb[0].mxu0 %v5263
      %v5526 = vpop.f32.mrb[0].mxu0
      %v5527 = vadd.f32 0.0, %v5526
      %v5528 = vpop.f32.mrb[0].mxu0
      %5529 = vmatprep.mubr.f32.mxu0 0.0
      %5530 = vmatmul.mubr.f32.gmra.mrb[0].mxu0 %v5266
      %v5531 = vpop.f32.mrb[0].mxu0
      %v5532 = vadd.f32 0.0, %v5531
      %v5533 = vpop.f32.mrb[0].mxu0
      %5534 = vmatprep.mubr.f32.mxu0 0.0
      %5535 = vmatmul.mubr.f32.gmra.mrb[0].mxu0 %v5269
      %v5536 = vpop.f32.mrb[0].mxu0
      %v5537 = vadd.f32 0.0, %v5536
      %v5538 = vpop.f32.mrb[0].mxu0
      %5539 = vmatprep.mubr.f32.mxu0 0.0
      %5540 = vmatmul.mubr.f32.gmra.mrb[0].mxu0 %v5272
      %v5541 = vpop.f32.mrb[0].mxu0
      %v5542 = vadd.f32 0.0, %v5541
      %v5543 = vpop.f32.mrb[0].mxu0
      %5544 = vmatprep.mubr.f32.mxu0 0.0
      %5545 = vmatmul.mubr.f32.gmra.mrb[0].mxu0 %v5275
      %v5546 = vpop.f32.mrb[0].mxu0
      %v5547 = vadd.f32 0.0, %v5546
      %v5548 = vpop.f32.mrb[0].mxu0
      %5549 = vdwg.mxu0
      %v5550 = vadd.f32 %v5071, %v5347
      %v5551 = vadd.f32 %v5072, %v5352
      %v5552 = vadd.f32 %v5073, %v5357
      %v5553 = vadd.f32 %v5074, %v5362
      %v5554 = vadd.f32 %v5075, %v5367
      %v5555 = vadd.f32 %v5076, %v5372
      %v5556 = vadd.f32 %v5077, %v5377
      %v5557 = vadd.f32 %v5078, %v5382
      %v5558 = vadd.f32 %v5079, %v5387
      %v5559 = vadd.f32 %v5080, %v5392
      %v5560 = vadd.f32 %v5081, %v5397
      %v5561 = vadd.f32 %v5082, %v5402
      %v5562 = vadd.f32 %v5083, %v5407
      %v5563 = vadd.f32 %v5084, %v5412
      %v5564 = vadd.f32 %v5085, %v5417
      %v5565 = vadd.f32 %v5086, %v5422
      %v5566 = vadd.f32 %v5087, %v5427
      %v5567 = vadd.f32 %v5088, %v5432
      %v5568 = vadd.f32 %v5089, %v5437
      %v5569 = vadd.f32 %v5090, %v5442
      %v5570 = vadd.f32 %v5091, %v5447
      %v5571 = vadd.f32 %v5092, %v5452
      %v5572 = vadd.f32 %v5093, %v5457
      %v5573 = vadd.f32 %v5094, %v5462
      %v5574 = vadd.f32 %v5095, %v5467
      %v5575 = vadd.f32 %v5096, %v5472
      %v5576 = vadd.f32 %v5097, %v5477
      %v5577 = vadd.f32 %v5098, %v5482
      %v5578 = vadd.f32 %v5099, %v5487
      %v5579 = vadd.f32 %v5100, %v5492
      %v5580 = vadd.f32 %v5101, %v5497
      %v5581 = vadd.f32 %v5102, %v5502
      %v5582 = vadd.f32 %v5103, %v5507
      %v5583 = vadd.f32 %v5104, %v5512
      %v5584 = vadd.f32 %v5105, %v5517
      %v5585 = vadd.f32 %v5106, %v5522
      %v5586 = vadd.f32 %v5107, %v5527
      %v5587 = vadd.f32 %v5108, %v5532
      %v5588 = vadd.f32 %v5109, %v5537
      %v5589 = vadd.f32 %v5110, %v5542
      %v5590 = vadd.f32 %v5111, %v5547
      %v5591 = vld [vmem:[%s5] sm:$0x1]
      %v5593 = vlaneseq
      %v5594 = vshrl.u32 %v5593, 7
      %v5595 = vsub.s32 0, %v5594
      %v5596 = vrot.slane %v5591, %v5595
      %v5598 = vadd.f32 %v5550, %v5596
      %v5599 = vadd.f32 %v5551, %v5596
      %v5600 = vadd.f32 %v5552, %v5596
      %v5601 = vadd.f32 %v5553, %v5596
      %v5602 = vadd.f32 %v5554, %v5596
      %v5603 = vadd.f32 %v5555, %v5596
      %v5604 = vadd.f32 %v5556, %v5596
      %v5605 = vadd.f32 %v5557, %v5596
      %v5606 = vadd.f32 %v5558, %v5596
      %v5607 = vadd.f32 %v5559, %v5596
      %v5608 = vadd.f32 %v5560, %v5596
      %v5609 = vadd.f32 %v5561, %v5596
      %v5610 = vadd.f32 %v5562, %v5596
      %v5611 = vadd.f32 %v5563, %v5596
      %v5612 = vadd.f32 %v5564, %v5596
      %v5613 = vadd.f32 %v5565, %v5596
      %v5614 = vadd.f32 %v5566, %v5596
      %v5615 = vadd.f32 %v5567, %v5596
      %v5616 = vadd.f32 %v5568, %v5596
      %v5617 = vadd.f32 %v5569, %v5596
      %v5618 = vadd.f32 %v5570, %v5596
      %v5619 = vadd.f32 %v5571, %v5596
      %v5620 = vadd.f32 %v5572, %v5596
      %v5621 = vadd.f32 %v5573, %v5596
      %v5622 = vadd.f32 %v5574, %v5596
      %v5623 = vadd.f32 %v5575, %v5596
      %v5624 = vadd.f32 %v5576, %v5596
      %v5625 = vadd.f32 %v5577, %v5596
      %v5626 = vadd.f32 %v5578, %v5596
      %v5627 = vadd.f32 %v5579, %v5596
      %v5628 = vadd.f32 %v5580, %v5596
      %v5629 = vadd.f32 %v5581, %v5596
      %v5630 = vadd.f32 %v5582, %v5596
      %v5631 = vadd.f32 %v5583, %v5596
      %v5632 = vadd.f32 %v5584, %v5596
      %v5633 = vadd.f32 %v5585, %v5596
      %v5634 = vadd.f32 %v5586, %v5596
      %v5635 = vadd.f32 %v5587, %v5596
      %v5636 = vadd.f32 %v5588, %v5596
      %v5637 = vadd.f32 %v5589, %v5596
      %v5638 = vadd.f32 %v5590, %v5596
      %v5639 = vxor.u32 %v5598, 2147483648
      %v5640 = vxor.u32 %v5599, 2147483648
      %v5641 = vxor.u32 %v5600, 2147483648
      %v5642 = vxor.u32 %v5601, 2147483648
      %v5643 = vxor.u32 %v5602, 2147483648
      %v5644 = vxor.u32 %v5603, 2147483648
      %v5645 = vxor.u32 %v5604, 2147483648
      %v5646 = vxor.u32 %v5605, 2147483648
      %v5647 = vxor.u32 %v5606, 2147483648
      %v5648 = vxor.u32 %v5607, 2147483648
      %v5649 = vxor.u32 %v5608, 2147483648
      %v5650 = vxor.u32 %v5609, 2147483648
      %v5651 = vxor.u32 %v5610, 2147483648
      %v5652 = vxor.u32 %v5611, 2147483648
      %v5653 = vxor.u32 %v5612, 2147483648
      %v5654 = vxor.u32 %v5613, 2147483648
      %v5655 = vxor.u32 %v5614, 2147483648
      %v5656 = vxor.u32 %v5615, 2147483648
      %v5657 = vxor.u32 %v5616, 2147483648
      %v5658 = vxor.u32 %v5617, 2147483648
      %v5659 = vxor.u32 %v5618, 2147483648
      %v5660 = vxor.u32 %v5619, 2147483648
      %v5661 = vxor.u32 %v5620, 2147483648
      %v5662 = vxor.u32 %v5621, 2147483648
      %v5663 = vxor.u32 %v5622, 2147483648
      %v5664 = vxor.u32 %v5623, 2147483648
      %v5665 = vxor.u32 %v5624, 2147483648
      %v5666 = vxor.u32 %v5625, 2147483648
      %v5667 = vxor.u32 %v5626, 2147483648
      %v5668 = vxor.u32 %v5627, 2147483648
      %v5669 = vxor.u32 %v5628, 2147483648
      %v5670 = vxor.u32 %v5629, 2147483648
      %v5671 = vxor.u32 %v5630, 2147483648
      %v5672 = vxor.u32 %v5631, 2147483648
      %v5673 = vxor.u32 %v5632, 2147483648
      %v5674 = vxor.u32 %v5633, 2147483648
      %v5675 = vxor.u32 %v5634, 2147483648
      %v5676 = vxor.u32 %v5635, 2147483648
      %v5677 = vxor.u32 %v5636, 2147483648
      %v5678 = vxor.u32 %v5637, 2147483648
      %v5679 = vxor.u32 %v5638, 2147483648
      %v5680 = vmul.f32 %v5639, 1.442695
      %v5681 = vpow.pop %v5680
      %v5682 = vmul.f32 %v5640, 1.442695
      %v5683 = vpow.pop %v5682
      %v5684 = vmul.f32 %v5641, 1.442695
      %v5685 = vpow.pop %v5684
      %v5686 = vmul.f32 %v5642, 1.442695
      %v5687 = vpow.pop %v5686
      %v5688 = vmul.f32 %v5643, 1.442695
      %v5689 = vpow.pop %v5688
      %v5690 = vmul.f32 %v5644, 1.442695
      %v5691 = vpow.pop %v5690
      %v5692 = vmul.f32 %v5645, 1.442695
      %v5693 = vpow.pop %v5692
      %v5694 = vmul.f32 %v5646, 1.442695
      %v5695 = vpow.pop %v5694
      %v5696 = vmul.f32 %v5647, 1.442695
      %v5697 = vpow.pop %v5696
      %v5698 = vmul.f32 %v5648, 1.442695
      %v5699 = vpow.pop %v5698
      %v5700 = vmul.f32 %v5649, 1.442695
      %v5701 = vpow.pop %v5700
      %v5702 = vmul.f32 %v5650, 1.442695
      %v5703 = vpow.pop %v5702
      %v5704 = vmul.f32 %v5651, 1.442695
      %v5705 = vpow.pop %v5704
      %v5706 = vmul.f32 %v5652, 1.442695
      %v5707 = vpow.pop %v5706
      %v5708 = vmul.f32 %v5653, 1.442695
      %v5709 = vpow.pop %v5708
      %v5710 = vmul.f32 %v5654, 1.442695
      %v5711 = vpow.pop %v5710
      %v5712 = vmul.f32 %v5655, 1.442695
      %v5713 = vpow.pop %v5712
      %v5714 = vmul.f32 %v5656, 1.442695
      %v5715 = vpow.pop %v5714
      %v5716 = vmul.f32 %v5657, 1.442695
      %v5717 = vpow.pop %v5716
      %v5718 = vmul.f32 %v5658, 1.442695
      %v5719 = vpow.pop %v5718
      %v5720 = vmul.f32 %v5659, 1.442695
      %v5721 = vpow.pop %v5720
      %v5722 = vmul.f32 %v5660, 1.442695
      %v5723 = vpow.pop %v5722
      %v5724 = vmul.f32 %v5661, 1.442695
      %v5725 = vpow.pop %v5724
      %v5726 = vmul.f32 %v5662, 1.442695
      %v5727 = vpow.pop %v5726
      %v5728 = vmul.f32 %v5663, 1.442695
      %v5729 = vpow.pop %v5728
      %v5730 = vmul.f32 %v5664, 1.442695
      %v5731 = vpow.pop %v5730
      %v5732 = vmul.f32 %v5665, 1.442695
      %v5733 = vpow.pop %v5732
      %v5734 = vmul.f32 %v5666, 1.442695
      %v5735 = vpow.pop %v5734
      %v5736 = vmul.f32 %v5667, 1.442695
      %v5737 = vpow.pop %v5736
      %v5738 = vmul.f32 %v5668, 1.442695
      %v5739 = vpow.pop %v5738
      %v5740 = vmul.f32 %v5669, 1.442695
      %v5741 = vpow.pop %v5740
      %v5742 = vmul.f32 %v5670, 1.442695
      %v5743 = vpow.pop %v5742
      %v5744 = vmul.f32 %v5671, 1.442695
      %v5745 = vpow.pop %v5744
      %v5746 = vmul.f32 %v5672, 1.442695
      %v5747 = vpow.pop %v5746
      %v5748 = vmul.f32 %v5673, 1.442695
      %v5749 = vpow.pop %v5748
      %v5750 = vmul.f32 %v5674, 1.442695
      %v5751 = vpow.pop %v5750
      %v5752 = vmul.f32 %v5675, 1.442695
      %v5753 = vpow.pop %v5752
      %v5754 = vmul.f32 %v5676, 1.442695
      %v5755 = vpow.pop %v5754
      %v5756 = vmul.f32 %v5677, 1.442695
      %v5757 = vpow.pop %v5756
      %v5758 = vmul.f32 %v5678, 1.442695
      %v5759 = vpow.pop %v5758
      %v5760 = vmul.f32 %v5679, 1.442695
      %v5761 = vpow.pop %v5760
      %v5762 = vadd.f32 %v5681, 1.0
      %v5763 = vadd.f32 %v5683, 1.0
      %v5764 = vadd.f32 %v5685, 1.0
      %v5765 = vadd.f32 %v5687, 1.0
      %v5766 = vadd.f32 %v5689, 1.0
      %v5767 = vadd.f32 %v5691, 1.0
      %v5768 = vadd.f32 %v5693, 1.0
      %v5769 = vadd.f32 %v5695, 1.0
      %v5770 = vadd.f32 %v5697, 1.0
      %v5771 = vadd.f32 %v5699, 1.0
      %v5772 = vadd.f32 %v5701, 1.0
      %v5773 = vadd.f32 %v5703, 1.0
      %v5774 = vadd.f32 %v5705, 1.0
      %v5775 = vadd.f32 %v5707, 1.0
      %v5776 = vadd.f32 %v5709, 1.0
      %v5777 = vadd.f32 %v5711, 1.0
      %v5778 = vadd.f32 %v5713, 1.0
      %v5779 = vadd.f32 %v5715, 1.0
      %v5780 = vadd.f32 %v5717, 1.0
      %v5781 = vadd.f32 %v5719, 1.0
      %v5782 = vadd.f32 %v5721, 1.0
      %v5783 = vadd.f32 %v5723, 1.0
      %v5784 = vadd.f32 %v5725, 1.0
      %v5785 = vadd.f32 %v5727, 1.0
      %v5786 = vadd.f32 %v5729, 1.0
      %v5787 = vadd.f32 %v5731, 1.0
      %v5788 = vadd.f32 %v5733, 1.0
      %v5789 = vadd.f32 %v5735, 1.0
      %v5790 = vadd.f32 %v5737, 1.0
      %v5791 = vadd.f32 %v5739, 1.0
      %v5792 = vadd.f32 %v5741, 1.0
      %v5793 = vadd.f32 %v5743, 1.0
      %v5794 = vadd.f32 %v5745, 1.0
      %v5795 = vadd.f32 %v5747, 1.0
      %v5796 = vadd.f32 %v5749, 1.0
      %v5797 = vadd.f32 %v5751, 1.0
      %v5798 = vadd.f32 %v5753, 1.0
      %v5799 = vadd.f32 %v5755, 1.0
      %v5800 = vadd.f32 %v5757, 1.0
      %v5801 = vadd.f32 %v5759, 1.0
      %v5802 = vadd.f32 %v5761, 1.0
      %v5803 = vrcp.pop %v5762
      %v5804 = vmul.f32 1.0, %v5803
      %v5805 = vrcp.pop %v5763
      %v5806 = vmul.f32 1.0, %v5805
      %v5807 = vrcp.pop %v5764
      %v5808 = vmul.f32 1.0, %v5807
      %v5809 = vrcp.pop %v5765
      %v5810 = vmul.f32 1.0, %v5809
      %v5811 = vrcp.pop %v5766
      %v5812 = vmul.f32 1.0, %v5811
      %v5813 = vrcp.pop %v5767
      %v5814 = vmul.f32 1.0, %v5813
      %v5815 = vrcp.pop %v5768
      %v5816 = vmul.f32 1.0, %v5815
      %v5817 = vrcp.pop %v5769
      %v5818 = vmul.f32 1.0, %v5817
      %v5819 = vrcp.pop %v5770
      %v5820 = vmul.f32 1.0, %v5819
      %v5821 = vrcp.pop %v5771
      %v5822 = vmul.f32 1.0, %v5821
      %v5823 = vrcp.pop %v5772
      %v5824 = vmul.f32 1.0, %v5823
      %v5825 = vrcp.pop %v5773
      %v5826 = vmul.f32 1.0, %v5825
      %v5827 = vrcp.pop %v5774
      %v5828 = vmul.f32 1.0, %v5827
      %v5829 = vrcp.pop %v5775
      %v5830 = vmul.f32 1.0, %v5829
      %v5831 = vrcp.pop %v5776
      %v5832 = vmul.f32 1.0, %v5831
      %v5833 = vrcp.pop %v5777
      %v5834 = vmul.f32 1.0, %v5833
      %v5835 = vrcp.pop %v5778
      %v5836 = vmul.f32 1.0, %v5835
      %v5837 = vrcp.pop %v5779
      %v5838 = vmul.f32 1.0, %v5837
      %v5839 = vrcp.pop %v5780
      %v5840 = vmul.f32 1.0, %v5839
      %v5841 = vrcp.pop %v5781
      %v5842 = vmul.f32 1.0, %v5841
      %v5843 = vrcp.pop %v5782
      %v5844 = vmul.f32 1.0, %v5843
      %v5845 = vrcp.pop %v5783
      %v5846 = vmul.f32 1.0, %v5845
      %v5847 = vrcp.pop %v5784
      %v5848 = vmul.f32 1.0, %v5847
      %v5849 = vrcp.pop %v5785
      %v5850 = vmul.f32 1.0, %v5849
      %v5851 = vrcp.pop %v5786
      %v5852 = vmul.f32 1.0, %v5851
      %v5853 = vrcp.pop %v5787
      %v5854 = vmul.f32 1.0, %v5853
      %v5855 = vrcp.pop %v5788
      %v5856 = vmul.f32 1.0, %v5855
      %v5857 = vrcp.pop %v5789
      %v5858 = vmul.f32 1.0, %v5857
      %v5859 = vrcp.pop %v5790
      %v5860 = vmul.f32 1.0, %v5859
      %v5861 = vrcp.pop %v5791
      %v5862 = vmul.f32 1.0, %v5861
      %v5863 = vrcp.pop %v5792
      %v5864 = vmul.f32 1.0, %v5863
      %v5865 = vrcp.pop %v5793
      %v5866 = vmul.f32 1.0, %v5865
      %v5867 = vrcp.pop %v5794
      %v5868 = vmul.f32 1.0, %v5867
      %v5869 = vrcp.pop %v5795
      %v5870 = vmul.f32 1.0, %v5869
      %v5871 = vrcp.pop %v5796
      %v5872 = vmul.f32 1.0, %v5871
      %v5873 = vrcp.pop %v5797
      %v5874 = vmul.f32 1.0, %v5873
      %v5875 = vrcp.pop %v5798
      %v5876 = vmul.f32 1.0, %v5875
      %v5877 = vrcp.pop %v5799
      %v5878 = vmul.f32 1.0, %v5877
      %v5879 = vrcp.pop %v5800
      %v5880 = vmul.f32 1.0, %v5879
      %v5881 = vrcp.pop %v5801
      %v5882 = vmul.f32 1.0, %v5881
      %v5883 = vrcp.pop %v5802
      %v5884 = vmul.f32 1.0, %v5883
      %v5885 = vmul.f32 %v5598, %v5804
      %v5886 = vmul.f32 %v5599, %v5806
      %v5887 = vmul.f32 %v5600, %v5808
      %v5888 = vmul.f32 %v5601, %v5810
      %v5889 = vmul.f32 %v5602, %v5812
      %v5890 = vmul.f32 %v5603, %v5814
      %v5891 = vmul.f32 %v5604, %v5816
      %v5892 = vmul.f32 %v5605, %v5818
      %v5893 = vmul.f32 %v5606, %v5820
      %v5894 = vmul.f32 %v5607, %v5822
      %v5895 = vmul.f32 %v5608, %v5824
      %v5896 = vmul.f32 %v5609, %v5826
      %v5897 = vmul.f32 %v5610, %v5828
      %v5898 = vmul.f32 %v5611, %v5830
      %v5899 = vmul.f32 %v5612, %v5832
      %v5900 = vmul.f32 %v5613, %v5834
      %v5901 = vmul.f32 %v5614, %v5836
      %v5902 = vmul.f32 %v5615, %v5838
      %v5903 = vmul.f32 %v5616, %v5840
      %v5904 = vmul.f32 %v5617, %v5842
      %v5905 = vmul.f32 %v5618, %v5844
      %v5906 = vmul.f32 %v5619, %v5846
      %v5907 = vmul.f32 %v5620, %v5848
      %v5908 = vmul.f32 %v5621, %v5850
      %v5909 = vmul.f32 %v5622, %v5852
      %v5910 = vmul.f32 %v5623, %v5854
      %v5911 = vmul.f32 %v5624, %v5856
      %v5912 = vmul.f32 %v5625, %v5858
      %v5913 = vmul.f32 %v5626, %v5860
      %v5914 = vmul.f32 %v5627, %v5862
      %v5915 = vmul.f32 %v5628, %v5864
      %v5916 = vmul.f32 %v5629, %v5866
      %v5917 = vmul.f32 %v5630, %v5868
      %v5918 = vmul.f32 %v5631, %v5870
      %v5919 = vmul.f32 %v5632, %v5872
      %v5920 = vmul.f32 %v5633, %v5874
      %v5921 = vmul.f32 %v5634, %v5876
      %v5922 = vmul.f32 %v5635, %v5878
      %v5923 = vmul.f32 %v5636, %v5880
      %v5924 = vmul.f32 %v5637, %v5882
      %v5925 = vmul.f32 %v5638, %v5884
      %v5926 = vadd.f32 %v5885, %v252
      %v5927 = vadd.f32 %v5886, %v253
      %v5928 = vadd.f32 %v5887, %v254
      %v5929 = vadd.f32 %v5888, %v255
      %v5930 = vadd.f32 %v5889, %v256
      %v5931 = vadd.f32 %v5890, %v257
      %v5932 = vadd.f32 %v5891, %v258
      %v5933 = vadd.f32 %v5892, %v259
      %v5934 = vadd.f32 %v5893, %v260
      %v5935 = vadd.f32 %v5894, %v261
      %v5936 = vadd.f32 %v5895, %v262
      %v5937 = vadd.f32 %v5896, %v263
      %v5938 = vadd.f32 %v5897, %v264
      %v5939 = vadd.f32 %v5898, %v265
      %v5940 = vadd.f32 %v5899, %v266
      %v5941 = vadd.f32 %v5900, %v267
      %v5942 = vadd.f32 %v5901, %v268
      %v5943 = vadd.f32 %v5902, %v269
      %v5944 = vadd.f32 %v5903, %v270
      %v5945 = vadd.f32 %v5904, %v271
      %v5946 = vadd.f32 %v5905, %v272
      %v5947 = vadd.f32 %v5906, %v273
      %v5948 = vadd.f32 %v5907, %v274
      %v5949 = vadd.f32 %v5908, %v275
      %v5950 = vadd.f32 %v5909, %v276
      %v5951 = vadd.f32 %v5910, %v277
      %v5952 = vadd.f32 %v5911, %v278
      %v5953 = vadd.f32 %v5912, %v279
      %v5954 = vadd.f32 %v5913, %v280
      %v5955 = vadd.f32 %v5914, %v281
      %v5956 = vadd.f32 %v5915, %v282
      %v5957 = vadd.f32 %v5916, %v283
      %v5958 = vadd.f32 %v5917, %v284
      %v5959 = vadd.f32 %v5918, %v285
      %v5960 = vadd.f32 %v5919, %v286
      %v5961 = vadd.f32 %v5920, %v287
      %v5962 = vadd.f32 %v5921, %v288
      %v5963 = vadd.f32 %v5922, %v289
      %v5964 = vadd.f32 %v5923, %v290
      %v5965 = vadd.f32 %v5924, %v291
      %v5966 = vadd.f32 %v5925, %v292
      %5967 = vst.msk [vmem:[%s251] sm:$0xff] %vm301, %v5926
      %5968 = vst.msk [vmem:[%s251 + $0x8] sm:$0xff] %vm301, %v5927
      %5969 = vst.msk [vmem:[%s251 + $0x10] sm:$0xff] %vm301, %v5928
      %5970 = vst.msk [vmem:[%s251 + $0x18] sm:$0xff] %vm301, %v5929
      %5971 = vst.msk [vmem:[%s251 + $0x20] sm:$0xff] %vm301, %v5930
      %5972 = vst.msk [vmem:[%s251 + $0x28] sm:$0xff] %vm301, %v5931
      %5973 = vst.msk [vmem:[%s251 + $0x30] sm:$0xff] %vm301, %v5932
      %5974 = vst.msk [vmem:[%s251 + $0x38] sm:$0xff] %vm301, %v5933
      %5975 = vst.msk [vmem:[%s251 + $0x40] sm:$0xff] %vm301, %v5934
      %5976 = vst.msk [vmem:[%s251 + $0x48] sm:$0xff] %vm301, %v5935
      %5977 = vst.msk [vmem:[%s251 + $0x50] sm:$0xff] %vm301, %v5936
      %5978 = vst.msk [vmem:[%s251 + $0x58] sm:$0xff] %vm301, %v5937
      %5979 = vst.msk [vmem:[%s251 + $0x60] sm:$0xff] %vm301, %v5938
      %5980 = vst.msk [vmem:[%s251 + $0x68] sm:$0xff] %vm301, %v5939
      %5981 = vst.msk [vmem:[%s251 + $0x70] sm:$0xff] %vm301, %v5940
      %5982 = vst.msk [vmem:[%s251 + $0x78] sm:$0xff] %vm301, %v5941
      %5983 = vst.msk [vmem:[%s251 + $0x80] sm:$0xff] %vm301, %v5942
      %5984 = vst.msk [vmem:[%s251 + $0x88] sm:$0xff] %vm301, %v5943
      %5985 = vst.msk [vmem:[%s251 + $0x90] sm:$0xff] %vm301, %v5944
      %5986 = vst.msk [vmem:[%s251 + $0x98] sm:$0xff] %vm301, %v5945
      %5987 = vst.msk [vmem:[%s251 + $0xa0] sm:$0xff] %vm301, %v5946
      %5988 = vst.msk [vmem:[%s251 + $0xa8] sm:$0xff] %vm301, %v5947
      %5989 = vst.msk [vmem:[%s251 + $0xb0] sm:$0xff] %vm301, %v5948
      %5990 = vst.msk [vmem:[%s251 + $0xb8] sm:$0xff] %vm301, %v5949
      %5991 = vst.msk [vmem:[%s251 + $0xc0] sm:$0xff] %vm301, %v5950
      %5992 = vst.msk [vmem:[%s251 + $0xc8] sm:$0xff] %vm301, %v5951
      %5993 = vst.msk [vmem:[%s251 + $0xd0] sm:$0xff] %vm301, %v5952
      %5994 = vst.msk [vmem:[%s251 + $0xd8] sm:$0xff] %vm301, %v5953
      %5995 = vst.msk [vmem:[%s251 + $0xe0] sm:$0xff] %vm301, %v5954
      %5996 = vst.msk [vmem:[%s251 + $0xe8] sm:$0xff] %vm301, %v5955
      %5997 = vst.msk [vmem:[%s251 + $0xf0] sm:$0xff] %vm301, %v5956
      %5998 = vst.msk [vmem:[%s251 + $0xf8] sm:$0xff] %vm301, %v5957
      %5999 = vst.msk [vmem:[%s251 + $0x100] sm:$0xff] %vm301, %v5958
      %6000 = vst.msk [vmem:[%s251 + $0x108] sm:$0xff] %vm301, %v5959
      %6001 = vst.msk [vmem:[%s251 + $0x110] sm:$0xff] %vm301, %v5960
      %6002 = vst.msk [vmem:[%s251 + $0x118] sm:$0xff] %vm301, %v5961
      %6003 = vst.msk [vmem:[%s251 + $0x120] sm:$0xff] %vm301, %v5962
      %6004 = vst.msk [vmem:[%s251 + $0x128] sm:$0xff] %vm301, %v5963
      %6005 = vst.msk [vmem:[%s251 + $0x130] sm:$0xff] %vm301, %v5964
      %6006 = vst.msk [vmem:[%s251 + $0x138] sm:$0xff] %vm301, %v5965
      %6007 = vst.msk [vmem:[%s251 + $0x140] sm:$0xf] %vm1360, %v5966
      %p6008 = scmp.lt.s32.totalorder %s17, 1
      %s6009 = scalar_select %p6008, %s17, 1
      %s6010 = smul.addr %s6009, 41
      %s6011 = smul.addr %s6010, 8
      %s6012 = scalar_lea.vmem %s6, %s6011
      // Predicated region
      $region45: #{c3_forward.4} parent=43 // pred_check
        %p6013 = pneg %p166
      $region46: #{c3_forward.4} parent=43 // pred_check_branch
        %6015 = sbr.rel (%p6013) target = $region48
      $region47: #{c3_forward.4} parent=43 // pred_region
        _
      $region48: #{c3_forward.4} parent=43 // pred_fallthru
        _
    $region44: #{c3_forward.4} parent=5 // pred_fallthru
      _
    %p6016 = scmp.le.s32.totalorder 2, %s12
    // Predicated region
    $region49: #{c3_forward.4} parent=5 // pred_check
      %p6017 = pneg %p6016
    $region50: #{c3_forward.4} parent=5 // pred_check_branch
      %6019 = sbr.rel (%p6017) target = $region52
    $region51: #{c3_forward.4} parent=5 // pred_region
      %s6020 = ssub.s32 %s12, 2
      // Predicated region
      $region53: #{c3_forward.4} parent=51 // pred_check
        %p6021 = pneg %p172
      $region54: #{c3_forward.4} parent=51 // pred_check_branch
        %6023 = sbr.rel (%p6021) target = $region56
      $region55: #{c3_forward.4} parent=51 // pred_region
        %p6024 = scmp.lt.s32.totalorder %s18, 1
        %s6025 = scalar_select %p6024, %s18, 1
        %s6026 = smul.addr %s6025, 41
        %s6027 = smul.addr %s6026, 8
        %s6028 = scalar_lea.vmem %s6, %s6027
      $region56: #{c3_forward.4} parent=51 // pred_fallthru
        _
    $region52: #{c3_forward.4} parent=5 // pred_fallthru
      _
  $region6: #{c3_forward.4} parent=0 // loop_footer
    %s16 = sadd.s32 1, %s12
  $region7: #{c3_forward.4} parent=0 // loop_footer_branch
    %11 = sbr.rel target = $region3
  $region8: #{c3_forward.4} parent=0 // loop_exit
    _

</llo_original>
